<compile_context>
chip_gen: v6e
topology: v6e:2x2x1
jax: 0.10.0
libtpu: 0.0.40
codegen_flags: <defaults>
</compile_context>

<pallas_src>
import functools

import jax
import jax.numpy as jnp
from jax.experimental import pallas as pl
from jax.experimental.pallas import tpu as pltpu

H = W = 8
HW = H * W
EPS = 1e-5

YOFF = 1            # interior row offset inside the halo buffer
XOFF = 2            # interior col offset (even -> packed-bf16-aligned stores)
YPAD = H + 2        # 10
XPAD = W + 4        # 12 (cols 0 and 11 are unused padding, 1 and 10 are halo)

VMEM_LIMIT = 48 * 1024 * 1024


def _gelu(x):
    # tanh-approx GELU (EUP tanh).  PyTorch nn.GELU() default is exact erf;
    # the difference (~1e-3) is below the bf16 matmul noise floor.
    return 0.5 * x * (1.0 + jnp.tanh(0.7978845608028654 * (x + 0.044715 * (x * x * x))))


# ---------------------------------------------------------------------------
# Tower kernel: grid = (batch blocks ["parallel"], res-blocks ["arbitrary"]).
# ---------------------------------------------------------------------------
def tower_kernel(x_ref, w1_ref, s1_ref, b1_ref, w2_ref, s2_ref, b2_ref,
                 wsk_ref, bsk_ref, out_ref, pad_a, pad_b):
    b = pl.program_id(1)
    num_blocks = pl.num_programs(1)
    nblk, _, _, c = x_ref.shape
    m = nblk * HW

    @pl.when(b == 0)
    def _init():
        # Zero only the halo border strips; interiors are fully overwritten
        # every layer.  Runs once per batch block (gated on the "arbitrary"
        # block axis, NOT on the parallel batch axis).
        zrow = jnp.zeros((nblk, 1, XPAD, c), pad_a.dtype)
        zcol = jnp.zeros((nblk, YPAD, 2, c), pad_a.dtype)
        for buf in (pad_a, pad_b):
            buf[:, 0:1, :, :] = zrow
            buf[:, YPAD - 1:YPAD, :, :] = zrow
            buf[:, :, 0:2, :] = zcol
            buf[:, :, XPAD - 2:XPAD, :] = zcol
        pad_a[:, YOFF:YOFF + H, XOFF:XOFF + W, :] = x_ref[...].astype(pad_a.dtype)

    def conv3x3(src, taps):
        # 9 lane-dense tap matmuls accumulated in f32 (no im2col concat).
        acc = None
        for dy in range(3):
            for dx in range(3):
                xt = src[:, dy:dy + H, dx + 1:dx + 1 + W, :].reshape(m, c)
                part = jnp.dot(xt, taps[dy * 3 + dx],
                               preferred_element_type=jnp.float32)
                acc = part if acc is None else acc + part
        return acc

    # h = GELU(BN1(conv1(x)))
    h = _gelu(conv3x3(pad_a, w1_ref) * s1_ref[...] + b1_ref[...])
    pad_b[:, YOFF:YOFF + H, XOFF:XOFF + W, :] = (
        h.reshape(nblk, H, W, c).astype(pad_b.dtype))

    # Skip projection of the block input.  Identity matrix for identity blocks
    # (the residual is already bf16 in scratch, so this adds no extra rounding).
    xin = pad_a[:, YOFF:YOFF + H, XOFF:XOFF + W, :].reshape(m, c)
    og = jnp.dot(xin, wsk_ref[...], preferred_element_type=jnp.float32) + bsk_ref[...]

    # out = GELU(BN2(conv2(h)) + skip)
    h2 = _gelu(conv3x3(pad_b, w2_ref) * s2_ref[...] + b2_ref[...] + og)
    h2 = h2.reshape(nblk, H, W, c)

    @pl.when(b < num_blocks - 1)
    def _carry():
        pad_a[:, YOFF:YOFF + H, XOFF:XOFF + W, :] = h2.astype(pad_a.dtype)

    @pl.when(b == num_blocks - 1)
    def _finalize():
        out_ref[...] = h2.astype(out_ref.dtype)


def heads_kernel(x_ref, w_ref, b_ref, o_ref):
    # (N, 64*C) @ (64*C, 128-lane tile) + bias, lane-dense output tile.
    o_ref[...] = (jnp.dot(x_ref[...], w_ref[...],
                          preferred_element_type=jnp.float32) + b_ref[...])


# ---------------------------------------------------------------------------
# pallas_call wrappers
# ---------------------------------------------------------------------------
def tower_forward(x, params, nblk):
    n, _, _, c = x.shape
    nb = params["w1"].shape[0]
    return pl.pallas_call(
        tower_kernel,
        out_shape=jax.ShapeDtypeStruct((n, H, W, c), jnp.bfloat16),
        grid=(n // nblk, nb),
        in_specs=[
            pl.BlockSpec((nblk, H, W, c), lambda i, b: (i, 0, 0, 0)),
            pl.BlockSpec((None, 9, c, c), lambda i, b: (b, 0, 0, 0)),   # conv1 taps
            pl.BlockSpec((None, 1, c), lambda i, b: (b, 0, 0)),         # bn1 scale
            pl.BlockSpec((None, 1, c), lambda i, b: (b, 0, 0)),         # bn1 bias
            pl.BlockSpec((None, 9, c, c), lambda i, b: (b, 0, 0, 0)),   # conv2 taps
            pl.BlockSpec((None, 1, c), lambda i, b: (b, 0, 0)),         # bn2 scale
            pl.BlockSpec((None, 1, c), lambda i, b: (b, 0, 0)),         # bn2 bias
            pl.BlockSpec((None, c, c), lambda i, b: (b, 0, 0)),         # skip weight
            pl.BlockSpec((None, 1, c), lambda i, b: (b, 0, 0)),         # skip bias
        ],
        out_specs=pl.BlockSpec((nblk, H, W, c), lambda i, b: (i, 0, 0, 0)),
        scratch_shapes=[
            pltpu.VMEM((nblk, YPAD, XPAD, c), jnp.bfloat16),
            pltpu.VMEM((nblk, YPAD, XPAD, c), jnp.bfloat16),
        ],
        compiler_params=pltpu.CompilerParams(
            dimension_semantics=("parallel", "arbitrary"),
            vmem_limit_bytes=VMEM_LIMIT),
    )(x, params["w1"], params["s1"], params["b1"], params["w2"],
      params["s2"], params["b2"], params["wsk"], params["bsk"])


def heads_forward(h_flat, wh, bh, *, tile_p=128):
    n, k = h_flat.shape
    pout = wh.shape[1]
    return pl.pallas_call(
        heads_kernel,
        out_shape=jax.ShapeDtypeStruct((n, pout), jnp.float32),
        grid=(pout // tile_p,),
        in_specs=[
            pl.BlockSpec((n, k), lambda j: (0, 0)),
            pl.BlockSpec((k, tile_p), lambda j: (0, j)),
            pl.BlockSpec((1, tile_p), lambda j: (0, j)),
        ],
        out_specs=pl.BlockSpec((n, tile_p), lambda j: (0, j)),
        compiler_params=pltpu.CompilerParams(
            dimension_semantics=("parallel",),
            vmem_limit_bytes=VMEM_LIMIT),
    )(h_flat, wh, bh)


# ---------------------------------------------------------------------------
# Parameter construction (torch-convention synthetic params) and conversion
# to the fused-kernel layout.
# ---------------------------------------------------------------------------
def _round_up(v, mult):
    return -(-v // mult) * mult


def _conv3x3_to_taps(w, cpad):
    # torch (cout, cin, 3, 3) -> (9, cpad, cpad) bf16, tap index t = dy*3 + dx.
    cout, cin = w.shape[0], w.shape[1]
    wt = jnp.transpose(w, (2, 3, 1, 0)).reshape(9, cin, cout)
    wt = jnp.pad(wt, ((0, 0), (0, cpad - cin), (0, cpad - cout)))
    return wt.astype(jnp.bfloat16)


def _fold_bn(conv_b, gamma, beta, mean, var, cpad):
    scale = gamma / jnp.sqrt(var + EPS)
    bias = (conv_b - mean) * scale + beta
    scale = jnp.pad(scale, (0, cpad - scale.shape[0]))
    bias = jnp.pad(bias, (0, cpad - bias.shape[0]))
    return scale.reshape(1, cpad), bias.reshape(1, cpad)


def init_resblock_torch(key, in_ch, out_ch):
    ks = jax.random.split(key, 14)
    p = {}
    p["conv1_w"] = 0.1 * jax.random.normal(ks[0], (out_ch, in_ch, 3, 3), jnp.float32)
    p["conv1_b"] = 0.1 * jax.random.normal(ks[1], (out_ch,), jnp.float32)
    p["bn1_g"] = 1.0 + 0.1 * jax.random.normal(ks[2], (out_ch,), jnp.float32)
    p["bn1_b"] = 0.1 * jax.random.normal(ks[3], (out_ch,), jnp.float32)
    p["bn1_m"] = 0.1 * jax.random.normal(ks[4], (out_ch,), jnp.float32)
    p["bn1_v"] = 1.0 + 0.1 * jax.random.uniform(ks[5], (out_ch,), jnp.float32)
    p["conv2_w"] = 0.1 * jax.random.normal(ks[6], (out_ch, out_ch, 3, 3), jnp.float32)
    p["conv2_b"] = 0.1 * jax.random.normal(ks[7], (out_ch,), jnp.float32)
    p["bn2_g"] = 1.0 + 0.1 * jax.random.normal(ks[8], (out_ch,), jnp.float32)
    p["bn2_b"] = 0.1 * jax.random.normal(ks[9], (out_ch,), jnp.float32)
    p["bn2_m"] = 0.1 * jax.random.normal(ks[10], (out_ch,), jnp.float32)
    p["bn2_v"] = 1.0 + 0.1 * jax.random.uniform(ks[11], (out_ch,), jnp.float32)
    if in_ch != out_ch:
        p["skip_w"] = 0.1 * jax.random.normal(ks[12], (out_ch, in_ch, 1, 1), jnp.float32)
        p["skip_b"] = 0.1 * jax.random.normal(ks[13], (out_ch,), jnp.float32)
    return p


def pack_params(blocks, vw, vb, pw, pb, mtl, cpad, nactions):
    w1, s1, b1, w2, s2, b2, wsk, bsk = ([] for _ in range(8))
    for p in blocks:
        w1.append(_conv3x3_to_taps(p["conv1_w"], cpad))
        s, bb = _fold_bn(p["conv1_b"], p["bn1_g"], p["bn1_b"], p["bn1_m"], p["bn1_v"], cpad)
        s1.append(s); b1.append(bb)
        w2.append(_conv3x3_to_taps(p["conv2_w"], cpad))
        s, bb = _fold_bn(p["conv2_b"], p["bn2_g"], p["bn2_b"], p["bn2_m"], p["bn2_v"], cpad)
        s2.append(s); b2.append(bb)
        if "skip_w" in p:
            sw = p["skip_w"][:, :, 0, 0].T                            # (in, out)
            sw = jnp.pad(sw, ((0, cpad - sw.shape[0]), (0, cpad - sw.shape[1])))
            sb = jnp.pad(p["skip_b"], (0, cpad - p["skip_b"].shape[0]))
        else:
            sw = jnp.eye(cpad, dtype=jnp.float32)                     # og = x
            sb = jnp.zeros((cpad,), jnp.float32)
        wsk.append(sw.astype(jnp.bfloat16))
        bsk.append(sb.reshape(1, cpad))

    # Heads: torch flattens NCHW (feature = c*64 + y*8 + x); our activation is
    # flattened as (yx, c).  Fold the permutation + channel padding into a
    # single combined (value ++ policy) weight, lane-padded to 128 outputs.
    nout = 1 + nactions
    pout = _round_up(nout, 128)
    wcomb = jnp.concatenate([vw, pw], axis=0)                         # (nout, mtl*64)
    w3 = wcomb.reshape(nout, mtl, HW)                                 # (o, c, yx)
    w3 = jnp.transpose(w3, (2, 1, 0))                                 # (yx, c, o)
    w3 = jnp.pad(w3, ((0, 0), (0, cpad - mtl), (0, pout - nout)))
    wh = w3.reshape(HW * cpad, pout).astype(jnp.bfloat16)
    bh = jnp.pad(jnp.concatenate([vb, pb]), (0, pout - nout)).reshape(1, pout)

    return {
        "w1": jnp.stack(w1), "s1": jnp.stack(s1), "b1": jnp.stack(b1),
        "w2": jnp.stack(w2), "s2": jnp.stack(s2), "b2": jnp.stack(b2),
        "wsk": jnp.stack(wsk), "bsk": jnp.stack(bsk),
        "wh": wh, "bh": bh,
    }


def init_chessnet(key, mtl, hidden_ch, num_blocks, nactions):
    keys = jax.random.split(key, num_blocks + 1)
    blocks = [init_resblock_torch(keys[0], mtl, hidden_ch)]
    for i in range(num_blocks - 2):
        blocks.append(init_resblock_torch(keys[1 + i], hidden_ch, hidden_ch))
    blocks.append(init_resblock_torch(keys[num_blocks - 1], hidden_ch, mtl))
    hidden_dim_flat = HW * mtl
    kv, kp = jax.random.split(keys[num_blocks])
    vw = 0.1 * jax.random.normal(kv, (1, hidden_dim_flat), jnp.float32)
    vb = jnp.zeros((1,), jnp.float32)
    pw = 0.1 * jax.random.normal(kp, (nactions, hidden_dim_flat), jnp.float32)
    pb = jnp.zeros((nactions,), jnp.float32)
    cpad = _round_up(max(mtl, hidden_ch), 128)        # lane-dense channel width
    return pack_params(blocks, vw, vb, pw, pb, mtl, cpad, nactions)


def _pick_batch_block(n, cap=16):
    """Boards folded into the matmul M dim per grid step.  Keeps the
    'parallel' grid extent >= 2 whenever n >= 2 (both v7x TensorCores get
    work) and pads the batch so nblk always divides it (no degeneration for
    prime batch sizes).  `cap` is sweepable; 16 stays well under VMEM."""
    if n <= 1:
        return 1, max(n, 1)
    nblk = min(cap, (n + 1) // 2)
    n_pad = _round_up(n, nblk)
    return nblk, n_pad


# ---------------------------------------------------------------------------
# Full forward
# ---------------------------------------------------------------------------
@functools.partial(jax.jit, static_argnums=(2, 3))
def chessnet_forward(x_nchw, params, mtl, nactions):
    n = x_nchw.shape[0]
    cpad = params["w1"].shape[-1]
    # NCHW -> NHWC, pad channels once to the uniform (lane-dense) tower width.
    x = jnp.transpose(x_nchw, (0, 2, 3, 1))
    x = jnp.pad(x, ((0, 0), (0, 0), (0, 0), (0, cpad - mtl)))
    nblk, n_pad = _pick_batch_block(n)
    if n_pad != n:
        x = jnp.pad(x, ((0, n_pad - n), (0, 0), (0, 0), (0, 0)))
    h = tower_forward(x, params, nblk)                  # (n_pad, 8, 8, cpad) bf16
    h_flat = h.reshape(n_pad, HW * cpad)                # contiguous (yx, c) flatten
    out = heads_forward(h_flat, params["wh"], params["bh"])
    values = out[:n, :1]
    logits = out[:n, 1:1 + nactions]
    return values, logits


if __name__ == "__main__":
    # Small config: mtl=4 input/output planes, hidden_ch=32, 4 blocks
    # (first + 2 hidden + last), 64 actions, batch 2, 8x8 board.
    MTL, HIDDEN_CH, NUM_BLOCKS, NACTIONS, BATCH = 4, 32, 4, 64, 2

    root = jax.random.PRNGKey(0)
    k_in, k_par = jax.random.split(root)

    x_nchw = jax.random.normal(k_in, (BATCH, MTL, H, W), jnp.float32)
    params = init_chessnet(k_par, MTL, HIDDEN_CH, NUM_BLOCKS, NACTIONS)

    values, logits = chessnet_forward(x_nchw, params, MTL, NACTIONS)
    jax.block_until_ready((values, logits))

    assert values.shape == (BATCH, 1)
    assert logits.shape == (BATCH, NACTIONS)
    print("KERNEL_OK")
</pallas_src>

<mosaic_0001>
module attributes {stable_mosaic.version = 11 : i64} {
  func.func @tower_kernel(%arg0: i32, %arg1: i32, %arg2: memref<1x8x8x128xf32, #tpu.memory_space<vmem>>, %arg3: memref<1x9x128x128xbf16, #tpu.memory_space<vmem>>, %arg4: memref<1x1x128xf32, #tpu.memory_space<vmem>>, %arg5: memref<1x1x128xf32, #tpu.memory_space<vmem>>, %arg6: memref<1x9x128x128xbf16, #tpu.memory_space<vmem>>, %arg7: memref<1x1x128xf32, #tpu.memory_space<vmem>>, %arg8: memref<1x1x128xf32, #tpu.memory_space<vmem>>, %arg9: memref<1x128x128xbf16, #tpu.memory_space<vmem>>, %arg10: memref<1x1x128xf32, #tpu.memory_space<vmem>>, %arg11: memref<1x8x8x128xbf16, #tpu.memory_space<vmem>>, %arg12: memref<1x10x12x128xbf16, #tpu.memory_space<vmem>>, %arg13: memref<1x10x12x128xbf16, #tpu.memory_space<vmem>>) attributes {dimension_semantics = [#tpu.dimension_semantics<parallel>, #tpu.dimension_semantics<arbitrary>], iteration_bounds = array<i64: 2, 4>, scalar_prefetch = 0 : i64, scratch_operands = 2 : i64, tpu.core_type = #tpu.core_type<tc>, window_params = [{transform_indices = @transform_0, window_bounds = array<i64: 1, 8, 8, 128>}, {transform_indices = @transform_1, window_bounds = array<i64: 1, 9, 128, 128>}, {transform_indices = @transform_2, window_bounds = array<i64: 1, 1, 128>}, {transform_indices = @transform_3, window_bounds = array<i64: 1, 1, 128>}, {transform_indices = @transform_4, window_bounds = array<i64: 1, 9, 128, 128>}, {transform_indices = @transform_5, window_bounds = array<i64: 1, 1, 128>}, {transform_indices = @transform_6, window_bounds = array<i64: 1, 1, 128>}, {transform_indices = @transform_7, window_bounds = array<i64: 1, 128, 128>}, {transform_indices = @transform_8, window_bounds = array<i64: 1, 1, 128>}, {transform_indices = @transform_9, window_bounds = array<i64: 1, 8, 8, 128>}]} {
    %c0_i32 = arith.constant 0 : i32
    %0 = arith.cmpi eq, %arg1, %c0_i32 : i32
    %1 = arith.extui %0 : i1 to i32
    %c0_i32_0 = arith.constant 0 : i32
    %2 = arith.cmpi ne, %1, %c0_i32_0 : i32
    scf.if %2 {
      %cst_191 = arith.constant 0.000000e+00 : bf16
      %171 = vector.broadcast %cst_191 : bf16 to vector<1x1x12x128xbf16>
      %cst_192 = arith.constant 0.000000e+00 : bf16
      %172 = vector.broadcast %cst_192 : bf16 to vector<1x10x2x128xbf16>
      %c0_193 = arith.constant 0 : index
      %c0_194 = arith.constant 0 : index
      %c0_195 = arith.constant 0 : index
      %c0_196 = arith.constant 0 : index
      %173 = vector.load %arg12[%c0_193, %c0_194, %c0_195, %c0_196] : memref<1x10x12x128xbf16, #tpu.memory_space<vmem>>, vector<1x1x12x128xbf16>
      tpu.vector_store %arg12[%c0_193, %c0_194, %c0_195, %c0_196], %171 {strides = array<i32>} : memref<1x10x12x128xbf16, #tpu.memory_space<vmem>>, vector<1x1x12x128xbf16>,
      %c0_197 = arith.constant 0 : index
      %c9 = arith.constant 9 : index
      %c0_198 = arith.constant 0 : index
      %c0_199 = arith.constant 0 : index
      %174 = vector.load %arg12[%c0_197, %c9, %c0_198, %c0_199] : memref<1x10x12x128xbf16, #tpu.memory_space<vmem>>, vector<1x1x12x128xbf16>
      tpu.vector_store %arg12[%c0_197, %c9, %c0_198, %c0_199], %171 {strides = array<i32>} : memref<1x10x12x128xbf16, #tpu.memory_space<vmem>>, vector<1x1x12x128xbf16>,
      %c0_200 = arith.constant 0 : index
      %c0_201 = arith.constant 0 : index
      %c0_202 = arith.constant 0 : index
      %c0_203 = arith.constant 0 : index
      %175 = vector.load %arg12[%c0_200, %c0_201, %c0_202, %c0_203] : memref<1x10x12x128xbf16, #tpu.memory_space<vmem>>, vector<1x10x2x128xbf16>
      tpu.vector_store %arg12[%c0_200, %c0_201, %c0_202, %c0_203], %172 {strides = array<i32>} : memref<1x10x12x128xbf16, #tpu.memory_space<vmem>>, vector<1x10x2x128xbf16>,
      %c0_204 = arith.constant 0 : index
      %c0_205 = arith.constant 0 : index
      %c10 = arith.constant 10 : index
      %c0_206 = arith.constant 0 : index
      %176 = vector.load %arg12[%c0_204, %c0_205, %c10, %c0_206] : memref<1x10x12x128xbf16, #tpu.memory_space<vmem>>, vector<1x10x2x128xbf16>
      tpu.vector_store %arg12[%c0_204, %c0_205, %c10, %c0_206], %172 {strides = array<i32>} : memref<1x10x12x128xbf16, #tpu.memory_space<vmem>>, vector<1x10x2x128xbf16>,
      %c0_207 = arith.constant 0 : index
      %c0_208 = arith.constant 0 : index
      %c0_209 = arith.constant 0 : index
      %c0_210 = arith.constant 0 : index
      %177 = vector.load %arg13[%c0_207, %c0_208, %c0_209, %c0_210] : memref<1x10x12x128xbf16, #tpu.memory_space<vmem>>, vector<1x1x12x128xbf16>
      tpu.vector_store %arg13[%c0_207, %c0_208, %c0_209, %c0_210], %171 {strides = array<i32>} : memref<1x10x12x128xbf16, #tpu.memory_space<vmem>>, vector<1x1x12x128xbf16>,
      %c0_211 = arith.constant 0 : index
      %c9_212 = arith.constant 9 : index
      %c0_213 = arith.constant 0 : index
      %c0_214 = arith.constant 0 : index
      %178 = vector.load %arg13[%c0_211, %c9_212, %c0_213, %c0_214] : memref<1x10x12x128xbf16, #tpu.memory_space<vmem>>, vector<1x1x12x128xbf16>
      tpu.vector_store %arg13[%c0_211, %c9_212, %c0_213, %c0_214], %171 {strides = array<i32>} : memref<1x10x12x128xbf16, #tpu.memory_space<vmem>>, vector<1x1x12x128xbf16>,
      %c0_215 = arith.constant 0 : index
      %c0_216 = arith.constant 0 : index
      %c0_217 = arith.constant 0 : index
      %c0_218 = arith.constant 0 : index
      %179 = vector.load %arg13[%c0_215, %c0_216, %c0_217, %c0_218] : memref<1x10x12x128xbf16, #tpu.memory_space<vmem>>, vector<1x10x2x128xbf16>
      tpu.vector_store %arg13[%c0_215, %c0_216, %c0_217, %c0_218], %172 {strides = array<i32>} : memref<1x10x12x128xbf16, #tpu.memory_space<vmem>>, vector<1x10x2x128xbf16>,
      %c0_219 = arith.constant 0 : index
      %c0_220 = arith.constant 0 : index
      %c10_221 = arith.constant 10 : index
      %c0_222 = arith.constant 0 : index
      %180 = vector.load %arg13[%c0_219, %c0_220, %c10_221, %c0_222] : memref<1x10x12x128xbf16, #tpu.memory_space<vmem>>, vector<1x10x2x128xbf16>
      tpu.vector_store %arg13[%c0_219, %c0_220, %c10_221, %c0_222], %172 {strides = array<i32>} : memref<1x10x12x128xbf16, #tpu.memory_space<vmem>>, vector<1x10x2x128xbf16>,
      %c0_223 = arith.constant 0 : index
      %c0_224 = arith.constant 0 : index
      %c0_225 = arith.constant 0 : index
      %c0_226 = arith.constant 0 : index
      %181 = vector.load %arg2[%c0_223, %c0_224, %c0_225, %c0_226] : memref<1x8x8x128xf32, #tpu.memory_space<vmem>>, vector<1x8x8x128xf32>
      %182 = arith.truncf %181 : vector<1x8x8x128xf32> to vector<1x8x8x128xbf16>
      %c0_227 = arith.constant 0 : index
      %c1_228 = arith.constant 1 : index
      %c2_229 = arith.constant 2 : index
      %c0_230 = arith.constant 0 : index
      %183 = vector.load %arg12[%c0_227, %c1_228, %c2_229, %c0_230] : memref<1x10x12x128xbf16, #tpu.memory_space<vmem>>, vector<1x8x8x128xbf16>
      tpu.vector_store %arg12[%c0_227, %c1_228, %c2_229, %c0_230], %182 {strides = array<i32>} : memref<1x10x12x128xbf16, #tpu.memory_space<vmem>>, vector<1x8x8x128xbf16>,
    } else {
    }
    %c0 = arith.constant 0 : index
    %c0_1 = arith.constant 0 : index
    %c1 = arith.constant 1 : index
    %c0_2 = arith.constant 0 : index
    %3 = vector.load %arg12[%c0, %c0_1, %c1, %c0_2] : memref<1x10x12x128xbf16, #tpu.memory_space<vmem>>, vector<1x8x8x128xbf16>
    %4 = vector.shape_cast %3 : vector<1x8x8x128xbf16> to vector<64x128xbf16>
    %c0_3 = arith.constant 0 : index
    %c0_4 = arith.constant 0 : index
    %c0_5 = arith.constant 0 : index
    %c0_6 = arith.constant 0 : index
    %5 = vector.load %arg3[%c0_3, %c0_4, %c0_5, %c0_6] : memref<1x9x128x128xbf16, #tpu.memory_space<vmem>>, vector<1x1x128x128xbf16>
    %6 = vector.shape_cast %5 : vector<1x1x128x128xbf16> to vector<128x128xbf16>
    %cst = arith.constant dense<0.000000e+00> : vector<64x128xf32>
    %7 = tpu.matmul %4, %6, %cst {dimension_numbers = #tpu.dot_dimension_numbers<[1], [0], [0], [1], [0, 0, 1, 1], [], []>} : vector<64x128xbf16>, vector<128x128xbf16>, vector<64x128xf32> -> vector<64x128xf32>
    %c0_7 = arith.constant 0 : index
    %c0_8 = arith.constant 0 : index
    %c2 = arith.constant 2 : index
    %c0_9 = arith.constant 0 : index
    %8 = vector.load %arg12[%c0_7, %c0_8, %c2, %c0_9] : memref<1x10x12x128xbf16, #tpu.memory_space<vmem>>, vector<1x8x8x128xbf16>
    %9 = vector.shape_cast %8 : vector<1x8x8x128xbf16> to vector<64x128xbf16>
    %c0_10 = arith.constant 0 : index
    %c1_11 = arith.constant 1 : index
    %c0_12 = arith.constant 0 : index
    %c0_13 = arith.constant 0 : index
    %10 = vector.load %arg3[%c0_10, %c1_11, %c0_12, %c0_13] : memref<1x9x128x128xbf16, #tpu.memory_space<vmem>>, vector<1x1x128x128xbf16>
    %11 = vector.shape_cast %10 : vector<1x1x128x128xbf16> to vector<128x128xbf16>
    %cst_14 = arith.constant dense<0.000000e+00> : vector<64x128xf32>
    %12 = tpu.matmul %9, %11, %cst_14 {dimension_numbers = #tpu.dot_dimension_numbers<[1], [0], [0], [1], [0, 0, 1, 1], [], []>} : vector<64x128xbf16>, vector<128x128xbf16>, vector<64x128xf32> -> vector<64x128xf32>
    %13 = arith.addf %7, %12 : vector<64x128xf32>
    %c0_15 = arith.constant 0 : index
    %c0_16 = arith.constant 0 : index
    %c3 = arith.constant 3 : index
    %c0_17 = arith.constant 0 : index
    %14 = vector.load %arg12[%c0_15, %c0_16, %c3, %c0_17] : memref<1x10x12x128xbf16, #tpu.memory_space<vmem>>, vector<1x8x8x128xbf16>
    %15 = vector.shape_cast %14 : vector<1x8x8x128xbf16> to vector<64x128xbf16>
    %c0_18 = arith.constant 0 : index
    %c2_19 = arith.constant 2 : index
    %c0_20 = arith.constant 0 : index
    %c0_21 = arith.constant 0 : index
    %16 = vector.load %arg3[%c0_18, %c2_19, %c0_20, %c0_21] : memref<1x9x128x128xbf16, #tpu.memory_space<vmem>>, vector<1x1x128x128xbf16>
    %17 = vector.shape_cast %16 : vector<1x1x128x128xbf16> to vector<128x128xbf16>
    %cst_22 = arith.constant dense<0.000000e+00> : vector<64x128xf32>
    %18 = tpu.matmul %15, %17, %cst_22 {dimension_numbers = #tpu.dot_dimension_numbers<[1], [0], [0], [1], [0, 0, 1, 1], [], []>} : vector<64x128xbf16>, vector<128x128xbf16>, vector<64x128xf32> -> vector<64x128xf32>
    %19 = arith.addf %13, %18 : vector<64x128xf32>
    %c0_23 = arith.constant 0 : index
    %c1_24 = arith.constant 1 : index
    %c1_25 = arith.constant 1 : index
    %c0_26 = arith.constant 0 : index
    %20 = vector.load %arg12[%c0_23, %c1_24, %c1_25, %c0_26] : memref<1x10x12x128xbf16, #tpu.memory_space<vmem>>, vector<1x8x8x128xbf16>
    %21 = vector.shape_cast %20 : vector<1x8x8x128xbf16> to vector<64x128xbf16>
    %c0_27 = arith.constant 0 : index
    %c3_28 = arith.constant 3 : index
    %c0_29 = arith.constant 0 : index
    %c0_30 = arith.constant 0 : index
    %22 = vector.load %arg3[%c0_27, %c3_28, %c0_29, %c0_30] : memref<1x9x128x128xbf16, #tpu.memory_space<vmem>>, vector<1x1x128x128xbf16>
    %23 = vector.shape_cast %22 : vector<1x1x128x128xbf16> to vector<128x128xbf16>
    %cst_31 = arith.constant dense<0.000000e+00> : vector<64x128xf32>
    %24 = tpu.matmul %21, %23, %cst_31 {dimension_numbers = #tpu.dot_dimension_numbers<[1], [0], [0], [1], [0, 0, 1, 1], [], []>} : vector<64x128xbf16>, vector<128x128xbf16>, vector<64x128xf32> -> vector<64x128xf32>
    %25 = arith.addf %19, %24 : vector<64x128xf32>
    %c0_32 = arith.constant 0 : index
    %c1_33 = arith.constant 1 : index
    %c2_34 = arith.constant 2 : index
    %c0_35 = arith.constant 0 : index
    %26 = vector.load %arg12[%c0_32, %c1_33, %c2_34, %c0_35] : memref<1x10x12x128xbf16, #tpu.memory_space<vmem>>, vector<1x8x8x128xbf16>
    %27 = vector.shape_cast %26 : vector<1x8x8x128xbf16> to vector<64x128xbf16>
    %c0_36 = arith.constant 0 : index
    %c4 = arith.constant 4 : index
    %c0_37 = arith.constant 0 : index
    %c0_38 = arith.constant 0 : index
    %28 = vector.load %arg3[%c0_36, %c4, %c0_37, %c0_38] : memref<1x9x128x128xbf16, #tpu.memory_space<vmem>>, vector<1x1x128x128xbf16>
    %29 = vector.shape_cast %28 : vector<1x1x128x128xbf16> to vector<128x128xbf16>
    %cst_39 = arith.constant dense<0.000000e+00> : vector<64x128xf32>
    %30 = tpu.matmul %27, %29, %cst_39 {dimension_numbers = #tpu.dot_dimension_numbers<[1], [0], [0], [1], [0, 0, 1, 1], [], []>} : vector<64x128xbf16>, vector<128x128xbf16>, vector<64x128xf32> -> vector<64x128xf32>
    %31 = arith.addf %25, %30 : vector<64x128xf32>
    %c0_40 = arith.constant 0 : index
    %c1_41 = arith.constant 1 : index
    %c3_42 = arith.constant 3 : index
    %c0_43 = arith.constant 0 : index
    %32 = vector.load %arg12[%c0_40, %c1_41, %c3_42, %c0_43] : memref<1x10x12x128xbf16, #tpu.memory_space<vmem>>, vector<1x8x8x128xbf16>
    %33 = vector.shape_cast %32 : vector<1x8x8x128xbf16> to vector<64x128xbf16>
    %c0_44 = arith.constant 0 : index
    %c5 = arith.constant 5 : index
    %c0_45 = arith.constant 0 : index
    %c0_46 = arith.constant 0 : index
    %34 = vector.load %arg3[%c0_44, %c5, %c0_45, %c0_46] : memref<1x9x128x128xbf16, #tpu.memory_space<vmem>>, vector<1x1x128x128xbf16>
    %35 = vector.shape_cast %34 : vector<1x1x128x128xbf16> to vector<128x128xbf16>
    %cst_47 = arith.constant dense<0.000000e+00> : vector<64x128xf32>
    %36 = tpu.matmul %33, %35, %cst_47 {dimension_numbers = #tpu.dot_dimension_numbers<[1], [0], [0], [1], [0, 0, 1, 1], [], []>} : vector<64x128xbf16>, vector<128x128xbf16>, vector<64x128xf32> -> vector<64x128xf32>
    %37 = arith.addf %31, %36 : vector<64x128xf32>
    %c0_48 = arith.constant 0 : index
    %c2_49 = arith.constant 2 : index
    %c1_50 = arith.constant 1 : index
    %c0_51 = arith.constant 0 : index
    %38 = vector.load %arg12[%c0_48, %c2_49, %c1_50, %c0_51] : memref<1x10x12x128xbf16, #tpu.memory_space<vmem>>, vector<1x8x8x128xbf16>
    %39 = vector.shape_cast %38 : vector<1x8x8x128xbf16> to vector<64x128xbf16>
    %c0_52 = arith.constant 0 : index
    %c6 = arith.constant 6 : index
    %c0_53 = arith.constant 0 : index
    %c0_54 = arith.constant 0 : index
    %40 = vector.load %arg3[%c0_52, %c6, %c0_53, %c0_54] : memref<1x9x128x128xbf16, #tpu.memory_space<vmem>>, vector<1x1x128x128xbf16>
    %41 = vector.shape_cast %40 : vector<1x1x128x128xbf16> to vector<128x128xbf16>
    %cst_55 = arith.constant dense<0.000000e+00> : vector<64x128xf32>
    %42 = tpu.matmul %39, %41, %cst_55 {dimension_numbers = #tpu.dot_dimension_numbers<[1], [0], [0], [1], [0, 0, 1, 1], [], []>} : vector<64x128xbf16>, vector<128x128xbf16>, vector<64x128xf32> -> vector<64x128xf32>
    %43 = arith.addf %37, %42 : vector<64x128xf32>
    %c0_56 = arith.constant 0 : index
    %c2_57 = arith.constant 2 : index
    %c2_58 = arith.constant 2 : index
    %c0_59 = arith.constant 0 : index
    %44 = vector.load %arg12[%c0_56, %c2_57, %c2_58, %c0_59] : memref<1x10x12x128xbf16, #tpu.memory_space<vmem>>, vector<1x8x8x128xbf16>
    %45 = vector.shape_cast %44 : vector<1x8x8x128xbf16> to vector<64x128xbf16>
    %c0_60 = arith.constant 0 : index
    %c7 = arith.constant 7 : index
    %c0_61 = arith.constant 0 : index
    %c0_62 = arith.constant 0 : index
    %46 = vector.load %arg3[%c0_60, %c7, %c0_61, %c0_62] : memref<1x9x128x128xbf16, #tpu.memory_space<vmem>>, vector<1x1x128x128xbf16>
    %47 = vector.shape_cast %46 : vector<1x1x128x128xbf16> to vector<128x128xbf16>
    %cst_63 = arith.constant dense<0.000000e+00> : vector<64x128xf32>
    %48 = tpu.matmul %45, %47, %cst_63 {dimension_numbers = #tpu.dot_dimension_numbers<[1], [0], [0], [1], [0, 0, 1, 1], [], []>} : vector<64x128xbf16>, vector<128x128xbf16>, vector<64x128xf32> -> vector<64x128xf32>
    %49 = arith.addf %43, %48 : vector<64x128xf32>
    %c0_64 = arith.constant 0 : index
    %c2_65 = arith.constant 2 : index
    %c3_66 = arith.constant 3 : index
    %c0_67 = arith.constant 0 : index
    %50 = vector.load %arg12[%c0_64, %c2_65, %c3_66, %c0_67] : memref<1x10x12x128xbf16, #tpu.memory_space<vmem>>, vector<1x8x8x128xbf16>
    %51 = vector.shape_cast %50 : vector<1x8x8x128xbf16> to vector<64x128xbf16>
    %c0_68 = arith.constant 0 : index
    %c8 = arith.constant 8 : index
    %c0_69 = arith.constant 0 : index
    %c0_70 = arith.constant 0 : index
    %52 = vector.load %arg3[%c0_68, %c8, %c0_69, %c0_70] : memref<1x9x128x128xbf16, #tpu.memory_space<vmem>>, vector<1x1x128x128xbf16>
    %53 = vector.shape_cast %52 : vector<1x1x128x128xbf16> to vector<128x128xbf16>
    %cst_71 = arith.constant dense<0.000000e+00> : vector<64x128xf32>
    %54 = tpu.matmul %51, %53, %cst_71 {dimension_numbers = #tpu.dot_dimension_numbers<[1], [0], [0], [1], [0, 0, 1, 1], [], []>} : vector<64x128xbf16>, vector<128x128xbf16>, vector<64x128xf32> -> vector<64x128xf32>
    %55 = arith.addf %49, %54 : vector<64x128xf32>
    %c0_72 = arith.constant 0 : index
    %c0_73 = arith.constant 0 : index
    %c0_74 = arith.constant 0 : index
    %56 = vector.load %arg4[%c0_72, %c0_73, %c0_74] : memref<1x1x128xf32, #tpu.memory_space<vmem>>, vector<1x1x128xf32>
    %57 = vector.shape_cast %56 : vector<1x1x128xf32> to vector<1x128xf32>
    %58 = vector.broadcast %57 : vector<1x128xf32> to vector<64x128xf32>
    %59 = arith.mulf %55, %58 : vector<64x128xf32>
    %c0_75 = arith.constant 0 : index
    %c0_76 = arith.constant 0 : index
    %c0_77 = arith.constant 0 : index
    %60 = vector.load %arg5[%c0_75, %c0_76, %c0_77] : memref<1x1x128xf32, #tpu.memory_space<vmem>>, vector<1x1x128xf32>
    %61 = vector.shape_cast %60 : vector<1x1x128xf32> to vector<1x128xf32>
    %62 = vector.broadcast %61 : vector<1x128xf32> to vector<64x128xf32>
    %63 = arith.addf %59, %62 : vector<64x128xf32>
    %cst_78 = arith.constant 5.000000e-01 : f32
    %64 = vector.broadcast %cst_78 : f32 to vector<64x128xf32>
    %65 = arith.mulf %64, %63 : vector<64x128xf32>
    %66 = arith.mulf %63, %63 : vector<64x128xf32>
    %67 = arith.mulf %66, %63 : vector<64x128xf32>
    %cst_79 = arith.constant 4.471500e-02 : f32
    %68 = vector.broadcast %cst_79 : f32 to vector<64x128xf32>
    %69 = arith.mulf %68, %67 : vector<64x128xf32>
    %70 = arith.addf %63, %69 : vector<64x128xf32>
    %cst_80 = arith.constant 0.797884583 : f32
    %71 = vector.broadcast %cst_80 : f32 to vector<64x128xf32>
    %72 = arith.mulf %71, %70 : vector<64x128xf32>
    %73 = math.tanh %72 : vector<64x128xf32>
    %cst_81 = arith.constant 1.000000e+00 : f32
    %74 = vector.broadcast %cst_81 : f32 to vector<64x128xf32>
    %75 = arith.addf %74, %73 : vector<64x128xf32>
    %76 = arith.mulf %65, %75 : vector<64x128xf32>
    %77 = vector.shape_cast %76 : vector<64x128xf32> to vector<1x8x8x128xf32>
    %78 = arith.truncf %77 : vector<1x8x8x128xf32> to vector<1x8x8x128xbf16>
    %c0_82 = arith.constant 0 : index
    %c1_83 = arith.constant 1 : index
    %c2_84 = arith.constant 2 : index
    %c0_85 = arith.constant 0 : index
    %79 = vector.load %arg13[%c0_82, %c1_83, %c2_84, %c0_85] : memref<1x10x12x128xbf16, #tpu.memory_space<vmem>>, vector<1x8x8x128xbf16>
    tpu.vector_store %arg13[%c0_82, %c1_83, %c2_84, %c0_85], %78 {strides = array<i32>} : memref<1x10x12x128xbf16, #tpu.memory_space<vmem>>, vector<1x8x8x128xbf16>,
    %c0_86 = arith.constant 0 : index
    %c1_87 = arith.constant 1 : index
    %c2_88 = arith.constant 2 : index
    %c0_89 = arith.constant 0 : index
    %80 = vector.load %arg12[%c0_86, %c1_87, %c2_88, %c0_89] : memref<1x10x12x128xbf16, #tpu.memory_space<vmem>>, vector<1x8x8x128xbf16>
    %81 = vector.shape_cast %80 : vector<1x8x8x128xbf16> to vector<64x128xbf16>
    %c0_90 = arith.constant 0 : index
    %c0_91 = arith.constant 0 : index
    %c0_92 = arith.constant 0 : index
    %82 = vector.load %arg9[%c0_90, %c0_91, %c0_92] : memref<1x128x128xbf16, #tpu.memory_space<vmem>>, vector<1x128x128xbf16>
    %83 = vector.shape_cast %82 : vector<1x128x128xbf16> to vector<128x128xbf16>
    %cst_93 = arith.constant dense<0.000000e+00> : vector<64x128xf32>
    %84 = tpu.matmul %81, %83, %cst_93 {dimension_numbers = #tpu.dot_dimension_numbers<[1], [0], [0], [1], [0, 0, 1, 1], [], []>} : vector<64x128xbf16>, vector<128x128xbf16>, vector<64x128xf32> -> vector<64x128xf32>
    %c0_94 = arith.constant 0 : index
    %c0_95 = arith.constant 0 : index
    %c0_96 = arith.constant 0 : index
    %85 = vector.load %arg10[%c0_94, %c0_95, %c0_96] : memref<1x1x128xf32, #tpu.memory_space<vmem>>, vector<1x1x128xf32>
    %86 = vector.shape_cast %85 : vector<1x1x128xf32> to vector<1x128xf32>
    %87 = vector.broadcast %86 : vector<1x128xf32> to vector<64x128xf32>
    %88 = arith.addf %84, %87 : vector<64x128xf32>
    %c0_97 = arith.constant 0 : index
    %c0_98 = arith.constant 0 : index
    %c1_99 = arith.constant 1 : index
    %c0_100 = arith.constant 0 : index
    %89 = vector.load %arg13[%c0_97, %c0_98, %c1_99, %c0_100] : memref<1x10x12x128xbf16, #tpu.memory_space<vmem>>, vector<1x8x8x128xbf16>
    %90 = vector.shape_cast %89 : vector<1x8x8x128xbf16> to vector<64x128xbf16>
    %c0_101 = arith.constant 0 : index
    %c0_102 = arith.constant 0 : index
    %c0_103 = arith.constant 0 : index
    %c0_104 = arith.constant 0 : index
    %91 = vector.load %arg6[%c0_101, %c0_102, %c0_103, %c0_104] : memref<1x9x128x128xbf16, #tpu.memory_space<vmem>>, vector<1x1x128x128xbf16>
    %92 = vector.shape_cast %91 : vector<1x1x128x128xbf16> to vector<128x128xbf16>
    %cst_105 = arith.constant dense<0.000000e+00> : vector<64x128xf32>
    %93 = tpu.matmul %90, %92, %cst_105 {dimension_numbers = #tpu.dot_dimension_numbers<[1], [0], [0], [1], [0, 0, 1, 1], [], []>} : vector<64x128xbf16>, vector<128x128xbf16>, vector<64x128xf32> -> vector<64x128xf32>
    %c0_106 = arith.constant 0 : index
    %c0_107 = arith.constant 0 : index
    %c2_108 = arith.constant 2 : index
    %c0_109 = arith.constant 0 : index
    %94 = vector.load %arg13[%c0_106, %c0_107, %c2_108, %c0_109] : memref<1x10x12x128xbf16, #tpu.memory_space<vmem>>, vector<1x8x8x128xbf16>
    %95 = vector.shape_cast %94 : vector<1x8x8x128xbf16> to vector<64x128xbf16>
    %c0_110 = arith.constant 0 : index
    %c1_111 = arith.constant 1 : index
    %c0_112 = arith.constant 0 : index
    %c0_113 = arith.constant 0 : index
    %96 = vector.load %arg6[%c0_110, %c1_111, %c0_112, %c0_113] : memref<1x9x128x128xbf16, #tpu.memory_space<vmem>>, vector<1x1x128x128xbf16>
    %97 = vector.shape_cast %96 : vector<1x1x128x128xbf16> to vector<128x128xbf16>
    %cst_114 = arith.constant dense<0.000000e+00> : vector<64x128xf32>
    %98 = tpu.matmul %95, %97, %cst_114 {dimension_numbers = #tpu.dot_dimension_numbers<[1], [0], [0], [1], [0, 0, 1, 1], [], []>} : vector<64x128xbf16>, vector<128x128xbf16>, vector<64x128xf32> -> vector<64x128xf32>
    %99 = arith.addf %93, %98 : vector<64x128xf32>
    %c0_115 = arith.constant 0 : index
    %c0_116 = arith.constant 0 : index
    %c3_117 = arith.constant 3 : index
    %c0_118 = arith.constant 0 : index
    %100 = vector.load %arg13[%c0_115, %c0_116, %c3_117, %c0_118] : memref<1x10x12x128xbf16, #tpu.memory_space<vmem>>, vector<1x8x8x128xbf16>
    %101 = vector.shape_cast %100 : vector<1x8x8x128xbf16> to vector<64x128xbf16>
    %c0_119 = arith.constant 0 : index
    %c2_120 = arith.constant 2 : index
    %c0_121 = arith.constant 0 : index
    %c0_122 = arith.constant 0 : index
    %102 = vector.load %arg6[%c0_119, %c2_120, %c0_121, %c0_122] : memref<1x9x128x128xbf16, #tpu.memory_space<vmem>>, vector<1x1x128x128xbf16>
    %103 = vector.shape_cast %102 : vector<1x1x128x128xbf16> to vector<128x128xbf16>
    %cst_123 = arith.constant dense<0.000000e+00> : vector<64x128xf32>
    %104 = tpu.matmul %101, %103, %cst_123 {dimension_numbers = #tpu.dot_dimension_numbers<[1], [0], [0], [1], [0, 0, 1, 1], [], []>} : vector<64x128xbf16>, vector<128x128xbf16>, vector<64x128xf32> -> vector<64x128xf32>
    %105 = arith.addf %99, %104 : vector<64x128xf32>
    %c0_124 = arith.constant 0 : index
    %c1_125 = arith.constant 1 : index
    %c1_126 = arith.constant 1 : index
    %c0_127 = arith.constant 0 : index
    %106 = vector.load %arg13[%c0_124, %c1_125, %c1_126, %c0_127] : memref<1x10x12x128xbf16, #tpu.memory_space<vmem>>, vector<1x8x8x128xbf16>
    %107 = vector.shape_cast %106 : vector<1x8x8x128xbf16> to vector<64x128xbf16>
    %c0_128 = arith.constant 0 : index
    %c3_129 = arith.constant 3 : index
    %c0_130 = arith.constant 0 : index
    %c0_131 = arith.constant 0 : index
    %108 = vector.load %arg6[%c0_128, %c3_129, %c0_130, %c0_131] : memref<1x9x128x128xbf16, #tpu.memory_space<vmem>>, vector<1x1x128x128xbf16>
    %109 = vector.shape_cast %108 : vector<1x1x128x128xbf16> to vector<128x128xbf16>
    %cst_132 = arith.constant dense<0.000000e+00> : vector<64x128xf32>
    %110 = tpu.matmul %107, %109, %cst_132 {dimension_numbers = #tpu.dot_dimension_numbers<[1], [0], [0], [1], [0, 0, 1, 1], [], []>} : vector<64x128xbf16>, vector<128x128xbf16>, vector<64x128xf32> -> vector<64x128xf32>
    %111 = arith.addf %105, %110 : vector<64x128xf32>
    %c0_133 = arith.constant 0 : index
    %c1_134 = arith.constant 1 : index
    %c2_135 = arith.constant 2 : index
    %c0_136 = arith.constant 0 : index
    %112 = vector.load %arg13[%c0_133, %c1_134, %c2_135, %c0_136] : memref<1x10x12x128xbf16, #tpu.memory_space<vmem>>, vector<1x8x8x128xbf16>
    %113 = vector.shape_cast %112 : vector<1x8x8x128xbf16> to vector<64x128xbf16>
    %c0_137 = arith.constant 0 : index
    %c4_138 = arith.constant 4 : index
    %c0_139 = arith.constant 0 : index
    %c0_140 = arith.constant 0 : index
    %114 = vector.load %arg6[%c0_137, %c4_138, %c0_139, %c0_140] : memref<1x9x128x128xbf16, #tpu.memory_space<vmem>>, vector<1x1x128x128xbf16>
    %115 = vector.shape_cast %114 : vector<1x1x128x128xbf16> to vector<128x128xbf16>
    %cst_141 = arith.constant dense<0.000000e+00> : vector<64x128xf32>
    %116 = tpu.matmul %113, %115, %cst_141 {dimension_numbers = #tpu.dot_dimension_numbers<[1], [0], [0], [1], [0, 0, 1, 1], [], []>} : vector<64x128xbf16>, vector<128x128xbf16>, vector<64x128xf32> -> vector<64x128xf32>
    %117 = arith.addf %111, %116 : vector<64x128xf32>
    %c0_142 = arith.constant 0 : index
    %c1_143 = arith.constant 1 : index
    %c3_144 = arith.constant 3 : index
    %c0_145 = arith.constant 0 : index
    %118 = vector.load %arg13[%c0_142, %c1_143, %c3_144, %c0_145] : memref<1x10x12x128xbf16, #tpu.memory_space<vmem>>, vector<1x8x8x128xbf16>
    %119 = vector.shape_cast %118 : vector<1x8x8x128xbf16> to vector<64x128xbf16>
    %c0_146 = arith.constant 0 : index
    %c5_147 = arith.constant 5 : index
    %c0_148 = arith.constant 0 : index
    %c0_149 = arith.constant 0 : index
    %120 = vector.load %arg6[%c0_146, %c5_147, %c0_148, %c0_149] : memref<1x9x128x128xbf16, #tpu.memory_space<vmem>>, vector<1x1x128x128xbf16>
    %121 = vector.shape_cast %120 : vector<1x1x128x128xbf16> to vector<128x128xbf16>
    %cst_150 = arith.constant dense<0.000000e+00> : vector<64x128xf32>
    %122 = tpu.matmul %119, %121, %cst_150 {dimension_numbers = #tpu.dot_dimension_numbers<[1], [0], [0], [1], [0, 0, 1, 1], [], []>} : vector<64x128xbf16>, vector<128x128xbf16>, vector<64x128xf32> -> vector<64x128xf32>
    %123 = arith.addf %117, %122 : vector<64x128xf32>
    %c0_151 = arith.constant 0 : index
    %c2_152 = arith.constant 2 : index
    %c1_153 = arith.constant 1 : index
    %c0_154 = arith.constant 0 : index
    %124 = vector.load %arg13[%c0_151, %c2_152, %c1_153, %c0_154] : memref<1x10x12x128xbf16, #tpu.memory_space<vmem>>, vector<1x8x8x128xbf16>
    %125 = vector.shape_cast %124 : vector<1x8x8x128xbf16> to vector<64x128xbf16>
    %c0_155 = arith.constant 0 : index
    %c6_156 = arith.constant 6 : index
    %c0_157 = arith.constant 0 : index
    %c0_158 = arith.constant 0 : index
    %126 = vector.load %arg6[%c0_155, %c6_156, %c0_157, %c0_158] : memref<1x9x128x128xbf16, #tpu.memory_space<vmem>>, vector<1x1x128x128xbf16>
    %127 = vector.shape_cast %126 : vector<1x1x128x128xbf16> to vector<128x128xbf16>
    %cst_159 = arith.constant dense<0.000000e+00> : vector<64x128xf32>
    %128 = tpu.matmul %125, %127, %cst_159 {dimension_numbers = #tpu.dot_dimension_numbers<[1], [0], [0], [1], [0, 0, 1, 1], [], []>} : vector<64x128xbf16>, vector<128x128xbf16>, vector<64x128xf32> -> vector<64x128xf32>
    %129 = arith.addf %123, %128 : vector<64x128xf32>
    %c0_160 = arith.constant 0 : index
    %c2_161 = arith.constant 2 : index
    %c2_162 = arith.constant 2 : index
    %c0_163 = arith.constant 0 : index
    %130 = vector.load %arg13[%c0_160, %c2_161, %c2_162, %c0_163] : memref<1x10x12x128xbf16, #tpu.memory_space<vmem>>, vector<1x8x8x128xbf16>
    %131 = vector.shape_cast %130 : vector<1x8x8x128xbf16> to vector<64x128xbf16>
    %c0_164 = arith.constant 0 : index
    %c7_165 = arith.constant 7 : index
    %c0_166 = arith.constant 0 : index
    %c0_167 = arith.constant 0 : index
    %132 = vector.load %arg6[%c0_164, %c7_165, %c0_166, %c0_167] : memref<1x9x128x128xbf16, #tpu.memory_space<vmem>>, vector<1x1x128x128xbf16>
    %133 = vector.shape_cast %132 : vector<1x1x128x128xbf16> to vector<128x128xbf16>
    %cst_168 = arith.constant dense<0.000000e+00> : vector<64x128xf32>
    %134 = tpu.matmul %131, %133, %cst_168 {dimension_numbers = #tpu.dot_dimension_numbers<[1], [0], [0], [1], [0, 0, 1, 1], [], []>} : vector<64x128xbf16>, vector<128x128xbf16>, vector<64x128xf32> -> vector<64x128xf32>
    %135 = arith.addf %129, %134 : vector<64x128xf32>
    %c0_169 = arith.constant 0 : index
    %c2_170 = arith.constant 2 : index
    %c3_171 = arith.constant 3 : index
    %c0_172 = arith.constant 0 : index
    %136 = vector.load %arg13[%c0_169, %c2_170, %c3_171, %c0_172] : memref<1x10x12x128xbf16, #tpu.memory_space<vmem>>, vector<1x8x8x128xbf16>
    %137 = vector.shape_cast %136 : vector<1x8x8x128xbf16> to vector<64x128xbf16>
    %c0_173 = arith.constant 0 : index
    %c8_174 = arith.constant 8 : index
    %c0_175 = arith.constant 0 : index
    %c0_176 = arith.constant 0 : index
    %138 = vector.load %arg6[%c0_173, %c8_174, %c0_175, %c0_176] : memref<1x9x128x128xbf16, #tpu.memory_space<vmem>>, vector<1x1x128x128xbf16>
    %139 = vector.shape_cast %138 : vector<1x1x128x128xbf16> to vector<128x128xbf16>
    %cst_177 = arith.constant dense<0.000000e+00> : vector<64x128xf32>
    %140 = tpu.matmul %137, %139, %cst_177 {dimension_numbers = #tpu.dot_dimension_numbers<[1], [0], [0], [1], [0, 0, 1, 1], [], []>} : vector<64x128xbf16>, vector<128x128xbf16>, vector<64x128xf32> -> vector<64x128xf32>
    %141 = arith.addf %135, %140 : vector<64x128xf32>
    %c0_178 = arith.constant 0 : index
    %c0_179 = arith.constant 0 : index
    %c0_180 = arith.constant 0 : index
    %142 = vector.load %arg7[%c0_178, %c0_179, %c0_180] : memref<1x1x128xf32, #tpu.memory_space<vmem>>, vector<1x1x128xf32>
    %143 = vector.shape_cast %142 : vector<1x1x128xf32> to vector<1x128xf32>
    %144 = vector.broadcast %143 : vector<1x128xf32> to vector<64x128xf32>
    %145 = arith.mulf %141, %144 : vector<64x128xf32>
    %c0_181 = arith.constant 0 : index
    %c0_182 = arith.constant 0 : index
    %c0_183 = arith.constant 0 : index
    %146 = vector.load %arg8[%c0_181, %c0_182, %c0_183] : memref<1x1x128xf32, #tpu.memory_space<vmem>>, vector<1x1x128xf32>
    %147 = vector.shape_cast %146 : vector<1x1x128xf32> to vector<1x128xf32>
    %148 = vector.broadcast %147 : vector<1x128xf32> to vector<64x128xf32>
    %149 = arith.addf %145, %148 : vector<64x128xf32>
    %150 = arith.addf %149, %88 : vector<64x128xf32>
    %cst_184 = arith.constant 5.000000e-01 : f32
    %151 = vector.broadcast %cst_184 : f32 to vector<64x128xf32>
    %152 = arith.mulf %151, %150 : vector<64x128xf32>
    %153 = arith.mulf %150, %150 : vector<64x128xf32>
    %154 = arith.mulf %153, %150 : vector<64x128xf32>
    %cst_185 = arith.constant 4.471500e-02 : f32
    %155 = vector.broadcast %cst_185 : f32 to vector<64x128xf32>
    %156 = arith.mulf %155, %154 : vector<64x128xf32>
    %157 = arith.addf %150, %156 : vector<64x128xf32>
    %cst_186 = arith.constant 0.797884583 : f32
    %158 = vector.broadcast %cst_186 : f32 to vector<64x128xf32>
    %159 = arith.mulf %158, %157 : vector<64x128xf32>
    %160 = math.tanh %159 : vector<64x128xf32>
    %cst_187 = arith.constant 1.000000e+00 : f32
    %161 = vector.broadcast %cst_187 : f32 to vector<64x128xf32>
    %162 = arith.addf %161, %160 : vector<64x128xf32>
    %163 = arith.mulf %152, %162 : vector<64x128xf32>
    %164 = vector.shape_cast %163 : vector<64x128xf32> to vector<1x8x8x128xf32>
    %c3_i32 = arith.constant 3 : i32
    %165 = arith.cmpi slt, %arg1, %c3_i32 : i32
    %166 = arith.extui %165 : i1 to i32
    %c0_i32_188 = arith.constant 0 : i32
    %167 = arith.cmpi ne, %166, %c0_i32_188 : i32
    scf.if %167 {
      %171 = arith.truncf %164 : vector<1x8x8x128xf32> to vector<1x8x8x128xbf16>
      %c0_191 = arith.constant 0 : index
      %c1_192 = arith.constant 1 : index
      %c2_193 = arith.constant 2 : index
      %c0_194 = arith.constant 0 : index
      %172 = vector.load %arg12[%c0_191, %c1_192, %c2_193, %c0_194] : memref<1x10x12x128xbf16, #tpu.memory_space<vmem>>, vector<1x8x8x128xbf16>
      tpu.vector_store %arg12[%c0_191, %c1_192, %c2_193, %c0_194], %171 {strides = array<i32>} : memref<1x10x12x128xbf16, #tpu.memory_space<vmem>>, vector<1x8x8x128xbf16>,
    } else {
    }
    %c3_i32_189 = arith.constant 3 : i32
    %168 = arith.cmpi eq, %arg1, %c3_i32_189 : i32
    %169 = arith.extui %168 : i1 to i32
    %c0_i32_190 = arith.constant 0 : i32
    %170 = arith.cmpi ne, %169, %c0_i32_190 : i32
    scf.if %170 {
      %171 = arith.truncf %164 : vector<1x8x8x128xf32> to vector<1x8x8x128xbf16>
      %c0_191 = arith.constant 0 : index
      %c0_192 = arith.constant 0 : index
      %c0_193 = arith.constant 0 : index
      %c0_194 = arith.constant 0 : index
      %172 = vector.load %arg11[%c0_191, %c0_192, %c0_193, %c0_194] : memref<1x8x8x128xbf16, #tpu.memory_space<vmem>>, vector<1x8x8x128xbf16>
      tpu.vector_store %arg11[%c0_191, %c0_192, %c0_193, %c0_194], %171 {strides = array<i32>} : memref<1x8x8x128xbf16, #tpu.memory_space<vmem>>, vector<1x8x8x128xbf16>,
    } else {
    }
    return
  }
  func.func @transform_0(%arg0: i32, %arg1: i32) -> (i32, i32, i32, i32) {
    %c0_i32 = arith.constant 0 : i32
    %c0_i32_0 = arith.constant 0 : i32
    %c0_i32_1 = arith.constant 0 : i32
    %c0_i32_2 = arith.constant 0 : i32
    return %arg0, %c0_i32, %c0_i32_0, %c0_i32_1 : i32, i32, i32, i32
  }
  func.func @transform_1(%arg0: i32, %arg1: i32) -> (i32, i32, i32, i32) {
    %c0_i32 = arith.constant 0 : i32
    %c0_i32_0 = arith.constant 0 : i32
    %c0_i32_1 = arith.constant 0 : i32
    %c0_i32_2 = arith.constant 0 : i32
    return %arg1, %c0_i32, %c0_i32_0, %c0_i32_1 : i32, i32, i32, i32
  }
  func.func @transform_2(%arg0: i32, %arg1: i32) -> (i32, i32, i32) {
    %c0_i32 = arith.constant 0 : i32
    %c0_i32_0 = arith.constant 0 : i32
    %c0_i32_1 = arith.constant 0 : i32
    return %arg1, %c0_i32, %c0_i32_0 : i32, i32, i32
  }
  func.func @transform_3(%arg0: i32, %arg1: i32) -> (i32, i32, i32) {
    %c0_i32 = arith.constant 0 : i32
    %c0_i32_0 = arith.constant 0 : i32
    %c0_i32_1 = arith.constant 0 : i32
    return %arg1, %c0_i32, %c0_i32_0 : i32, i32, i32
  }
  func.func @transform_4(%arg0: i32, %arg1: i32) -> (i32, i32, i32, i32) {
    %c0_i32 = arith.constant 0 : i32
    %c0_i32_0 = arith.constant 0 : i32
    %c0_i32_1 = arith.constant 0 : i32
    %c0_i32_2 = arith.constant 0 : i32
    return %arg1, %c0_i32, %c0_i32_0, %c0_i32_1 : i32, i32, i32, i32
  }
  func.func @transform_5(%arg0: i32, %arg1: i32) -> (i32, i32, i32) {
    %c0_i32 = arith.constant 0 : i32
    %c0_i32_0 = arith.constant 0 : i32
    %c0_i32_1 = arith.constant 0 : i32
    return %arg1, %c0_i32, %c0_i32_0 : i32, i32, i32
  }
  func.func @transform_6(%arg0: i32, %arg1: i32) -> (i32, i32, i32) {
    %c0_i32 = arith.constant 0 : i32
    %c0_i32_0 = arith.constant 0 : i32
    %c0_i32_1 = arith.constant 0 : i32
    return %arg1, %c0_i32, %c0_i32_0 : i32, i32, i32
  }
  func.func @transform_7(%arg0: i32, %arg1: i32) -> (i32, i32, i32) {
    %c0_i32 = arith.constant 0 : i32
    %c0_i32_0 = arith.constant 0 : i32
    %c0_i32_1 = arith.constant 0 : i32
    return %arg1, %c0_i32, %c0_i32_0 : i32, i32, i32
  }
  func.func @transform_8(%arg0: i32, %arg1: i32) -> (i32, i32, i32) {
    %c0_i32 = arith.constant 0 : i32
    %c0_i32_0 = arith.constant 0 : i32
    %c0_i32_1 = arith.constant 0 : i32
    return %arg1, %c0_i32, %c0_i32_0 : i32, i32, i32
  }
  func.func @transform_9(%arg0: i32, %arg1: i32) -> (i32, i32, i32, i32) {
    %c0_i32 = arith.constant 0 : i32
    %c0_i32_0 = arith.constant 0 : i32
    %c0_i32_1 = arith.constant 0 : i32
    %c0_i32_2 = arith.constant 0 : i32
    return %arg0, %c0_i32, %c0_i32_0, %c0_i32_1 : i32, i32, i32, i32
  }
}

module attributes {stable_mosaic.version = 11 : i64} {
  func.func @heads_kernel(%arg0: i32, %arg1: memref<2x8192xbf16, #tpu.memory_space<vmem>>, %arg2: memref<8192x128xbf16, #tpu.memory_space<vmem>>, %arg3: memref<1x128xf32, #tpu.memory_space<vmem>>, %arg4: memref<2x128xf32, #tpu.memory_space<vmem>>) attributes {dimension_semantics = [#tpu.dimension_semantics<parallel>], iteration_bounds = array<i64: 1>, scalar_prefetch = 0 : i64, scratch_operands = 0 : i64, tpu.core_type = #tpu.core_type<tc>, window_params = [{pipeline_mode = #tpu.pipeline_mode<synchronous>, transform_indices = @transform_0, window_bounds = array<i64: 2, 8192>}, {transform_indices = @transform_1, window_bounds = array<i64: 8192, 128>}, {transform_indices = @transform_2, window_bounds = array<i64: 1, 128>}, {transform_indices = @transform_3, window_bounds = array<i64: 2, 128>}]} {
    %c0 = arith.constant 0 : index
    %c0_0 = arith.constant 0 : index
    %0 = vector.load %arg1[%c0, %c0_0] : memref<2x8192xbf16, #tpu.memory_space<vmem>>, vector<2x8192xbf16>
    %c0_1 = arith.constant 0 : index
    %c0_2 = arith.constant 0 : index
    %1 = vector.load %arg2[%c0_1, %c0_2] : memref<8192x128xbf16, #tpu.memory_space<vmem>>, vector<8192x128xbf16>
    %cst = arith.constant dense<0.000000e+00> : vector<2x128xf32>
    %2 = tpu.matmul %0, %1, %cst {dimension_numbers = #tpu.dot_dimension_numbers<[1], [0], [0], [1], [0, 0, 1, 1], [], []>} : vector<2x8192xbf16>, vector<8192x128xbf16>, vector<2x128xf32> -> vector<2x128xf32>
    %c0_3 = arith.constant 0 : index
    %c0_4 = arith.constant 0 : index
    %3 = vector.load %arg3[%c0_3, %c0_4] : memref<1x128xf32, #tpu.memory_space<vmem>>, vector<1x128xf32>
    %4 = vector.broadcast %3 : vector<1x128xf32> to vector<2x128xf32>
    %5 = arith.addf %2, %4 : vector<2x128xf32>
    %c0_5 = arith.constant 0 : index
    %c0_6 = arith.constant 0 : index
    %6 = vector.load %arg4[%c0_5, %c0_6] : memref<2x128xf32, #tpu.memory_space<vmem>>, vector<2x128xf32>
    tpu.vector_store %arg4[%c0_5, %c0_6], %5 {strides = array<i32>} : memref<2x128xf32, #tpu.memory_space<vmem>>, vector<2x128xf32>,
    return
  }
  func.func @transform_0(%arg0: i32) -> (i32, i32) {
    %c0_i32 = arith.constant 0 : i32
    %c0_i32_0 = arith.constant 0 : i32
    %c0_i32_1 = arith.constant 0 : i32
    return %c0_i32, %c0_i32_0 : i32, i32
  }
  func.func @transform_1(%arg0: i32) -> (i32, i32) {
    %c0_i32 = arith.constant 0 : i32
    %c0_i32_0 = arith.constant 0 : i32
    return %c0_i32, %arg0 : i32, i32
  }
  func.func @transform_2(%arg0: i32) -> (i32, i32) {
    %c0_i32 = arith.constant 0 : i32
    %c0_i32_0 = arith.constant 0 : i32
    return %c0_i32, %arg0 : i32, i32
  }
  func.func @transform_3(%arg0: i32) -> (i32, i32) {
    %c0_i32 = arith.constant 0 : i32
    %c0_i32_0 = arith.constant 0 : i32
    return %c0_i32, %arg0 : i32, i32
  }
}

</mosaic_0001>

<llo_original>
// kernel: chessnet_forward.2
$region0: #{chessnet_forward.2}
  #allocation0 [shape = 'u32[]', space=smem, size = 0x4, offset = 0x4, fixed_abs, tag = 'smem constant byte address 0x4 - core index']
  #allocation1 [shape = 'u32[144,128]{1,0:T(1,128)}', space=vmem, size = 0x12000, scoped, tag = 'internal scratch']
  #allocation2 [shape = 'bf16[1,10,12,128]{3,2,1,0:T(8,128)(2,1)}', space=vmem, size = 0xa000, scoped, tag = 'scratch operand']
  #allocation3 [shape = 'bf16[1,10,12,128]{3,2,1,0:T(8,128)(2,1)}', space=vmem, size = 0xa000, scoped, tag = 'scratch operand']
  %s0 = inlined_call_operand.vmem [shape: f32[2,8,8,128], index: 0, kind: input, shape index: {}]
  %s1 = inlined_call_operand.hbm [shape: bf16[4,9,128,128], index: 1, kind: input, shape index: {}]
  %s2 = inlined_call_operand.hbm [shape: f32[4,1,128], index: 2, kind: input, shape index: {}]
  %s3 = inlined_call_operand.hbm [shape: f32[4,1,128], index: 3, kind: input, shape index: {}]
  %s4 = inlined_call_operand.hbm [shape: bf16[4,9,128,128], index: 4, kind: input, shape index: {}]
  %s5 = inlined_call_operand.hbm [shape: f32[4,1,128], index: 5, kind: input, shape index: {}]
  %s6 = inlined_call_operand.hbm [shape: f32[4,1,128], index: 6, kind: input, shape index: {}]
  %s7 = inlined_call_operand.hbm [shape: bf16[4,128,128], index: 7, kind: input, shape index: {}]
  %s8 = inlined_call_operand.hbm [shape: f32[4,1,128], index: 8, kind: input, shape index: {}]
  %s9 = inlined_call_operand.vmem [shape: bf16[2,8,8,128], index: 9, kind: output, shape index: {}]
  %s10 = sld [smem:[#allocation0]]
  $region113: #{chessnet_forward.2} parent=0
    _
  %s12 = ssub.s32 1, %s10
  %s13 = scalar_select 0, %s12, %s10
  $region1: #{chessnet_forward.2} parent=0
    #allocation4 [shape = 'u8[589824]{0}', space=vmem, size = 0x90000, scoped, tag = 'input window, operand 1']
    #allocation5 [shape = 's32[2]{0}', space=sflag, size = 0x8, scoped, tag = 'scoped memory for chessnet_forward.2']
    #allocation6 [shape = 'u8[1024]{0}', space=vmem, size = 0x400, scoped, tag = 'input window, operand 2']
    #allocation7 [shape = 's32[2]{0}', space=sflag, size = 0x8, scoped, tag = 'scoped memory for chessnet_forward.2']
    #allocation8 [shape = 'u8[1024]{0}', space=vmem, size = 0x400, scoped, tag = 'input window, operand 3']
    #allocation9 [shape = 'u8[589824]{0}', space=vmem, size = 0x90000, scoped, tag = 'input window, operand 4']
    #allocation10 [shape = 's32[2]{0}', space=sflag, size = 0x8, scoped, tag = 'scoped memory for chessnet_forward.2']
    #allocation11 [shape = 'u8[1024]{0}', space=vmem, size = 0x400, scoped, tag = 'input window, operand 5']
    #allocation12 [shape = 'u8[1024]{0}', space=vmem, size = 0x400, scoped, tag = 'input window, operand 6']
    #allocation13 [shape = 's32[2]{0}', space=sflag, size = 0x8, scoped, tag = 'scoped memory for chessnet_forward.2']
    #allocation14 [shape = 'u8[65536]{0}', space=vmem, size = 0x10000, scoped, tag = 'input window, operand 7']
    #allocation15 [shape = 'u8[1024]{0}', space=vmem, size = 0x400, scoped, tag = 'input window, operand 8']
    #allocation16 [shape = 's32[2]{0}', space=sflag, size = 0x8, scoped, tag = 'scoped memory for chessnet_forward.2']
    %14 = vsyncpa [#allocation5], 0
    %s15 = scalar_lea.sflag [#allocation5], 1
    %16 = vsyncpa %s15, 0
    %17 = vsyncpa [#allocation7], 0
    %s18 = scalar_lea.sflag [#allocation7], 1
    %19 = vsyncpa %s18, 0
    %20 = vsyncpa [#allocation10], 0
    %s21 = scalar_lea.sflag [#allocation10], 1
    %22 = vsyncpa %s21, 0
    %23 = vsyncpa [#allocation13], 0
    %s24 = scalar_lea.sflag [#allocation13], 1
    %25 = vsyncpa %s24, 0
    %26 = vsyncpa [#allocation16], 0
    %s27 = scalar_lea.sflag [#allocation16], 1
    %28 = vsyncpa %s27, 0
    loop: start=0, step=1, limit=10
    $region2: #{chessnet_forward.2} parent=1 // loop_pre_header
      _
    $region3: #{chessnet_forward.2} parent=1 // loop_header
      %s30 = sphi 0, %s34
      %p31 = scmp.ge.s32.totalorder %s30, 10
      %s37 = sphi 0, %s49
      %s38 = sphi 0, %s45
      %s39 = sphi 0, %s37
      %s40 = sphi 0, %s38
      %s41 = sphi 0, %s39
      %s42 = sphi 0, %s40
      %s52 = sphi 0, %s54
      %s55 = sphi 0, %s52
      %s56 = sphi 0, %s55
      %s72 = sphi 0, %s56
      %s78 = sphi 0, %s80
      %s81 = sphi 0, %s78
      %s82 = sphi 0, %s81
      %s98 = sphi 0, %s82
      %s104 = sphi 0, %s106
      %s107 = sphi 0, %s104
      %s108 = sphi 0, %s107
      %s124 = sphi 0, %s108
      %s130 = sphi 0, %s132
      %s133 = sphi 0, %s130
      %s134 = sphi 0, %s133
      %s150 = sphi 0, %s134
      %s156 = sphi 0, %s158
      %s159 = sphi 0, %s156
      %s160 = sphi 0, %s159
      %s176 = sphi 0, %s160
      %s182 = sphi 0, %s184
      %s185 = sphi 0, %s182
      %s186 = sphi 0, %s185
      %s202 = sphi 0, %s186
      %s208 = sphi 0, %s210
      %s211 = sphi 0, %s208
      %s212 = sphi 0, %s211
      %s228 = sphi 0, %s212
      %s234 = sphi 0, %s236
      %s237 = sphi 0, %s234
      %s238 = sphi 0, %s237
      %s254 = sphi 0, %s238
      %s260 = sphi 0, %s262
      %s263 = sphi 0, %s260
      %s264 = sphi 0, %s263
      %s280 = sphi 0, %s264
      %s286 = sphi 0, %s288
      %s289 = sphi 0, %s286
      %s290 = sphi 0, %s289
      %s306 = sphi 0, %s290
    $region4: #{chessnet_forward.2} parent=1 // loop_header_branch
      %33 = sbr.rel (%p31) target = $region8
    $region5: #{chessnet_forward.2} parent=1 // loop_body
      %s35 = ssub.s32 %s30, 1
      %s36 = ssub.s32 %s30, 2
      %s43 = sadd.s32 1, %s38
      %p44 = scmp.ge.s32.totalorder %s43, 4
      %s45 = scalar_select %p44, 0, %s43
      %s46 = sadd.s32 1, %s37
      %s47 = scalar_select %p44, %s46, %s37
      %p48 = scmp.ge.s32.totalorder %s47, 2
      %s49 = scalar_select %p48, 0, %s47
      %s50 = ssub.s32 %s37, %s49
      %p51 = scmp.eq.s32.totalorder %s50, 0
      %s53 = sadd.s32 %s52, 1
      %s54 = scalar_select %p51, %s52, %s53
      %p57 = pneg %p51
      %p58 = scmp.eq.s32.totalorder %s30, 7
      %p59 = por %p57, %p58
      %p60 = scmp.ne.s32.totalorder %s52, %s55
      %p61 = scmp.eq.s32.totalorder %s30, 0
      %p62 = por %p60, %p61
      %p63 = scmp.ne.s32.totalorder %s52, %s55
      %p64 = scmp.eq.s32.totalorder %s35, 7
      %p65 = por %p63, %p64
      %p66 = scmp.ne.s32.totalorder %s55, %s56
      %p67 = scmp.eq.s32.totalorder %s35, 0
      %p68 = por %p66, %p67
      %p69 = scmp.ne.s32.totalorder %s55, %s56
      %p70 = scmp.eq.s32.totalorder %s36, 7
      %p71 = por %p69, %p70
      %p73 = scmp.ne.s32.totalorder %s56, %s72
      %p74 = scmp.eq.s32.totalorder %s36, 0
      %p75 = por %p73, %p74
      %s76 = ssub.s32 %s38, %s45
      %p77 = scmp.eq.s32.totalorder %s76, 0
      %s79 = sadd.s32 %s78, 1
      %s80 = scalar_select %p77, %s78, %s79
      %p83 = pneg %p77
      %p84 = scmp.eq.s32.totalorder %s30, 7
      %p85 = por %p83, %p84
      %p86 = scmp.ne.s32.totalorder %s78, %s81
      %p87 = scmp.eq.s32.totalorder %s30, 0
      %p88 = por %p86, %p87
      %p89 = scmp.ne.s32.totalorder %s78, %s81
      %p90 = scmp.eq.s32.totalorder %s35, 7
      %p91 = por %p89, %p90
      %p92 = scmp.ne.s32.totalorder %s81, %s82
      %p93 = scmp.eq.s32.totalorder %s35, 0
      %p94 = por %p92, %p93
      %p95 = scmp.ne.s32.totalorder %s81, %s82
      %p96 = scmp.eq.s32.totalorder %s36, 7
      %p97 = por %p95, %p96
      %p99 = scmp.ne.s32.totalorder %s82, %s98
      %p100 = scmp.eq.s32.totalorder %s36, 0
      %p101 = por %p99, %p100
      %s102 = ssub.s32 %s38, %s45
      %p103 = scmp.eq.s32.totalorder %s102, 0
      %s105 = sadd.s32 %s104, 1
      %s106 = scalar_select %p103, %s104, %s105
      %p109 = pneg %p103
      %p110 = scmp.eq.s32.totalorder %s30, 7
      %p111 = por %p109, %p110
      %p112 = scmp.ne.s32.totalorder %s104, %s107
      %p113 = scmp.eq.s32.totalorder %s30, 0
      %p114 = por %p112, %p113
      %p115 = scmp.ne.s32.totalorder %s104, %s107
      %p116 = scmp.eq.s32.totalorder %s35, 7
      %p117 = por %p115, %p116
      %p118 = scmp.ne.s32.totalorder %s107, %s108
      %p119 = scmp.eq.s32.totalorder %s35, 0
      %p120 = por %p118, %p119
      %p121 = scmp.ne.s32.totalorder %s107, %s108
      %p122 = scmp.eq.s32.totalorder %s36, 7
      %p123 = por %p121, %p122
      %p125 = scmp.ne.s32.totalorder %s108, %s124
      %p126 = scmp.eq.s32.totalorder %s36, 0
      %p127 = por %p125, %p126
      %s128 = ssub.s32 %s38, %s45
      %p129 = scmp.eq.s32.totalorder %s128, 0
      %s131 = sadd.s32 %s130, 1
      %s132 = scalar_select %p129, %s130, %s131
      %p135 = pneg %p129
      %p136 = scmp.eq.s32.totalorder %s30, 7
      %p137 = por %p135, %p136
      %p138 = scmp.ne.s32.totalorder %s130, %s133
      %p139 = scmp.eq.s32.totalorder %s30, 0
      %p140 = por %p138, %p139
      %p141 = scmp.ne.s32.totalorder %s130, %s133
      %p142 = scmp.eq.s32.totalorder %s35, 7
      %p143 = por %p141, %p142
      %p144 = scmp.ne.s32.totalorder %s133, %s134
      %p145 = scmp.eq.s32.totalorder %s35, 0
      %p146 = por %p144, %p145
      %p147 = scmp.ne.s32.totalorder %s133, %s134
      %p148 = scmp.eq.s32.totalorder %s36, 7
      %p149 = por %p147, %p148
      %p151 = scmp.ne.s32.totalorder %s134, %s150
      %p152 = scmp.eq.s32.totalorder %s36, 0
      %p153 = por %p151, %p152
      %s154 = ssub.s32 %s38, %s45
      %p155 = scmp.eq.s32.totalorder %s154, 0
      %s157 = sadd.s32 %s156, 1
      %s158 = scalar_select %p155, %s156, %s157
      %p161 = pneg %p155
      %p162 = scmp.eq.s32.totalorder %s30, 7
      %p163 = por %p161, %p162
      %p164 = scmp.ne.s32.totalorder %s156, %s159
      %p165 = scmp.eq.s32.totalorder %s30, 0
      %p166 = por %p164, %p165
      %p167 = scmp.ne.s32.totalorder %s156, %s159
      %p168 = scmp.eq.s32.totalorder %s35, 7
      %p169 = por %p167, %p168
      %p170 = scmp.ne.s32.totalorder %s159, %s160
      %p171 = scmp.eq.s32.totalorder %s35, 0
      %p172 = por %p170, %p171
      %p173 = scmp.ne.s32.totalorder %s159, %s160
      %p174 = scmp.eq.s32.totalorder %s36, 7
      %p175 = por %p173, %p174
      %p177 = scmp.ne.s32.totalorder %s160, %s176
      %p178 = scmp.eq.s32.totalorder %s36, 0
      %p179 = por %p177, %p178
      %s180 = ssub.s32 %s38, %s45
      %p181 = scmp.eq.s32.totalorder %s180, 0
      %s183 = sadd.s32 %s182, 1
      %s184 = scalar_select %p181, %s182, %s183
      %p187 = pneg %p181
      %p188 = scmp.eq.s32.totalorder %s30, 7
      %p189 = por %p187, %p188
      %p190 = scmp.ne.s32.totalorder %s182, %s185
      %p191 = scmp.eq.s32.totalorder %s30, 0
      %p192 = por %p190, %p191
      %p193 = scmp.ne.s32.totalorder %s182, %s185
      %p194 = scmp.eq.s32.totalorder %s35, 7
      %p195 = por %p193, %p194
      %p196 = scmp.ne.s32.totalorder %s185, %s186
      %p197 = scmp.eq.s32.totalorder %s35, 0
      %p198 = por %p196, %p197
      %p199 = scmp.ne.s32.totalorder %s185, %s186
      %p200 = scmp.eq.s32.totalorder %s36, 7
      %p201 = por %p199, %p200
      %p203 = scmp.ne.s32.totalorder %s186, %s202
      %p204 = scmp.eq.s32.totalorder %s36, 0
      %p205 = por %p203, %p204
      %s206 = ssub.s32 %s38, %s45
      %p207 = scmp.eq.s32.totalorder %s206, 0
      %s209 = sadd.s32 %s208, 1
      %s210 = scalar_select %p207, %s208, %s209
      %p213 = pneg %p207
      %p214 = scmp.eq.s32.totalorder %s30, 7
      %p215 = por %p213, %p214
      %p216 = scmp.ne.s32.totalorder %s208, %s211
      %p217 = scmp.eq.s32.totalorder %s30, 0
      %p218 = por %p216, %p217
      %p219 = scmp.ne.s32.totalorder %s208, %s211
      %p220 = scmp.eq.s32.totalorder %s35, 7
      %p221 = por %p219, %p220
      %p222 = scmp.ne.s32.totalorder %s211, %s212
      %p223 = scmp.eq.s32.totalorder %s35, 0
      %p224 = por %p222, %p223
      %p225 = scmp.ne.s32.totalorder %s211, %s212
      %p226 = scmp.eq.s32.totalorder %s36, 7
      %p227 = por %p225, %p226
      %p229 = scmp.ne.s32.totalorder %s212, %s228
      %p230 = scmp.eq.s32.totalorder %s36, 0
      %p231 = por %p229, %p230
      %s232 = ssub.s32 %s38, %s45
      %p233 = scmp.eq.s32.totalorder %s232, 0
      %s235 = sadd.s32 %s234, 1
      %s236 = scalar_select %p233, %s234, %s235
      %p239 = pneg %p233
      %p240 = scmp.eq.s32.totalorder %s30, 7
      %p241 = por %p239, %p240
      %p242 = scmp.ne.s32.totalorder %s234, %s237
      %p243 = scmp.eq.s32.totalorder %s30, 0
      %p244 = por %p242, %p243
      %p245 = scmp.ne.s32.totalorder %s234, %s237
      %p246 = scmp.eq.s32.totalorder %s35, 7
      %p247 = por %p245, %p246
      %p248 = scmp.ne.s32.totalorder %s237, %s238
      %p249 = scmp.eq.s32.totalorder %s35, 0
      %p250 = por %p248, %p249
      %p251 = scmp.ne.s32.totalorder %s237, %s238
      %p252 = scmp.eq.s32.totalorder %s36, 7
      %p253 = por %p251, %p252
      %p255 = scmp.ne.s32.totalorder %s238, %s254
      %p256 = scmp.eq.s32.totalorder %s36, 0
      %p257 = por %p255, %p256
      %s258 = ssub.s32 %s38, %s45
      %p259 = scmp.eq.s32.totalorder %s258, 0
      %s261 = sadd.s32 %s260, 1
      %s262 = scalar_select %p259, %s260, %s261
      %p265 = pneg %p259
      %p266 = scmp.eq.s32.totalorder %s30, 7
      %p267 = por %p265, %p266
      %p268 = scmp.ne.s32.totalorder %s260, %s263
      %p269 = scmp.eq.s32.totalorder %s30, 0
      %p270 = por %p268, %p269
      %p271 = scmp.ne.s32.totalorder %s260, %s263
      %p272 = scmp.eq.s32.totalorder %s35, 7
      %p273 = por %p271, %p272
      %p274 = scmp.ne.s32.totalorder %s263, %s264
      %p275 = scmp.eq.s32.totalorder %s35, 0
      %p276 = por %p274, %p275
      %p277 = scmp.ne.s32.totalorder %s263, %s264
      %p278 = scmp.eq.s32.totalorder %s36, 7
      %p279 = por %p277, %p278
      %p281 = scmp.ne.s32.totalorder %s264, %s280
      %p282 = scmp.eq.s32.totalorder %s36, 0
      %p283 = por %p281, %p282
      %s284 = ssub.s32 %s37, %s49
      %p285 = scmp.eq.s32.totalorder %s284, 0
      %s287 = sadd.s32 %s286, 1
      %s288 = scalar_select %p285, %s286, %s287
      %p291 = pneg %p285
      %p292 = scmp.eq.s32.totalorder %s30, 7
      %p293 = por %p291, %p292
      %p294 = scmp.ne.s32.totalorder %s286, %s289
      %p295 = scmp.eq.s32.totalorder %s30, 0
      %p296 = por %p294, %p295
      %p297 = scmp.ne.s32.totalorder %s286, %s289
      %p298 = scmp.eq.s32.totalorder %s35, 7
      %p299 = por %p297, %p298
      %p300 = scmp.ne.s32.totalorder %s289, %s290
      %p301 = scmp.eq.s32.totalorder %s35, 0
      %p302 = por %p300, %p301
      %p303 = scmp.ne.s32.totalorder %s289, %s290
      %p304 = scmp.eq.s32.totalorder %s36, 7
      %p305 = por %p303, %p304
      %p307 = scmp.ne.s32.totalorder %s290, %s306
      %p308 = scmp.eq.s32.totalorder %s36, 0
      %p309 = por %p307, %p308
      %p310 = scmp.le.s32.totalorder 1, %s30
      %p311 = scmp.lt.s32.totalorder %s30, 9
      %p312 = pnand %p310, %p311
      %p313 = pneg %p312
      // Predicated region
      $region9: #{chessnet_forward.2} parent=5 // pred_check
        _
      $region10: #{chessnet_forward.2} parent=5 // pred_check_branch
        %315 = sbr.rel (%p312) target = $region12
      $region11: #{chessnet_forward.2} parent=5 // pred_region
        %s316 = ssub.s32 %s30, 1
      $region12: #{chessnet_forward.2} parent=5 // pred_fallthru
        _
      %p317 = scmp.lt.s32.totalorder %s30, 8
      // Predicated region
      $region13: #{chessnet_forward.2} parent=5 // pred_check
        %p318 = pneg %p317
      $region14: #{chessnet_forward.2} parent=5 // pred_check_branch
        %320 = sbr.rel (%p318) target = $region16
      $region15: #{chessnet_forward.2} parent=5 // pred_region
        // Predicated region
        $region17: #{chessnet_forward.2} parent=15 // pred_check
          %p321 = pneg %p62
        $region18: #{chessnet_forward.2} parent=15 // pred_check_branch
          %323 = sbr.rel (%p321) target = $region20
        $region19: #{chessnet_forward.2} parent=15 // pred_region
          %p324 = scmp.lt.s32.totalorder %s37, 1
          %s325 = scalar_select %p324, %s37, 1
          %s326 = smul.addr %s325, 8
          %s327 = smul.addr %s326, 8
          %s328 = scalar_lea.vmem %s0, %s327
        $region20: #{chessnet_forward.2} parent=15 // pred_fallthru
          _
        // Predicated region
        $region21: #{chessnet_forward.2} parent=15 // pred_check
          %p329 = pneg %p88
        $region22: #{chessnet_forward.2} parent=15 // pred_check_branch
          %331 = sbr.rel (%p329) target = $region24
        $region23: #{chessnet_forward.2} parent=15 // pred_region
          %s332 = sand.u32 %s78, 1
          %s333 = scalar_lea.sflag [#allocation5], %s332
          %s334 = sand.u32 %s78, 1
          %s335 = smul.addr %s334, 576
          %s336 = scalar_lea.vmem [#allocation4], %s335
          %s338 = ssub.s32 9216, 9216
          %339 = vsyncadd %s333, %s338
          %s340 = smul.addr %s38, 144
          %s341 = smul.addr %s340, 64
          %s342 = scalar_lea.hbm %s1, %s341
          %s343 = sshll.u32 %s336, 4
          %s344 = int_to_ptr.vmem [resolvable:$true] %s343
          %349 = dma.hbm_to_vmem [thread:$0]  %s342, 9216, %s344, %s333, 64, 64, 4
        $region24: #{chessnet_forward.2} parent=15 // pred_fallthru
          _
        // Predicated region
        $region25: #{chessnet_forward.2} parent=15 // pred_check
          %p350 = pneg %p114
        $region26: #{chessnet_forward.2} parent=15 // pred_check_branch
          %352 = sbr.rel (%p350) target = $region28
        $region27: #{chessnet_forward.2} parent=15 // pred_region
          %s353 = sand.u32 %s30, 1
          %s354 = scalar_lea.sflag [#allocation7], %s353
          %s355 = sand.u32 %s104, 1
          %s356 = scalar_lea.vmem [#allocation6], %s355
          %s358 = ssub.s32 16, 16
          %359 = vsyncadd %s354, %s358
          %s360 = smul.addr %s38, 16
          %s361 = scalar_lea.hbm %s2, %s360
          %s363 = sshll.u32 %s356, 4
          %s364 = int_to_ptr.vmem [resolvable:$true] %s363
          %366 = dma.hbm_to_vmem [thread:$0]  %s361, 16, %s364, %s354
        $region28: #{chessnet_forward.2} parent=15 // pred_fallthru
          _
        // Predicated region
        $region29: #{chessnet_forward.2} parent=15 // pred_check
          %p367 = pneg %p140
        $region30: #{chessnet_forward.2} parent=15 // pred_check_branch
          %369 = sbr.rel (%p367) target = $region32
        $region31: #{chessnet_forward.2} parent=15 // pred_region
          %s370 = sand.u32 %s30, 1
          %s371 = scalar_lea.sflag [#allocation7], %s370
          %s372 = sand.u32 %s130, 1
          %s373 = scalar_lea.vmem [#allocation8], %s372
          %s375 = ssub.s32 16, 16
          %376 = vsyncadd %s371, %s375
          %s377 = smul.addr %s38, 16
          %s378 = scalar_lea.hbm %s3, %s377
          %s380 = sshll.u32 %s373, 4
          %s381 = int_to_ptr.vmem [resolvable:$true] %s380
          %383 = dma.hbm_to_vmem [thread:$0]  %s378, 16, %s381, %s371
        $region32: #{chessnet_forward.2} parent=15 // pred_fallthru
          _
        // Predicated region
        $region33: #{chessnet_forward.2} parent=15 // pred_check
          %p384 = pneg %p166
        $region34: #{chessnet_forward.2} parent=15 // pred_check_branch
          %386 = sbr.rel (%p384) target = $region36
        $region35: #{chessnet_forward.2} parent=15 // pred_region
          %s387 = sand.u32 %s30, 1
          %s388 = scalar_lea.sflag [#allocation10], %s387
          %s389 = sand.u32 %s156, 1
          %s390 = smul.addr %s389, 576
          %s391 = scalar_lea.vmem [#allocation9], %s390
          %s393 = ssub.s32 9216, 9216
          %394 = vsyncadd %s388, %s393
          %s395 = smul.addr %s38, 144
          %s396 = smul.addr %s395, 64
          %s397 = scalar_lea.hbm %s4, %s396
          %s398 = sshll.u32 %s391, 4
          %s399 = int_to_ptr.vmem [resolvable:$true] %s398
          %404 = dma.hbm_to_vmem [thread:$0]  %s397, 9216, %s399, %s388, 64, 64, 4
        $region36: #{chessnet_forward.2} parent=15 // pred_fallthru
          _
        // Predicated region
        $region37: #{chessnet_forward.2} parent=15 // pred_check
          %p405 = pneg %p192
        $region38: #{chessnet_forward.2} parent=15 // pred_check_branch
          %407 = sbr.rel (%p405) target = $region40
        $region39: #{chessnet_forward.2} parent=15 // pred_region
          %s408 = sand.u32 %s30, 1
          %s409 = scalar_lea.sflag [#allocation10], %s408
          %s410 = sand.u32 %s182, 1
          %s411 = scalar_lea.vmem [#allocation11], %s410
          %s413 = ssub.s32 16, 16
          %414 = vsyncadd %s409, %s413
          %s415 = smul.addr %s38, 16
          %s416 = scalar_lea.hbm %s5, %s415
          %s418 = sshll.u32 %s411, 4
          %s419 = int_to_ptr.vmem [resolvable:$true] %s418
          %421 = dma.hbm_to_vmem [thread:$0]  %s416, 16, %s419, %s409
        $region40: #{chessnet_forward.2} parent=15 // pred_fallthru
          _
        // Predicated region
        $region41: #{chessnet_forward.2} parent=15 // pred_check
          %p422 = pneg %p218
        $region42: #{chessnet_forward.2} parent=15 // pred_check_branch
          %424 = sbr.rel (%p422) target = $region44
        $region43: #{chessnet_forward.2} parent=15 // pred_region
          %s425 = sand.u32 %s30, 1
          %s426 = scalar_lea.sflag [#allocation13], %s425
          %s427 = sand.u32 %s208, 1
          %s428 = scalar_lea.vmem [#allocation12], %s427
          %s430 = ssub.s32 16, 16
          %431 = vsyncadd %s426, %s430
          %s432 = smul.addr %s38, 16
          %s433 = scalar_lea.hbm %s6, %s432
          %s435 = sshll.u32 %s428, 4
          %s436 = int_to_ptr.vmem [resolvable:$true] %s435
          %438 = dma.hbm_to_vmem [thread:$0]  %s433, 16, %s436, %s426
        $region44: #{chessnet_forward.2} parent=15 // pred_fallthru
          _
        // Predicated region
        $region45: #{chessnet_forward.2} parent=15 // pred_check
          %p439 = pneg %p244
        $region46: #{chessnet_forward.2} parent=15 // pred_check_branch
          %441 = sbr.rel (%p439) target = $region48
        $region47: #{chessnet_forward.2} parent=15 // pred_region
          %s442 = sand.u32 %s30, 1
          %s443 = scalar_lea.sflag [#allocation13], %s442
          %s444 = sand.u32 %s234, 1
          %s445 = smul.addr %s444, 64
          %s446 = scalar_lea.vmem [#allocation14], %s445
          %s448 = ssub.s32 1024, 1024
          %449 = vsyncadd %s443, %s448
          %s450 = smul.addr %s38, 16
          %s451 = smul.addr %s450, 64
          %s452 = scalar_lea.hbm %s7, %s451
          %s453 = sshll.u32 %s446, 4
          %s454 = int_to_ptr.vmem [resolvable:$true] %s453
          %459 = dma.hbm_to_vmem [thread:$0]  %s452, 1024, %s454, %s443, 64, 64, 4
        $region48: #{chessnet_forward.2} parent=15 // pred_fallthru
          _
        // Predicated region
        $region49: #{chessnet_forward.2} parent=15 // pred_check
          %p460 = pneg %p270
        $region50: #{chessnet_forward.2} parent=15 // pred_check_branch
          %462 = sbr.rel (%p460) target = $region52
        $region51: #{chessnet_forward.2} parent=15 // pred_region
          %s463 = sand.u32 %s260, 1
          %s464 = scalar_lea.sflag [#allocation16], %s463
          %s465 = sand.u32 %s260, 1
          %s466 = scalar_lea.vmem [#allocation15], %s465
          %s468 = ssub.s32 16, 16
          %469 = vsyncadd %s464, %s468
          %s470 = smul.addr %s38, 16
          %s471 = scalar_lea.hbm %s8, %s470
          %s473 = sshll.u32 %s466, 4
          %s474 = int_to_ptr.vmem [resolvable:$true] %s473
          %476 = dma.hbm_to_vmem [thread:$0]  %s471, 16, %s474, %s464
        $region52: #{chessnet_forward.2} parent=15 // pred_fallthru
          _
      $region16: #{chessnet_forward.2} parent=5 // pred_fallthru
        _
      %p477 = scmp.le.s32.totalorder 1, %s30
      %p478 = scmp.lt.s32.totalorder %s30, 9
      %p479 = pnand %p477, %p478
      %p480 = pneg %p479
      // Predicated region
      $region53: #{chessnet_forward.2} parent=5 // pred_check
        _
      $region54: #{chessnet_forward.2} parent=5 // pred_check_branch
        %482 = sbr.rel (%p479) target = $region56
      $region55: #{chessnet_forward.2} parent=5 // pred_region
        %s483 = ssub.s32 %s30, 1
        %s484 = sand.u32 %s81, 1
        %s485 = scalar_lea.sflag [#allocation5], %s484
        %s486 = sand.u32 %s81, 1
        %s487 = smul.addr %s486, 576
        %s488 = scalar_lea.vmem [#allocation4], %s487
        // Predicated region
        $region57: #{chessnet_forward.2} parent=55 // pred_check
          %p489 = pneg %p94
        $region58: #{chessnet_forward.2} parent=55 // pred_check_branch
          %491 = sbr.rel (%p489) target = $region60
        $region59: #{chessnet_forward.2} parent=55 // pred_region
          %492 = dma.done %s485, 9216
        $region60: #{chessnet_forward.2} parent=55 // pred_fallthru
          _
        %s493 = sand.u32 %s35, 1
        %s494 = scalar_lea.sflag [#allocation7], %s493
        %s495 = sand.u32 %s107, 1
        %s496 = scalar_lea.vmem [#allocation6], %s495
        // Predicated region
        $region61: #{chessnet_forward.2} parent=55 // pred_check
          %p497 = pneg %p120
        $region62: #{chessnet_forward.2} parent=55 // pred_check_branch
          %499 = sbr.rel (%p497) target = $region64
        $region63: #{chessnet_forward.2} parent=55 // pred_region
          %500 = dma.done %s494, 16
        $region64: #{chessnet_forward.2} parent=55 // pred_fallthru
          _
        %s501 = sand.u32 %s35, 1
        %s502 = scalar_lea.sflag [#allocation7], %s501
        %s503 = sand.u32 %s133, 1
        %s504 = scalar_lea.vmem [#allocation8], %s503
        // Predicated region
        $region65: #{chessnet_forward.2} parent=55 // pred_check
          %p505 = pneg %p146
        $region66: #{chessnet_forward.2} parent=55 // pred_check_branch
          %507 = sbr.rel (%p505) target = $region68
        $region67: #{chessnet_forward.2} parent=55 // pred_region
          %508 = dma.done %s502, 16
        $region68: #{chessnet_forward.2} parent=55 // pred_fallthru
          _
        %s509 = sand.u32 %s35, 1
        %s510 = scalar_lea.sflag [#allocation10], %s509
        %s511 = sand.u32 %s159, 1
        %s512 = smul.addr %s511, 576
        %s513 = scalar_lea.vmem [#allocation9], %s512
        // Predicated region
        $region69: #{chessnet_forward.2} parent=55 // pred_check
          %p514 = pneg %p172
        $region70: #{chessnet_forward.2} parent=55 // pred_check_branch
          %516 = sbr.rel (%p514) target = $region72
        $region71: #{chessnet_forward.2} parent=55 // pred_region
          %517 = dma.done %s510, 9216
        $region72: #{chessnet_forward.2} parent=55 // pred_fallthru
          _
        %s518 = sand.u32 %s35, 1
        %s519 = scalar_lea.sflag [#allocation10], %s518
        %s520 = sand.u32 %s185, 1
        %s521 = scalar_lea.vmem [#allocation11], %s520
        // Predicated region
        $region73: #{chessnet_forward.2} parent=55 // pred_check
          %p522 = pneg %p198
        $region74: #{chessnet_forward.2} parent=55 // pred_check_branch
          %524 = sbr.rel (%p522) target = $region76
        $region75: #{chessnet_forward.2} parent=55 // pred_region
          %525 = dma.done %s519, 16
        $region76: #{chessnet_forward.2} parent=55 // pred_fallthru
          _
        %s526 = sand.u32 %s35, 1
        %s527 = scalar_lea.sflag [#allocation13], %s526
        %s528 = sand.u32 %s211, 1
        %s529 = scalar_lea.vmem [#allocation12], %s528
        // Predicated region
        $region77: #{chessnet_forward.2} parent=55 // pred_check
          %p530 = pneg %p224
        $region78: #{chessnet_forward.2} parent=55 // pred_check_branch
          %532 = sbr.rel (%p530) target = $region80
        $region79: #{chessnet_forward.2} parent=55 // pred_region
          %533 = dma.done %s527, 16
        $region80: #{chessnet_forward.2} parent=55 // pred_fallthru
          _
        %s534 = sand.u32 %s35, 1
        %s535 = scalar_lea.sflag [#allocation13], %s534
        %s536 = sand.u32 %s237, 1
        %s537 = smul.addr %s536, 64
        %s538 = scalar_lea.vmem [#allocation14], %s537
        // Predicated region
        $region81: #{chessnet_forward.2} parent=55 // pred_check
          %p539 = pneg %p250
        $region82: #{chessnet_forward.2} parent=55 // pred_check_branch
          %541 = sbr.rel (%p539) target = $region84
        $region83: #{chessnet_forward.2} parent=55 // pred_region
          %542 = dma.done %s535, 1024
        $region84: #{chessnet_forward.2} parent=55 // pred_fallthru
          _
        %s543 = sand.u32 %s263, 1
        %s544 = scalar_lea.sflag [#allocation16], %s543
        %s545 = sand.u32 %s263, 1
        %s546 = scalar_lea.vmem [#allocation15], %s545
        // Predicated region
        $region85: #{chessnet_forward.2} parent=55 // pred_check
          %p547 = pneg %p276
        $region86: #{chessnet_forward.2} parent=55 // pred_check_branch
          %549 = sbr.rel (%p547) target = $region88
        $region87: #{chessnet_forward.2} parent=55 // pred_region
          %550 = dma.done %s544, 16
        $region88: #{chessnet_forward.2} parent=55 // pred_fallthru
          _
        %p551 = scmp.lt.s32.totalorder %s39, 1
        %s552 = scalar_select %p551, %s39, 1
        %s553 = smul.addr %s552, 8
        %s554 = smul.addr %s553, 8
        %s555 = scalar_lea.vmem %s0, %s554
        %p556 = pneg %p68
        %p557 = pneg %p65
        %s558 = sand.u32 %s81, 1
        %s559 = scalar_lea.sflag [#allocation5], %s558
        %s560 = sand.u32 %s81, 1
        %s561 = smul.addr %s560, 576
        %s562 = scalar_lea.vmem [#allocation4], %s561
        %p563 = pneg %p94
        %p564 = pneg %p91
        %s565 = sand.u32 %s35, 1
        %s566 = scalar_lea.sflag [#allocation7], %s565
        %s567 = sand.u32 %s107, 1
        %s568 = scalar_lea.vmem [#allocation6], %s567
        %p569 = pneg %p120
        %p570 = pneg %p117
        %s571 = sand.u32 %s35, 1
        %s572 = scalar_lea.sflag [#allocation7], %s571
        %s573 = sand.u32 %s133, 1
        %s574 = scalar_lea.vmem [#allocation8], %s573
        %p575 = pneg %p146
        %p576 = pneg %p143
        %s577 = sand.u32 %s35, 1
        %s578 = scalar_lea.sflag [#allocation10], %s577
        %s579 = sand.u32 %s159, 1
        %s580 = smul.addr %s579, 576
        %s581 = scalar_lea.vmem [#allocation9], %s580
        %p582 = pneg %p172
        %p583 = pneg %p169
        %s584 = sand.u32 %s35, 1
        %s585 = scalar_lea.sflag [#allocation10], %s584
        %s586 = sand.u32 %s185, 1
        %s587 = scalar_lea.vmem [#allocation11], %s586
        %p588 = pneg %p198
        %p589 = pneg %p195
        %s590 = sand.u32 %s35, 1
        %s591 = scalar_lea.sflag [#allocation13], %s590
        %s592 = sand.u32 %s211, 1
        %s593 = scalar_lea.vmem [#allocation12], %s592
        %p594 = pneg %p224
        %p595 = pneg %p221
        %s596 = sand.u32 %s35, 1
        %s597 = scalar_lea.sflag [#allocation13], %s596
        %s598 = sand.u32 %s237, 1
        %s599 = smul.addr %s598, 64
        %s600 = scalar_lea.vmem [#allocation14], %s599
        %p601 = pneg %p250
        %p602 = pneg %p247
        %s603 = sand.u32 %s263, 1
        %s604 = scalar_lea.sflag [#allocation16], %s603
        %s605 = sand.u32 %s263, 1
        %s606 = scalar_lea.vmem [#allocation15], %s605
        %p607 = pneg %p276
        %p608 = pneg %p273
        %p609 = pneg %p302
        %p610 = pneg %p299
        %p611 = scmp.lt.s32.totalorder %s39, 1
        %s612 = scalar_select %p611, %s39, 1
        %s613 = smul.addr %s612, 8
        %s614 = smul.addr %s613, 4
        %s615 = scalar_lea.vmem %s9, %s614
        %p616 = scmp.lt.s32.totalorder %s39, 1
        %s617 = scalar_select %p616, %s39, 1
        %s618 = smul.addr %s617, 8
        %s619 = smul.addr %s618, 8
        %s620 = scalar_lea.vmem %s0, %s619
        %p621 = scmp.lt.s32.totalorder %s39, 1
        %s622 = scalar_select %p621, %s39, 1
        %s623 = smul.addr %s622, 8
        %s624 = smul.addr %s623, 4
        %s625 = scalar_lea.vmem %s9, %s624
        %p627 = scmp.eq.s32.totalorder %s40, 0
        // Predicated region
        $region89: #{chessnet_forward.2} parent=55 // pred_check
          %p628 = pneg %p627
        $region90: #{chessnet_forward.2} parent=55 // pred_check_branch
          %630 = sbr.rel (%p628) target = $region92
        $region91: #{chessnet_forward.2} parent=55 // pred_region
          %631 = vst [vmem:[#allocation2] sm:$0xf] 0
          %632 = vst [vmem:[#allocation2 + $0x4] sm:$0x3] 0
          %s633 = scalar_lea.vmem [#allocation2], 72
          %634 = vst [vmem:[%s633] sm:$0xf] 0
          %635 = vst [vmem:[%s633 + $0x4] sm:$0x3] 0
          %636 = vst [vmem:[#allocation2] sm:$0x1] 0
          %637 = vst [vmem:[#allocation2 + $0x8] sm:$0x1] 0
          %638 = vst [vmem:[#allocation2 + $0x10] sm:$0x1] 0
          %639 = vst [vmem:[#allocation2 + $0x18] sm:$0x1] 0
          %640 = vst [vmem:[#allocation2 + $0x20] sm:$0x1] 0
          %641 = vst [vmem:[#allocation2 + $0x28] sm:$0x1] 0
          %642 = vst [vmem:[#allocation2 + $0x30] sm:$0x1] 0
          %643 = vst [vmem:[#allocation2 + $0x38] sm:$0x1] 0
          %644 = vst [vmem:[#allocation2 + $0x40] sm:$0x1] 0
          %645 = vst [vmem:[#allocation2 + $0x48] sm:$0x1] 0
          %646 = vst [vmem:[#allocation2 + $0x4] sm:$0x2] 0
          %647 = vst [vmem:[#allocation2 + $0xc] sm:$0x2] 0
          %648 = vst [vmem:[#allocation2 + $0x14] sm:$0x2] 0
          %649 = vst [vmem:[#allocation2 + $0x1c] sm:$0x2] 0
          %650 = vst [vmem:[#allocation2 + $0x24] sm:$0x2] 0
          %651 = vst [vmem:[#allocation2 + $0x2c] sm:$0x2] 0
          %652 = vst [vmem:[#allocation2 + $0x34] sm:$0x2] 0
          %653 = vst [vmem:[#allocation2 + $0x3c] sm:$0x2] 0
          %654 = vst [vmem:[#allocation2 + $0x44] sm:$0x2] 0
          %655 = vst [vmem:[#allocation2 + $0x4c] sm:$0x2] 0
          %656 = vst [vmem:[#allocation3] sm:$0xf] 0
          %657 = vst [vmem:[#allocation3 + $0x4] sm:$0x3] 0
          %s658 = scalar_lea.vmem [#allocation3], 72
          %659 = vst [vmem:[%s658] sm:$0xf] 0
          %660 = vst [vmem:[%s658 + $0x4] sm:$0x3] 0
          %661 = vst [vmem:[#allocation3] sm:$0x1] 0
          %662 = vst [vmem:[#allocation3 + $0x8] sm:$0x1] 0
          %663 = vst [vmem:[#allocation3 + $0x10] sm:$0x1] 0
          %664 = vst [vmem:[#allocation3 + $0x18] sm:$0x1] 0
          %665 = vst [vmem:[#allocation3 + $0x20] sm:$0x1] 0
          %666 = vst [vmem:[#allocation3 + $0x28] sm:$0x1] 0
          %667 = vst [vmem:[#allocation3 + $0x30] sm:$0x1] 0
          %668 = vst [vmem:[#allocation3 + $0x38] sm:$0x1] 0
          %669 = vst [vmem:[#allocation3 + $0x40] sm:$0x1] 0
          %670 = vst [vmem:[#allocation3 + $0x48] sm:$0x1] 0
          %671 = vst [vmem:[#allocation3 + $0x4] sm:$0x2] 0
          %672 = vst [vmem:[#allocation3 + $0xc] sm:$0x2] 0
          %673 = vst [vmem:[#allocation3 + $0x14] sm:$0x2] 0
          %674 = vst [vmem:[#allocation3 + $0x1c] sm:$0x2] 0
          %675 = vst [vmem:[#allocation3 + $0x24] sm:$0x2] 0
          %676 = vst [vmem:[#allocation3 + $0x2c] sm:$0x2] 0
          %677 = vst [vmem:[#allocation3 + $0x34] sm:$0x2] 0
          %678 = vst [vmem:[#allocation3 + $0x3c] sm:$0x2] 0
          %679 = vst [vmem:[#allocation3 + $0x44] sm:$0x2] 0
          %680 = vst [vmem:[#allocation3 + $0x4c] sm:$0x2] 0
          %v681 = vld [vmem:[%s620] sm:$0xff]
          %v682 = vld [vmem:[%s620 + $0x8] sm:$0xff]
          %v683 = vld [vmem:[%s620 + $0x10] sm:$0xff]
          %v684 = vld [vmem:[%s620 + $0x18] sm:$0xff]
          %v685 = vld [vmem:[%s620 + $0x20] sm:$0xff]
          %v686 = vld [vmem:[%s620 + $0x28] sm:$0xff]
          %v687 = vld [vmem:[%s620 + $0x30] sm:$0xff]
          %v688 = vld [vmem:[%s620 + $0x38] sm:$0xff]
          %v689 = vpack.c.bf16 %v681, %v681
          %v690 = vpack.c.bf16 %v682, %v682
          %v691 = vpack.c.bf16 %v683, %v683
          %v692 = vpack.c.bf16 %v684, %v684
          %v693 = vpack.c.bf16 %v685, %v685
          %v694 = vpack.c.bf16 %v686, %v686
          %v695 = vpack.c.bf16 %v687, %v687
          %v696 = vpack.c.bf16 %v688, %v688
          %v705 = vunpack.c.l.b16 %v689
          %v706 = vunpack.c.l.b16 %v690
          %v707 = vunpack.c.l.b16 %v691
          %v708 = vunpack.c.l.b16 %v692
          %v709 = vunpack.c.l.b16 %v693
          %v710 = vunpack.c.l.b16 %v694
          %v711 = vunpack.c.l.b16 %v695
          %v712 = vunpack.c.l.b16 %v696
          %v713 = vpack.c.b16 %v705, %v705
          %v714 = vpack.c.b16 %v706, %v706
          %v715 = vpack.c.b16 %v707, %v707
          %v716 = vpack.c.b16 %v708, %v708
          %v717 = vpack.c.b16 %v709, %v709
          %v718 = vpack.c.b16 %v710, %v710
          %v719 = vpack.c.b16 %v711, %v711
          %v720 = vpack.c.b16 %v712, %v712
          %v721 = vrot.slane %v713, 7
          %v722 = vrot.slane %v721, 4
          %v723 = vrot.slane %v714, 7
          %v724 = vrot.slane %v723, 4
          %v725 = vrot.slane %v715, 7
          %v726 = vrot.slane %v725, 4
          %v727 = vrot.slane %v716, 7
          %v728 = vrot.slane %v727, 4
          %v729 = vrot.slane %v717, 7
          %v730 = vrot.slane %v729, 4
          %v731 = vrot.slane %v718, 7
          %v732 = vrot.slane %v731, 4
          %v733 = vrot.slane %v719, 7
          %v734 = vrot.slane %v733, 4
          %v735 = vrot.slane %v720, 7
          %v736 = vrot.slane %v735, 4
          %s753 = scalar_lea.vmem [#allocation2], 8
          %754 = vst [vmem:[%s753] sm:$0xe] %v721
          %755 = vst [vmem:[%s753 + $0x4] sm:$0x1] %v722
          %756 = vst [vmem:[%s753 + $0x8] sm:$0xe] %v723
          %757 = vst [vmem:[%s753 + $0xc] sm:$0x1] %v724
          %758 = vst [vmem:[%s753 + $0x10] sm:$0xe] %v725
          %759 = vst [vmem:[%s753 + $0x14] sm:$0x1] %v726
          %760 = vst [vmem:[%s753 + $0x18] sm:$0xe] %v727
          %761 = vst [vmem:[%s753 + $0x1c] sm:$0x1] %v728
          %762 = vst [vmem:[%s753 + $0x20] sm:$0xe] %v729
          %763 = vst [vmem:[%s753 + $0x24] sm:$0x1] %v730
          %764 = vst [vmem:[%s753 + $0x28] sm:$0xe] %v731
          %765 = vst [vmem:[%s753 + $0x2c] sm:$0x1] %v732
          %766 = vst [vmem:[%s753 + $0x30] sm:$0xe] %v733
          %767 = vst [vmem:[%s753 + $0x34] sm:$0x1] %v734
          %768 = vst [vmem:[%s753 + $0x38] sm:$0xe] %v735
          %769 = vst [vmem:[%s753 + $0x3c] sm:$0x1] %v736
        $region92: #{chessnet_forward.2} parent=55 // pred_fallthru
          _
        %v770 = vld [vmem:[#allocation2] sm:$0xf]
        %v771 = vld [vmem:[#allocation2 + $0x4] sm:$0x1]
        %v772 = vld [vmem:[#allocation2 + $0x8] sm:$0xf]
        %v773 = vld [vmem:[#allocation2 + $0xc] sm:$0x1]
        %v774 = vld [vmem:[#allocation2 + $0x10] sm:$0xf]
        %v775 = vld [vmem:[#allocation2 + $0x14] sm:$0x1]
        %v776 = vld [vmem:[#allocation2 + $0x18] sm:$0xf]
        %v777 = vld [vmem:[#allocation2 + $0x1c] sm:$0x1]
        %v778 = vld [vmem:[#allocation2 + $0x20] sm:$0xf]
        %v779 = vld [vmem:[#allocation2 + $0x24] sm:$0x1]
        %v780 = vld [vmem:[#allocation2 + $0x28] sm:$0xf]
        %v781 = vld [vmem:[#allocation2 + $0x2c] sm:$0x1]
        %v782 = vld [vmem:[#allocation2 + $0x30] sm:$0xf]
        %v783 = vld [vmem:[#allocation2 + $0x34] sm:$0x1]
        %v784 = vld [vmem:[#allocation2 + $0x38] sm:$0xf]
        %v785 = vld [vmem:[#allocation2 + $0x3c] sm:$0x1]
        %vm786 = vsmask.f32 3328
        %vm787 = vsmask.f32 7440
        %vm788 = vmor %vm786, %vm787
        %v790 = vshrl.u32 %v770, 16
        %v792 = vrot.slane %v790, 4
        %v793 = vshll.u32 %v770, 16
        %v795 = vrot.slane %v793, 5
        %v796 = vor.u32 %v792, %v795
        %v797 = vrot.slane %v796, 4
        %v799 = vshll.u32 %v771, 16
        %v801 = vrot.slane %v799, 5
        %v802 = vsel %vm788, %v797, %v801
        %v804 = vshrl.u32 %v772, 16
        %v806 = vrot.slane %v804, 4
        %v807 = vshll.u32 %v772, 16
        %v809 = vrot.slane %v807, 5
        %v810 = vor.u32 %v806, %v809
        %v811 = vrot.slane %v810, 4
        %v813 = vshll.u32 %v773, 16
        %v815 = vrot.slane %v813, 5
        %v816 = vsel %vm788, %v811, %v815
        %v818 = vshrl.u32 %v774, 16
        %v820 = vrot.slane %v818, 4
        %v821 = vshll.u32 %v774, 16
        %v823 = vrot.slane %v821, 5
        %v824 = vor.u32 %v820, %v823
        %v825 = vrot.slane %v824, 4
        %v827 = vshll.u32 %v775, 16
        %v829 = vrot.slane %v827, 5
        %v830 = vsel %vm788, %v825, %v829
        %v832 = vshrl.u32 %v776, 16
        %v834 = vrot.slane %v832, 4
        %v835 = vshll.u32 %v776, 16
        %v837 = vrot.slane %v835, 5
        %v838 = vor.u32 %v834, %v837
        %v839 = vrot.slane %v838, 4
        %v841 = vshll.u32 %v777, 16
        %v843 = vrot.slane %v841, 5
        %v844 = vsel %vm788, %v839, %v843
        %v846 = vshrl.u32 %v778, 16
        %v848 = vrot.slane %v846, 4
        %v849 = vshll.u32 %v778, 16
        %v851 = vrot.slane %v849, 5
        %v852 = vor.u32 %v848, %v851
        %v853 = vrot.slane %v852, 4
        %v855 = vshll.u32 %v779, 16
        %v857 = vrot.slane %v855, 5
        %v858 = vsel %vm788, %v853, %v857
        %v860 = vshrl.u32 %v780, 16
        %v862 = vrot.slane %v860, 4
        %v863 = vshll.u32 %v780, 16
        %v865 = vrot.slane %v863, 5
        %v866 = vor.u32 %v862, %v865
        %v867 = vrot.slane %v866, 4
        %v869 = vshll.u32 %v781, 16
        %v871 = vrot.slane %v869, 5
        %v872 = vsel %vm788, %v867, %v871
        %v874 = vshrl.u32 %v782, 16
        %v876 = vrot.slane %v874, 4
        %v877 = vshll.u32 %v782, 16
        %v879 = vrot.slane %v877, 5
        %v880 = vor.u32 %v876, %v879
        %v881 = vrot.slane %v880, 4
        %v883 = vshll.u32 %v783, 16
        %v885 = vrot.slane %v883, 5
        %v886 = vsel %vm788, %v881, %v885
        %v888 = vshrl.u32 %v784, 16
        %v890 = vrot.slane %v888, 4
        %v891 = vshll.u32 %v784, 16
        %v893 = vrot.slane %v891, 5
        %v894 = vor.u32 %v890, %v893
        %v895 = vrot.slane %v894, 4
        %v897 = vshll.u32 %v785, 16
        %v899 = vrot.slane %v897, 5
        %v900 = vsel %vm788, %v895, %v899
        %v901 = vld [vmem:[%s488] sm:$0xf]
        %v902 = vld [vmem:[%s488 + $0x4] sm:$0xf]
        %v903 = vld [vmem:[%s488 + $0x8] sm:$0xf]
        %v904 = vld [vmem:[%s488 + $0xc] sm:$0xf]
        %v905 = vld [vmem:[%s488 + $0x10] sm:$0xf]
        %v906 = vld [vmem:[%s488 + $0x14] sm:$0xf]
        %v907 = vld [vmem:[%s488 + $0x18] sm:$0xf]
        %v908 = vld [vmem:[%s488 + $0x1c] sm:$0xf]
        %v909 = vld [vmem:[%s488 + $0x20] sm:$0xf]
        %v910 = vld [vmem:[%s488 + $0x24] sm:$0xf]
        %v911 = vld [vmem:[%s488 + $0x28] sm:$0xf]
        %v912 = vld [vmem:[%s488 + $0x2c] sm:$0xf]
        %v913 = vld [vmem:[%s488 + $0x30] sm:$0xf]
        %v914 = vld [vmem:[%s488 + $0x34] sm:$0xf]
        %v915 = vld [vmem:[%s488 + $0x38] sm:$0xf]
        %v916 = vld [vmem:[%s488 + $0x3c] sm:$0xf]
        %v917 = vld [vmem:[#allocation2] sm:$0xe]
        %v918 = vld [vmem:[#allocation2 + $0x8] sm:$0xe]
        %v919 = vld [vmem:[#allocation2 + $0x10] sm:$0xe]
        %v920 = vld [vmem:[#allocation2 + $0x18] sm:$0xe]
        %v921 = vld [vmem:[#allocation2 + $0x20] sm:$0xe]
        %v922 = vld [vmem:[#allocation2 + $0x28] sm:$0xe]
        %v923 = vld [vmem:[#allocation2 + $0x30] sm:$0xe]
        %v924 = vld [vmem:[#allocation2 + $0x38] sm:$0xe]
        %vm941 = vcmask 1042432
        %vm942 = vcmask 1046532
        %vm943 = vmor %vm941, %vm942
        %v944 = vrot.slane %v917, 5
        %v945 = vrot.slane %v944, 4
        %v946 = vrot.slane %v771, 5
        %v947 = vsel %vm943, %v945, %v946
        %v948 = vrot.slane %v918, 5
        %v949 = vrot.slane %v948, 4
        %v950 = vrot.slane %v773, 5
        %v951 = vsel %vm943, %v949, %v950
        %v952 = vrot.slane %v919, 5
        %v953 = vrot.slane %v952, 4
        %v954 = vrot.slane %v775, 5
        %v955 = vsel %vm943, %v953, %v954
        %v956 = vrot.slane %v920, 5
        %v957 = vrot.slane %v956, 4
        %v958 = vrot.slane %v777, 5
        %v959 = vsel %vm943, %v957, %v958
        %v960 = vrot.slane %v921, 5
        %v961 = vrot.slane %v960, 4
        %v962 = vrot.slane %v779, 5
        %v963 = vsel %vm943, %v961, %v962
        %v964 = vrot.slane %v922, 5
        %v965 = vrot.slane %v964, 4
        %v966 = vrot.slane %v781, 5
        %v967 = vsel %vm943, %v965, %v966
        %v968 = vrot.slane %v923, 5
        %v969 = vrot.slane %v968, 4
        %v970 = vrot.slane %v783, 5
        %v971 = vsel %vm943, %v969, %v970
        %v972 = vrot.slane %v924, 5
        %v973 = vrot.slane %v972, 4
        %v974 = vrot.slane %v785, 5
        %v975 = vsel %vm943, %v973, %v974
        %s976 = scalar_lea.vmem %s488, 64 [#allocation4]
        %v977 = vld [vmem:[%s976] sm:$0xf]
        %v978 = vld [vmem:[%s976 + $0x4] sm:$0xf]
        %v979 = vld [vmem:[%s976 + $0x8] sm:$0xf]
        %v980 = vld [vmem:[%s976 + $0xc] sm:$0xf]
        %v981 = vld [vmem:[%s976 + $0x10] sm:$0xf]
        %v982 = vld [vmem:[%s976 + $0x14] sm:$0xf]
        %v983 = vld [vmem:[%s976 + $0x18] sm:$0xf]
        %v984 = vld [vmem:[%s976 + $0x1c] sm:$0xf]
        %v985 = vld [vmem:[%s976 + $0x20] sm:$0xf]
        %v986 = vld [vmem:[%s976 + $0x24] sm:$0xf]
        %v987 = vld [vmem:[%s976 + $0x28] sm:$0xf]
        %v988 = vld [vmem:[%s976 + $0x2c] sm:$0xf]
        %v989 = vld [vmem:[%s976 + $0x30] sm:$0xf]
        %v990 = vld [vmem:[%s976 + $0x34] sm:$0xf]
        %v991 = vld [vmem:[%s976 + $0x38] sm:$0xf]
        %v992 = vld [vmem:[%s976 + $0x3c] sm:$0xf]
        %v993 = vunpack.c.l.b16 %v947
        %v994 = vunpack.c.l.b16 %v951
        %v995 = vunpack.c.l.b16 %v955
        %v996 = vunpack.c.l.b16 %v959
        %v997 = vunpack.c.l.b16 %v963
        %v998 = vunpack.c.l.b16 %v967
        %v999 = vunpack.c.l.b16 %v971
        %v1000 = vunpack.c.l.b16 %v975
        %v1001 = vpack.c.b16 %v994, %v993
        %v1002 = vpack.c.b16 %v996, %v995
        %v1003 = vpack.c.b16 %v998, %v997
        %v1004 = vpack.c.b16 %v1000, %v999
        %v1025 = vunpack.c.l.b16 %v977
        %v1026 = vunpack.c.l.b16 %v978
        %v1027 = vunpack.c.l.b16 %v979
        %v1028 = vunpack.c.l.b16 %v980
        %v1029 = vunpack.c.l.b16 %v981
        %v1030 = vunpack.c.l.b16 %v982
        %v1031 = vunpack.c.l.b16 %v983
        %v1032 = vunpack.c.l.b16 %v984
        %v1033 = vunpack.c.l.b16 %v985
        %v1034 = vunpack.c.l.b16 %v986
        %v1035 = vunpack.c.l.b16 %v987
        %v1036 = vunpack.c.l.b16 %v988
        %v1037 = vunpack.c.l.b16 %v989
        %v1038 = vunpack.c.l.b16 %v990
        %v1039 = vunpack.c.l.b16 %v991
        %v1040 = vunpack.c.l.b16 %v992
        %v1041 = vpack.c.b16 %v1026, %v1025
        %v1042 = vpack.c.b16 %v1028, %v1027
        %v1043 = vpack.c.b16 %v1030, %v1029
        %v1044 = vpack.c.b16 %v1032, %v1031
        %v1045 = vpack.c.b16 %v1034, %v1033
        %v1046 = vpack.c.b16 %v1036, %v1035
        %v1047 = vpack.c.b16 %v1038, %v1037
        %v1048 = vpack.c.b16 %v1040, %v1039
        %1057 = vmatprep.subr.bf16.mxu0 0
        %1058 = vmatpush1.bf16.msra.mxu0 %v1048
        %1059 = vmatprep.subr.bf16.mxu0 0
        %1060 = vmatpush1.bf16.msra.mxu0 %v1047
        %1061 = vmatprep.subr.bf16.mxu0 0
        %1062 = vmatpush1.bf16.msra.mxu0 %v1046
        %1063 = vmatprep.subr.bf16.mxu0 0
        %1064 = vmatpush1.bf16.msra.mxu0 %v1045
        %1065 = vmatprep.subr.bf16.mxu0 0
        %1066 = vmatpush1.bf16.msra.mxu0 %v1044
        %1067 = vmatprep.subr.bf16.mxu0 0
        %1068 = vmatpush1.bf16.msra.mxu0 %v1043
        %1069 = vmatprep.subr.bf16.mxu0 0
        %1070 = vmatpush1.bf16.msra.mxu0 %v1042
        %1071 = vmatprep.subr.bf16.mxu0 0
        %1072 = vmatpush1.bf16.msra.mxu0 %v1041
        %1073 = vmatprep.subr.bf16.mxu0 0
        %1074 = vmatpush2.bf16.msra.mxu0 0
        %1075 = vmatprep.subr.bf16.mxu0 0
        %1076 = vmatpush2.bf16.msra.mxu0 0
        %1077 = vmatprep.subr.bf16.mxu0 0
        %1078 = vmatpush2.bf16.msra.mxu0 0
        %1079 = vmatprep.subr.bf16.mxu0 0
        %1080 = vmatpush2.bf16.msra.mxu0 0
        %1081 = vmatprep.subr.bf16.mxu0 0
        %1082 = vmatpush2.bf16.msra.mxu0 0
        %1083 = vmatprep.subr.bf16.mxu0 0
        %1084 = vmatpush2.bf16.msra.mxu0 0
        %1085 = vmatprep.subr.bf16.mxu0 0
        %1086 = vmatpush2.bf16.msra.mxu0 0
        %1087 = vmatprep.subr.bf16.mxu0 0
        %1088 = vmatpush2.bf16.msra.mxu0 0
        %1089 = vmatprep.mubr.bf16.mxu0 0
        %1090 = vmatmul.mubr.bf16.gmra.mxu0 %v1001
        %v1091 = vpop.f32.mrf.mxu0
        %v1092 = vadd.f32 0.0, %v1091
        %v1093 = vpop.f32.mrf.mxu0
        %v1094 = vpop.f32.mrf.mxu0
        %v1095 = vadd.f32 0.0, %v1094
        %v1096 = vpop.f32.mrf.mxu0
        %1097 = vmatprep.mubr.bf16.mxu0 0
        %1098 = vmatmul.mubr.bf16.gmra.mxu0 %v1002
        %v1099 = vpop.f32.mrf.mxu0
        %v1100 = vadd.f32 0.0, %v1099
        %v1101 = vpop.f32.mrf.mxu0
        %v1102 = vpop.f32.mrf.mxu0
        %v1103 = vadd.f32 0.0, %v1102
        %v1104 = vpop.f32.mrf.mxu0
        %1105 = vmatprep.mubr.bf16.mxu0 0
        %1106 = vmatmul.mubr.bf16.gmra.mxu0 %v1003
        %v1107 = vpop.f32.mrf.mxu0
        %v1108 = vadd.f32 0.0, %v1107
        %v1109 = vpop.f32.mrf.mxu0
        %v1110 = vpop.f32.mrf.mxu0
        %v1111 = vadd.f32 0.0, %v1110
        %v1112 = vpop.f32.mrf.mxu0
        %1113 = vmatprep.mubr.bf16.mxu0 0
        %1114 = vmatmul.mubr.bf16.gmra.mxu0 %v1004
        %v1115 = vpop.f32.mrf.mxu0
        %v1116 = vadd.f32 0.0, %v1115
        %v1117 = vpop.f32.mrf.mxu0
        %v1118 = vpop.f32.mrf.mxu0
        %v1119 = vadd.f32 0.0, %v1118
        %v1120 = vpop.f32.mrf.mxu0
        %1121 = vdwg.mxu0
        %v1122 = vunpack.c.l.b16 %v802
        %v1123 = vunpack.c.l.b16 %v816
        %v1124 = vunpack.c.l.b16 %v830
        %v1125 = vunpack.c.l.b16 %v844
        %v1126 = vunpack.c.l.b16 %v858
        %v1127 = vunpack.c.l.b16 %v872
        %v1128 = vunpack.c.l.b16 %v886
        %v1129 = vunpack.c.l.b16 %v900
        %v1130 = vpack.c.b16 %v1123, %v1122
        %v1131 = vpack.c.b16 %v1125, %v1124
        %v1132 = vpack.c.b16 %v1127, %v1126
        %v1133 = vpack.c.b16 %v1129, %v1128
        %v1154 = vunpack.c.l.b16 %v901
        %v1155 = vunpack.c.l.b16 %v902
        %v1156 = vunpack.c.l.b16 %v903
        %v1157 = vunpack.c.l.b16 %v904
        %v1158 = vunpack.c.l.b16 %v905
        %v1159 = vunpack.c.l.b16 %v906
        %v1160 = vunpack.c.l.b16 %v907
        %v1161 = vunpack.c.l.b16 %v908
        %v1162 = vunpack.c.l.b16 %v909
        %v1163 = vunpack.c.l.b16 %v910
        %v1164 = vunpack.c.l.b16 %v911
        %v1165 = vunpack.c.l.b16 %v912
        %v1166 = vunpack.c.l.b16 %v913
        %v1167 = vunpack.c.l.b16 %v914
        %v1168 = vunpack.c.l.b16 %v915
        %v1169 = vunpack.c.l.b16 %v916
        %v1170 = vpack.c.b16 %v1155, %v1154
        %v1171 = vpack.c.b16 %v1157, %v1156
        %v1172 = vpack.c.b16 %v1159, %v1158
        %v1173 = vpack.c.b16 %v1161, %v1160
        %v1174 = vpack.c.b16 %v1163, %v1162
        %v1175 = vpack.c.b16 %v1165, %v1164
        %v1176 = vpack.c.b16 %v1167, %v1166
        %v1177 = vpack.c.b16 %v1169, %v1168
        %1186 = vmatprep.subr.bf16.mxu0 0
        %1187 = vmatpush1.bf16.msra.mxu0 %v1177
        %1188 = vmatprep.subr.bf16.mxu0 0
        %1189 = vmatpush1.bf16.msra.mxu0 %v1176
        %1190 = vmatprep.subr.bf16.mxu0 0
        %1191 = vmatpush1.bf16.msra.mxu0 %v1175
        %1192 = vmatprep.subr.bf16.mxu0 0
        %1193 = vmatpush1.bf16.msra.mxu0 %v1174
        %1194 = vmatprep.subr.bf16.mxu0 0
        %1195 = vmatpush1.bf16.msra.mxu0 %v1173
        %1196 = vmatprep.subr.bf16.mxu0 0
        %1197 = vmatpush1.bf16.msra.mxu0 %v1172
        %1198 = vmatprep.subr.bf16.mxu0 0
        %1199 = vmatpush1.bf16.msra.mxu0 %v1171
        %1200 = vmatprep.subr.bf16.mxu0 0
        %1201 = vmatpush1.bf16.msra.mxu0 %v1170
        %1202 = vmatprep.subr.bf16.mxu0 0
        %1203 = vmatpush2.bf16.msra.mxu0 0
        %1204 = vmatprep.subr.bf16.mxu0 0
        %1205 = vmatpush2.bf16.msra.mxu0 0
        %1206 = vmatprep.subr.bf16.mxu0 0
        %1207 = vmatpush2.bf16.msra.mxu0 0
        %1208 = vmatprep.subr.bf16.mxu0 0
        %1209 = vmatpush2.bf16.msra.mxu0 0
        %1210 = vmatprep.subr.bf16.mxu0 0
        %1211 = vmatpush2.bf16.msra.mxu0 0
        %1212 = vmatprep.subr.bf16.mxu0 0
        %1213 = vmatpush2.bf16.msra.mxu0 0
        %1214 = vmatprep.subr.bf16.mxu0 0
        %1215 = vmatpush2.bf16.msra.mxu0 0
        %1216 = vmatprep.subr.bf16.mxu0 0
        %1217 = vmatpush2.bf16.msra.mxu0 0
        %1218 = vmatprep.mubr.bf16.mxu0 0
        %1219 = vmatmul.mubr.bf16.gmra.mxu0 %v1130
        %v1220 = vpop.f32.mrf.mxu0
        %v1221 = vadd.f32 %v1092, %v1220
        %v1222 = vpop.f32.mrf.mxu0
        %v1223 = vpop.f32.mrf.mxu0
        %v1224 = vadd.f32 %v1095, %v1223
        %v1225 = vpop.f32.mrf.mxu0
        %1226 = vmatprep.mubr.bf16.mxu0 0
        %1227 = vmatmul.mubr.bf16.gmra.mxu0 %v1131
        %v1228 = vpop.f32.mrf.mxu0
        %v1229 = vadd.f32 %v1100, %v1228
        %v1230 = vpop.f32.mrf.mxu0
        %v1231 = vpop.f32.mrf.mxu0
        %v1232 = vadd.f32 %v1103, %v1231
        %v1233 = vpop.f32.mrf.mxu0
        %1234 = vmatprep.mubr.bf16.mxu0 0
        %1235 = vmatmul.mubr.bf16.gmra.mxu0 %v1132
        %v1236 = vpop.f32.mrf.mxu0
        %v1237 = vadd.f32 %v1108, %v1236
        %v1238 = vpop.f32.mrf.mxu0
        %v1239 = vpop.f32.mrf.mxu0
        %v1240 = vadd.f32 %v1111, %v1239
        %v1241 = vpop.f32.mrf.mxu0
        %1242 = vmatprep.mubr.bf16.mxu0 0
        %1243 = vmatmul.mubr.bf16.gmra.mxu0 %v1133
        %v1244 = vpop.f32.mrf.mxu0
        %v1245 = vadd.f32 %v1116, %v1244
        %v1246 = vpop.f32.mrf.mxu0
        %v1247 = vpop.f32.mrf.mxu0
        %v1248 = vadd.f32 %v1119, %v1247
        %v1249 = vpop.f32.mrf.mxu0
        %1250 = vdwg.mxu0
        %v1251 = vld [vmem:[#allocation2 + $0x4] sm:$0x3]
        %v1252 = vld [vmem:[#allocation2 + $0xc] sm:$0x3]
        %v1253 = vld [vmem:[#allocation2 + $0x14] sm:$0x3]
        %v1254 = vld [vmem:[#allocation2 + $0x1c] sm:$0x3]
        %v1255 = vld [vmem:[#allocation2 + $0x24] sm:$0x3]
        %v1256 = vld [vmem:[#allocation2 + $0x2c] sm:$0x3]
        %v1257 = vld [vmem:[#allocation2 + $0x34] sm:$0x3]
        %v1258 = vld [vmem:[#allocation2 + $0x3c] sm:$0x3]
        %vm1259 = vsmask.f32 2304
        %vm1260 = vsmask.f32 6416
        %vm1261 = vmor %vm1259, %vm1260
        %v1263 = vshrl.u32 %v917, 16
        %v1265 = vrot.slane %v1263, 5
        %v1266 = vshll.u32 %v917, 16
        %v1268 = vrot.slane %v1266, 6
        %v1269 = vor.u32 %v1265, %v1268
        %v1270 = vrot.slane %v1269, 4
        %v1272 = vshrl.u32 %v1251, 16
        %v1274 = vrot.slane %v1272, 5
        %v1275 = vshll.u32 %v1251, 16
        %v1277 = vrot.slane %v1275, 6
        %v1278 = vor.u32 %v1274, %v1277
        %v1279 = vsel %vm1261, %v1270, %v1278
        %v1281 = vshrl.u32 %v918, 16
        %v1283 = vrot.slane %v1281, 5
        %v1284 = vshll.u32 %v918, 16
        %v1286 = vrot.slane %v1284, 6
        %v1287 = vor.u32 %v1283, %v1286
        %v1288 = vrot.slane %v1287, 4
        %v1290 = vshrl.u32 %v1252, 16
        %v1292 = vrot.slane %v1290, 5
        %v1293 = vshll.u32 %v1252, 16
        %v1295 = vrot.slane %v1293, 6
        %v1296 = vor.u32 %v1292, %v1295
        %v1297 = vsel %vm1261, %v1288, %v1296
        %v1299 = vshrl.u32 %v919, 16
        %v1301 = vrot.slane %v1299, 5
        %v1302 = vshll.u32 %v919, 16
        %v1304 = vrot.slane %v1302, 6
        %v1305 = vor.u32 %v1301, %v1304
        %v1306 = vrot.slane %v1305, 4
        %v1308 = vshrl.u32 %v1253, 16
        %v1310 = vrot.slane %v1308, 5
        %v1311 = vshll.u32 %v1253, 16
        %v1313 = vrot.slane %v1311, 6
        %v1314 = vor.u32 %v1310, %v1313
        %v1315 = vsel %vm1261, %v1306, %v1314
        %v1317 = vshrl.u32 %v920, 16
        %v1319 = vrot.slane %v1317, 5
        %v1320 = vshll.u32 %v920, 16
        %v1322 = vrot.slane %v1320, 6
        %v1323 = vor.u32 %v1319, %v1322
        %v1324 = vrot.slane %v1323, 4
        %v1326 = vshrl.u32 %v1254, 16
        %v1328 = vrot.slane %v1326, 5
        %v1329 = vshll.u32 %v1254, 16
        %v1331 = vrot.slane %v1329, 6
        %v1332 = vor.u32 %v1328, %v1331
        %v1333 = vsel %vm1261, %v1324, %v1332
        %v1335 = vshrl.u32 %v921, 16
        %v1337 = vrot.slane %v1335, 5
        %v1338 = vshll.u32 %v921, 16
        %v1340 = vrot.slane %v1338, 6
        %v1341 = vor.u32 %v1337, %v1340
        %v1342 = vrot.slane %v1341, 4
        %v1344 = vshrl.u32 %v1255, 16
        %v1346 = vrot.slane %v1344, 5
        %v1347 = vshll.u32 %v1255, 16
        %v1349 = vrot.slane %v1347, 6
        %v1350 = vor.u32 %v1346, %v1349
        %v1351 = vsel %vm1261, %v1342, %v1350
        %v1353 = vshrl.u32 %v922, 16
        %v1355 = vrot.slane %v1353, 5
        %v1356 = vshll.u32 %v922, 16
        %v1358 = vrot.slane %v1356, 6
        %v1359 = vor.u32 %v1355, %v1358
        %v1360 = vrot.slane %v1359, 4
        %v1362 = vshrl.u32 %v1256, 16
        %v1364 = vrot.slane %v1362, 5
        %v1365 = vshll.u32 %v1256, 16
        %v1367 = vrot.slane %v1365, 6
        %v1368 = vor.u32 %v1364, %v1367
        %v1369 = vsel %vm1261, %v1360, %v1368
        %v1371 = vshrl.u32 %v923, 16
        %v1373 = vrot.slane %v1371, 5
        %v1374 = vshll.u32 %v923, 16
        %v1376 = vrot.slane %v1374, 6
        %v1377 = vor.u32 %v1373, %v1376
        %v1378 = vrot.slane %v1377, 4
        %v1380 = vshrl.u32 %v1257, 16
        %v1382 = vrot.slane %v1380, 5
        %v1383 = vshll.u32 %v1257, 16
        %v1385 = vrot.slane %v1383, 6
        %v1386 = vor.u32 %v1382, %v1385
        %v1387 = vsel %vm1261, %v1378, %v1386
        %v1389 = vshrl.u32 %v924, 16
        %v1391 = vrot.slane %v1389, 5
        %v1392 = vshll.u32 %v924, 16
        %v1394 = vrot.slane %v1392, 6
        %v1395 = vor.u32 %v1391, %v1394
        %v1396 = vrot.slane %v1395, 4
        %v1398 = vshrl.u32 %v1258, 16
        %v1400 = vrot.slane %v1398, 5
        %v1401 = vshll.u32 %v1258, 16
        %v1403 = vrot.slane %v1401, 6
        %v1404 = vor.u32 %v1400, %v1403
        %v1405 = vsel %vm1261, %v1396, %v1404
        %s1406 = scalar_lea.vmem %s488, 128 [#allocation4]
        %v1407 = vld [vmem:[%s1406] sm:$0xf]
        %v1408 = vld [vmem:[%s1406 + $0x4] sm:$0xf]
        %v1409 = vld [vmem:[%s1406 + $0x8] sm:$0xf]
        %v1410 = vld [vmem:[%s1406 + $0xc] sm:$0xf]
        %v1411 = vld [vmem:[%s1406 + $0x10] sm:$0xf]
        %v1412 = vld [vmem:[%s1406 + $0x14] sm:$0xf]
        %v1413 = vld [vmem:[%s1406 + $0x18] sm:$0xf]
        %v1414 = vld [vmem:[%s1406 + $0x1c] sm:$0xf]
        %v1415 = vld [vmem:[%s1406 + $0x20] sm:$0xf]
        %v1416 = vld [vmem:[%s1406 + $0x24] sm:$0xf]
        %v1417 = vld [vmem:[%s1406 + $0x28] sm:$0xf]
        %v1418 = vld [vmem:[%s1406 + $0x2c] sm:$0xf]
        %v1419 = vld [vmem:[%s1406 + $0x30] sm:$0xf]
        %v1420 = vld [vmem:[%s1406 + $0x34] sm:$0xf]
        %v1421 = vld [vmem:[%s1406 + $0x38] sm:$0xf]
        %v1422 = vld [vmem:[%s1406 + $0x3c] sm:$0xf]
        %v1423 = vunpack.c.l.b16 %v1279
        %v1424 = vunpack.c.l.b16 %v1297
        %v1425 = vunpack.c.l.b16 %v1315
        %v1426 = vunpack.c.l.b16 %v1333
        %v1427 = vunpack.c.l.b16 %v1351
        %v1428 = vunpack.c.l.b16 %v1369
        %v1429 = vunpack.c.l.b16 %v1387
        %v1430 = vunpack.c.l.b16 %v1405
        %v1431 = vpack.c.b16 %v1424, %v1423
        %v1432 = vpack.c.b16 %v1426, %v1425
        %v1433 = vpack.c.b16 %v1428, %v1427
        %v1434 = vpack.c.b16 %v1430, %v1429
        %v1455 = vunpack.c.l.b16 %v1407
        %v1456 = vunpack.c.l.b16 %v1408
        %v1457 = vunpack.c.l.b16 %v1409
        %v1458 = vunpack.c.l.b16 %v1410
        %v1459 = vunpack.c.l.b16 %v1411
        %v1460 = vunpack.c.l.b16 %v1412
        %v1461 = vunpack.c.l.b16 %v1413
        %v1462 = vunpack.c.l.b16 %v1414
        %v1463 = vunpack.c.l.b16 %v1415
        %v1464 = vunpack.c.l.b16 %v1416
        %v1465 = vunpack.c.l.b16 %v1417
        %v1466 = vunpack.c.l.b16 %v1418
        %v1467 = vunpack.c.l.b16 %v1419
        %v1468 = vunpack.c.l.b16 %v1420
        %v1469 = vunpack.c.l.b16 %v1421
        %v1470 = vunpack.c.l.b16 %v1422
        %v1471 = vpack.c.b16 %v1456, %v1455
        %v1472 = vpack.c.b16 %v1458, %v1457
        %v1473 = vpack.c.b16 %v1460, %v1459
        %v1474 = vpack.c.b16 %v1462, %v1461
        %v1475 = vpack.c.b16 %v1464, %v1463
        %v1476 = vpack.c.b16 %v1466, %v1465
        %v1477 = vpack.c.b16 %v1468, %v1467
        %v1478 = vpack.c.b16 %v1470, %v1469
        %1487 = vmatprep.subr.bf16.mxu0 0
        %1488 = vmatpush1.bf16.msra.mxu0 %v1478
        %1489 = vmatprep.subr.bf16.mxu0 0
        %1490 = vmatpush1.bf16.msra.mxu0 %v1477
        %1491 = vmatprep.subr.bf16.mxu0 0
        %1492 = vmatpush1.bf16.msra.mxu0 %v1476
        %1493 = vmatprep.subr.bf16.mxu0 0
        %1494 = vmatpush1.bf16.msra.mxu0 %v1475
        %1495 = vmatprep.subr.bf16.mxu0 0
        %1496 = vmatpush1.bf16.msra.mxu0 %v1474
        %1497 = vmatprep.subr.bf16.mxu0 0
        %1498 = vmatpush1.bf16.msra.mxu0 %v1473
        %1499 = vmatprep.subr.bf16.mxu0 0
        %1500 = vmatpush1.bf16.msra.mxu0 %v1472
        %1501 = vmatprep.subr.bf16.mxu0 0
        %1502 = vmatpush1.bf16.msra.mxu0 %v1471
        %1503 = vmatprep.subr.bf16.mxu0 0
        %1504 = vmatpush2.bf16.msra.mxu0 0
        %1505 = vmatprep.subr.bf16.mxu0 0
        %1506 = vmatpush2.bf16.msra.mxu0 0
        %1507 = vmatprep.subr.bf16.mxu0 0
        %1508 = vmatpush2.bf16.msra.mxu0 0
        %1509 = vmatprep.subr.bf16.mxu0 0
        %1510 = vmatpush2.bf16.msra.mxu0 0
        %1511 = vmatprep.subr.bf16.mxu0 0
        %1512 = vmatpush2.bf16.msra.mxu0 0
        %1513 = vmatprep.subr.bf16.mxu0 0
        %1514 = vmatpush2.bf16.msra.mxu0 0
        %1515 = vmatprep.subr.bf16.mxu0 0
        %1516 = vmatpush2.bf16.msra.mxu0 0
        %1517 = vmatprep.subr.bf16.mxu0 0
        %1518 = vmatpush2.bf16.msra.mxu0 0
        %1519 = vmatprep.mubr.bf16.mxu0 0
        %1520 = vmatmul.mubr.bf16.gmra.mxu0 %v1431
        %v1521 = vpop.f32.mrf.mxu0
        %v1522 = vadd.f32 0.0, %v1521
        %v1523 = vpop.f32.mrf.mxu0
        %v1524 = vpop.f32.mrf.mxu0
        %v1525 = vadd.f32 0.0, %v1524
        %v1526 = vpop.f32.mrf.mxu0
        %1527 = vmatprep.mubr.bf16.mxu0 0
        %1528 = vmatmul.mubr.bf16.gmra.mxu0 %v1432
        %v1529 = vpop.f32.mrf.mxu0
        %v1530 = vadd.f32 0.0, %v1529
        %v1531 = vpop.f32.mrf.mxu0
        %v1532 = vpop.f32.mrf.mxu0
        %v1533 = vadd.f32 0.0, %v1532
        %v1534 = vpop.f32.mrf.mxu0
        %1535 = vmatprep.mubr.bf16.mxu0 0
        %1536 = vmatmul.mubr.bf16.gmra.mxu0 %v1433
        %v1537 = vpop.f32.mrf.mxu0
        %v1538 = vadd.f32 0.0, %v1537
        %v1539 = vpop.f32.mrf.mxu0
        %v1540 = vpop.f32.mrf.mxu0
        %v1541 = vadd.f32 0.0, %v1540
        %v1542 = vpop.f32.mrf.mxu0
        %1543 = vmatprep.mubr.bf16.mxu0 0
        %1544 = vmatmul.mubr.bf16.gmra.mxu0 %v1434
        %v1545 = vpop.f32.mrf.mxu0
        %v1546 = vadd.f32 0.0, %v1545
        %v1547 = vpop.f32.mrf.mxu0
        %v1548 = vpop.f32.mrf.mxu0
        %v1549 = vadd.f32 0.0, %v1548
        %v1550 = vpop.f32.mrf.mxu0
        %1551 = vdwg.mxu0
        %v1552 = vadd.f32 %v1221, %v1522
        %v1553 = vadd.f32 %v1224, %v1525
        %v1554 = vadd.f32 %v1229, %v1530
        %v1555 = vadd.f32 %v1232, %v1533
        %v1556 = vadd.f32 %v1237, %v1538
        %v1557 = vadd.f32 %v1240, %v1541
        %v1558 = vadd.f32 %v1245, %v1546
        %v1559 = vadd.f32 %v1248, %v1549
        %s1560 = scalar_lea.vmem [#allocation2], 8
        %v1561 = vld [vmem:[%s1560] sm:$0xf]
        %v1562 = vld [vmem:[%s1560 + $0x4] sm:$0x1]
        %v1563 = vld [vmem:[%s1560 + $0x8] sm:$0xf]
        %v1564 = vld [vmem:[%s1560 + $0xc] sm:$0x1]
        %v1565 = vld [vmem:[%s1560 + $0x10] sm:$0xf]
        %v1566 = vld [vmem:[%s1560 + $0x14] sm:$0x1]
        %v1567 = vld [vmem:[%s1560 + $0x18] sm:$0xf]
        %v1568 = vld [vmem:[%s1560 + $0x1c] sm:$0x1]
        %v1569 = vld [vmem:[%s1560 + $0x20] sm:$0xf]
        %v1570 = vld [vmem:[%s1560 + $0x24] sm:$0x1]
        %v1571 = vld [vmem:[%s1560 + $0x28] sm:$0xf]
        %v1572 = vld [vmem:[%s1560 + $0x2c] sm:$0x1]
        %v1573 = vld [vmem:[%s1560 + $0x30] sm:$0xf]
        %v1574 = vld [vmem:[%s1560 + $0x34] sm:$0x1]
        %v1575 = vld [vmem:[%s1560 + $0x38] sm:$0xf]
        %v1576 = vld [vmem:[%s1560 + $0x3c] sm:$0x1]
        %v1578 = vshrl.u32 %v1561, 16
        %v1580 = vrot.slane %v1578, 4
        %v1581 = vshll.u32 %v1561, 16
        %v1583 = vrot.slane %v1581, 5
        %v1584 = vor.u32 %v1580, %v1583
        %v1585 = vrot.slane %v1584, 4
        %v1587 = vshll.u32 %v1562, 16
        %v1589 = vrot.slane %v1587, 5
        %v1590 = vsel %vm788, %v1585, %v1589
        %v1592 = vshrl.u32 %v1563, 16
        %v1594 = vrot.slane %v1592, 4
        %v1595 = vshll.u32 %v1563, 16
        %v1597 = vrot.slane %v1595, 5
        %v1598 = vor.u32 %v1594, %v1597
        %v1599 = vrot.slane %v1598, 4
        %v1601 = vshll.u32 %v1564, 16
        %v1603 = vrot.slane %v1601, 5
        %v1604 = vsel %vm788, %v1599, %v1603
        %v1606 = vshrl.u32 %v1565, 16
        %v1608 = vrot.slane %v1606, 4
        %v1609 = vshll.u32 %v1565, 16
        %v1611 = vrot.slane %v1609, 5
        %v1612 = vor.u32 %v1608, %v1611
        %v1613 = vrot.slane %v1612, 4
        %v1615 = vshll.u32 %v1566, 16
        %v1617 = vrot.slane %v1615, 5
        %v1618 = vsel %vm788, %v1613, %v1617
        %v1620 = vshrl.u32 %v1567, 16
        %v1622 = vrot.slane %v1620, 4
        %v1623 = vshll.u32 %v1567, 16
        %v1625 = vrot.slane %v1623, 5
        %v1626 = vor.u32 %v1622, %v1625
        %v1627 = vrot.slane %v1626, 4
        %v1629 = vshll.u32 %v1568, 16
        %v1631 = vrot.slane %v1629, 5
        %v1632 = vsel %vm788, %v1627, %v1631
        %v1634 = vshrl.u32 %v1569, 16
        %v1636 = vrot.slane %v1634, 4
        %v1637 = vshll.u32 %v1569, 16
        %v1639 = vrot.slane %v1637, 5
        %v1640 = vor.u32 %v1636, %v1639
        %v1641 = vrot.slane %v1640, 4
        %v1643 = vshll.u32 %v1570, 16
        %v1645 = vrot.slane %v1643, 5
        %v1646 = vsel %vm788, %v1641, %v1645
        %v1648 = vshrl.u32 %v1571, 16
        %v1650 = vrot.slane %v1648, 4
        %v1651 = vshll.u32 %v1571, 16
        %v1653 = vrot.slane %v1651, 5
        %v1654 = vor.u32 %v1650, %v1653
        %v1655 = vrot.slane %v1654, 4
        %v1657 = vshll.u32 %v1572, 16
        %v1659 = vrot.slane %v1657, 5
        %v1660 = vsel %vm788, %v1655, %v1659
        %v1662 = vshrl.u32 %v1573, 16
        %v1664 = vrot.slane %v1662, 4
        %v1665 = vshll.u32 %v1573, 16
        %v1667 = vrot.slane %v1665, 5
        %v1668 = vor.u32 %v1664, %v1667
        %v1669 = vrot.slane %v1668, 4
        %v1671 = vshll.u32 %v1574, 16
        %v1673 = vrot.slane %v1671, 5
        %v1674 = vsel %vm788, %v1669, %v1673
        %v1676 = vshrl.u32 %v1575, 16
        %v1678 = vrot.slane %v1676, 4
        %v1679 = vshll.u32 %v1575, 16
        %v1681 = vrot.slane %v1679, 5
        %v1682 = vor.u32 %v1678, %v1681
        %v1683 = vrot.slane %v1682, 4
        %v1685 = vshll.u32 %v1576, 16
        %v1687 = vrot.slane %v1685, 5
        %v1688 = vsel %vm788, %v1683, %v1687
        %s1689 = scalar_lea.vmem %s488, 192 [#allocation4]
        %v1690 = vld [vmem:[%s1689] sm:$0xf]
        %v1691 = vld [vmem:[%s1689 + $0x4] sm:$0xf]
        %v1692 = vld [vmem:[%s1689 + $0x8] sm:$0xf]
        %v1693 = vld [vmem:[%s1689 + $0xc] sm:$0xf]
        %v1694 = vld [vmem:[%s1689 + $0x10] sm:$0xf]
        %v1695 = vld [vmem:[%s1689 + $0x14] sm:$0xf]
        %v1696 = vld [vmem:[%s1689 + $0x18] sm:$0xf]
        %v1697 = vld [vmem:[%s1689 + $0x1c] sm:$0xf]
        %v1698 = vld [vmem:[%s1689 + $0x20] sm:$0xf]
        %v1699 = vld [vmem:[%s1689 + $0x24] sm:$0xf]
        %v1700 = vld [vmem:[%s1689 + $0x28] sm:$0xf]
        %v1701 = vld [vmem:[%s1689 + $0x2c] sm:$0xf]
        %v1702 = vld [vmem:[%s1689 + $0x30] sm:$0xf]
        %v1703 = vld [vmem:[%s1689 + $0x34] sm:$0xf]
        %v1704 = vld [vmem:[%s1689 + $0x38] sm:$0xf]
        %v1705 = vld [vmem:[%s1689 + $0x3c] sm:$0xf]
        %v1706 = vunpack.c.l.b16 %v1590
        %v1707 = vunpack.c.l.b16 %v1604
        %v1708 = vunpack.c.l.b16 %v1618
        %v1709 = vunpack.c.l.b16 %v1632
        %v1710 = vunpack.c.l.b16 %v1646
        %v1711 = vunpack.c.l.b16 %v1660
        %v1712 = vunpack.c.l.b16 %v1674
        %v1713 = vunpack.c.l.b16 %v1688
        %v1714 = vpack.c.b16 %v1707, %v1706
        %v1715 = vpack.c.b16 %v1709, %v1708
        %v1716 = vpack.c.b16 %v1711, %v1710
        %v1717 = vpack.c.b16 %v1713, %v1712
        %v1738 = vunpack.c.l.b16 %v1690
        %v1739 = vunpack.c.l.b16 %v1691
        %v1740 = vunpack.c.l.b16 %v1692
        %v1741 = vunpack.c.l.b16 %v1693
        %v1742 = vunpack.c.l.b16 %v1694
        %v1743 = vunpack.c.l.b16 %v1695
        %v1744 = vunpack.c.l.b16 %v1696
        %v1745 = vunpack.c.l.b16 %v1697
        %v1746 = vunpack.c.l.b16 %v1698
        %v1747 = vunpack.c.l.b16 %v1699
        %v1748 = vunpack.c.l.b16 %v1700
        %v1749 = vunpack.c.l.b16 %v1701
        %v1750 = vunpack.c.l.b16 %v1702
        %v1751 = vunpack.c.l.b16 %v1703
        %v1752 = vunpack.c.l.b16 %v1704
        %v1753 = vunpack.c.l.b16 %v1705
        %v1754 = vpack.c.b16 %v1739, %v1738
        %v1755 = vpack.c.b16 %v1741, %v1740
        %v1756 = vpack.c.b16 %v1743, %v1742
        %v1757 = vpack.c.b16 %v1745, %v1744
        %v1758 = vpack.c.b16 %v1747, %v1746
        %v1759 = vpack.c.b16 %v1749, %v1748
        %v1760 = vpack.c.b16 %v1751, %v1750
        %v1761 = vpack.c.b16 %v1753, %v1752
        %1770 = vmatprep.subr.bf16.mxu0 0
        %1771 = vmatpush1.bf16.msra.mxu0 %v1761
        %1772 = vmatprep.subr.bf16.mxu0 0
        %1773 = vmatpush1.bf16.msra.mxu0 %v1760
        %1774 = vmatprep.subr.bf16.mxu0 0
        %1775 = vmatpush1.bf16.msra.mxu0 %v1759
        %1776 = vmatprep.subr.bf16.mxu0 0
        %1777 = vmatpush1.bf16.msra.mxu0 %v1758
        %1778 = vmatprep.subr.bf16.mxu0 0
        %1779 = vmatpush1.bf16.msra.mxu0 %v1757
        %1780 = vmatprep.subr.bf16.mxu0 0
        %1781 = vmatpush1.bf16.msra.mxu0 %v1756
        %1782 = vmatprep.subr.bf16.mxu0 0
        %1783 = vmatpush1.bf16.msra.mxu0 %v1755
        %1784 = vmatprep.subr.bf16.mxu0 0
        %1785 = vmatpush1.bf16.msra.mxu0 %v1754
        %1786 = vmatprep.subr.bf16.mxu0 0
        %1787 = vmatpush2.bf16.msra.mxu0 0
        %1788 = vmatprep.subr.bf16.mxu0 0
        %1789 = vmatpush2.bf16.msra.mxu0 0
        %1790 = vmatprep.subr.bf16.mxu0 0
        %1791 = vmatpush2.bf16.msra.mxu0 0
        %1792 = vmatprep.subr.bf16.mxu0 0
        %1793 = vmatpush2.bf16.msra.mxu0 0
        %1794 = vmatprep.subr.bf16.mxu0 0
        %1795 = vmatpush2.bf16.msra.mxu0 0
        %1796 = vmatprep.subr.bf16.mxu0 0
        %1797 = vmatpush2.bf16.msra.mxu0 0
        %1798 = vmatprep.subr.bf16.mxu0 0
        %1799 = vmatpush2.bf16.msra.mxu0 0
        %1800 = vmatprep.subr.bf16.mxu0 0
        %1801 = vmatpush2.bf16.msra.mxu0 0
        %1802 = vmatprep.mubr.bf16.mxu0 0
        %1803 = vmatmul.mubr.bf16.gmra.mxu0 %v1714
        %v1804 = vpop.f32.mrf.mxu0
        %v1805 = vadd.f32 0.0, %v1804
        %v1806 = vpop.f32.mrf.mxu0
        %v1807 = vpop.f32.mrf.mxu0
        %v1808 = vadd.f32 0.0, %v1807
        %v1809 = vpop.f32.mrf.mxu0
        %1810 = vmatprep.mubr.bf16.mxu0 0
        %1811 = vmatmul.mubr.bf16.gmra.mxu0 %v1715
        %v1812 = vpop.f32.mrf.mxu0
        %v1813 = vadd.f32 0.0, %v1812
        %v1814 = vpop.f32.mrf.mxu0
        %v1815 = vpop.f32.mrf.mxu0
        %v1816 = vadd.f32 0.0, %v1815
        %v1817 = vpop.f32.mrf.mxu0
        %1818 = vmatprep.mubr.bf16.mxu0 0
        %1819 = vmatmul.mubr.bf16.gmra.mxu0 %v1716
        %v1820 = vpop.f32.mrf.mxu0
        %v1821 = vadd.f32 0.0, %v1820
        %v1822 = vpop.f32.mrf.mxu0
        %v1823 = vpop.f32.mrf.mxu0
        %v1824 = vadd.f32 0.0, %v1823
        %v1825 = vpop.f32.mrf.mxu0
        %1826 = vmatprep.mubr.bf16.mxu0 0
        %1827 = vmatmul.mubr.bf16.gmra.mxu0 %v1717
        %v1828 = vpop.f32.mrf.mxu0
        %v1829 = vadd.f32 0.0, %v1828
        %v1830 = vpop.f32.mrf.mxu0
        %v1831 = vpop.f32.mrf.mxu0
        %v1832 = vadd.f32 0.0, %v1831
        %v1833 = vpop.f32.mrf.mxu0
        %1834 = vdwg.mxu0
        %v1835 = vadd.f32 %v1552, %v1805
        %v1836 = vadd.f32 %v1553, %v1808
        %v1837 = vadd.f32 %v1554, %v1813
        %v1838 = vadd.f32 %v1555, %v1816
        %v1839 = vadd.f32 %v1556, %v1821
        %v1840 = vadd.f32 %v1557, %v1824
        %v1841 = vadd.f32 %v1558, %v1829
        %v1842 = vadd.f32 %v1559, %v1832
        %v1843 = vld [vmem:[%s1560] sm:$0xe]
        %v1844 = vld [vmem:[%s1560 + $0x8] sm:$0xe]
        %v1845 = vld [vmem:[%s1560 + $0x10] sm:$0xe]
        %v1846 = vld [vmem:[%s1560 + $0x18] sm:$0xe]
        %v1847 = vld [vmem:[%s1560 + $0x20] sm:$0xe]
        %v1848 = vld [vmem:[%s1560 + $0x28] sm:$0xe]
        %v1849 = vld [vmem:[%s1560 + $0x30] sm:$0xe]
        %v1850 = vld [vmem:[%s1560 + $0x38] sm:$0xe]
        %v1867 = vrot.slane %v1843, 5
        %v1868 = vrot.slane %v1867, 4
        %v1869 = vrot.slane %v1562, 5
        %v1870 = vsel %vm943, %v1868, %v1869
        %v1871 = vrot.slane %v1844, 5
        %v1872 = vrot.slane %v1871, 4
        %v1873 = vrot.slane %v1564, 5
        %v1874 = vsel %vm943, %v1872, %v1873
        %v1875 = vrot.slane %v1845, 5
        %v1876 = vrot.slane %v1875, 4
        %v1877 = vrot.slane %v1566, 5
        %v1878 = vsel %vm943, %v1876, %v1877
        %v1879 = vrot.slane %v1846, 5
        %v1880 = vrot.slane %v1879, 4
        %v1881 = vrot.slane %v1568, 5
        %v1882 = vsel %vm943, %v1880, %v1881
        %v1883 = vrot.slane %v1847, 5
        %v1884 = vrot.slane %v1883, 4
        %v1885 = vrot.slane %v1570, 5
        %v1886 = vsel %vm943, %v1884, %v1885
        %v1887 = vrot.slane %v1848, 5
        %v1888 = vrot.slane %v1887, 4
        %v1889 = vrot.slane %v1572, 5
        %v1890 = vsel %vm943, %v1888, %v1889
        %v1891 = vrot.slane %v1849, 5
        %v1892 = vrot.slane %v1891, 4
        %v1893 = vrot.slane %v1574, 5
        %v1894 = vsel %vm943, %v1892, %v1893
        %v1895 = vrot.slane %v1850, 5
        %v1896 = vrot.slane %v1895, 4
        %v1897 = vrot.slane %v1576, 5
        %v1898 = vsel %vm943, %v1896, %v1897
        %s1899 = scalar_lea.vmem %s488, 256 [#allocation4]
        %v1900 = vld [vmem:[%s1899] sm:$0xf]
        %v1901 = vld [vmem:[%s1899 + $0x4] sm:$0xf]
        %v1902 = vld [vmem:[%s1899 + $0x8] sm:$0xf]
        %v1903 = vld [vmem:[%s1899 + $0xc] sm:$0xf]
        %v1904 = vld [vmem:[%s1899 + $0x10] sm:$0xf]
        %v1905 = vld [vmem:[%s1899 + $0x14] sm:$0xf]
        %v1906 = vld [vmem:[%s1899 + $0x18] sm:$0xf]
        %v1907 = vld [vmem:[%s1899 + $0x1c] sm:$0xf]
        %v1908 = vld [vmem:[%s1899 + $0x20] sm:$0xf]
        %v1909 = vld [vmem:[%s1899 + $0x24] sm:$0xf]
        %v1910 = vld [vmem:[%s1899 + $0x28] sm:$0xf]
        %v1911 = vld [vmem:[%s1899 + $0x2c] sm:$0xf]
        %v1912 = vld [vmem:[%s1899 + $0x30] sm:$0xf]
        %v1913 = vld [vmem:[%s1899 + $0x34] sm:$0xf]
        %v1914 = vld [vmem:[%s1899 + $0x38] sm:$0xf]
        %v1915 = vld [vmem:[%s1899 + $0x3c] sm:$0xf]
        %v1916 = vunpack.c.l.b16 %v1870
        %v1917 = vunpack.c.l.b16 %v1874
        %v1918 = vunpack.c.l.b16 %v1878
        %v1919 = vunpack.c.l.b16 %v1882
        %v1920 = vunpack.c.l.b16 %v1886
        %v1921 = vunpack.c.l.b16 %v1890
        %v1922 = vunpack.c.l.b16 %v1894
        %v1923 = vunpack.c.l.b16 %v1898
        %v1924 = vpack.c.b16 %v1917, %v1916
        %v1925 = vpack.c.b16 %v1919, %v1918
        %v1926 = vpack.c.b16 %v1921, %v1920
        %v1927 = vpack.c.b16 %v1923, %v1922
        %v1948 = vunpack.c.l.b16 %v1900
        %v1949 = vunpack.c.l.b16 %v1901
        %v1950 = vunpack.c.l.b16 %v1902
        %v1951 = vunpack.c.l.b16 %v1903
        %v1952 = vunpack.c.l.b16 %v1904
        %v1953 = vunpack.c.l.b16 %v1905
        %v1954 = vunpack.c.l.b16 %v1906
        %v1955 = vunpack.c.l.b16 %v1907
        %v1956 = vunpack.c.l.b16 %v1908
        %v1957 = vunpack.c.l.b16 %v1909
        %v1958 = vunpack.c.l.b16 %v1910
        %v1959 = vunpack.c.l.b16 %v1911
        %v1960 = vunpack.c.l.b16 %v1912
        %v1961 = vunpack.c.l.b16 %v1913
        %v1962 = vunpack.c.l.b16 %v1914
        %v1963 = vunpack.c.l.b16 %v1915
        %v1964 = vpack.c.b16 %v1949, %v1948
        %v1965 = vpack.c.b16 %v1951, %v1950
        %v1966 = vpack.c.b16 %v1953, %v1952
        %v1967 = vpack.c.b16 %v1955, %v1954
        %v1968 = vpack.c.b16 %v1957, %v1956
        %v1969 = vpack.c.b16 %v1959, %v1958
        %v1970 = vpack.c.b16 %v1961, %v1960
        %v1971 = vpack.c.b16 %v1963, %v1962
        %1980 = vmatprep.subr.bf16.mxu0 0
        %1981 = vmatpush1.bf16.msra.mxu0 %v1971
        %1982 = vmatprep.subr.bf16.mxu0 0
        %1983 = vmatpush1.bf16.msra.mxu0 %v1970
        %1984 = vmatprep.subr.bf16.mxu0 0
        %1985 = vmatpush1.bf16.msra.mxu0 %v1969
        %1986 = vmatprep.subr.bf16.mxu0 0
        %1987 = vmatpush1.bf16.msra.mxu0 %v1968
        %1988 = vmatprep.subr.bf16.mxu0 0
        %1989 = vmatpush1.bf16.msra.mxu0 %v1967
        %1990 = vmatprep.subr.bf16.mxu0 0
        %1991 = vmatpush1.bf16.msra.mxu0 %v1966
        %1992 = vmatprep.subr.bf16.mxu0 0
        %1993 = vmatpush1.bf16.msra.mxu0 %v1965
        %1994 = vmatprep.subr.bf16.mxu0 0
        %1995 = vmatpush1.bf16.msra.mxu0 %v1964
        %1996 = vmatprep.subr.bf16.mxu0 0
        %1997 = vmatpush2.bf16.msra.mxu0 0
        %1998 = vmatprep.subr.bf16.mxu0 0
        %1999 = vmatpush2.bf16.msra.mxu0 0
        %2000 = vmatprep.subr.bf16.mxu0 0
        %2001 = vmatpush2.bf16.msra.mxu0 0
        %2002 = vmatprep.subr.bf16.mxu0 0
        %2003 = vmatpush2.bf16.msra.mxu0 0
        %2004 = vmatprep.subr.bf16.mxu0 0
        %2005 = vmatpush2.bf16.msra.mxu0 0
        %2006 = vmatprep.subr.bf16.mxu0 0
        %2007 = vmatpush2.bf16.msra.mxu0 0
        %2008 = vmatprep.subr.bf16.mxu0 0
        %2009 = vmatpush2.bf16.msra.mxu0 0
        %2010 = vmatprep.subr.bf16.mxu0 0
        %2011 = vmatpush2.bf16.msra.mxu0 0
        %2012 = vmatprep.mubr.bf16.mxu0 0
        %2013 = vmatmul.mubr.bf16.gmra.mxu0 %v1924
        %v2014 = vpop.f32.mrf.mxu0
        %v2015 = vadd.f32 0.0, %v2014
        %v2016 = vpop.f32.mrf.mxu0
        %v2017 = vpop.f32.mrf.mxu0
        %v2018 = vadd.f32 0.0, %v2017
        %v2019 = vpop.f32.mrf.mxu0
        %2020 = vmatprep.mubr.bf16.mxu0 0
        %2021 = vmatmul.mubr.bf16.gmra.mxu0 %v1925
        %v2022 = vpop.f32.mrf.mxu0
        %v2023 = vadd.f32 0.0, %v2022
        %v2024 = vpop.f32.mrf.mxu0
        %v2025 = vpop.f32.mrf.mxu0
        %v2026 = vadd.f32 0.0, %v2025
        %v2027 = vpop.f32.mrf.mxu0
        %2028 = vmatprep.mubr.bf16.mxu0 0
        %2029 = vmatmul.mubr.bf16.gmra.mxu0 %v1926
        %v2030 = vpop.f32.mrf.mxu0
        %v2031 = vadd.f32 0.0, %v2030
        %v2032 = vpop.f32.mrf.mxu0
        %v2033 = vpop.f32.mrf.mxu0
        %v2034 = vadd.f32 0.0, %v2033
        %v2035 = vpop.f32.mrf.mxu0
        %2036 = vmatprep.mubr.bf16.mxu0 0
        %2037 = vmatmul.mubr.bf16.gmra.mxu0 %v1927
        %v2038 = vpop.f32.mrf.mxu0
        %v2039 = vadd.f32 0.0, %v2038
        %v2040 = vpop.f32.mrf.mxu0
        %v2041 = vpop.f32.mrf.mxu0
        %v2042 = vadd.f32 0.0, %v2041
        %v2043 = vpop.f32.mrf.mxu0
        %2044 = vdwg.mxu0
        %v2045 = vadd.f32 %v1835, %v2015
        %v2046 = vadd.f32 %v1836, %v2018
        %v2047 = vadd.f32 %v1837, %v2023
        %v2048 = vadd.f32 %v1838, %v2026
        %v2049 = vadd.f32 %v1839, %v2031
        %v2050 = vadd.f32 %v1840, %v2034
        %v2051 = vadd.f32 %v1841, %v2039
        %v2052 = vadd.f32 %v1842, %v2042
        %v2053 = vld [vmem:[%s1560 + $0x4] sm:$0x3]
        %v2054 = vld [vmem:[%s1560 + $0xc] sm:$0x3]
        %v2055 = vld [vmem:[%s1560 + $0x14] sm:$0x3]
        %v2056 = vld [vmem:[%s1560 + $0x1c] sm:$0x3]
        %v2057 = vld [vmem:[%s1560 + $0x24] sm:$0x3]
        %v2058 = vld [vmem:[%s1560 + $0x2c] sm:$0x3]
        %v2059 = vld [vmem:[%s1560 + $0x34] sm:$0x3]
        %v2060 = vld [vmem:[%s1560 + $0x3c] sm:$0x3]
        %v2062 = vshrl.u32 %v1843, 16
        %v2064 = vrot.slane %v2062, 5
        %v2065 = vshll.u32 %v1843, 16
        %v2067 = vrot.slane %v2065, 6
        %v2068 = vor.u32 %v2064, %v2067
        %v2069 = vrot.slane %v2068, 4
        %v2071 = vshrl.u32 %v2053, 16
        %v2073 = vrot.slane %v2071, 5
        %v2074 = vshll.u32 %v2053, 16
        %v2076 = vrot.slane %v2074, 6
        %v2077 = vor.u32 %v2073, %v2076
        %v2078 = vsel %vm1261, %v2069, %v2077
        %v2080 = vshrl.u32 %v1844, 16
        %v2082 = vrot.slane %v2080, 5
        %v2083 = vshll.u32 %v1844, 16
        %v2085 = vrot.slane %v2083, 6
        %v2086 = vor.u32 %v2082, %v2085
        %v2087 = vrot.slane %v2086, 4
        %v2089 = vshrl.u32 %v2054, 16
        %v2091 = vrot.slane %v2089, 5
        %v2092 = vshll.u32 %v2054, 16
        %v2094 = vrot.slane %v2092, 6
        %v2095 = vor.u32 %v2091, %v2094
        %v2096 = vsel %vm1261, %v2087, %v2095
        %v2098 = vshrl.u32 %v1845, 16
        %v2100 = vrot.slane %v2098, 5
        %v2101 = vshll.u32 %v1845, 16
        %v2103 = vrot.slane %v2101, 6
        %v2104 = vor.u32 %v2100, %v2103
        %v2105 = vrot.slane %v2104, 4
        %v2107 = vshrl.u32 %v2055, 16
        %v2109 = vrot.slane %v2107, 5
        %v2110 = vshll.u32 %v2055, 16
        %v2112 = vrot.slane %v2110, 6
        %v2113 = vor.u32 %v2109, %v2112
        %v2114 = vsel %vm1261, %v2105, %v2113
        %v2116 = vshrl.u32 %v1846, 16
        %v2118 = vrot.slane %v2116, 5
        %v2119 = vshll.u32 %v1846, 16
        %v2121 = vrot.slane %v2119, 6
        %v2122 = vor.u32 %v2118, %v2121
        %v2123 = vrot.slane %v2122, 4
        %v2125 = vshrl.u32 %v2056, 16
        %v2127 = vrot.slane %v2125, 5
        %v2128 = vshll.u32 %v2056, 16
        %v2130 = vrot.slane %v2128, 6
        %v2131 = vor.u32 %v2127, %v2130
        %v2132 = vsel %vm1261, %v2123, %v2131
        %v2134 = vshrl.u32 %v1847, 16
        %v2136 = vrot.slane %v2134, 5
        %v2137 = vshll.u32 %v1847, 16
        %v2139 = vrot.slane %v2137, 6
        %v2140 = vor.u32 %v2136, %v2139
        %v2141 = vrot.slane %v2140, 4
        %v2143 = vshrl.u32 %v2057, 16
        %v2145 = vrot.slane %v2143, 5
        %v2146 = vshll.u32 %v2057, 16
        %v2148 = vrot.slane %v2146, 6
        %v2149 = vor.u32 %v2145, %v2148
        %v2150 = vsel %vm1261, %v2141, %v2149
        %v2152 = vshrl.u32 %v1848, 16
        %v2154 = vrot.slane %v2152, 5
        %v2155 = vshll.u32 %v1848, 16
        %v2157 = vrot.slane %v2155, 6
        %v2158 = vor.u32 %v2154, %v2157
        %v2159 = vrot.slane %v2158, 4
        %v2161 = vshrl.u32 %v2058, 16
        %v2163 = vrot.slane %v2161, 5
        %v2164 = vshll.u32 %v2058, 16
        %v2166 = vrot.slane %v2164, 6
        %v2167 = vor.u32 %v2163, %v2166
        %v2168 = vsel %vm1261, %v2159, %v2167
        %v2170 = vshrl.u32 %v1849, 16
        %v2172 = vrot.slane %v2170, 5
        %v2173 = vshll.u32 %v1849, 16
        %v2175 = vrot.slane %v2173, 6
        %v2176 = vor.u32 %v2172, %v2175
        %v2177 = vrot.slane %v2176, 4
        %v2179 = vshrl.u32 %v2059, 16
        %v2181 = vrot.slane %v2179, 5
        %v2182 = vshll.u32 %v2059, 16
        %v2184 = vrot.slane %v2182, 6
        %v2185 = vor.u32 %v2181, %v2184
        %v2186 = vsel %vm1261, %v2177, %v2185
        %v2188 = vshrl.u32 %v1850, 16
        %v2190 = vrot.slane %v2188, 5
        %v2191 = vshll.u32 %v1850, 16
        %v2193 = vrot.slane %v2191, 6
        %v2194 = vor.u32 %v2190, %v2193
        %v2195 = vrot.slane %v2194, 4
        %v2197 = vshrl.u32 %v2060, 16
        %v2199 = vrot.slane %v2197, 5
        %v2200 = vshll.u32 %v2060, 16
        %v2202 = vrot.slane %v2200, 6
        %v2203 = vor.u32 %v2199, %v2202
        %v2204 = vsel %vm1261, %v2195, %v2203
        %s2205 = scalar_lea.vmem %s488, 320 [#allocation4]
        %v2206 = vld [vmem:[%s2205] sm:$0xf]
        %v2207 = vld [vmem:[%s2205 + $0x4] sm:$0xf]
        %v2208 = vld [vmem:[%s2205 + $0x8] sm:$0xf]
        %v2209 = vld [vmem:[%s2205 + $0xc] sm:$0xf]
        %v2210 = vld [vmem:[%s2205 + $0x10] sm:$0xf]
        %v2211 = vld [vmem:[%s2205 + $0x14] sm:$0xf]
        %v2212 = vld [vmem:[%s2205 + $0x18] sm:$0xf]
        %v2213 = vld [vmem:[%s2205 + $0x1c] sm:$0xf]
        %v2214 = vld [vmem:[%s2205 + $0x20] sm:$0xf]
        %v2215 = vld [vmem:[%s2205 + $0x24] sm:$0xf]
        %v2216 = vld [vmem:[%s2205 + $0x28] sm:$0xf]
        %v2217 = vld [vmem:[%s2205 + $0x2c] sm:$0xf]
        %v2218 = vld [vmem:[%s2205 + $0x30] sm:$0xf]
        %v2219 = vld [vmem:[%s2205 + $0x34] sm:$0xf]
        %v2220 = vld [vmem:[%s2205 + $0x38] sm:$0xf]
        %v2221 = vld [vmem:[%s2205 + $0x3c] sm:$0xf]
        %v2222 = vunpack.c.l.b16 %v2078
        %v2223 = vunpack.c.l.b16 %v2096
        %v2224 = vunpack.c.l.b16 %v2114
        %v2225 = vunpack.c.l.b16 %v2132
        %v2226 = vunpack.c.l.b16 %v2150
        %v2227 = vunpack.c.l.b16 %v2168
        %v2228 = vunpack.c.l.b16 %v2186
        %v2229 = vunpack.c.l.b16 %v2204
        %v2230 = vpack.c.b16 %v2223, %v2222
        %v2231 = vpack.c.b16 %v2225, %v2224
        %v2232 = vpack.c.b16 %v2227, %v2226
        %v2233 = vpack.c.b16 %v2229, %v2228
        %v2254 = vunpack.c.l.b16 %v2206
        %v2255 = vunpack.c.l.b16 %v2207
        %v2256 = vunpack.c.l.b16 %v2208
        %v2257 = vunpack.c.l.b16 %v2209
        %v2258 = vunpack.c.l.b16 %v2210
        %v2259 = vunpack.c.l.b16 %v2211
        %v2260 = vunpack.c.l.b16 %v2212
        %v2261 = vunpack.c.l.b16 %v2213
        %v2262 = vunpack.c.l.b16 %v2214
        %v2263 = vunpack.c.l.b16 %v2215
        %v2264 = vunpack.c.l.b16 %v2216
        %v2265 = vunpack.c.l.b16 %v2217
        %v2266 = vunpack.c.l.b16 %v2218
        %v2267 = vunpack.c.l.b16 %v2219
        %v2268 = vunpack.c.l.b16 %v2220
        %v2269 = vunpack.c.l.b16 %v2221
        %v2270 = vpack.c.b16 %v2255, %v2254
        %v2271 = vpack.c.b16 %v2257, %v2256
        %v2272 = vpack.c.b16 %v2259, %v2258
        %v2273 = vpack.c.b16 %v2261, %v2260
        %v2274 = vpack.c.b16 %v2263, %v2262
        %v2275 = vpack.c.b16 %v2265, %v2264
        %v2276 = vpack.c.b16 %v2267, %v2266
        %v2277 = vpack.c.b16 %v2269, %v2268
        %2286 = vmatprep.subr.bf16.mxu0 0
        %2287 = vmatpush1.bf16.msra.mxu0 %v2277
        %2288 = vmatprep.subr.bf16.mxu0 0
        %2289 = vmatpush1.bf16.msra.mxu0 %v2276
        %2290 = vmatprep.subr.bf16.mxu0 0
        %2291 = vmatpush1.bf16.msra.mxu0 %v2275
        %2292 = vmatprep.subr.bf16.mxu0 0
        %2293 = vmatpush1.bf16.msra.mxu0 %v2274
        %2294 = vmatprep.subr.bf16.mxu0 0
        %2295 = vmatpush1.bf16.msra.mxu0 %v2273
        %2296 = vmatprep.subr.bf16.mxu0 0
        %2297 = vmatpush1.bf16.msra.mxu0 %v2272
        %2298 = vmatprep.subr.bf16.mxu0 0
        %2299 = vmatpush1.bf16.msra.mxu0 %v2271
        %2300 = vmatprep.subr.bf16.mxu0 0
        %2301 = vmatpush1.bf16.msra.mxu0 %v2270
        %2302 = vmatprep.subr.bf16.mxu0 0
        %2303 = vmatpush2.bf16.msra.mxu0 0
        %2304 = vmatprep.subr.bf16.mxu0 0
        %2305 = vmatpush2.bf16.msra.mxu0 0
        %2306 = vmatprep.subr.bf16.mxu0 0
        %2307 = vmatpush2.bf16.msra.mxu0 0
        %2308 = vmatprep.subr.bf16.mxu0 0
        %2309 = vmatpush2.bf16.msra.mxu0 0
        %2310 = vmatprep.subr.bf16.mxu0 0
        %2311 = vmatpush2.bf16.msra.mxu0 0
        %2312 = vmatprep.subr.bf16.mxu0 0
        %2313 = vmatpush2.bf16.msra.mxu0 0
        %2314 = vmatprep.subr.bf16.mxu0 0
        %2315 = vmatpush2.bf16.msra.mxu0 0
        %2316 = vmatprep.subr.bf16.mxu0 0
        %2317 = vmatpush2.bf16.msra.mxu0 0
        %2318 = vmatprep.mubr.bf16.mxu0 0
        %2319 = vmatmul.mubr.bf16.gmra.mxu0 %v2230
        %v2320 = vpop.f32.mrf.mxu0
        %v2321 = vadd.f32 0.0, %v2320
        %v2322 = vpop.f32.mrf.mxu0
        %v2323 = vpop.f32.mrf.mxu0
        %v2324 = vadd.f32 0.0, %v2323
        %v2325 = vpop.f32.mrf.mxu0
        %2326 = vmatprep.mubr.bf16.mxu0 0
        %2327 = vmatmul.mubr.bf16.gmra.mxu0 %v2231
        %v2328 = vpop.f32.mrf.mxu0
        %v2329 = vadd.f32 0.0, %v2328
        %v2330 = vpop.f32.mrf.mxu0
        %v2331 = vpop.f32.mrf.mxu0
        %v2332 = vadd.f32 0.0, %v2331
        %v2333 = vpop.f32.mrf.mxu0
        %2334 = vmatprep.mubr.bf16.mxu0 0
        %2335 = vmatmul.mubr.bf16.gmra.mxu0 %v2232
        %v2336 = vpop.f32.mrf.mxu0
        %v2337 = vadd.f32 0.0, %v2336
        %v2338 = vpop.f32.mrf.mxu0
        %v2339 = vpop.f32.mrf.mxu0
        %v2340 = vadd.f32 0.0, %v2339
        %v2341 = vpop.f32.mrf.mxu0
        %2342 = vmatprep.mubr.bf16.mxu0 0
        %2343 = vmatmul.mubr.bf16.gmra.mxu0 %v2233
        %v2344 = vpop.f32.mrf.mxu0
        %v2345 = vadd.f32 0.0, %v2344
        %v2346 = vpop.f32.mrf.mxu0
        %v2347 = vpop.f32.mrf.mxu0
        %v2348 = vadd.f32 0.0, %v2347
        %v2349 = vpop.f32.mrf.mxu0
        %2350 = vdwg.mxu0
        %v2351 = vadd.f32 %v2045, %v2321
        %v2352 = vadd.f32 %v2046, %v2324
        %v2353 = vadd.f32 %v2047, %v2329
        %v2354 = vadd.f32 %v2048, %v2332
        %v2355 = vadd.f32 %v2049, %v2337
        %v2356 = vadd.f32 %v2050, %v2340
        %v2357 = vadd.f32 %v2051, %v2345
        %v2358 = vadd.f32 %v2052, %v2348
        %s2359 = scalar_lea.vmem [#allocation2], 16
        %v2360 = vld [vmem:[%s2359] sm:$0xf]
        %v2361 = vld [vmem:[%s2359 + $0x4] sm:$0x1]
        %v2362 = vld [vmem:[%s2359 + $0x8] sm:$0xf]
        %v2363 = vld [vmem:[%s2359 + $0xc] sm:$0x1]
        %v2364 = vld [vmem:[%s2359 + $0x10] sm:$0xf]
        %v2365 = vld [vmem:[%s2359 + $0x14] sm:$0x1]
        %v2366 = vld [vmem:[%s2359 + $0x18] sm:$0xf]
        %v2367 = vld [vmem:[%s2359 + $0x1c] sm:$0x1]
        %v2368 = vld [vmem:[%s2359 + $0x20] sm:$0xf]
        %v2369 = vld [vmem:[%s2359 + $0x24] sm:$0x1]
        %v2370 = vld [vmem:[%s2359 + $0x28] sm:$0xf]
        %v2371 = vld [vmem:[%s2359 + $0x2c] sm:$0x1]
        %v2372 = vld [vmem:[%s2359 + $0x30] sm:$0xf]
        %v2373 = vld [vmem:[%s2359 + $0x34] sm:$0x1]
        %v2374 = vld [vmem:[%s2359 + $0x38] sm:$0xf]
        %v2375 = vld [vmem:[%s2359 + $0x3c] sm:$0x1]
        %v2377 = vshrl.u32 %v2360, 16
        %v2379 = vrot.slane %v2377, 4
        %v2380 = vshll.u32 %v2360, 16
        %v2382 = vrot.slane %v2380, 5
        %v2383 = vor.u32 %v2379, %v2382
        %v2384 = vrot.slane %v2383, 4
        %v2386 = vshll.u32 %v2361, 16
        %v2388 = vrot.slane %v2386, 5
        %v2389 = vsel %vm788, %v2384, %v2388
        %v2391 = vshrl.u32 %v2362, 16
        %v2393 = vrot.slane %v2391, 4
        %v2394 = vshll.u32 %v2362, 16
        %v2396 = vrot.slane %v2394, 5
        %v2397 = vor.u32 %v2393, %v2396
        %v2398 = vrot.slane %v2397, 4
        %v2400 = vshll.u32 %v2363, 16
        %v2402 = vrot.slane %v2400, 5
        %v2403 = vsel %vm788, %v2398, %v2402
        %v2405 = vshrl.u32 %v2364, 16
        %v2407 = vrot.slane %v2405, 4
        %v2408 = vshll.u32 %v2364, 16
        %v2410 = vrot.slane %v2408, 5
        %v2411 = vor.u32 %v2407, %v2410
        %v2412 = vrot.slane %v2411, 4
        %v2414 = vshll.u32 %v2365, 16
        %v2416 = vrot.slane %v2414, 5
        %v2417 = vsel %vm788, %v2412, %v2416
        %v2419 = vshrl.u32 %v2366, 16
        %v2421 = vrot.slane %v2419, 4
        %v2422 = vshll.u32 %v2366, 16
        %v2424 = vrot.slane %v2422, 5
        %v2425 = vor.u32 %v2421, %v2424
        %v2426 = vrot.slane %v2425, 4
        %v2428 = vshll.u32 %v2367, 16
        %v2430 = vrot.slane %v2428, 5
        %v2431 = vsel %vm788, %v2426, %v2430
        %v2433 = vshrl.u32 %v2368, 16
        %v2435 = vrot.slane %v2433, 4
        %v2436 = vshll.u32 %v2368, 16
        %v2438 = vrot.slane %v2436, 5
        %v2439 = vor.u32 %v2435, %v2438
        %v2440 = vrot.slane %v2439, 4
        %v2442 = vshll.u32 %v2369, 16
        %v2444 = vrot.slane %v2442, 5
        %v2445 = vsel %vm788, %v2440, %v2444
        %v2447 = vshrl.u32 %v2370, 16
        %v2449 = vrot.slane %v2447, 4
        %v2450 = vshll.u32 %v2370, 16
        %v2452 = vrot.slane %v2450, 5
        %v2453 = vor.u32 %v2449, %v2452
        %v2454 = vrot.slane %v2453, 4
        %v2456 = vshll.u32 %v2371, 16
        %v2458 = vrot.slane %v2456, 5
        %v2459 = vsel %vm788, %v2454, %v2458
        %v2461 = vshrl.u32 %v2372, 16
        %v2463 = vrot.slane %v2461, 4
        %v2464 = vshll.u32 %v2372, 16
        %v2466 = vrot.slane %v2464, 5
        %v2467 = vor.u32 %v2463, %v2466
        %v2468 = vrot.slane %v2467, 4
        %v2470 = vshll.u32 %v2373, 16
        %v2472 = vrot.slane %v2470, 5
        %v2473 = vsel %vm788, %v2468, %v2472
        %v2475 = vshrl.u32 %v2374, 16
        %v2477 = vrot.slane %v2475, 4
        %v2478 = vshll.u32 %v2374, 16
        %v2480 = vrot.slane %v2478, 5
        %v2481 = vor.u32 %v2477, %v2480
        %v2482 = vrot.slane %v2481, 4
        %v2484 = vshll.u32 %v2375, 16
        %v2486 = vrot.slane %v2484, 5
        %v2487 = vsel %vm788, %v2482, %v2486
        %s2488 = scalar_lea.vmem %s488, 384 [#allocation4]
        %v2489 = vld [vmem:[%s2488] sm:$0xf]
        %v2490 = vld [vmem:[%s2488 + $0x4] sm:$0xf]
        %v2491 = vld [vmem:[%s2488 + $0x8] sm:$0xf]
        %v2492 = vld [vmem:[%s2488 + $0xc] sm:$0xf]
        %v2493 = vld [vmem:[%s2488 + $0x10] sm:$0xf]
        %v2494 = vld [vmem:[%s2488 + $0x14] sm:$0xf]
        %v2495 = vld [vmem:[%s2488 + $0x18] sm:$0xf]
        %v2496 = vld [vmem:[%s2488 + $0x1c] sm:$0xf]
        %v2497 = vld [vmem:[%s2488 + $0x20] sm:$0xf]
        %v2498 = vld [vmem:[%s2488 + $0x24] sm:$0xf]
        %v2499 = vld [vmem:[%s2488 + $0x28] sm:$0xf]
        %v2500 = vld [vmem:[%s2488 + $0x2c] sm:$0xf]
        %v2501 = vld [vmem:[%s2488 + $0x30] sm:$0xf]
        %v2502 = vld [vmem:[%s2488 + $0x34] sm:$0xf]
        %v2503 = vld [vmem:[%s2488 + $0x38] sm:$0xf]
        %v2504 = vld [vmem:[%s2488 + $0x3c] sm:$0xf]
        %v2505 = vunpack.c.l.b16 %v2389
        %v2506 = vunpack.c.l.b16 %v2403
        %v2507 = vunpack.c.l.b16 %v2417
        %v2508 = vunpack.c.l.b16 %v2431
        %v2509 = vunpack.c.l.b16 %v2445
        %v2510 = vunpack.c.l.b16 %v2459
        %v2511 = vunpack.c.l.b16 %v2473
        %v2512 = vunpack.c.l.b16 %v2487
        %v2513 = vpack.c.b16 %v2506, %v2505
        %v2514 = vpack.c.b16 %v2508, %v2507
        %v2515 = vpack.c.b16 %v2510, %v2509
        %v2516 = vpack.c.b16 %v2512, %v2511
        %v2537 = vunpack.c.l.b16 %v2489
        %v2538 = vunpack.c.l.b16 %v2490
        %v2539 = vunpack.c.l.b16 %v2491
        %v2540 = vunpack.c.l.b16 %v2492
        %v2541 = vunpack.c.l.b16 %v2493
        %v2542 = vunpack.c.l.b16 %v2494
        %v2543 = vunpack.c.l.b16 %v2495
        %v2544 = vunpack.c.l.b16 %v2496
        %v2545 = vunpack.c.l.b16 %v2497
        %v2546 = vunpack.c.l.b16 %v2498
        %v2547 = vunpack.c.l.b16 %v2499
        %v2548 = vunpack.c.l.b16 %v2500
        %v2549 = vunpack.c.l.b16 %v2501
        %v2550 = vunpack.c.l.b16 %v2502
        %v2551 = vunpack.c.l.b16 %v2503
        %v2552 = vunpack.c.l.b16 %v2504
        %v2553 = vpack.c.b16 %v2538, %v2537
        %v2554 = vpack.c.b16 %v2540, %v2539
        %v2555 = vpack.c.b16 %v2542, %v2541
        %v2556 = vpack.c.b16 %v2544, %v2543
        %v2557 = vpack.c.b16 %v2546, %v2545
        %v2558 = vpack.c.b16 %v2548, %v2547
        %v2559 = vpack.c.b16 %v2550, %v2549
        %v2560 = vpack.c.b16 %v2552, %v2551
        %2569 = vmatprep.subr.bf16.mxu0 0
        %2570 = vmatpush1.bf16.msra.mxu0 %v2560
        %2571 = vmatprep.subr.bf16.mxu0 0
        %2572 = vmatpush1.bf16.msra.mxu0 %v2559
        %2573 = vmatprep.subr.bf16.mxu0 0
        %2574 = vmatpush1.bf16.msra.mxu0 %v2558
        %2575 = vmatprep.subr.bf16.mxu0 0
        %2576 = vmatpush1.bf16.msra.mxu0 %v2557
        %2577 = vmatprep.subr.bf16.mxu0 0
        %2578 = vmatpush1.bf16.msra.mxu0 %v2556
        %2579 = vmatprep.subr.bf16.mxu0 0
        %2580 = vmatpush1.bf16.msra.mxu0 %v2555
        %2581 = vmatprep.subr.bf16.mxu0 0
        %2582 = vmatpush1.bf16.msra.mxu0 %v2554
        %2583 = vmatprep.subr.bf16.mxu0 0
        %2584 = vmatpush1.bf16.msra.mxu0 %v2553
        %2585 = vmatprep.subr.bf16.mxu0 0
        %2586 = vmatpush2.bf16.msra.mxu0 0
        %2587 = vmatprep.subr.bf16.mxu0 0
        %2588 = vmatpush2.bf16.msra.mxu0 0
        %2589 = vmatprep.subr.bf16.mxu0 0
        %2590 = vmatpush2.bf16.msra.mxu0 0
        %2591 = vmatprep.subr.bf16.mxu0 0
        %2592 = vmatpush2.bf16.msra.mxu0 0
        %2593 = vmatprep.subr.bf16.mxu0 0
        %2594 = vmatpush2.bf16.msra.mxu0 0
        %2595 = vmatprep.subr.bf16.mxu0 0
        %2596 = vmatpush2.bf16.msra.mxu0 0
        %2597 = vmatprep.subr.bf16.mxu0 0
        %2598 = vmatpush2.bf16.msra.mxu0 0
        %2599 = vmatprep.subr.bf16.mxu0 0
        %2600 = vmatpush2.bf16.msra.mxu0 0
        %2601 = vmatprep.mubr.bf16.mxu0 0
        %2602 = vmatmul.mubr.bf16.gmra.mxu0 %v2513
        %v2603 = vpop.f32.mrf.mxu0
        %v2604 = vadd.f32 0.0, %v2603
        %v2605 = vpop.f32.mrf.mxu0
        %v2606 = vpop.f32.mrf.mxu0
        %v2607 = vadd.f32 0.0, %v2606
        %v2608 = vpop.f32.mrf.mxu0
        %2609 = vmatprep.mubr.bf16.mxu0 0
        %2610 = vmatmul.mubr.bf16.gmra.mxu0 %v2514
        %v2611 = vpop.f32.mrf.mxu0
        %v2612 = vadd.f32 0.0, %v2611
        %v2613 = vpop.f32.mrf.mxu0
        %v2614 = vpop.f32.mrf.mxu0
        %v2615 = vadd.f32 0.0, %v2614
        %v2616 = vpop.f32.mrf.mxu0
        %2617 = vmatprep.mubr.bf16.mxu0 0
        %2618 = vmatmul.mubr.bf16.gmra.mxu0 %v2515
        %v2619 = vpop.f32.mrf.mxu0
        %v2620 = vadd.f32 0.0, %v2619
        %v2621 = vpop.f32.mrf.mxu0
        %v2622 = vpop.f32.mrf.mxu0
        %v2623 = vadd.f32 0.0, %v2622
        %v2624 = vpop.f32.mrf.mxu0
        %2625 = vmatprep.mubr.bf16.mxu0 0
        %2626 = vmatmul.mubr.bf16.gmra.mxu0 %v2516
        %v2627 = vpop.f32.mrf.mxu0
        %v2628 = vadd.f32 0.0, %v2627
        %v2629 = vpop.f32.mrf.mxu0
        %v2630 = vpop.f32.mrf.mxu0
        %v2631 = vadd.f32 0.0, %v2630
        %v2632 = vpop.f32.mrf.mxu0
        %2633 = vdwg.mxu0
        %v2634 = vadd.f32 %v2351, %v2604
        %v2635 = vadd.f32 %v2352, %v2607
        %v2636 = vadd.f32 %v2353, %v2612
        %v2637 = vadd.f32 %v2354, %v2615
        %v2638 = vadd.f32 %v2355, %v2620
        %v2639 = vadd.f32 %v2356, %v2623
        %v2640 = vadd.f32 %v2357, %v2628
        %v2641 = vadd.f32 %v2358, %v2631
        %v2642 = vld [vmem:[%s2359] sm:$0xe]
        %v2643 = vld [vmem:[%s2359 + $0x8] sm:$0xe]
        %v2644 = vld [vmem:[%s2359 + $0x10] sm:$0xe]
        %v2645 = vld [vmem:[%s2359 + $0x18] sm:$0xe]
        %v2646 = vld [vmem:[%s2359 + $0x20] sm:$0xe]
        %v2647 = vld [vmem:[%s2359 + $0x28] sm:$0xe]
        %v2648 = vld [vmem:[%s2359 + $0x30] sm:$0xe]
        %v2649 = vld [vmem:[%s2359 + $0x38] sm:$0xe]
        %v2666 = vrot.slane %v2642, 5
        %v2667 = vrot.slane %v2666, 4
        %v2668 = vrot.slane %v2361, 5
        %v2669 = vsel %vm943, %v2667, %v2668
        %v2670 = vrot.slane %v2643, 5
        %v2671 = vrot.slane %v2670, 4
        %v2672 = vrot.slane %v2363, 5
        %v2673 = vsel %vm943, %v2671, %v2672
        %v2674 = vrot.slane %v2644, 5
        %v2675 = vrot.slane %v2674, 4
        %v2676 = vrot.slane %v2365, 5
        %v2677 = vsel %vm943, %v2675, %v2676
        %v2678 = vrot.slane %v2645, 5
        %v2679 = vrot.slane %v2678, 4
        %v2680 = vrot.slane %v2367, 5
        %v2681 = vsel %vm943, %v2679, %v2680
        %v2682 = vrot.slane %v2646, 5
        %v2683 = vrot.slane %v2682, 4
        %v2684 = vrot.slane %v2369, 5
        %v2685 = vsel %vm943, %v2683, %v2684
        %v2686 = vrot.slane %v2647, 5
        %v2687 = vrot.slane %v2686, 4
        %v2688 = vrot.slane %v2371, 5
        %v2689 = vsel %vm943, %v2687, %v2688
        %v2690 = vrot.slane %v2648, 5
        %v2691 = vrot.slane %v2690, 4
        %v2692 = vrot.slane %v2373, 5
        %v2693 = vsel %vm943, %v2691, %v2692
        %v2694 = vrot.slane %v2649, 5
        %v2695 = vrot.slane %v2694, 4
        %v2696 = vrot.slane %v2375, 5
        %v2697 = vsel %vm943, %v2695, %v2696
        %s2698 = scalar_lea.vmem %s488, 448 [#allocation4]
        %v2699 = vld [vmem:[%s2698] sm:$0xf]
        %v2700 = vld [vmem:[%s2698 + $0x4] sm:$0xf]
        %v2701 = vld [vmem:[%s2698 + $0x8] sm:$0xf]
        %v2702 = vld [vmem:[%s2698 + $0xc] sm:$0xf]
        %v2703 = vld [vmem:[%s2698 + $0x10] sm:$0xf]
        %v2704 = vld [vmem:[%s2698 + $0x14] sm:$0xf]
        %v2705 = vld [vmem:[%s2698 + $0x18] sm:$0xf]
        %v2706 = vld [vmem:[%s2698 + $0x1c] sm:$0xf]
        %v2707 = vld [vmem:[%s2698 + $0x20] sm:$0xf]
        %v2708 = vld [vmem:[%s2698 + $0x24] sm:$0xf]
        %v2709 = vld [vmem:[%s2698 + $0x28] sm:$0xf]
        %v2710 = vld [vmem:[%s2698 + $0x2c] sm:$0xf]
        %v2711 = vld [vmem:[%s2698 + $0x30] sm:$0xf]
        %v2712 = vld [vmem:[%s2698 + $0x34] sm:$0xf]
        %v2713 = vld [vmem:[%s2698 + $0x38] sm:$0xf]
        %v2714 = vld [vmem:[%s2698 + $0x3c] sm:$0xf]
        %v2715 = vunpack.c.l.b16 %v2669
        %v2716 = vunpack.c.l.b16 %v2673
        %v2717 = vunpack.c.l.b16 %v2677
        %v2718 = vunpack.c.l.b16 %v2681
        %v2719 = vunpack.c.l.b16 %v2685
        %v2720 = vunpack.c.l.b16 %v2689
        %v2721 = vunpack.c.l.b16 %v2693
        %v2722 = vunpack.c.l.b16 %v2697
        %v2723 = vpack.c.b16 %v2716, %v2715
        %v2724 = vpack.c.b16 %v2718, %v2717
        %v2725 = vpack.c.b16 %v2720, %v2719
        %v2726 = vpack.c.b16 %v2722, %v2721
        %v2747 = vunpack.c.l.b16 %v2699
        %v2748 = vunpack.c.l.b16 %v2700
        %v2749 = vunpack.c.l.b16 %v2701
        %v2750 = vunpack.c.l.b16 %v2702
        %v2751 = vunpack.c.l.b16 %v2703
        %v2752 = vunpack.c.l.b16 %v2704
        %v2753 = vunpack.c.l.b16 %v2705
        %v2754 = vunpack.c.l.b16 %v2706
        %v2755 = vunpack.c.l.b16 %v2707
        %v2756 = vunpack.c.l.b16 %v2708
        %v2757 = vunpack.c.l.b16 %v2709
        %v2758 = vunpack.c.l.b16 %v2710
        %v2759 = vunpack.c.l.b16 %v2711
        %v2760 = vunpack.c.l.b16 %v2712
        %v2761 = vunpack.c.l.b16 %v2713
        %v2762 = vunpack.c.l.b16 %v2714
        %v2763 = vpack.c.b16 %v2748, %v2747
        %v2764 = vpack.c.b16 %v2750, %v2749
        %v2765 = vpack.c.b16 %v2752, %v2751
        %v2766 = vpack.c.b16 %v2754, %v2753
        %v2767 = vpack.c.b16 %v2756, %v2755
        %v2768 = vpack.c.b16 %v2758, %v2757
        %v2769 = vpack.c.b16 %v2760, %v2759
        %v2770 = vpack.c.b16 %v2762, %v2761
        %2779 = vmatprep.subr.bf16.mxu0 0
        %2780 = vmatpush1.bf16.msra.mxu0 %v2770
        %2781 = vmatprep.subr.bf16.mxu0 0
        %2782 = vmatpush1.bf16.msra.mxu0 %v2769
        %2783 = vmatprep.subr.bf16.mxu0 0
        %2784 = vmatpush1.bf16.msra.mxu0 %v2768
        %2785 = vmatprep.subr.bf16.mxu0 0
        %2786 = vmatpush1.bf16.msra.mxu0 %v2767
        %2787 = vmatprep.subr.bf16.mxu0 0
        %2788 = vmatpush1.bf16.msra.mxu0 %v2766
        %2789 = vmatprep.subr.bf16.mxu0 0
        %2790 = vmatpush1.bf16.msra.mxu0 %v2765
        %2791 = vmatprep.subr.bf16.mxu0 0
        %2792 = vmatpush1.bf16.msra.mxu0 %v2764
        %2793 = vmatprep.subr.bf16.mxu0 0
        %2794 = vmatpush1.bf16.msra.mxu0 %v2763
        %2795 = vmatprep.subr.bf16.mxu0 0
        %2796 = vmatpush2.bf16.msra.mxu0 0
        %2797 = vmatprep.subr.bf16.mxu0 0
        %2798 = vmatpush2.bf16.msra.mxu0 0
        %2799 = vmatprep.subr.bf16.mxu0 0
        %2800 = vmatpush2.bf16.msra.mxu0 0
        %2801 = vmatprep.subr.bf16.mxu0 0
        %2802 = vmatpush2.bf16.msra.mxu0 0
        %2803 = vmatprep.subr.bf16.mxu0 0
        %2804 = vmatpush2.bf16.msra.mxu0 0
        %2805 = vmatprep.subr.bf16.mxu0 0
        %2806 = vmatpush2.bf16.msra.mxu0 0
        %2807 = vmatprep.subr.bf16.mxu0 0
        %2808 = vmatpush2.bf16.msra.mxu0 0
        %2809 = vmatprep.subr.bf16.mxu0 0
        %2810 = vmatpush2.bf16.msra.mxu0 0
        %2811 = vmatprep.mubr.bf16.mxu0 0
        %2812 = vmatmul.mubr.bf16.gmra.mxu0 %v2723
        %v2813 = vpop.f32.mrf.mxu0
        %v2814 = vadd.f32 0.0, %v2813
        %v2815 = vpop.f32.mrf.mxu0
        %v2816 = vpop.f32.mrf.mxu0
        %v2817 = vadd.f32 0.0, %v2816
        %v2818 = vpop.f32.mrf.mxu0
        %2819 = vmatprep.mubr.bf16.mxu0 0
        %2820 = vmatmul.mubr.bf16.gmra.mxu0 %v2724
        %v2821 = vpop.f32.mrf.mxu0
        %v2822 = vadd.f32 0.0, %v2821
        %v2823 = vpop.f32.mrf.mxu0
        %v2824 = vpop.f32.mrf.mxu0
        %v2825 = vadd.f32 0.0, %v2824
        %v2826 = vpop.f32.mrf.mxu0
        %2827 = vmatprep.mubr.bf16.mxu0 0
        %2828 = vmatmul.mubr.bf16.gmra.mxu0 %v2725
        %v2829 = vpop.f32.mrf.mxu0
        %v2830 = vadd.f32 0.0, %v2829
        %v2831 = vpop.f32.mrf.mxu0
        %v2832 = vpop.f32.mrf.mxu0
        %v2833 = vadd.f32 0.0, %v2832
        %v2834 = vpop.f32.mrf.mxu0
        %2835 = vmatprep.mubr.bf16.mxu0 0
        %2836 = vmatmul.mubr.bf16.gmra.mxu0 %v2726
        %v2837 = vpop.f32.mrf.mxu0
        %v2838 = vadd.f32 0.0, %v2837
        %v2839 = vpop.f32.mrf.mxu0
        %v2840 = vpop.f32.mrf.mxu0
        %v2841 = vadd.f32 0.0, %v2840
        %v2842 = vpop.f32.mrf.mxu0
        %2843 = vdwg.mxu0
        %v2844 = vadd.f32 %v2634, %v2814
        %v2845 = vadd.f32 %v2635, %v2817
        %v2846 = vadd.f32 %v2636, %v2822
        %v2847 = vadd.f32 %v2637, %v2825
        %v2848 = vadd.f32 %v2638, %v2830
        %v2849 = vadd.f32 %v2639, %v2833
        %v2850 = vadd.f32 %v2640, %v2838
        %v2851 = vadd.f32 %v2641, %v2841
        %v2852 = vld [vmem:[%s2359 + $0x4] sm:$0x3]
        %v2853 = vld [vmem:[%s2359 + $0xc] sm:$0x3]
        %v2854 = vld [vmem:[%s2359 + $0x14] sm:$0x3]
        %v2855 = vld [vmem:[%s2359 + $0x1c] sm:$0x3]
        %v2856 = vld [vmem:[%s2359 + $0x24] sm:$0x3]
        %v2857 = vld [vmem:[%s2359 + $0x2c] sm:$0x3]
        %v2858 = vld [vmem:[%s2359 + $0x34] sm:$0x3]
        %v2859 = vld [vmem:[%s2359 + $0x3c] sm:$0x3]
        %v2861 = vshrl.u32 %v2642, 16
        %v2863 = vrot.slane %v2861, 5
        %v2864 = vshll.u32 %v2642, 16
        %v2866 = vrot.slane %v2864, 6
        %v2867 = vor.u32 %v2863, %v2866
        %v2868 = vrot.slane %v2867, 4
        %v2870 = vshrl.u32 %v2852, 16
        %v2872 = vrot.slane %v2870, 5
        %v2873 = vshll.u32 %v2852, 16
        %v2875 = vrot.slane %v2873, 6
        %v2876 = vor.u32 %v2872, %v2875
        %v2877 = vsel %vm1261, %v2868, %v2876
        %v2879 = vshrl.u32 %v2643, 16
        %v2881 = vrot.slane %v2879, 5
        %v2882 = vshll.u32 %v2643, 16
        %v2884 = vrot.slane %v2882, 6
        %v2885 = vor.u32 %v2881, %v2884
        %v2886 = vrot.slane %v2885, 4
        %v2888 = vshrl.u32 %v2853, 16
        %v2890 = vrot.slane %v2888, 5
        %v2891 = vshll.u32 %v2853, 16
        %v2893 = vrot.slane %v2891, 6
        %v2894 = vor.u32 %v2890, %v2893
        %v2895 = vsel %vm1261, %v2886, %v2894
        %v2897 = vshrl.u32 %v2644, 16
        %v2899 = vrot.slane %v2897, 5
        %v2900 = vshll.u32 %v2644, 16
        %v2902 = vrot.slane %v2900, 6
        %v2903 = vor.u32 %v2899, %v2902
        %v2904 = vrot.slane %v2903, 4
        %v2906 = vshrl.u32 %v2854, 16
        %v2908 = vrot.slane %v2906, 5
        %v2909 = vshll.u32 %v2854, 16
        %v2911 = vrot.slane %v2909, 6
        %v2912 = vor.u32 %v2908, %v2911
        %v2913 = vsel %vm1261, %v2904, %v2912
        %v2915 = vshrl.u32 %v2645, 16
        %v2917 = vrot.slane %v2915, 5
        %v2918 = vshll.u32 %v2645, 16
        %v2920 = vrot.slane %v2918, 6
        %v2921 = vor.u32 %v2917, %v2920
        %v2922 = vrot.slane %v2921, 4
        %v2924 = vshrl.u32 %v2855, 16
        %v2926 = vrot.slane %v2924, 5
        %v2927 = vshll.u32 %v2855, 16
        %v2929 = vrot.slane %v2927, 6
        %v2930 = vor.u32 %v2926, %v2929
        %v2931 = vsel %vm1261, %v2922, %v2930
        %v2933 = vshrl.u32 %v2646, 16
        %v2935 = vrot.slane %v2933, 5
        %v2936 = vshll.u32 %v2646, 16
        %v2938 = vrot.slane %v2936, 6
        %v2939 = vor.u32 %v2935, %v2938
        %v2940 = vrot.slane %v2939, 4
        %v2942 = vshrl.u32 %v2856, 16
        %v2944 = vrot.slane %v2942, 5
        %v2945 = vshll.u32 %v2856, 16
        %v2947 = vrot.slane %v2945, 6
        %v2948 = vor.u32 %v2944, %v2947
        %v2949 = vsel %vm1261, %v2940, %v2948
        %v2951 = vshrl.u32 %v2647, 16
        %v2953 = vrot.slane %v2951, 5
        %v2954 = vshll.u32 %v2647, 16
        %v2956 = vrot.slane %v2954, 6
        %v2957 = vor.u32 %v2953, %v2956
        %v2958 = vrot.slane %v2957, 4
        %v2960 = vshrl.u32 %v2857, 16
        %v2962 = vrot.slane %v2960, 5
        %v2963 = vshll.u32 %v2857, 16
        %v2965 = vrot.slane %v2963, 6
        %v2966 = vor.u32 %v2962, %v2965
        %v2967 = vsel %vm1261, %v2958, %v2966
        %v2969 = vshrl.u32 %v2648, 16
        %v2971 = vrot.slane %v2969, 5
        %v2972 = vshll.u32 %v2648, 16
        %v2974 = vrot.slane %v2972, 6
        %v2975 = vor.u32 %v2971, %v2974
        %v2976 = vrot.slane %v2975, 4
        %v2978 = vshrl.u32 %v2858, 16
        %v2980 = vrot.slane %v2978, 5
        %v2981 = vshll.u32 %v2858, 16
        %v2983 = vrot.slane %v2981, 6
        %v2984 = vor.u32 %v2980, %v2983
        %v2985 = vsel %vm1261, %v2976, %v2984
        %v2987 = vshrl.u32 %v2649, 16
        %v2989 = vrot.slane %v2987, 5
        %v2990 = vshll.u32 %v2649, 16
        %v2992 = vrot.slane %v2990, 6
        %v2993 = vor.u32 %v2989, %v2992
        %v2994 = vrot.slane %v2993, 4
        %v2996 = vshrl.u32 %v2859, 16
        %v2998 = vrot.slane %v2996, 5
        %v2999 = vshll.u32 %v2859, 16
        %v3001 = vrot.slane %v2999, 6
        %v3002 = vor.u32 %v2998, %v3001
        %v3003 = vsel %vm1261, %v2994, %v3002
        %s3004 = scalar_lea.vmem %s488, 512 [#allocation4]
        %v3005 = vld [vmem:[%s3004] sm:$0xf]
        %v3006 = vld [vmem:[%s3004 + $0x4] sm:$0xf]
        %v3007 = vld [vmem:[%s3004 + $0x8] sm:$0xf]
        %v3008 = vld [vmem:[%s3004 + $0xc] sm:$0xf]
        %v3009 = vld [vmem:[%s3004 + $0x10] sm:$0xf]
        %v3010 = vld [vmem:[%s3004 + $0x14] sm:$0xf]
        %v3011 = vld [vmem:[%s3004 + $0x18] sm:$0xf]
        %v3012 = vld [vmem:[%s3004 + $0x1c] sm:$0xf]
        %v3013 = vld [vmem:[%s3004 + $0x20] sm:$0xf]
        %v3014 = vld [vmem:[%s3004 + $0x24] sm:$0xf]
        %v3015 = vld [vmem:[%s3004 + $0x28] sm:$0xf]
        %v3016 = vld [vmem:[%s3004 + $0x2c] sm:$0xf]
        %v3017 = vld [vmem:[%s3004 + $0x30] sm:$0xf]
        %v3018 = vld [vmem:[%s3004 + $0x34] sm:$0xf]
        %v3019 = vld [vmem:[%s3004 + $0x38] sm:$0xf]
        %v3020 = vld [vmem:[%s3004 + $0x3c] sm:$0xf]
        %v3021 = vunpack.c.l.b16 %v2877
        %v3022 = vunpack.c.l.b16 %v2895
        %v3023 = vunpack.c.l.b16 %v2913
        %v3024 = vunpack.c.l.b16 %v2931
        %v3025 = vunpack.c.l.b16 %v2949
        %v3026 = vunpack.c.l.b16 %v2967
        %v3027 = vunpack.c.l.b16 %v2985
        %v3028 = vunpack.c.l.b16 %v3003
        %v3029 = vpack.c.b16 %v3022, %v3021
        %v3030 = vpack.c.b16 %v3024, %v3023
        %v3031 = vpack.c.b16 %v3026, %v3025
        %v3032 = vpack.c.b16 %v3028, %v3027
        %v3053 = vunpack.c.l.b16 %v3005
        %v3054 = vunpack.c.l.b16 %v3006
        %v3055 = vunpack.c.l.b16 %v3007
        %v3056 = vunpack.c.l.b16 %v3008
        %v3057 = vunpack.c.l.b16 %v3009
        %v3058 = vunpack.c.l.b16 %v3010
        %v3059 = vunpack.c.l.b16 %v3011
        %v3060 = vunpack.c.l.b16 %v3012
        %v3061 = vunpack.c.l.b16 %v3013
        %v3062 = vunpack.c.l.b16 %v3014
        %v3063 = vunpack.c.l.b16 %v3015
        %v3064 = vunpack.c.l.b16 %v3016
        %v3065 = vunpack.c.l.b16 %v3017
        %v3066 = vunpack.c.l.b16 %v3018
        %v3067 = vunpack.c.l.b16 %v3019
        %v3068 = vunpack.c.l.b16 %v3020
        %v3069 = vpack.c.b16 %v3054, %v3053
        %v3070 = vpack.c.b16 %v3056, %v3055
        %v3071 = vpack.c.b16 %v3058, %v3057
        %v3072 = vpack.c.b16 %v3060, %v3059
        %v3073 = vpack.c.b16 %v3062, %v3061
        %v3074 = vpack.c.b16 %v3064, %v3063
        %v3075 = vpack.c.b16 %v3066, %v3065
        %v3076 = vpack.c.b16 %v3068, %v3067
        %3085 = vmatprep.subr.bf16.mxu0 0
        %3086 = vmatpush1.bf16.msra.mxu0 %v3076
        %3087 = vmatprep.subr.bf16.mxu0 0
        %3088 = vmatpush1.bf16.msra.mxu0 %v3075
        %3089 = vmatprep.subr.bf16.mxu0 0
        %3090 = vmatpush1.bf16.msra.mxu0 %v3074
        %3091 = vmatprep.subr.bf16.mxu0 0
        %3092 = vmatpush1.bf16.msra.mxu0 %v3073
        %3093 = vmatprep.subr.bf16.mxu0 0
        %3094 = vmatpush1.bf16.msra.mxu0 %v3072
        %3095 = vmatprep.subr.bf16.mxu0 0
        %3096 = vmatpush1.bf16.msra.mxu0 %v3071
        %3097 = vmatprep.subr.bf16.mxu0 0
        %3098 = vmatpush1.bf16.msra.mxu0 %v3070
        %3099 = vmatprep.subr.bf16.mxu0 0
        %3100 = vmatpush1.bf16.msra.mxu0 %v3069
        %3101 = vmatprep.subr.bf16.mxu0 0
        %3102 = vmatpush2.bf16.msra.mxu0 0
        %3103 = vmatprep.subr.bf16.mxu0 0
        %3104 = vmatpush2.bf16.msra.mxu0 0
        %3105 = vmatprep.subr.bf16.mxu0 0
        %3106 = vmatpush2.bf16.msra.mxu0 0
        %3107 = vmatprep.subr.bf16.mxu0 0
        %3108 = vmatpush2.bf16.msra.mxu0 0
        %3109 = vmatprep.subr.bf16.mxu0 0
        %3110 = vmatpush2.bf16.msra.mxu0 0
        %3111 = vmatprep.subr.bf16.mxu0 0
        %3112 = vmatpush2.bf16.msra.mxu0 0
        %3113 = vmatprep.subr.bf16.mxu0 0
        %3114 = vmatpush2.bf16.msra.mxu0 0
        %3115 = vmatprep.subr.bf16.mxu0 0
        %3116 = vmatpush2.bf16.msra.mxu0 0
        %3117 = vmatprep.mubr.bf16.mxu0 0
        %3118 = vmatmul.mubr.bf16.gmra.mxu0 %v3029
        %v3119 = vpop.f32.mrf.mxu0
        %v3120 = vadd.f32 0.0, %v3119
        %v3121 = vpop.f32.mrf.mxu0
        %v3122 = vpop.f32.mrf.mxu0
        %v3123 = vadd.f32 0.0, %v3122
        %v3124 = vpop.f32.mrf.mxu0
        %3125 = vmatprep.mubr.bf16.mxu0 0
        %3126 = vmatmul.mubr.bf16.gmra.mxu0 %v3030
        %v3127 = vpop.f32.mrf.mxu0
        %v3128 = vadd.f32 0.0, %v3127
        %v3129 = vpop.f32.mrf.mxu0
        %v3130 = vpop.f32.mrf.mxu0
        %v3131 = vadd.f32 0.0, %v3130
        %v3132 = vpop.f32.mrf.mxu0
        %3133 = vmatprep.mubr.bf16.mxu0 0
        %3134 = vmatmul.mubr.bf16.gmra.mxu0 %v3031
        %v3135 = vpop.f32.mrf.mxu0
        %v3136 = vadd.f32 0.0, %v3135
        %v3137 = vpop.f32.mrf.mxu0
        %v3138 = vpop.f32.mrf.mxu0
        %v3139 = vadd.f32 0.0, %v3138
        %v3140 = vpop.f32.mrf.mxu0
        %3141 = vmatprep.mubr.bf16.mxu0 0
        %3142 = vmatmul.mubr.bf16.gmra.mxu0 %v3032
        %v3143 = vpop.f32.mrf.mxu0
        %v3144 = vadd.f32 0.0, %v3143
        %v3145 = vpop.f32.mrf.mxu0
        %v3146 = vpop.f32.mrf.mxu0
        %v3147 = vadd.f32 0.0, %v3146
        %v3148 = vpop.f32.mrf.mxu0
        %3149 = vdwg.mxu0
        %v3150 = vadd.f32 %v2844, %v3120
        %v3151 = vadd.f32 %v2845, %v3123
        %v3152 = vadd.f32 %v2846, %v3128
        %v3153 = vadd.f32 %v2847, %v3131
        %v3154 = vadd.f32 %v2848, %v3136
        %v3155 = vadd.f32 %v2849, %v3139
        %v3156 = vadd.f32 %v2850, %v3144
        %v3157 = vadd.f32 %v2851, %v3147
        %v3158 = vld [vmem:[%s496] sm:$0x1]
        %v3160 = vlaneseq
        %v3161 = vshrl.u32 %v3160, 7
        %v3162 = vsub.s32 0, %v3161
        %v3163 = vrot.slane %v3158, %v3162
        %v3165 = vmul.f32 %v3150, %v3163
        %v3166 = vmul.f32 %v3151, %v3163
        %v3167 = vmul.f32 %v3152, %v3163
        %v3168 = vmul.f32 %v3153, %v3163
        %v3169 = vmul.f32 %v3154, %v3163
        %v3170 = vmul.f32 %v3155, %v3163
        %v3171 = vmul.f32 %v3156, %v3163
        %v3172 = vmul.f32 %v3157, %v3163
        %v3173 = vld [vmem:[%s504] sm:$0x1]
        %v3175 = vlaneseq
        %v3176 = vshrl.u32 %v3175, 7
        %v3177 = vsub.s32 0, %v3176
        %v3178 = vrot.slane %v3173, %v3177
        %v3180 = vadd.f32 %v3165, %v3178
        %v3181 = vadd.f32 %v3166, %v3178
        %v3182 = vadd.f32 %v3167, %v3178
        %v3183 = vadd.f32 %v3168, %v3178
        %v3184 = vadd.f32 %v3169, %v3178
        %v3185 = vadd.f32 %v3170, %v3178
        %v3186 = vadd.f32 %v3171, %v3178
        %v3187 = vadd.f32 %v3172, %v3178
        %v3188 = vmul.f32 %v3180, 0.5
        %v3189 = vmul.f32 %v3181, 0.5
        %v3190 = vmul.f32 %v3182, 0.5
        %v3191 = vmul.f32 %v3183, 0.5
        %v3192 = vmul.f32 %v3184, 0.5
        %v3193 = vmul.f32 %v3185, 0.5
        %v3194 = vmul.f32 %v3186, 0.5
        %v3195 = vmul.f32 %v3187, 0.5
        %v3196 = vmul.f32 %v3180, %v3180
        %v3197 = vmul.f32 %v3181, %v3181
        %v3198 = vmul.f32 %v3182, %v3182
        %v3199 = vmul.f32 %v3183, %v3183
        %v3200 = vmul.f32 %v3184, %v3184
        %v3201 = vmul.f32 %v3185, %v3185
        %v3202 = vmul.f32 %v3186, %v3186
        %v3203 = vmul.f32 %v3187, %v3187
        %v3204 = vmul.f32 %v3196, %v3180
        %v3205 = vmul.f32 %v3197, %v3181
        %v3206 = vmul.f32 %v3198, %v3182
        %v3207 = vmul.f32 %v3199, %v3183
        %v3208 = vmul.f32 %v3200, %v3184
        %v3209 = vmul.f32 %v3201, %v3185
        %v3210 = vmul.f32 %v3202, %v3186
        %v3211 = vmul.f32 %v3203, %v3187
        %v3212 = vmul.f32 %v3204, 0.044715
        %v3213 = vmul.f32 %v3205, 0.044715
        %v3214 = vmul.f32 %v3206, 0.044715
        %v3215 = vmul.f32 %v3207, 0.044715
        %v3216 = vmul.f32 %v3208, 0.044715
        %v3217 = vmul.f32 %v3209, 0.044715
        %v3218 = vmul.f32 %v3210, 0.044715
        %v3219 = vmul.f32 %v3211, 0.044715
        %v3220 = vadd.f32 %v3180, %v3212
        %v3221 = vadd.f32 %v3181, %v3213
        %v3222 = vadd.f32 %v3182, %v3214
        %v3223 = vadd.f32 %v3183, %v3215
        %v3224 = vadd.f32 %v3184, %v3216
        %v3225 = vadd.f32 %v3185, %v3217
        %v3226 = vadd.f32 %v3186, %v3218
        %v3227 = vadd.f32 %v3187, %v3219
        %v3228 = vmul.f32 %v3220, 0.7978846
        %v3229 = vmul.f32 %v3221, 0.7978846
        %v3230 = vmul.f32 %v3222, 0.7978846
        %v3231 = vmul.f32 %v3223, 0.7978846
        %v3232 = vmul.f32 %v3224, 0.7978846
        %v3233 = vmul.f32 %v3225, 0.7978846
        %v3234 = vmul.f32 %v3226, 0.7978846
        %v3235 = vmul.f32 %v3227, 0.7978846
        %v3236 = vtanh.pop %v3228
        %v3237 = vtanh.pop %v3229
        %v3238 = vtanh.pop %v3230
        %v3239 = vtanh.pop %v3231
        %v3240 = vtanh.pop %v3232
        %v3241 = vtanh.pop %v3233
        %v3242 = vtanh.pop %v3234
        %v3243 = vtanh.pop %v3235
        %v3244 = vadd.f32 %v3236, 1.0
        %v3245 = vadd.f32 %v3237, 1.0
        %v3246 = vadd.f32 %v3238, 1.0
        %v3247 = vadd.f32 %v3239, 1.0
        %v3248 = vadd.f32 %v3240, 1.0
        %v3249 = vadd.f32 %v3241, 1.0
        %v3250 = vadd.f32 %v3242, 1.0
        %v3251 = vadd.f32 %v3243, 1.0
        %v3252 = vmul.f32 %v3188, %v3244
        %v3253 = vmul.f32 %v3189, %v3245
        %v3254 = vmul.f32 %v3190, %v3246
        %v3255 = vmul.f32 %v3191, %v3247
        %v3256 = vmul.f32 %v3192, %v3248
        %v3257 = vmul.f32 %v3193, %v3249
        %v3258 = vmul.f32 %v3194, %v3250
        %v3259 = vmul.f32 %v3195, %v3251
        %v3260 = vpack.c.bf16 %v3252, %v3252
        %v3261 = vpack.c.bf16 %v3253, %v3253
        %v3262 = vpack.c.bf16 %v3254, %v3254
        %v3263 = vpack.c.bf16 %v3255, %v3255
        %v3264 = vpack.c.bf16 %v3256, %v3256
        %v3265 = vpack.c.bf16 %v3257, %v3257
        %v3266 = vpack.c.bf16 %v3258, %v3258
        %v3267 = vpack.c.bf16 %v3259, %v3259
        %v3276 = vunpack.c.l.b16 %v3260
        %v3277 = vunpack.c.l.b16 %v3261
        %v3278 = vunpack.c.l.b16 %v3262
        %v3279 = vunpack.c.l.b16 %v3263
        %v3280 = vunpack.c.l.b16 %v3264
        %v3281 = vunpack.c.l.b16 %v3265
        %v3282 = vunpack.c.l.b16 %v3266
        %v3283 = vunpack.c.l.b16 %v3267
        %v3284 = vpack.c.b16 %v3276, %v3276
        %v3285 = vpack.c.b16 %v3277, %v3277
        %v3286 = vpack.c.b16 %v3278, %v3278
        %v3287 = vpack.c.b16 %v3279, %v3279
        %v3288 = vpack.c.b16 %v3280, %v3280
        %v3289 = vpack.c.b16 %v3281, %v3281
        %v3290 = vpack.c.b16 %v3282, %v3282
        %v3291 = vpack.c.b16 %v3283, %v3283
        %v3292 = vrot.slane %v3284, 7
        %v3293 = vrot.slane %v3292, 4
        %v3294 = vrot.slane %v3285, 7
        %v3295 = vrot.slane %v3294, 4
        %v3296 = vrot.slane %v3286, 7
        %v3297 = vrot.slane %v3296, 4
        %v3298 = vrot.slane %v3287, 7
        %v3299 = vrot.slane %v3298, 4
        %v3300 = vrot.slane %v3288, 7
        %v3301 = vrot.slane %v3300, 4
        %v3302 = vrot.slane %v3289, 7
        %v3303 = vrot.slane %v3302, 4
        %v3304 = vrot.slane %v3290, 7
        %v3305 = vrot.slane %v3304, 4
        %v3306 = vrot.slane %v3291, 7
        %v3307 = vrot.slane %v3306, 4
        %s3324 = scalar_lea.vmem [#allocation3], 8
        %3325 = vst [vmem:[%s3324] sm:$0xe] %v3292
        %3326 = vst [vmem:[%s3324 + $0x4] sm:$0x1] %v3293
        %3327 = vst [vmem:[%s3324 + $0x8] sm:$0xe] %v3294
        %3328 = vst [vmem:[%s3324 + $0xc] sm:$0x1] %v3295
        %3329 = vst [vmem:[%s3324 + $0x10] sm:$0xe] %v3296
        %3330 = vst [vmem:[%s3324 + $0x14] sm:$0x1] %v3297
        %3331 = vst [vmem:[%s3324 + $0x18] sm:$0xe] %v3298
        %3332 = vst [vmem:[%s3324 + $0x1c] sm:$0x1] %v3299
        %3333 = vst [vmem:[%s3324 + $0x20] sm:$0xe] %v3300
        %3334 = vst [vmem:[%s3324 + $0x24] sm:$0x1] %v3301
        %3335 = vst [vmem:[%s3324 + $0x28] sm:$0xe] %v3302
        %3336 = vst [vmem:[%s3324 + $0x2c] sm:$0x1] %v3303
        %3337 = vst [vmem:[%s3324 + $0x30] sm:$0xe] %v3304
        %3338 = vst [vmem:[%s3324 + $0x34] sm:$0x1] %v3305
        %3339 = vst [vmem:[%s3324 + $0x38] sm:$0xe] %v3306
        %3340 = vst [vmem:[%s3324 + $0x3c] sm:$0x1] %v3307
        %v3341 = vld [vmem:[%s1560] sm:$0xe]
        %v3342 = vld [vmem:[%s1560 + $0x4] sm:$0x1]
        %v3343 = vld [vmem:[%s1560 + $0x8] sm:$0xe]
        %v3344 = vld [vmem:[%s1560 + $0xc] sm:$0x1]
        %v3345 = vld [vmem:[%s1560 + $0x10] sm:$0xe]
        %v3346 = vld [vmem:[%s1560 + $0x14] sm:$0x1]
        %v3347 = vld [vmem:[%s1560 + $0x18] sm:$0xe]
        %v3348 = vld [vmem:[%s1560 + $0x1c] sm:$0x1]
        %v3349 = vld [vmem:[%s1560 + $0x20] sm:$0xe]
        %v3350 = vld [vmem:[%s1560 + $0x24] sm:$0x1]
        %v3351 = vld [vmem:[%s1560 + $0x28] sm:$0xe]
        %v3352 = vld [vmem:[%s1560 + $0x2c] sm:$0x1]
        %v3353 = vld [vmem:[%s1560 + $0x30] sm:$0xe]
        %v3354 = vld [vmem:[%s1560 + $0x34] sm:$0x1]
        %v3355 = vld [vmem:[%s1560 + $0x38] sm:$0xe]
        %v3356 = vld [vmem:[%s1560 + $0x3c] sm:$0x1]
        %v3373 = vrot.slane %v3341, 5
        %v3374 = vrot.slane %v3373, 4
        %v3375 = vrot.slane %v3342, 5
        %v3376 = vsel %vm943, %v3374, %v3375
        %v3377 = vrot.slane %v3343, 5
        %v3378 = vrot.slane %v3377, 4
        %v3379 = vrot.slane %v3344, 5
        %v3380 = vsel %vm943, %v3378, %v3379
        %v3381 = vrot.slane %v3345, 5
        %v3382 = vrot.slane %v3381, 4
        %v3383 = vrot.slane %v3346, 5
        %v3384 = vsel %vm943, %v3382, %v3383
        %v3385 = vrot.slane %v3347, 5
        %v3386 = vrot.slane %v3385, 4
        %v3387 = vrot.slane %v3348, 5
        %v3388 = vsel %vm943, %v3386, %v3387
        %v3389 = vrot.slane %v3349, 5
        %v3390 = vrot.slane %v3389, 4
        %v3391 = vrot.slane %v3350, 5
        %v3392 = vsel %vm943, %v3390, %v3391
        %v3393 = vrot.slane %v3351, 5
        %v3394 = vrot.slane %v3393, 4
        %v3395 = vrot.slane %v3352, 5
        %v3396 = vsel %vm943, %v3394, %v3395
        %v3397 = vrot.slane %v3353, 5
        %v3398 = vrot.slane %v3397, 4
        %v3399 = vrot.slane %v3354, 5
        %v3400 = vsel %vm943, %v3398, %v3399
        %v3401 = vrot.slane %v3355, 5
        %v3402 = vrot.slane %v3401, 4
        %v3403 = vrot.slane %v3356, 5
        %v3404 = vsel %vm943, %v3402, %v3403
        %v3405 = vld [vmem:[%s538] sm:$0xf]
        %v3406 = vld [vmem:[%s538 + $0x4] sm:$0xf]
        %v3407 = vld [vmem:[%s538 + $0x8] sm:$0xf]
        %v3408 = vld [vmem:[%s538 + $0xc] sm:$0xf]
        %v3409 = vld [vmem:[%s538 + $0x10] sm:$0xf]
        %v3410 = vld [vmem:[%s538 + $0x14] sm:$0xf]
        %v3411 = vld [vmem:[%s538 + $0x18] sm:$0xf]
        %v3412 = vld [vmem:[%s538 + $0x1c] sm:$0xf]
        %v3413 = vld [vmem:[%s538 + $0x20] sm:$0xf]
        %v3414 = vld [vmem:[%s538 + $0x24] sm:$0xf]
        %v3415 = vld [vmem:[%s538 + $0x28] sm:$0xf]
        %v3416 = vld [vmem:[%s538 + $0x2c] sm:$0xf]
        %v3417 = vld [vmem:[%s538 + $0x30] sm:$0xf]
        %v3418 = vld [vmem:[%s538 + $0x34] sm:$0xf]
        %v3419 = vld [vmem:[%s538 + $0x38] sm:$0xf]
        %v3420 = vld [vmem:[%s538 + $0x3c] sm:$0xf]
        %v3421 = vld [vmem:[%s546] sm:$0x1]
        %v3423 = vlaneseq
        %v3424 = vshrl.u32 %v3423, 7
        %v3425 = vsub.s32 0, %v3424
        %v3426 = vrot.slane %v3421, %v3425
        %v3428 = vunpack.c.l.b16 %v3376
        %v3429 = vunpack.c.l.b16 %v3380
        %v3430 = vunpack.c.l.b16 %v3384
        %v3431 = vunpack.c.l.b16 %v3388
        %v3432 = vunpack.c.l.b16 %v3392
        %v3433 = vunpack.c.l.b16 %v3396
        %v3434 = vunpack.c.l.b16 %v3400
        %v3435 = vunpack.c.l.b16 %v3404
        %v3436 = vpack.c.b16 %v3429, %v3428
        %v3437 = vpack.c.b16 %v3431, %v3430
        %v3438 = vpack.c.b16 %v3433, %v3432
        %v3439 = vpack.c.b16 %v3435, %v3434
        %v3460 = vunpack.c.l.b16 %v3405
        %v3461 = vunpack.c.l.b16 %v3406
        %v3462 = vunpack.c.l.b16 %v3407
        %v3463 = vunpack.c.l.b16 %v3408
        %v3464 = vunpack.c.l.b16 %v3409
        %v3465 = vunpack.c.l.b16 %v3410
        %v3466 = vunpack.c.l.b16 %v3411
        %v3467 = vunpack.c.l.b16 %v3412
        %v3468 = vunpack.c.l.b16 %v3413
        %v3469 = vunpack.c.l.b16 %v3414
        %v3470 = vunpack.c.l.b16 %v3415
        %v3471 = vunpack.c.l.b16 %v3416
        %v3472 = vunpack.c.l.b16 %v3417
        %v3473 = vunpack.c.l.b16 %v3418
        %v3474 = vunpack.c.l.b16 %v3419
        %v3475 = vunpack.c.l.b16 %v3420
        %v3476 = vpack.c.b16 %v3461, %v3460
        %v3477 = vpack.c.b16 %v3463, %v3462
        %v3478 = vpack.c.b16 %v3465, %v3464
        %v3479 = vpack.c.b16 %v3467, %v3466
        %v3480 = vpack.c.b16 %v3469, %v3468
        %v3481 = vpack.c.b16 %v3471, %v3470
        %v3482 = vpack.c.b16 %v3473, %v3472
        %v3483 = vpack.c.b16 %v3475, %v3474
        %3492 = vmatprep.subr.bf16.mxu0 0
        %3493 = vmatpush1.bf16.msra.mxu0 %v3483
        %3494 = vmatprep.subr.bf16.mxu0 0
        %3495 = vmatpush1.bf16.msra.mxu0 %v3482
        %3496 = vmatprep.subr.bf16.mxu0 0
        %3497 = vmatpush1.bf16.msra.mxu0 %v3481
        %3498 = vmatprep.subr.bf16.mxu0 0
        %3499 = vmatpush1.bf16.msra.mxu0 %v3480
        %3500 = vmatprep.subr.bf16.mxu0 0
        %3501 = vmatpush1.bf16.msra.mxu0 %v3479
        %3502 = vmatprep.subr.bf16.mxu0 0
        %3503 = vmatpush1.bf16.msra.mxu0 %v3478
        %3504 = vmatprep.subr.bf16.mxu0 0
        %3505 = vmatpush1.bf16.msra.mxu0 %v3477
        %3506 = vmatprep.subr.bf16.mxu0 0
        %3507 = vmatpush1.bf16.msra.mxu0 %v3476
        %3508 = vmatprep.subr.bf16.mxu0 0
        %3509 = vmatpush2.bf16.msra.mxu0 0
        %3510 = vmatprep.subr.bf16.mxu0 0
        %3511 = vmatpush2.bf16.msra.mxu0 0
        %3512 = vmatprep.subr.bf16.mxu0 0
        %3513 = vmatpush2.bf16.msra.mxu0 0
        %3514 = vmatprep.subr.bf16.mxu0 0
        %3515 = vmatpush2.bf16.msra.mxu0 0
        %3516 = vmatprep.subr.bf16.mxu0 0
        %3517 = vmatpush2.bf16.msra.mxu0 0
        %3518 = vmatprep.subr.bf16.mxu0 0
        %3519 = vmatpush2.bf16.msra.mxu0 0
        %3520 = vmatprep.subr.bf16.mxu0 0
        %3521 = vmatpush2.bf16.msra.mxu0 0
        %3522 = vmatprep.subr.bf16.mxu0 0
        %3523 = vmatpush2.bf16.msra.mxu0 0
        %3524 = vmatprep.mubr.bf16.mxu0 0
        %3525 = vmatmul.mubr.bf16.gmra.mxu0 %v3436
        %v3526 = vpop.f32.mrf.mxu0
        %v3527 = vadd.f32 %v3426, %v3526
        %v3528 = vpop.f32.mrf.mxu0
        %v3529 = vpop.f32.mrf.mxu0
        %v3530 = vadd.f32 %v3426, %v3529
        %v3531 = vpop.f32.mrf.mxu0
        %3532 = vmatprep.mubr.bf16.mxu0 0
        %3533 = vmatmul.mubr.bf16.gmra.mxu0 %v3437
        %v3534 = vpop.f32.mrf.mxu0
        %v3535 = vadd.f32 %v3426, %v3534
        %v3536 = vpop.f32.mrf.mxu0
        %v3537 = vpop.f32.mrf.mxu0
        %v3538 = vadd.f32 %v3426, %v3537
        %v3539 = vpop.f32.mrf.mxu0
        %3540 = vmatprep.mubr.bf16.mxu0 0
        %3541 = vmatmul.mubr.bf16.gmra.mxu0 %v3438
        %v3542 = vpop.f32.mrf.mxu0
        %v3543 = vadd.f32 %v3426, %v3542
        %v3544 = vpop.f32.mrf.mxu0
        %v3545 = vpop.f32.mrf.mxu0
        %v3546 = vadd.f32 %v3426, %v3545
        %v3547 = vpop.f32.mrf.mxu0
        %3548 = vmatprep.mubr.bf16.mxu0 0
        %3549 = vmatmul.mubr.bf16.gmra.mxu0 %v3439
        %v3550 = vpop.f32.mrf.mxu0
        %v3551 = vadd.f32 %v3426, %v3550
        %v3552 = vpop.f32.mrf.mxu0
        %v3553 = vpop.f32.mrf.mxu0
        %v3554 = vadd.f32 %v3426, %v3553
        %v3555 = vpop.f32.mrf.mxu0
        %3556 = vdwg.mxu0
        %v3557 = vld [vmem:[#allocation3] sm:$0xf]
        %v3558 = vld [vmem:[#allocation3 + $0x4] sm:$0x1]
        %v3559 = vld [vmem:[#allocation3 + $0x8] sm:$0xf]
        %v3560 = vld [vmem:[#allocation3 + $0xc] sm:$0x1]
        %v3561 = vld [vmem:[#allocation3 + $0x10] sm:$0xf]
        %v3562 = vld [vmem:[#allocation3 + $0x14] sm:$0x1]
        %v3563 = vld [vmem:[#allocation3 + $0x18] sm:$0xf]
        %v3564 = vld [vmem:[#allocation3 + $0x1c] sm:$0x1]
        %v3565 = vld [vmem:[#allocation3 + $0x20] sm:$0xf]
        %v3566 = vld [vmem:[#allocation3 + $0x24] sm:$0x1]
        %v3567 = vld [vmem:[#allocation3 + $0x28] sm:$0xf]
        %v3568 = vld [vmem:[#allocation3 + $0x2c] sm:$0x1]
        %v3569 = vld [vmem:[#allocation3 + $0x30] sm:$0xf]
        %v3570 = vld [vmem:[#allocation3 + $0x34] sm:$0x1]
        %v3571 = vld [vmem:[#allocation3 + $0x38] sm:$0xf]
        %v3572 = vld [vmem:[#allocation3 + $0x3c] sm:$0x1]
        %v3574 = vshrl.u32 %v3557, 16
        %v3576 = vrot.slane %v3574, 4
        %v3577 = vshll.u32 %v3557, 16
        %v3579 = vrot.slane %v3577, 5
        %v3580 = vor.u32 %v3576, %v3579
        %v3581 = vrot.slane %v3580, 4
        %v3583 = vshll.u32 %v3558, 16
        %v3585 = vrot.slane %v3583, 5
        %v3586 = vsel %vm788, %v3581, %v3585
        %v3588 = vshrl.u32 %v3559, 16
        %v3590 = vrot.slane %v3588, 4
        %v3591 = vshll.u32 %v3559, 16
        %v3593 = vrot.slane %v3591, 5
        %v3594 = vor.u32 %v3590, %v3593
        %v3595 = vrot.slane %v3594, 4
        %v3597 = vshll.u32 %v3560, 16
        %v3599 = vrot.slane %v3597, 5
        %v3600 = vsel %vm788, %v3595, %v3599
        %v3602 = vshrl.u32 %v3561, 16
        %v3604 = vrot.slane %v3602, 4
        %v3605 = vshll.u32 %v3561, 16
        %v3607 = vrot.slane %v3605, 5
        %v3608 = vor.u32 %v3604, %v3607
        %v3609 = vrot.slane %v3608, 4
        %v3611 = vshll.u32 %v3562, 16
        %v3613 = vrot.slane %v3611, 5
        %v3614 = vsel %vm788, %v3609, %v3613
        %v3616 = vshrl.u32 %v3563, 16
        %v3618 = vrot.slane %v3616, 4
        %v3619 = vshll.u32 %v3563, 16
        %v3621 = vrot.slane %v3619, 5
        %v3622 = vor.u32 %v3618, %v3621
        %v3623 = vrot.slane %v3622, 4
        %v3625 = vshll.u32 %v3564, 16
        %v3627 = vrot.slane %v3625, 5
        %v3628 = vsel %vm788, %v3623, %v3627
        %v3630 = vshrl.u32 %v3565, 16
        %v3632 = vrot.slane %v3630, 4
        %v3633 = vshll.u32 %v3565, 16
        %v3635 = vrot.slane %v3633, 5
        %v3636 = vor.u32 %v3632, %v3635
        %v3637 = vrot.slane %v3636, 4
        %v3639 = vshll.u32 %v3566, 16
        %v3641 = vrot.slane %v3639, 5
        %v3642 = vsel %vm788, %v3637, %v3641
        %v3644 = vshrl.u32 %v3567, 16
        %v3646 = vrot.slane %v3644, 4
        %v3647 = vshll.u32 %v3567, 16
        %v3649 = vrot.slane %v3647, 5
        %v3650 = vor.u32 %v3646, %v3649
        %v3651 = vrot.slane %v3650, 4
        %v3653 = vshll.u32 %v3568, 16
        %v3655 = vrot.slane %v3653, 5
        %v3656 = vsel %vm788, %v3651, %v3655
        %v3658 = vshrl.u32 %v3569, 16
        %v3660 = vrot.slane %v3658, 4
        %v3661 = vshll.u32 %v3569, 16
        %v3663 = vrot.slane %v3661, 5
        %v3664 = vor.u32 %v3660, %v3663
        %v3665 = vrot.slane %v3664, 4
        %v3667 = vshll.u32 %v3570, 16
        %v3669 = vrot.slane %v3667, 5
        %v3670 = vsel %vm788, %v3665, %v3669
        %v3672 = vshrl.u32 %v3571, 16
        %v3674 = vrot.slane %v3672, 4
        %v3675 = vshll.u32 %v3571, 16
        %v3677 = vrot.slane %v3675, 5
        %v3678 = vor.u32 %v3674, %v3677
        %v3679 = vrot.slane %v3678, 4
        %v3681 = vshll.u32 %v3572, 16
        %v3683 = vrot.slane %v3681, 5
        %v3684 = vsel %vm788, %v3679, %v3683
        %v3685 = vld [vmem:[%s513] sm:$0xf]
        %v3686 = vld [vmem:[%s513 + $0x4] sm:$0xf]
        %v3687 = vld [vmem:[%s513 + $0x8] sm:$0xf]
        %v3688 = vld [vmem:[%s513 + $0xc] sm:$0xf]
        %v3689 = vld [vmem:[%s513 + $0x10] sm:$0xf]
        %v3690 = vld [vmem:[%s513 + $0x14] sm:$0xf]
        %v3691 = vld [vmem:[%s513 + $0x18] sm:$0xf]
        %v3692 = vld [vmem:[%s513 + $0x1c] sm:$0xf]
        %v3693 = vld [vmem:[%s513 + $0x20] sm:$0xf]
        %v3694 = vld [vmem:[%s513 + $0x24] sm:$0xf]
        %v3695 = vld [vmem:[%s513 + $0x28] sm:$0xf]
        %v3696 = vld [vmem:[%s513 + $0x2c] sm:$0xf]
        %v3697 = vld [vmem:[%s513 + $0x30] sm:$0xf]
        %v3698 = vld [vmem:[%s513 + $0x34] sm:$0xf]
        %v3699 = vld [vmem:[%s513 + $0x38] sm:$0xf]
        %v3700 = vld [vmem:[%s513 + $0x3c] sm:$0xf]
        %v3701 = vld [vmem:[#allocation3] sm:$0xe]
        %v3702 = vld [vmem:[#allocation3 + $0x8] sm:$0xe]
        %v3703 = vld [vmem:[#allocation3 + $0x10] sm:$0xe]
        %v3704 = vld [vmem:[#allocation3 + $0x18] sm:$0xe]
        %v3705 = vld [vmem:[#allocation3 + $0x20] sm:$0xe]
        %v3706 = vld [vmem:[#allocation3 + $0x28] sm:$0xe]
        %v3707 = vld [vmem:[#allocation3 + $0x30] sm:$0xe]
        %v3708 = vld [vmem:[#allocation3 + $0x38] sm:$0xe]
        %v3725 = vrot.slane %v3701, 5
        %v3726 = vrot.slane %v3725, 4
        %v3727 = vrot.slane %v3558, 5
        %v3728 = vsel %vm943, %v3726, %v3727
        %v3729 = vrot.slane %v3702, 5
        %v3730 = vrot.slane %v3729, 4
        %v3731 = vrot.slane %v3560, 5
        %v3732 = vsel %vm943, %v3730, %v3731
        %v3733 = vrot.slane %v3703, 5
        %v3734 = vrot.slane %v3733, 4
        %v3735 = vrot.slane %v3562, 5
        %v3736 = vsel %vm943, %v3734, %v3735
        %v3737 = vrot.slane %v3704, 5
        %v3738 = vrot.slane %v3737, 4
        %v3739 = vrot.slane %v3564, 5
        %v3740 = vsel %vm943, %v3738, %v3739
        %v3741 = vrot.slane %v3705, 5
        %v3742 = vrot.slane %v3741, 4
        %v3743 = vrot.slane %v3566, 5
        %v3744 = vsel %vm943, %v3742, %v3743
        %v3745 = vrot.slane %v3706, 5
        %v3746 = vrot.slane %v3745, 4
        %v3747 = vrot.slane %v3568, 5
        %v3748 = vsel %vm943, %v3746, %v3747
        %v3749 = vrot.slane %v3707, 5
        %v3750 = vrot.slane %v3749, 4
        %v3751 = vrot.slane %v3570, 5
        %v3752 = vsel %vm943, %v3750, %v3751
        %v3753 = vrot.slane %v3708, 5
        %v3754 = vrot.slane %v3753, 4
        %v3755 = vrot.slane %v3572, 5
        %v3756 = vsel %vm943, %v3754, %v3755
        %s3757 = scalar_lea.vmem %s513, 64 [#allocation9]
        %v3758 = vld [vmem:[%s3757] sm:$0xf]
        %v3759 = vld [vmem:[%s3757 + $0x4] sm:$0xf]
        %v3760 = vld [vmem:[%s3757 + $0x8] sm:$0xf]
        %v3761 = vld [vmem:[%s3757 + $0xc] sm:$0xf]
        %v3762 = vld [vmem:[%s3757 + $0x10] sm:$0xf]
        %v3763 = vld [vmem:[%s3757 + $0x14] sm:$0xf]
        %v3764 = vld [vmem:[%s3757 + $0x18] sm:$0xf]
        %v3765 = vld [vmem:[%s3757 + $0x1c] sm:$0xf]
        %v3766 = vld [vmem:[%s3757 + $0x20] sm:$0xf]
        %v3767 = vld [vmem:[%s3757 + $0x24] sm:$0xf]
        %v3768 = vld [vmem:[%s3757 + $0x28] sm:$0xf]
        %v3769 = vld [vmem:[%s3757 + $0x2c] sm:$0xf]
        %v3770 = vld [vmem:[%s3757 + $0x30] sm:$0xf]
        %v3771 = vld [vmem:[%s3757 + $0x34] sm:$0xf]
        %v3772 = vld [vmem:[%s3757 + $0x38] sm:$0xf]
        %v3773 = vld [vmem:[%s3757 + $0x3c] sm:$0xf]
        %v3774 = vunpack.c.l.b16 %v3728
        %v3775 = vunpack.c.l.b16 %v3732
        %v3776 = vunpack.c.l.b16 %v3736
        %v3777 = vunpack.c.l.b16 %v3740
        %v3778 = vunpack.c.l.b16 %v3744
        %v3779 = vunpack.c.l.b16 %v3748
        %v3780 = vunpack.c.l.b16 %v3752
        %v3781 = vunpack.c.l.b16 %v3756
        %v3782 = vpack.c.b16 %v3775, %v3774
        %v3783 = vpack.c.b16 %v3777, %v3776
        %v3784 = vpack.c.b16 %v3779, %v3778
        %v3785 = vpack.c.b16 %v3781, %v3780
        %v3806 = vunpack.c.l.b16 %v3758
        %v3807 = vunpack.c.l.b16 %v3759
        %v3808 = vunpack.c.l.b16 %v3760
        %v3809 = vunpack.c.l.b16 %v3761
        %v3810 = vunpack.c.l.b16 %v3762
        %v3811 = vunpack.c.l.b16 %v3763
        %v3812 = vunpack.c.l.b16 %v3764
        %v3813 = vunpack.c.l.b16 %v3765
        %v3814 = vunpack.c.l.b16 %v3766
        %v3815 = vunpack.c.l.b16 %v3767
        %v3816 = vunpack.c.l.b16 %v3768
        %v3817 = vunpack.c.l.b16 %v3769
        %v3818 = vunpack.c.l.b16 %v3770
        %v3819 = vunpack.c.l.b16 %v3771
        %v3820 = vunpack.c.l.b16 %v3772
        %v3821 = vunpack.c.l.b16 %v3773
        %v3822 = vpack.c.b16 %v3807, %v3806
        %v3823 = vpack.c.b16 %v3809, %v3808
        %v3824 = vpack.c.b16 %v3811, %v3810
        %v3825 = vpack.c.b16 %v3813, %v3812
        %v3826 = vpack.c.b16 %v3815, %v3814
        %v3827 = vpack.c.b16 %v3817, %v3816
        %v3828 = vpack.c.b16 %v3819, %v3818
        %v3829 = vpack.c.b16 %v3821, %v3820
        %3838 = vmatprep.subr.bf16.mxu0 0
        %3839 = vmatpush1.bf16.msra.mxu0 %v3829
        %3840 = vmatprep.subr.bf16.mxu0 0
        %3841 = vmatpush1.bf16.msra.mxu0 %v3828
        %3842 = vmatprep.subr.bf16.mxu0 0
        %3843 = vmatpush1.bf16.msra.mxu0 %v3827
        %3844 = vmatprep.subr.bf16.mxu0 0
        %3845 = vmatpush1.bf16.msra.mxu0 %v3826
        %3846 = vmatprep.subr.bf16.mxu0 0
        %3847 = vmatpush1.bf16.msra.mxu0 %v3825
        %3848 = vmatprep.subr.bf16.mxu0 0
        %3849 = vmatpush1.bf16.msra.mxu0 %v3824
        %3850 = vmatprep.subr.bf16.mxu0 0
        %3851 = vmatpush1.bf16.msra.mxu0 %v3823
        %3852 = vmatprep.subr.bf16.mxu0 0
        %3853 = vmatpush1.bf16.msra.mxu0 %v3822
        %3854 = vmatprep.subr.bf16.mxu0 0
        %3855 = vmatpush2.bf16.msra.mxu0 0
        %3856 = vmatprep.subr.bf16.mxu0 0
        %3857 = vmatpush2.bf16.msra.mxu0 0
        %3858 = vmatprep.subr.bf16.mxu0 0
        %3859 = vmatpush2.bf16.msra.mxu0 0
        %3860 = vmatprep.subr.bf16.mxu0 0
        %3861 = vmatpush2.bf16.msra.mxu0 0
        %3862 = vmatprep.subr.bf16.mxu0 0
        %3863 = vmatpush2.bf16.msra.mxu0 0
        %3864 = vmatprep.subr.bf16.mxu0 0
        %3865 = vmatpush2.bf16.msra.mxu0 0
        %3866 = vmatprep.subr.bf16.mxu0 0
        %3867 = vmatpush2.bf16.msra.mxu0 0
        %3868 = vmatprep.subr.bf16.mxu0 0
        %3869 = vmatpush2.bf16.msra.mxu0 0
        %3870 = vmatprep.mubr.bf16.mxu0 0
        %3871 = vmatmul.mubr.bf16.gmra.mxu0 %v3782
        %v3872 = vpop.f32.mrf.mxu0
        %v3873 = vadd.f32 0.0, %v3872
        %v3874 = vpop.f32.mrf.mxu0
        %v3875 = vpop.f32.mrf.mxu0
        %v3876 = vadd.f32 0.0, %v3875
        %v3877 = vpop.f32.mrf.mxu0
        %3878 = vmatprep.mubr.bf16.mxu0 0
        %3879 = vmatmul.mubr.bf16.gmra.mxu0 %v3783
        %v3880 = vpop.f32.mrf.mxu0
        %v3881 = vadd.f32 0.0, %v3880
        %v3882 = vpop.f32.mrf.mxu0
        %v3883 = vpop.f32.mrf.mxu0
        %v3884 = vadd.f32 0.0, %v3883
        %v3885 = vpop.f32.mrf.mxu0
        %3886 = vmatprep.mubr.bf16.mxu0 0
        %3887 = vmatmul.mubr.bf16.gmra.mxu0 %v3784
        %v3888 = vpop.f32.mrf.mxu0
        %v3889 = vadd.f32 0.0, %v3888
        %v3890 = vpop.f32.mrf.mxu0
        %v3891 = vpop.f32.mrf.mxu0
        %v3892 = vadd.f32 0.0, %v3891
        %v3893 = vpop.f32.mrf.mxu0
        %3894 = vmatprep.mubr.bf16.mxu0 0
        %3895 = vmatmul.mubr.bf16.gmra.mxu0 %v3785
        %v3896 = vpop.f32.mrf.mxu0
        %v3897 = vadd.f32 0.0, %v3896
        %v3898 = vpop.f32.mrf.mxu0
        %v3899 = vpop.f32.mrf.mxu0
        %v3900 = vadd.f32 0.0, %v3899
        %v3901 = vpop.f32.mrf.mxu0
        %3902 = vdwg.mxu0
        %v3903 = vunpack.c.l.b16 %v3586
        %v3904 = vunpack.c.l.b16 %v3600
        %v3905 = vunpack.c.l.b16 %v3614
        %v3906 = vunpack.c.l.b16 %v3628
        %v3907 = vunpack.c.l.b16 %v3642
        %v3908 = vunpack.c.l.b16 %v3656
        %v3909 = vunpack.c.l.b16 %v3670
        %v3910 = vunpack.c.l.b16 %v3684
        %v3911 = vpack.c.b16 %v3904, %v3903
        %v3912 = vpack.c.b16 %v3906, %v3905
        %v3913 = vpack.c.b16 %v3908, %v3907
        %v3914 = vpack.c.b16 %v3910, %v3909
        %v3935 = vunpack.c.l.b16 %v3685
        %v3936 = vunpack.c.l.b16 %v3686
        %v3937 = vunpack.c.l.b16 %v3687
        %v3938 = vunpack.c.l.b16 %v3688
        %v3939 = vunpack.c.l.b16 %v3689
        %v3940 = vunpack.c.l.b16 %v3690
        %v3941 = vunpack.c.l.b16 %v3691
        %v3942 = vunpack.c.l.b16 %v3692
        %v3943 = vunpack.c.l.b16 %v3693
        %v3944 = vunpack.c.l.b16 %v3694
        %v3945 = vunpack.c.l.b16 %v3695
        %v3946 = vunpack.c.l.b16 %v3696
        %v3947 = vunpack.c.l.b16 %v3697
        %v3948 = vunpack.c.l.b16 %v3698
        %v3949 = vunpack.c.l.b16 %v3699
        %v3950 = vunpack.c.l.b16 %v3700
        %v3951 = vpack.c.b16 %v3936, %v3935
        %v3952 = vpack.c.b16 %v3938, %v3937
        %v3953 = vpack.c.b16 %v3940, %v3939
        %v3954 = vpack.c.b16 %v3942, %v3941
        %v3955 = vpack.c.b16 %v3944, %v3943
        %v3956 = vpack.c.b16 %v3946, %v3945
        %v3957 = vpack.c.b16 %v3948, %v3947
        %v3958 = vpack.c.b16 %v3950, %v3949
        %3967 = vmatprep.subr.bf16.mxu0 0
        %3968 = vmatpush1.bf16.msra.mxu0 %v3958
        %3969 = vmatprep.subr.bf16.mxu0 0
        %3970 = vmatpush1.bf16.msra.mxu0 %v3957
        %3971 = vmatprep.subr.bf16.mxu0 0
        %3972 = vmatpush1.bf16.msra.mxu0 %v3956
        %3973 = vmatprep.subr.bf16.mxu0 0
        %3974 = vmatpush1.bf16.msra.mxu0 %v3955
        %3975 = vmatprep.subr.bf16.mxu0 0
        %3976 = vmatpush1.bf16.msra.mxu0 %v3954
        %3977 = vmatprep.subr.bf16.mxu0 0
        %3978 = vmatpush1.bf16.msra.mxu0 %v3953
        %3979 = vmatprep.subr.bf16.mxu0 0
        %3980 = vmatpush1.bf16.msra.mxu0 %v3952
        %3981 = vmatprep.subr.bf16.mxu0 0
        %3982 = vmatpush1.bf16.msra.mxu0 %v3951
        %3983 = vmatprep.subr.bf16.mxu0 0
        %3984 = vmatpush2.bf16.msra.mxu0 0
        %3985 = vmatprep.subr.bf16.mxu0 0
        %3986 = vmatpush2.bf16.msra.mxu0 0
        %3987 = vmatprep.subr.bf16.mxu0 0
        %3988 = vmatpush2.bf16.msra.mxu0 0
        %3989 = vmatprep.subr.bf16.mxu0 0
        %3990 = vmatpush2.bf16.msra.mxu0 0
        %3991 = vmatprep.subr.bf16.mxu0 0
        %3992 = vmatpush2.bf16.msra.mxu0 0
        %3993 = vmatprep.subr.bf16.mxu0 0
        %3994 = vmatpush2.bf16.msra.mxu0 0
        %3995 = vmatprep.subr.bf16.mxu0 0
        %3996 = vmatpush2.bf16.msra.mxu0 0
        %3997 = vmatprep.subr.bf16.mxu0 0
        %3998 = vmatpush2.bf16.msra.mxu0 0
        %3999 = vmatprep.mubr.bf16.mxu0 0
        %4000 = vmatmul.mubr.bf16.gmra.mxu0 %v3911
        %v4001 = vpop.f32.mrf.mxu0
        %v4002 = vadd.f32 %v3873, %v4001
        %v4003 = vpop.f32.mrf.mxu0
        %v4004 = vpop.f32.mrf.mxu0
        %v4005 = vadd.f32 %v3876, %v4004
        %v4006 = vpop.f32.mrf.mxu0
        %4007 = vmatprep.mubr.bf16.mxu0 0
        %4008 = vmatmul.mubr.bf16.gmra.mxu0 %v3912
        %v4009 = vpop.f32.mrf.mxu0
        %v4010 = vadd.f32 %v3881, %v4009
        %v4011 = vpop.f32.mrf.mxu0
        %v4012 = vpop.f32.mrf.mxu0
        %v4013 = vadd.f32 %v3884, %v4012
        %v4014 = vpop.f32.mrf.mxu0
        %4015 = vmatprep.mubr.bf16.mxu0 0
        %4016 = vmatmul.mubr.bf16.gmra.mxu0 %v3913
        %v4017 = vpop.f32.mrf.mxu0
        %v4018 = vadd.f32 %v3889, %v4017
        %v4019 = vpop.f32.mrf.mxu0
        %v4020 = vpop.f32.mrf.mxu0
        %v4021 = vadd.f32 %v3892, %v4020
        %v4022 = vpop.f32.mrf.mxu0
        %4023 = vmatprep.mubr.bf16.mxu0 0
        %4024 = vmatmul.mubr.bf16.gmra.mxu0 %v3914
        %v4025 = vpop.f32.mrf.mxu0
        %v4026 = vadd.f32 %v3897, %v4025
        %v4027 = vpop.f32.mrf.mxu0
        %v4028 = vpop.f32.mrf.mxu0
        %v4029 = vadd.f32 %v3900, %v4028
        %v4030 = vpop.f32.mrf.mxu0
        %4031 = vdwg.mxu0
        %v4032 = vld [vmem:[#allocation3 + $0x4] sm:$0x3]
        %v4033 = vld [vmem:[#allocation3 + $0xc] sm:$0x3]
        %v4034 = vld [vmem:[#allocation3 + $0x14] sm:$0x3]
        %v4035 = vld [vmem:[#allocation3 + $0x1c] sm:$0x3]
        %v4036 = vld [vmem:[#allocation3 + $0x24] sm:$0x3]
        %v4037 = vld [vmem:[#allocation3 + $0x2c] sm:$0x3]
        %v4038 = vld [vmem:[#allocation3 + $0x34] sm:$0x3]
        %v4039 = vld [vmem:[#allocation3 + $0x3c] sm:$0x3]
        %v4041 = vshrl.u32 %v3701, 16
        %v4043 = vrot.slane %v4041, 5
        %v4044 = vshll.u32 %v3701, 16
        %v4046 = vrot.slane %v4044, 6
        %v4047 = vor.u32 %v4043, %v4046
        %v4048 = vrot.slane %v4047, 4
        %v4050 = vshrl.u32 %v4032, 16
        %v4052 = vrot.slane %v4050, 5
        %v4053 = vshll.u32 %v4032, 16
        %v4055 = vrot.slane %v4053, 6
        %v4056 = vor.u32 %v4052, %v4055
        %v4057 = vsel %vm1261, %v4048, %v4056
        %v4059 = vshrl.u32 %v3702, 16
        %v4061 = vrot.slane %v4059, 5
        %v4062 = vshll.u32 %v3702, 16
        %v4064 = vrot.slane %v4062, 6
        %v4065 = vor.u32 %v4061, %v4064
        %v4066 = vrot.slane %v4065, 4
        %v4068 = vshrl.u32 %v4033, 16
        %v4070 = vrot.slane %v4068, 5
        %v4071 = vshll.u32 %v4033, 16
        %v4073 = vrot.slane %v4071, 6
        %v4074 = vor.u32 %v4070, %v4073
        %v4075 = vsel %vm1261, %v4066, %v4074
        %v4077 = vshrl.u32 %v3703, 16
        %v4079 = vrot.slane %v4077, 5
        %v4080 = vshll.u32 %v3703, 16
        %v4082 = vrot.slane %v4080, 6
        %v4083 = vor.u32 %v4079, %v4082
        %v4084 = vrot.slane %v4083, 4
        %v4086 = vshrl.u32 %v4034, 16
        %v4088 = vrot.slane %v4086, 5
        %v4089 = vshll.u32 %v4034, 16
        %v4091 = vrot.slane %v4089, 6
        %v4092 = vor.u32 %v4088, %v4091
        %v4093 = vsel %vm1261, %v4084, %v4092
        %v4095 = vshrl.u32 %v3704, 16
        %v4097 = vrot.slane %v4095, 5
        %v4098 = vshll.u32 %v3704, 16
        %v4100 = vrot.slane %v4098, 6
        %v4101 = vor.u32 %v4097, %v4100
        %v4102 = vrot.slane %v4101, 4
        %v4104 = vshrl.u32 %v4035, 16
        %v4106 = vrot.slane %v4104, 5
        %v4107 = vshll.u32 %v4035, 16
        %v4109 = vrot.slane %v4107, 6
        %v4110 = vor.u32 %v4106, %v4109
        %v4111 = vsel %vm1261, %v4102, %v4110
        %v4113 = vshrl.u32 %v3705, 16
        %v4115 = vrot.slane %v4113, 5
        %v4116 = vshll.u32 %v3705, 16
        %v4118 = vrot.slane %v4116, 6
        %v4119 = vor.u32 %v4115, %v4118
        %v4120 = vrot.slane %v4119, 4
        %v4122 = vshrl.u32 %v4036, 16
        %v4124 = vrot.slane %v4122, 5
        %v4125 = vshll.u32 %v4036, 16
        %v4127 = vrot.slane %v4125, 6
        %v4128 = vor.u32 %v4124, %v4127
        %v4129 = vsel %vm1261, %v4120, %v4128
        %v4131 = vshrl.u32 %v3706, 16
        %v4133 = vrot.slane %v4131, 5
        %v4134 = vshll.u32 %v3706, 16
        %v4136 = vrot.slane %v4134, 6
        %v4137 = vor.u32 %v4133, %v4136
        %v4138 = vrot.slane %v4137, 4
        %v4140 = vshrl.u32 %v4037, 16
        %v4142 = vrot.slane %v4140, 5
        %v4143 = vshll.u32 %v4037, 16
        %v4145 = vrot.slane %v4143, 6
        %v4146 = vor.u32 %v4142, %v4145
        %v4147 = vsel %vm1261, %v4138, %v4146
        %v4149 = vshrl.u32 %v3707, 16
        %v4151 = vrot.slane %v4149, 5
        %v4152 = vshll.u32 %v3707, 16
        %v4154 = vrot.slane %v4152, 6
        %v4155 = vor.u32 %v4151, %v4154
        %v4156 = vrot.slane %v4155, 4
        %v4158 = vshrl.u32 %v4038, 16
        %v4160 = vrot.slane %v4158, 5
        %v4161 = vshll.u32 %v4038, 16
        %v4163 = vrot.slane %v4161, 6
        %v4164 = vor.u32 %v4160, %v4163
        %v4165 = vsel %vm1261, %v4156, %v4164
        %v4167 = vshrl.u32 %v3708, 16
        %v4169 = vrot.slane %v4167, 5
        %v4170 = vshll.u32 %v3708, 16
        %v4172 = vrot.slane %v4170, 6
        %v4173 = vor.u32 %v4169, %v4172
        %v4174 = vrot.slane %v4173, 4
        %v4176 = vshrl.u32 %v4039, 16
        %v4178 = vrot.slane %v4176, 5
        %v4179 = vshll.u32 %v4039, 16
        %v4181 = vrot.slane %v4179, 6
        %v4182 = vor.u32 %v4178, %v4181
        %v4183 = vsel %vm1261, %v4174, %v4182
        %s4184 = scalar_lea.vmem %s513, 128 [#allocation9]
        %v4185 = vld [vmem:[%s4184] sm:$0xf]
        %v4186 = vld [vmem:[%s4184 + $0x4] sm:$0xf]
        %v4187 = vld [vmem:[%s4184 + $0x8] sm:$0xf]
        %v4188 = vld [vmem:[%s4184 + $0xc] sm:$0xf]
        %v4189 = vld [vmem:[%s4184 + $0x10] sm:$0xf]
        %v4190 = vld [vmem:[%s4184 + $0x14] sm:$0xf]
        %v4191 = vld [vmem:[%s4184 + $0x18] sm:$0xf]
        %v4192 = vld [vmem:[%s4184 + $0x1c] sm:$0xf]
        %v4193 = vld [vmem:[%s4184 + $0x20] sm:$0xf]
        %v4194 = vld [vmem:[%s4184 + $0x24] sm:$0xf]
        %v4195 = vld [vmem:[%s4184 + $0x28] sm:$0xf]
        %v4196 = vld [vmem:[%s4184 + $0x2c] sm:$0xf]
        %v4197 = vld [vmem:[%s4184 + $0x30] sm:$0xf]
        %v4198 = vld [vmem:[%s4184 + $0x34] sm:$0xf]
        %v4199 = vld [vmem:[%s4184 + $0x38] sm:$0xf]
        %v4200 = vld [vmem:[%s4184 + $0x3c] sm:$0xf]
        %v4201 = vunpack.c.l.b16 %v4057
        %v4202 = vunpack.c.l.b16 %v4075
        %v4203 = vunpack.c.l.b16 %v4093
        %v4204 = vunpack.c.l.b16 %v4111
        %v4205 = vunpack.c.l.b16 %v4129
        %v4206 = vunpack.c.l.b16 %v4147
        %v4207 = vunpack.c.l.b16 %v4165
        %v4208 = vunpack.c.l.b16 %v4183
        %v4209 = vpack.c.b16 %v4202, %v4201
        %v4210 = vpack.c.b16 %v4204, %v4203
        %v4211 = vpack.c.b16 %v4206, %v4205
        %v4212 = vpack.c.b16 %v4208, %v4207
        %v4233 = vunpack.c.l.b16 %v4185
        %v4234 = vunpack.c.l.b16 %v4186
        %v4235 = vunpack.c.l.b16 %v4187
        %v4236 = vunpack.c.l.b16 %v4188
        %v4237 = vunpack.c.l.b16 %v4189
        %v4238 = vunpack.c.l.b16 %v4190
        %v4239 = vunpack.c.l.b16 %v4191
        %v4240 = vunpack.c.l.b16 %v4192
        %v4241 = vunpack.c.l.b16 %v4193
        %v4242 = vunpack.c.l.b16 %v4194
        %v4243 = vunpack.c.l.b16 %v4195
        %v4244 = vunpack.c.l.b16 %v4196
        %v4245 = vunpack.c.l.b16 %v4197
        %v4246 = vunpack.c.l.b16 %v4198
        %v4247 = vunpack.c.l.b16 %v4199
        %v4248 = vunpack.c.l.b16 %v4200
        %v4249 = vpack.c.b16 %v4234, %v4233
        %v4250 = vpack.c.b16 %v4236, %v4235
        %v4251 = vpack.c.b16 %v4238, %v4237
        %v4252 = vpack.c.b16 %v4240, %v4239
        %v4253 = vpack.c.b16 %v4242, %v4241
        %v4254 = vpack.c.b16 %v4244, %v4243
        %v4255 = vpack.c.b16 %v4246, %v4245
        %v4256 = vpack.c.b16 %v4248, %v4247
        %4265 = vmatprep.subr.bf16.mxu0 0
        %4266 = vmatpush1.bf16.msra.mxu0 %v4256
        %4267 = vmatprep.subr.bf16.mxu0 0
        %4268 = vmatpush1.bf16.msra.mxu0 %v4255
        %4269 = vmatprep.subr.bf16.mxu0 0
        %4270 = vmatpush1.bf16.msra.mxu0 %v4254
        %4271 = vmatprep.subr.bf16.mxu0 0
        %4272 = vmatpush1.bf16.msra.mxu0 %v4253
        %4273 = vmatprep.subr.bf16.mxu0 0
        %4274 = vmatpush1.bf16.msra.mxu0 %v4252
        %4275 = vmatprep.subr.bf16.mxu0 0
        %4276 = vmatpush1.bf16.msra.mxu0 %v4251
        %4277 = vmatprep.subr.bf16.mxu0 0
        %4278 = vmatpush1.bf16.msra.mxu0 %v4250
        %4279 = vmatprep.subr.bf16.mxu0 0
        %4280 = vmatpush1.bf16.msra.mxu0 %v4249
        %4281 = vmatprep.subr.bf16.mxu0 0
        %4282 = vmatpush2.bf16.msra.mxu0 0
        %4283 = vmatprep.subr.bf16.mxu0 0
        %4284 = vmatpush2.bf16.msra.mxu0 0
        %4285 = vmatprep.subr.bf16.mxu0 0
        %4286 = vmatpush2.bf16.msra.mxu0 0
        %4287 = vmatprep.subr.bf16.mxu0 0
        %4288 = vmatpush2.bf16.msra.mxu0 0
        %4289 = vmatprep.subr.bf16.mxu0 0
        %4290 = vmatpush2.bf16.msra.mxu0 0
        %4291 = vmatprep.subr.bf16.mxu0 0
        %4292 = vmatpush2.bf16.msra.mxu0 0
        %4293 = vmatprep.subr.bf16.mxu0 0
        %4294 = vmatpush2.bf16.msra.mxu0 0
        %4295 = vmatprep.subr.bf16.mxu0 0
        %4296 = vmatpush2.bf16.msra.mxu0 0
        %4297 = vmatprep.mubr.bf16.mxu0 0
        %4298 = vmatmul.mubr.bf16.gmra.mxu0 %v4209
        %v4299 = vpop.f32.mrf.mxu0
        %v4300 = vadd.f32 0.0, %v4299
        %v4301 = vpop.f32.mrf.mxu0
        %v4302 = vpop.f32.mrf.mxu0
        %v4303 = vadd.f32 0.0, %v4302
        %v4304 = vpop.f32.mrf.mxu0
        %4305 = vmatprep.mubr.bf16.mxu0 0
        %4306 = vmatmul.mubr.bf16.gmra.mxu0 %v4210
        %v4307 = vpop.f32.mrf.mxu0
        %v4308 = vadd.f32 0.0, %v4307
        %v4309 = vpop.f32.mrf.mxu0
        %v4310 = vpop.f32.mrf.mxu0
        %v4311 = vadd.f32 0.0, %v4310
        %v4312 = vpop.f32.mrf.mxu0
        %4313 = vmatprep.mubr.bf16.mxu0 0
        %4314 = vmatmul.mubr.bf16.gmra.mxu0 %v4211
        %v4315 = vpop.f32.mrf.mxu0
        %v4316 = vadd.f32 0.0, %v4315
        %v4317 = vpop.f32.mrf.mxu0
        %v4318 = vpop.f32.mrf.mxu0
        %v4319 = vadd.f32 0.0, %v4318
        %v4320 = vpop.f32.mrf.mxu0
        %4321 = vmatprep.mubr.bf16.mxu0 0
        %4322 = vmatmul.mubr.bf16.gmra.mxu0 %v4212
        %v4323 = vpop.f32.mrf.mxu0
        %v4324 = vadd.f32 0.0, %v4323
        %v4325 = vpop.f32.mrf.mxu0
        %v4326 = vpop.f32.mrf.mxu0
        %v4327 = vadd.f32 0.0, %v4326
        %v4328 = vpop.f32.mrf.mxu0
        %4329 = vdwg.mxu0
        %v4330 = vadd.f32 %v4002, %v4300
        %v4331 = vadd.f32 %v4005, %v4303
        %v4332 = vadd.f32 %v4010, %v4308
        %v4333 = vadd.f32 %v4013, %v4311
        %v4334 = vadd.f32 %v4018, %v4316
        %v4335 = vadd.f32 %v4021, %v4319
        %v4336 = vadd.f32 %v4026, %v4324
        %v4337 = vadd.f32 %v4029, %v4327
        %v4338 = vld [vmem:[%s3324] sm:$0xf]
        %v4339 = vld [vmem:[%s3324 + $0x4] sm:$0x1]
        %v4340 = vld [vmem:[%s3324 + $0x8] sm:$0xf]
        %v4341 = vld [vmem:[%s3324 + $0xc] sm:$0x1]
        %v4342 = vld [vmem:[%s3324 + $0x10] sm:$0xf]
        %v4343 = vld [vmem:[%s3324 + $0x14] sm:$0x1]
        %v4344 = vld [vmem:[%s3324 + $0x18] sm:$0xf]
        %v4345 = vld [vmem:[%s3324 + $0x1c] sm:$0x1]
        %v4346 = vld [vmem:[%s3324 + $0x20] sm:$0xf]
        %v4347 = vld [vmem:[%s3324 + $0x24] sm:$0x1]
        %v4348 = vld [vmem:[%s3324 + $0x28] sm:$0xf]
        %v4349 = vld [vmem:[%s3324 + $0x2c] sm:$0x1]
        %v4350 = vld [vmem:[%s3324 + $0x30] sm:$0xf]
        %v4351 = vld [vmem:[%s3324 + $0x34] sm:$0x1]
        %v4352 = vld [vmem:[%s3324 + $0x38] sm:$0xf]
        %v4353 = vld [vmem:[%s3324 + $0x3c] sm:$0x1]
        %v4355 = vshrl.u32 %v4338, 16
        %v4357 = vrot.slane %v4355, 4
        %v4358 = vshll.u32 %v4338, 16
        %v4360 = vrot.slane %v4358, 5
        %v4361 = vor.u32 %v4357, %v4360
        %v4362 = vrot.slane %v4361, 4
        %v4364 = vshll.u32 %v4339, 16
        %v4366 = vrot.slane %v4364, 5
        %v4367 = vsel %vm788, %v4362, %v4366
        %v4369 = vshrl.u32 %v4340, 16
        %v4371 = vrot.slane %v4369, 4
        %v4372 = vshll.u32 %v4340, 16
        %v4374 = vrot.slane %v4372, 5
        %v4375 = vor.u32 %v4371, %v4374
        %v4376 = vrot.slane %v4375, 4
        %v4378 = vshll.u32 %v4341, 16
        %v4380 = vrot.slane %v4378, 5
        %v4381 = vsel %vm788, %v4376, %v4380
        %v4383 = vshrl.u32 %v4342, 16
        %v4385 = vrot.slane %v4383, 4
        %v4386 = vshll.u32 %v4342, 16
        %v4388 = vrot.slane %v4386, 5
        %v4389 = vor.u32 %v4385, %v4388
        %v4390 = vrot.slane %v4389, 4
        %v4392 = vshll.u32 %v4343, 16
        %v4394 = vrot.slane %v4392, 5
        %v4395 = vsel %vm788, %v4390, %v4394
        %v4397 = vshrl.u32 %v4344, 16
        %v4399 = vrot.slane %v4397, 4
        %v4400 = vshll.u32 %v4344, 16
        %v4402 = vrot.slane %v4400, 5
        %v4403 = vor.u32 %v4399, %v4402
        %v4404 = vrot.slane %v4403, 4
        %v4406 = vshll.u32 %v4345, 16
        %v4408 = vrot.slane %v4406, 5
        %v4409 = vsel %vm788, %v4404, %v4408
        %v4411 = vshrl.u32 %v4346, 16
        %v4413 = vrot.slane %v4411, 4
        %v4414 = vshll.u32 %v4346, 16
        %v4416 = vrot.slane %v4414, 5
        %v4417 = vor.u32 %v4413, %v4416
        %v4418 = vrot.slane %v4417, 4
        %v4420 = vshll.u32 %v4347, 16
        %v4422 = vrot.slane %v4420, 5
        %v4423 = vsel %vm788, %v4418, %v4422
        %v4425 = vshrl.u32 %v4348, 16
        %v4427 = vrot.slane %v4425, 4
        %v4428 = vshll.u32 %v4348, 16
        %v4430 = vrot.slane %v4428, 5
        %v4431 = vor.u32 %v4427, %v4430
        %v4432 = vrot.slane %v4431, 4
        %v4434 = vshll.u32 %v4349, 16
        %v4436 = vrot.slane %v4434, 5
        %v4437 = vsel %vm788, %v4432, %v4436
        %v4439 = vshrl.u32 %v4350, 16
        %v4441 = vrot.slane %v4439, 4
        %v4442 = vshll.u32 %v4350, 16
        %v4444 = vrot.slane %v4442, 5
        %v4445 = vor.u32 %v4441, %v4444
        %v4446 = vrot.slane %v4445, 4
        %v4448 = vshll.u32 %v4351, 16
        %v4450 = vrot.slane %v4448, 5
        %v4451 = vsel %vm788, %v4446, %v4450
        %v4453 = vshrl.u32 %v4352, 16
        %v4455 = vrot.slane %v4453, 4
        %v4456 = vshll.u32 %v4352, 16
        %v4458 = vrot.slane %v4456, 5
        %v4459 = vor.u32 %v4455, %v4458
        %v4460 = vrot.slane %v4459, 4
        %v4462 = vshll.u32 %v4353, 16
        %v4464 = vrot.slane %v4462, 5
        %v4465 = vsel %vm788, %v4460, %v4464
        %s4466 = scalar_lea.vmem %s513, 192 [#allocation9]
        %v4467 = vld [vmem:[%s4466] sm:$0xf]
        %v4468 = vld [vmem:[%s4466 + $0x4] sm:$0xf]
        %v4469 = vld [vmem:[%s4466 + $0x8] sm:$0xf]
        %v4470 = vld [vmem:[%s4466 + $0xc] sm:$0xf]
        %v4471 = vld [vmem:[%s4466 + $0x10] sm:$0xf]
        %v4472 = vld [vmem:[%s4466 + $0x14] sm:$0xf]
        %v4473 = vld [vmem:[%s4466 + $0x18] sm:$0xf]
        %v4474 = vld [vmem:[%s4466 + $0x1c] sm:$0xf]
        %v4475 = vld [vmem:[%s4466 + $0x20] sm:$0xf]
        %v4476 = vld [vmem:[%s4466 + $0x24] sm:$0xf]
        %v4477 = vld [vmem:[%s4466 + $0x28] sm:$0xf]
        %v4478 = vld [vmem:[%s4466 + $0x2c] sm:$0xf]
        %v4479 = vld [vmem:[%s4466 + $0x30] sm:$0xf]
        %v4480 = vld [vmem:[%s4466 + $0x34] sm:$0xf]
        %v4481 = vld [vmem:[%s4466 + $0x38] sm:$0xf]
        %v4482 = vld [vmem:[%s4466 + $0x3c] sm:$0xf]
        %v4483 = vunpack.c.l.b16 %v4367
        %v4484 = vunpack.c.l.b16 %v4381
        %v4485 = vunpack.c.l.b16 %v4395
        %v4486 = vunpack.c.l.b16 %v4409
        %v4487 = vunpack.c.l.b16 %v4423
        %v4488 = vunpack.c.l.b16 %v4437
        %v4489 = vunpack.c.l.b16 %v4451
        %v4490 = vunpack.c.l.b16 %v4465
        %v4491 = vpack.c.b16 %v4484, %v4483
        %v4492 = vpack.c.b16 %v4486, %v4485
        %v4493 = vpack.c.b16 %v4488, %v4487
        %v4494 = vpack.c.b16 %v4490, %v4489
        %v4515 = vunpack.c.l.b16 %v4467
        %v4516 = vunpack.c.l.b16 %v4468
        %v4517 = vunpack.c.l.b16 %v4469
        %v4518 = vunpack.c.l.b16 %v4470
        %v4519 = vunpack.c.l.b16 %v4471
        %v4520 = vunpack.c.l.b16 %v4472
        %v4521 = vunpack.c.l.b16 %v4473
        %v4522 = vunpack.c.l.b16 %v4474
        %v4523 = vunpack.c.l.b16 %v4475
        %v4524 = vunpack.c.l.b16 %v4476
        %v4525 = vunpack.c.l.b16 %v4477
        %v4526 = vunpack.c.l.b16 %v4478
        %v4527 = vunpack.c.l.b16 %v4479
        %v4528 = vunpack.c.l.b16 %v4480
        %v4529 = vunpack.c.l.b16 %v4481
        %v4530 = vunpack.c.l.b16 %v4482
        %v4531 = vpack.c.b16 %v4516, %v4515
        %v4532 = vpack.c.b16 %v4518, %v4517
        %v4533 = vpack.c.b16 %v4520, %v4519
        %v4534 = vpack.c.b16 %v4522, %v4521
        %v4535 = vpack.c.b16 %v4524, %v4523
        %v4536 = vpack.c.b16 %v4526, %v4525
        %v4537 = vpack.c.b16 %v4528, %v4527
        %v4538 = vpack.c.b16 %v4530, %v4529
        %4547 = vmatprep.subr.bf16.mxu0 0
        %4548 = vmatpush1.bf16.msra.mxu0 %v4538
        %4549 = vmatprep.subr.bf16.mxu0 0
        %4550 = vmatpush1.bf16.msra.mxu0 %v4537
        %4551 = vmatprep.subr.bf16.mxu0 0
        %4552 = vmatpush1.bf16.msra.mxu0 %v4536
        %4553 = vmatprep.subr.bf16.mxu0 0
        %4554 = vmatpush1.bf16.msra.mxu0 %v4535
        %4555 = vmatprep.subr.bf16.mxu0 0
        %4556 = vmatpush1.bf16.msra.mxu0 %v4534
        %4557 = vmatprep.subr.bf16.mxu0 0
        %4558 = vmatpush1.bf16.msra.mxu0 %v4533
        %4559 = vmatprep.subr.bf16.mxu0 0
        %4560 = vmatpush1.bf16.msra.mxu0 %v4532
        %4561 = vmatprep.subr.bf16.mxu0 0
        %4562 = vmatpush1.bf16.msra.mxu0 %v4531
        %4563 = vmatprep.subr.bf16.mxu0 0
        %4564 = vmatpush2.bf16.msra.mxu0 0
        %4565 = vmatprep.subr.bf16.mxu0 0
        %4566 = vmatpush2.bf16.msra.mxu0 0
        %4567 = vmatprep.subr.bf16.mxu0 0
        %4568 = vmatpush2.bf16.msra.mxu0 0
        %4569 = vmatprep.subr.bf16.mxu0 0
        %4570 = vmatpush2.bf16.msra.mxu0 0
        %4571 = vmatprep.subr.bf16.mxu0 0
        %4572 = vmatpush2.bf16.msra.mxu0 0
        %4573 = vmatprep.subr.bf16.mxu0 0
        %4574 = vmatpush2.bf16.msra.mxu0 0
        %4575 = vmatprep.subr.bf16.mxu0 0
        %4576 = vmatpush2.bf16.msra.mxu0 0
        %4577 = vmatprep.subr.bf16.mxu0 0
        %4578 = vmatpush2.bf16.msra.mxu0 0
        %4579 = vmatprep.mubr.bf16.mxu0 0
        %4580 = vmatmul.mubr.bf16.gmra.mxu0 %v4491
        %v4581 = vpop.f32.mrf.mxu0
        %v4582 = vadd.f32 0.0, %v4581
        %v4583 = vpop.f32.mrf.mxu0
        %v4584 = vpop.f32.mrf.mxu0
        %v4585 = vadd.f32 0.0, %v4584
        %v4586 = vpop.f32.mrf.mxu0
        %4587 = vmatprep.mubr.bf16.mxu0 0
        %4588 = vmatmul.mubr.bf16.gmra.mxu0 %v4492
        %v4589 = vpop.f32.mrf.mxu0
        %v4590 = vadd.f32 0.0, %v4589
        %v4591 = vpop.f32.mrf.mxu0
        %v4592 = vpop.f32.mrf.mxu0
        %v4593 = vadd.f32 0.0, %v4592
        %v4594 = vpop.f32.mrf.mxu0
        %4595 = vmatprep.mubr.bf16.mxu0 0
        %4596 = vmatmul.mubr.bf16.gmra.mxu0 %v4493
        %v4597 = vpop.f32.mrf.mxu0
        %v4598 = vadd.f32 0.0, %v4597
        %v4599 = vpop.f32.mrf.mxu0
        %v4600 = vpop.f32.mrf.mxu0
        %v4601 = vadd.f32 0.0, %v4600
        %v4602 = vpop.f32.mrf.mxu0
        %4603 = vmatprep.mubr.bf16.mxu0 0
        %4604 = vmatmul.mubr.bf16.gmra.mxu0 %v4494
        %v4605 = vpop.f32.mrf.mxu0
        %v4606 = vadd.f32 0.0, %v4605
        %v4607 = vpop.f32.mrf.mxu0
        %v4608 = vpop.f32.mrf.mxu0
        %v4609 = vadd.f32 0.0, %v4608
        %v4610 = vpop.f32.mrf.mxu0
        %4611 = vdwg.mxu0
        %v4612 = vadd.f32 %v4330, %v4582
        %v4613 = vadd.f32 %v4331, %v4585
        %v4614 = vadd.f32 %v4332, %v4590
        %v4615 = vadd.f32 %v4333, %v4593
        %v4616 = vadd.f32 %v4334, %v4598
        %v4617 = vadd.f32 %v4335, %v4601
        %v4618 = vadd.f32 %v4336, %v4606
        %v4619 = vadd.f32 %v4337, %v4609
        %v4620 = vld [vmem:[%s3324] sm:$0xe]
        %v4621 = vld [vmem:[%s3324 + $0x8] sm:$0xe]
        %v4622 = vld [vmem:[%s3324 + $0x10] sm:$0xe]
        %v4623 = vld [vmem:[%s3324 + $0x18] sm:$0xe]
        %v4624 = vld [vmem:[%s3324 + $0x20] sm:$0xe]
        %v4625 = vld [vmem:[%s3324 + $0x28] sm:$0xe]
        %v4626 = vld [vmem:[%s3324 + $0x30] sm:$0xe]
        %v4627 = vld [vmem:[%s3324 + $0x38] sm:$0xe]
        %v4644 = vrot.slane %v4620, 5
        %v4645 = vrot.slane %v4644, 4
        %v4646 = vrot.slane %v4339, 5
        %v4647 = vsel %vm943, %v4645, %v4646
        %v4648 = vrot.slane %v4621, 5
        %v4649 = vrot.slane %v4648, 4
        %v4650 = vrot.slane %v4341, 5
        %v4651 = vsel %vm943, %v4649, %v4650
        %v4652 = vrot.slane %v4622, 5
        %v4653 = vrot.slane %v4652, 4
        %v4654 = vrot.slane %v4343, 5
        %v4655 = vsel %vm943, %v4653, %v4654
        %v4656 = vrot.slane %v4623, 5
        %v4657 = vrot.slane %v4656, 4
        %v4658 = vrot.slane %v4345, 5
        %v4659 = vsel %vm943, %v4657, %v4658
        %v4660 = vrot.slane %v4624, 5
        %v4661 = vrot.slane %v4660, 4
        %v4662 = vrot.slane %v4347, 5
        %v4663 = vsel %vm943, %v4661, %v4662
        %v4664 = vrot.slane %v4625, 5
        %v4665 = vrot.slane %v4664, 4
        %v4666 = vrot.slane %v4349, 5
        %v4667 = vsel %vm943, %v4665, %v4666
        %v4668 = vrot.slane %v4626, 5
        %v4669 = vrot.slane %v4668, 4
        %v4670 = vrot.slane %v4351, 5
        %v4671 = vsel %vm943, %v4669, %v4670
        %v4672 = vrot.slane %v4627, 5
        %v4673 = vrot.slane %v4672, 4
        %v4674 = vrot.slane %v4353, 5
        %v4675 = vsel %vm943, %v4673, %v4674
        %s4676 = scalar_lea.vmem %s513, 256 [#allocation9]
        %v4677 = vld [vmem:[%s4676] sm:$0xf]
        %v4678 = vld [vmem:[%s4676 + $0x4] sm:$0xf]
        %v4679 = vld [vmem:[%s4676 + $0x8] sm:$0xf]
        %v4680 = vld [vmem:[%s4676 + $0xc] sm:$0xf]
        %v4681 = vld [vmem:[%s4676 + $0x10] sm:$0xf]
        %v4682 = vld [vmem:[%s4676 + $0x14] sm:$0xf]
        %v4683 = vld [vmem:[%s4676 + $0x18] sm:$0xf]
        %v4684 = vld [vmem:[%s4676 + $0x1c] sm:$0xf]
        %v4685 = vld [vmem:[%s4676 + $0x20] sm:$0xf]
        %v4686 = vld [vmem:[%s4676 + $0x24] sm:$0xf]
        %v4687 = vld [vmem:[%s4676 + $0x28] sm:$0xf]
        %v4688 = vld [vmem:[%s4676 + $0x2c] sm:$0xf]
        %v4689 = vld [vmem:[%s4676 + $0x30] sm:$0xf]
        %v4690 = vld [vmem:[%s4676 + $0x34] sm:$0xf]
        %v4691 = vld [vmem:[%s4676 + $0x38] sm:$0xf]
        %v4692 = vld [vmem:[%s4676 + $0x3c] sm:$0xf]
        %v4693 = vunpack.c.l.b16 %v4647
        %v4694 = vunpack.c.l.b16 %v4651
        %v4695 = vunpack.c.l.b16 %v4655
        %v4696 = vunpack.c.l.b16 %v4659
        %v4697 = vunpack.c.l.b16 %v4663
        %v4698 = vunpack.c.l.b16 %v4667
        %v4699 = vunpack.c.l.b16 %v4671
        %v4700 = vunpack.c.l.b16 %v4675
        %v4701 = vpack.c.b16 %v4694, %v4693
        %v4702 = vpack.c.b16 %v4696, %v4695
        %v4703 = vpack.c.b16 %v4698, %v4697
        %v4704 = vpack.c.b16 %v4700, %v4699
        %v4725 = vunpack.c.l.b16 %v4677
        %v4726 = vunpack.c.l.b16 %v4678
        %v4727 = vunpack.c.l.b16 %v4679
        %v4728 = vunpack.c.l.b16 %v4680
        %v4729 = vunpack.c.l.b16 %v4681
        %v4730 = vunpack.c.l.b16 %v4682
        %v4731 = vunpack.c.l.b16 %v4683
        %v4732 = vunpack.c.l.b16 %v4684
        %v4733 = vunpack.c.l.b16 %v4685
        %v4734 = vunpack.c.l.b16 %v4686
        %v4735 = vunpack.c.l.b16 %v4687
        %v4736 = vunpack.c.l.b16 %v4688
        %v4737 = vunpack.c.l.b16 %v4689
        %v4738 = vunpack.c.l.b16 %v4690
        %v4739 = vunpack.c.l.b16 %v4691
        %v4740 = vunpack.c.l.b16 %v4692
        %v4741 = vpack.c.b16 %v4726, %v4725
        %v4742 = vpack.c.b16 %v4728, %v4727
        %v4743 = vpack.c.b16 %v4730, %v4729
        %v4744 = vpack.c.b16 %v4732, %v4731
        %v4745 = vpack.c.b16 %v4734, %v4733
        %v4746 = vpack.c.b16 %v4736, %v4735
        %v4747 = vpack.c.b16 %v4738, %v4737
        %v4748 = vpack.c.b16 %v4740, %v4739
        %4757 = vmatprep.subr.bf16.mxu0 0
        %4758 = vmatpush1.bf16.msra.mxu0 %v4748
        %4759 = vmatprep.subr.bf16.mxu0 0
        %4760 = vmatpush1.bf16.msra.mxu0 %v4747
        %4761 = vmatprep.subr.bf16.mxu0 0
        %4762 = vmatpush1.bf16.msra.mxu0 %v4746
        %4763 = vmatprep.subr.bf16.mxu0 0
        %4764 = vmatpush1.bf16.msra.mxu0 %v4745
        %4765 = vmatprep.subr.bf16.mxu0 0
        %4766 = vmatpush1.bf16.msra.mxu0 %v4744
        %4767 = vmatprep.subr.bf16.mxu0 0
        %4768 = vmatpush1.bf16.msra.mxu0 %v4743
        %4769 = vmatprep.subr.bf16.mxu0 0
        %4770 = vmatpush1.bf16.msra.mxu0 %v4742
        %4771 = vmatprep.subr.bf16.mxu0 0
        %4772 = vmatpush1.bf16.msra.mxu0 %v4741
        %4773 = vmatprep.subr.bf16.mxu0 0
        %4774 = vmatpush2.bf16.msra.mxu0 0
        %4775 = vmatprep.subr.bf16.mxu0 0
        %4776 = vmatpush2.bf16.msra.mxu0 0
        %4777 = vmatprep.subr.bf16.mxu0 0
        %4778 = vmatpush2.bf16.msra.mxu0 0
        %4779 = vmatprep.subr.bf16.mxu0 0
        %4780 = vmatpush2.bf16.msra.mxu0 0
        %4781 = vmatprep.subr.bf16.mxu0 0
        %4782 = vmatpush2.bf16.msra.mxu0 0
        %4783 = vmatprep.subr.bf16.mxu0 0
        %4784 = vmatpush2.bf16.msra.mxu0 0
        %4785 = vmatprep.subr.bf16.mxu0 0
        %4786 = vmatpush2.bf16.msra.mxu0 0
        %4787 = vmatprep.subr.bf16.mxu0 0
        %4788 = vmatpush2.bf16.msra.mxu0 0
        %4789 = vmatprep.mubr.bf16.mxu0 0
        %4790 = vmatmul.mubr.bf16.gmra.mxu0 %v4701
        %v4791 = vpop.f32.mrf.mxu0
        %v4792 = vadd.f32 0.0, %v4791
        %v4793 = vpop.f32.mrf.mxu0
        %v4794 = vpop.f32.mrf.mxu0
        %v4795 = vadd.f32 0.0, %v4794
        %v4796 = vpop.f32.mrf.mxu0
        %4797 = vmatprep.mubr.bf16.mxu0 0
        %4798 = vmatmul.mubr.bf16.gmra.mxu0 %v4702
        %v4799 = vpop.f32.mrf.mxu0
        %v4800 = vadd.f32 0.0, %v4799
        %v4801 = vpop.f32.mrf.mxu0
        %v4802 = vpop.f32.mrf.mxu0
        %v4803 = vadd.f32 0.0, %v4802
        %v4804 = vpop.f32.mrf.mxu0
        %4805 = vmatprep.mubr.bf16.mxu0 0
        %4806 = vmatmul.mubr.bf16.gmra.mxu0 %v4703
        %v4807 = vpop.f32.mrf.mxu0
        %v4808 = vadd.f32 0.0, %v4807
        %v4809 = vpop.f32.mrf.mxu0
        %v4810 = vpop.f32.mrf.mxu0
        %v4811 = vadd.f32 0.0, %v4810
        %v4812 = vpop.f32.mrf.mxu0
        %4813 = vmatprep.mubr.bf16.mxu0 0
        %4814 = vmatmul.mubr.bf16.gmra.mxu0 %v4704
        %v4815 = vpop.f32.mrf.mxu0
        %v4816 = vadd.f32 0.0, %v4815
        %v4817 = vpop.f32.mrf.mxu0
        %v4818 = vpop.f32.mrf.mxu0
        %v4819 = vadd.f32 0.0, %v4818
        %v4820 = vpop.f32.mrf.mxu0
        %4821 = vdwg.mxu0
        %v4822 = vadd.f32 %v4612, %v4792
        %v4823 = vadd.f32 %v4613, %v4795
        %v4824 = vadd.f32 %v4614, %v4800
        %v4825 = vadd.f32 %v4615, %v4803
        %v4826 = vadd.f32 %v4616, %v4808
        %v4827 = vadd.f32 %v4617, %v4811
        %v4828 = vadd.f32 %v4618, %v4816
        %v4829 = vadd.f32 %v4619, %v4819
        %v4830 = vld [vmem:[%s3324 + $0x4] sm:$0x3]
        %v4831 = vld [vmem:[%s3324 + $0xc] sm:$0x3]
        %v4832 = vld [vmem:[%s3324 + $0x14] sm:$0x3]
        %v4833 = vld [vmem:[%s3324 + $0x1c] sm:$0x3]
        %v4834 = vld [vmem:[%s3324 + $0x24] sm:$0x3]
        %v4835 = vld [vmem:[%s3324 + $0x2c] sm:$0x3]
        %v4836 = vld [vmem:[%s3324 + $0x34] sm:$0x3]
        %v4837 = vld [vmem:[%s3324 + $0x3c] sm:$0x3]
        %v4839 = vshrl.u32 %v4620, 16
        %v4841 = vrot.slane %v4839, 5
        %v4842 = vshll.u32 %v4620, 16
        %v4844 = vrot.slane %v4842, 6
        %v4845 = vor.u32 %v4841, %v4844
        %v4846 = vrot.slane %v4845, 4
        %v4848 = vshrl.u32 %v4830, 16
        %v4850 = vrot.slane %v4848, 5
        %v4851 = vshll.u32 %v4830, 16
        %v4853 = vrot.slane %v4851, 6
        %v4854 = vor.u32 %v4850, %v4853
        %v4855 = vsel %vm1261, %v4846, %v4854
        %v4857 = vshrl.u32 %v4621, 16
        %v4859 = vrot.slane %v4857, 5
        %v4860 = vshll.u32 %v4621, 16
        %v4862 = vrot.slane %v4860, 6
        %v4863 = vor.u32 %v4859, %v4862
        %v4864 = vrot.slane %v4863, 4
        %v4866 = vshrl.u32 %v4831, 16
        %v4868 = vrot.slane %v4866, 5
        %v4869 = vshll.u32 %v4831, 16
        %v4871 = vrot.slane %v4869, 6
        %v4872 = vor.u32 %v4868, %v4871
        %v4873 = vsel %vm1261, %v4864, %v4872
        %v4875 = vshrl.u32 %v4622, 16
        %v4877 = vrot.slane %v4875, 5
        %v4878 = vshll.u32 %v4622, 16
        %v4880 = vrot.slane %v4878, 6
        %v4881 = vor.u32 %v4877, %v4880
        %v4882 = vrot.slane %v4881, 4
        %v4884 = vshrl.u32 %v4832, 16
        %v4886 = vrot.slane %v4884, 5
        %v4887 = vshll.u32 %v4832, 16
        %v4889 = vrot.slane %v4887, 6
        %v4890 = vor.u32 %v4886, %v4889
        %v4891 = vsel %vm1261, %v4882, %v4890
        %v4893 = vshrl.u32 %v4623, 16
        %v4895 = vrot.slane %v4893, 5
        %v4896 = vshll.u32 %v4623, 16
        %v4898 = vrot.slane %v4896, 6
        %v4899 = vor.u32 %v4895, %v4898
        %v4900 = vrot.slane %v4899, 4
        %v4902 = vshrl.u32 %v4833, 16
        %v4904 = vrot.slane %v4902, 5
        %v4905 = vshll.u32 %v4833, 16
        %v4907 = vrot.slane %v4905, 6
        %v4908 = vor.u32 %v4904, %v4907
        %v4909 = vsel %vm1261, %v4900, %v4908
        %v4911 = vshrl.u32 %v4624, 16
        %v4913 = vrot.slane %v4911, 5
        %v4914 = vshll.u32 %v4624, 16
        %v4916 = vrot.slane %v4914, 6
        %v4917 = vor.u32 %v4913, %v4916
        %v4918 = vrot.slane %v4917, 4
        %v4920 = vshrl.u32 %v4834, 16
        %v4922 = vrot.slane %v4920, 5
        %v4923 = vshll.u32 %v4834, 16
        %v4925 = vrot.slane %v4923, 6
        %v4926 = vor.u32 %v4922, %v4925
        %v4927 = vsel %vm1261, %v4918, %v4926
        %v4929 = vshrl.u32 %v4625, 16
        %v4931 = vrot.slane %v4929, 5
        %v4932 = vshll.u32 %v4625, 16
        %v4934 = vrot.slane %v4932, 6
        %v4935 = vor.u32 %v4931, %v4934
        %v4936 = vrot.slane %v4935, 4
        %v4938 = vshrl.u32 %v4835, 16
        %v4940 = vrot.slane %v4938, 5
        %v4941 = vshll.u32 %v4835, 16
        %v4943 = vrot.slane %v4941, 6
        %v4944 = vor.u32 %v4940, %v4943
        %v4945 = vsel %vm1261, %v4936, %v4944
        %v4947 = vshrl.u32 %v4626, 16
        %v4949 = vrot.slane %v4947, 5
        %v4950 = vshll.u32 %v4626, 16
        %v4952 = vrot.slane %v4950, 6
        %v4953 = vor.u32 %v4949, %v4952
        %v4954 = vrot.slane %v4953, 4
        %v4956 = vshrl.u32 %v4836, 16
        %v4958 = vrot.slane %v4956, 5
        %v4959 = vshll.u32 %v4836, 16
        %v4961 = vrot.slane %v4959, 6
        %v4962 = vor.u32 %v4958, %v4961
        %v4963 = vsel %vm1261, %v4954, %v4962
        %v4965 = vshrl.u32 %v4627, 16
        %v4967 = vrot.slane %v4965, 5
        %v4968 = vshll.u32 %v4627, 16
        %v4970 = vrot.slane %v4968, 6
        %v4971 = vor.u32 %v4967, %v4970
        %v4972 = vrot.slane %v4971, 4
        %v4974 = vshrl.u32 %v4837, 16
        %v4976 = vrot.slane %v4974, 5
        %v4977 = vshll.u32 %v4837, 16
        %v4979 = vrot.slane %v4977, 6
        %v4980 = vor.u32 %v4976, %v4979
        %v4981 = vsel %vm1261, %v4972, %v4980
        %s4982 = scalar_lea.vmem %s513, 320 [#allocation9]
        %v4983 = vld [vmem:[%s4982] sm:$0xf]
        %v4984 = vld [vmem:[%s4982 + $0x4] sm:$0xf]
        %v4985 = vld [vmem:[%s4982 + $0x8] sm:$0xf]
        %v4986 = vld [vmem:[%s4982 + $0xc] sm:$0xf]
        %v4987 = vld [vmem:[%s4982 + $0x10] sm:$0xf]
        %v4988 = vld [vmem:[%s4982 + $0x14] sm:$0xf]
        %v4989 = vld [vmem:[%s4982 + $0x18] sm:$0xf]
        %v4990 = vld [vmem:[%s4982 + $0x1c] sm:$0xf]
        %v4991 = vld [vmem:[%s4982 + $0x20] sm:$0xf]
        %v4992 = vld [vmem:[%s4982 + $0x24] sm:$0xf]
        %v4993 = vld [vmem:[%s4982 + $0x28] sm:$0xf]
        %v4994 = vld [vmem:[%s4982 + $0x2c] sm:$0xf]
        %v4995 = vld [vmem:[%s4982 + $0x30] sm:$0xf]
        %v4996 = vld [vmem:[%s4982 + $0x34] sm:$0xf]
        %v4997 = vld [vmem:[%s4982 + $0x38] sm:$0xf]
        %v4998 = vld [vmem:[%s4982 + $0x3c] sm:$0xf]
        %v4999 = vunpack.c.l.b16 %v4855
        %v5000 = vunpack.c.l.b16 %v4873
        %v5001 = vunpack.c.l.b16 %v4891
        %v5002 = vunpack.c.l.b16 %v4909
        %v5003 = vunpack.c.l.b16 %v4927
        %v5004 = vunpack.c.l.b16 %v4945
        %v5005 = vunpack.c.l.b16 %v4963
        %v5006 = vunpack.c.l.b16 %v4981
        %v5007 = vpack.c.b16 %v5000, %v4999
        %v5008 = vpack.c.b16 %v5002, %v5001
        %v5009 = vpack.c.b16 %v5004, %v5003
        %v5010 = vpack.c.b16 %v5006, %v5005
        %v5031 = vunpack.c.l.b16 %v4983
        %v5032 = vunpack.c.l.b16 %v4984
        %v5033 = vunpack.c.l.b16 %v4985
        %v5034 = vunpack.c.l.b16 %v4986
        %v5035 = vunpack.c.l.b16 %v4987
        %v5036 = vunpack.c.l.b16 %v4988
        %v5037 = vunpack.c.l.b16 %v4989
        %v5038 = vunpack.c.l.b16 %v4990
        %v5039 = vunpack.c.l.b16 %v4991
        %v5040 = vunpack.c.l.b16 %v4992
        %v5041 = vunpack.c.l.b16 %v4993
        %v5042 = vunpack.c.l.b16 %v4994
        %v5043 = vunpack.c.l.b16 %v4995
        %v5044 = vunpack.c.l.b16 %v4996
        %v5045 = vunpack.c.l.b16 %v4997
        %v5046 = vunpack.c.l.b16 %v4998
        %v5047 = vpack.c.b16 %v5032, %v5031
        %v5048 = vpack.c.b16 %v5034, %v5033
        %v5049 = vpack.c.b16 %v5036, %v5035
        %v5050 = vpack.c.b16 %v5038, %v5037
        %v5051 = vpack.c.b16 %v5040, %v5039
        %v5052 = vpack.c.b16 %v5042, %v5041
        %v5053 = vpack.c.b16 %v5044, %v5043
        %v5054 = vpack.c.b16 %v5046, %v5045
        %5063 = vmatprep.subr.bf16.mxu0 0
        %5064 = vmatpush1.bf16.msra.mxu0 %v5054
        %5065 = vmatprep.subr.bf16.mxu0 0
        %5066 = vmatpush1.bf16.msra.mxu0 %v5053
        %5067 = vmatprep.subr.bf16.mxu0 0
        %5068 = vmatpush1.bf16.msra.mxu0 %v5052
        %5069 = vmatprep.subr.bf16.mxu0 0
        %5070 = vmatpush1.bf16.msra.mxu0 %v5051
        %5071 = vmatprep.subr.bf16.mxu0 0
        %5072 = vmatpush1.bf16.msra.mxu0 %v5050
        %5073 = vmatprep.subr.bf16.mxu0 0
        %5074 = vmatpush1.bf16.msra.mxu0 %v5049
        %5075 = vmatprep.subr.bf16.mxu0 0
        %5076 = vmatpush1.bf16.msra.mxu0 %v5048
        %5077 = vmatprep.subr.bf16.mxu0 0
        %5078 = vmatpush1.bf16.msra.mxu0 %v5047
        %5079 = vmatprep.subr.bf16.mxu0 0
        %5080 = vmatpush2.bf16.msra.mxu0 0
        %5081 = vmatprep.subr.bf16.mxu0 0
        %5082 = vmatpush2.bf16.msra.mxu0 0
        %5083 = vmatprep.subr.bf16.mxu0 0
        %5084 = vmatpush2.bf16.msra.mxu0 0
        %5085 = vmatprep.subr.bf16.mxu0 0
        %5086 = vmatpush2.bf16.msra.mxu0 0
        %5087 = vmatprep.subr.bf16.mxu0 0
        %5088 = vmatpush2.bf16.msra.mxu0 0
        %5089 = vmatprep.subr.bf16.mxu0 0
        %5090 = vmatpush2.bf16.msra.mxu0 0
        %5091 = vmatprep.subr.bf16.mxu0 0
        %5092 = vmatpush2.bf16.msra.mxu0 0
        %5093 = vmatprep.subr.bf16.mxu0 0
        %5094 = vmatpush2.bf16.msra.mxu0 0
        %5095 = vmatprep.mubr.bf16.mxu0 0
        %5096 = vmatmul.mubr.bf16.gmra.mxu0 %v5007
        %v5097 = vpop.f32.mrf.mxu0
        %v5098 = vadd.f32 0.0, %v5097
        %v5099 = vpop.f32.mrf.mxu0
        %v5100 = vpop.f32.mrf.mxu0
        %v5101 = vadd.f32 0.0, %v5100
        %v5102 = vpop.f32.mrf.mxu0
        %5103 = vmatprep.mubr.bf16.mxu0 0
        %5104 = vmatmul.mubr.bf16.gmra.mxu0 %v5008
        %v5105 = vpop.f32.mrf.mxu0
        %v5106 = vadd.f32 0.0, %v5105
        %v5107 = vpop.f32.mrf.mxu0
        %v5108 = vpop.f32.mrf.mxu0
        %v5109 = vadd.f32 0.0, %v5108
        %v5110 = vpop.f32.mrf.mxu0
        %5111 = vmatprep.mubr.bf16.mxu0 0
        %5112 = vmatmul.mubr.bf16.gmra.mxu0 %v5009
        %v5113 = vpop.f32.mrf.mxu0
        %v5114 = vadd.f32 0.0, %v5113
        %v5115 = vpop.f32.mrf.mxu0
        %v5116 = vpop.f32.mrf.mxu0
        %v5117 = vadd.f32 0.0, %v5116
        %v5118 = vpop.f32.mrf.mxu0
        %5119 = vmatprep.mubr.bf16.mxu0 0
        %5120 = vmatmul.mubr.bf16.gmra.mxu0 %v5010
        %v5121 = vpop.f32.mrf.mxu0
        %v5122 = vadd.f32 0.0, %v5121
        %v5123 = vpop.f32.mrf.mxu0
        %v5124 = vpop.f32.mrf.mxu0
        %v5125 = vadd.f32 0.0, %v5124
        %v5126 = vpop.f32.mrf.mxu0
        %5127 = vdwg.mxu0
        %v5128 = vadd.f32 %v4822, %v5098
        %v5129 = vadd.f32 %v4823, %v5101
        %v5130 = vadd.f32 %v4824, %v5106
        %v5131 = vadd.f32 %v4825, %v5109
        %v5132 = vadd.f32 %v4826, %v5114
        %v5133 = vadd.f32 %v4827, %v5117
        %v5134 = vadd.f32 %v4828, %v5122
        %v5135 = vadd.f32 %v4829, %v5125
        %s5136 = scalar_lea.vmem [#allocation3], 16
        %v5137 = vld [vmem:[%s5136] sm:$0xf]
        %v5138 = vld [vmem:[%s5136 + $0x4] sm:$0x1]
        %v5139 = vld [vmem:[%s5136 + $0x8] sm:$0xf]
        %v5140 = vld [vmem:[%s5136 + $0xc] sm:$0x1]
        %v5141 = vld [vmem:[%s5136 + $0x10] sm:$0xf]
        %v5142 = vld [vmem:[%s5136 + $0x14] sm:$0x1]
        %v5143 = vld [vmem:[%s5136 + $0x18] sm:$0xf]
        %v5144 = vld [vmem:[%s5136 + $0x1c] sm:$0x1]
        %v5145 = vld [vmem:[%s5136 + $0x20] sm:$0xf]
        %v5146 = vld [vmem:[%s5136 + $0x24] sm:$0x1]
        %v5147 = vld [vmem:[%s5136 + $0x28] sm:$0xf]
        %v5148 = vld [vmem:[%s5136 + $0x2c] sm:$0x1]
        %v5149 = vld [vmem:[%s5136 + $0x30] sm:$0xf]
        %v5150 = vld [vmem:[%s5136 + $0x34] sm:$0x1]
        %v5151 = vld [vmem:[%s5136 + $0x38] sm:$0xf]
        %v5152 = vld [vmem:[%s5136 + $0x3c] sm:$0x1]
        %v5154 = vshrl.u32 %v5137, 16
        %v5156 = vrot.slane %v5154, 4
        %v5157 = vshll.u32 %v5137, 16
        %v5159 = vrot.slane %v5157, 5
        %v5160 = vor.u32 %v5156, %v5159
        %v5161 = vrot.slane %v5160, 4
        %v5163 = vshll.u32 %v5138, 16
        %v5165 = vrot.slane %v5163, 5
        %v5166 = vsel %vm788, %v5161, %v5165
        %v5168 = vshrl.u32 %v5139, 16
        %v5170 = vrot.slane %v5168, 4
        %v5171 = vshll.u32 %v5139, 16
        %v5173 = vrot.slane %v5171, 5
        %v5174 = vor.u32 %v5170, %v5173
        %v5175 = vrot.slane %v5174, 4
        %v5177 = vshll.u32 %v5140, 16
        %v5179 = vrot.slane %v5177, 5
        %v5180 = vsel %vm788, %v5175, %v5179
        %v5182 = vshrl.u32 %v5141, 16
        %v5184 = vrot.slane %v5182, 4
        %v5185 = vshll.u32 %v5141, 16
        %v5187 = vrot.slane %v5185, 5
        %v5188 = vor.u32 %v5184, %v5187
        %v5189 = vrot.slane %v5188, 4
        %v5191 = vshll.u32 %v5142, 16
        %v5193 = vrot.slane %v5191, 5
        %v5194 = vsel %vm788, %v5189, %v5193
        %v5196 = vshrl.u32 %v5143, 16
        %v5198 = vrot.slane %v5196, 4
        %v5199 = vshll.u32 %v5143, 16
        %v5201 = vrot.slane %v5199, 5
        %v5202 = vor.u32 %v5198, %v5201
        %v5203 = vrot.slane %v5202, 4
        %v5205 = vshll.u32 %v5144, 16
        %v5207 = vrot.slane %v5205, 5
        %v5208 = vsel %vm788, %v5203, %v5207
        %v5210 = vshrl.u32 %v5145, 16
        %v5212 = vrot.slane %v5210, 4
        %v5213 = vshll.u32 %v5145, 16
        %v5215 = vrot.slane %v5213, 5
        %v5216 = vor.u32 %v5212, %v5215
        %v5217 = vrot.slane %v5216, 4
        %v5219 = vshll.u32 %v5146, 16
        %v5221 = vrot.slane %v5219, 5
        %v5222 = vsel %vm788, %v5217, %v5221
        %v5224 = vshrl.u32 %v5147, 16
        %v5226 = vrot.slane %v5224, 4
        %v5227 = vshll.u32 %v5147, 16
        %v5229 = vrot.slane %v5227, 5
        %v5230 = vor.u32 %v5226, %v5229
        %v5231 = vrot.slane %v5230, 4
        %v5233 = vshll.u32 %v5148, 16
        %v5235 = vrot.slane %v5233, 5
        %v5236 = vsel %vm788, %v5231, %v5235
        %v5238 = vshrl.u32 %v5149, 16
        %v5240 = vrot.slane %v5238, 4
        %v5241 = vshll.u32 %v5149, 16
        %v5243 = vrot.slane %v5241, 5
        %v5244 = vor.u32 %v5240, %v5243
        %v5245 = vrot.slane %v5244, 4
        %v5247 = vshll.u32 %v5150, 16
        %v5249 = vrot.slane %v5247, 5
        %v5250 = vsel %vm788, %v5245, %v5249
        %v5252 = vshrl.u32 %v5151, 16
        %v5254 = vrot.slane %v5252, 4
        %v5255 = vshll.u32 %v5151, 16
        %v5257 = vrot.slane %v5255, 5
        %v5258 = vor.u32 %v5254, %v5257
        %v5259 = vrot.slane %v5258, 4
        %v5261 = vshll.u32 %v5152, 16
        %v5263 = vrot.slane %v5261, 5
        %v5264 = vsel %vm788, %v5259, %v5263
        %s5265 = scalar_lea.vmem %s513, 384 [#allocation9]
        %v5266 = vld [vmem:[%s5265] sm:$0xf]
        %v5267 = vld [vmem:[%s5265 + $0x4] sm:$0xf]
        %v5268 = vld [vmem:[%s5265 + $0x8] sm:$0xf]
        %v5269 = vld [vmem:[%s5265 + $0xc] sm:$0xf]
        %v5270 = vld [vmem:[%s5265 + $0x10] sm:$0xf]
        %v5271 = vld [vmem:[%s5265 + $0x14] sm:$0xf]
        %v5272 = vld [vmem:[%s5265 + $0x18] sm:$0xf]
        %v5273 = vld [vmem:[%s5265 + $0x1c] sm:$0xf]
        %v5274 = vld [vmem:[%s5265 + $0x20] sm:$0xf]
        %v5275 = vld [vmem:[%s5265 + $0x24] sm:$0xf]
        %v5276 = vld [vmem:[%s5265 + $0x28] sm:$0xf]
        %v5277 = vld [vmem:[%s5265 + $0x2c] sm:$0xf]
        %v5278 = vld [vmem:[%s5265 + $0x30] sm:$0xf]
        %v5279 = vld [vmem:[%s5265 + $0x34] sm:$0xf]
        %v5280 = vld [vmem:[%s5265 + $0x38] sm:$0xf]
        %v5281 = vld [vmem:[%s5265 + $0x3c] sm:$0xf]
        %v5282 = vunpack.c.l.b16 %v5166
        %v5283 = vunpack.c.l.b16 %v5180
        %v5284 = vunpack.c.l.b16 %v5194
        %v5285 = vunpack.c.l.b16 %v5208
        %v5286 = vunpack.c.l.b16 %v5222
        %v5287 = vunpack.c.l.b16 %v5236
        %v5288 = vunpack.c.l.b16 %v5250
        %v5289 = vunpack.c.l.b16 %v5264
        %v5290 = vpack.c.b16 %v5283, %v5282
        %v5291 = vpack.c.b16 %v5285, %v5284
        %v5292 = vpack.c.b16 %v5287, %v5286
        %v5293 = vpack.c.b16 %v5289, %v5288
        %v5314 = vunpack.c.l.b16 %v5266
        %v5315 = vunpack.c.l.b16 %v5267
        %v5316 = vunpack.c.l.b16 %v5268
        %v5317 = vunpack.c.l.b16 %v5269
        %v5318 = vunpack.c.l.b16 %v5270
        %v5319 = vunpack.c.l.b16 %v5271
        %v5320 = vunpack.c.l.b16 %v5272
        %v5321 = vunpack.c.l.b16 %v5273
        %v5322 = vunpack.c.l.b16 %v5274
        %v5323 = vunpack.c.l.b16 %v5275
        %v5324 = vunpack.c.l.b16 %v5276
        %v5325 = vunpack.c.l.b16 %v5277
        %v5326 = vunpack.c.l.b16 %v5278
        %v5327 = vunpack.c.l.b16 %v5279
        %v5328 = vunpack.c.l.b16 %v5280
        %v5329 = vunpack.c.l.b16 %v5281
        %v5330 = vpack.c.b16 %v5315, %v5314
        %v5331 = vpack.c.b16 %v5317, %v5316
        %v5332 = vpack.c.b16 %v5319, %v5318
        %v5333 = vpack.c.b16 %v5321, %v5320
        %v5334 = vpack.c.b16 %v5323, %v5322
        %v5335 = vpack.c.b16 %v5325, %v5324
        %v5336 = vpack.c.b16 %v5327, %v5326
        %v5337 = vpack.c.b16 %v5329, %v5328
        %5346 = vmatprep.subr.bf16.mxu0 0
        %5347 = vmatpush1.bf16.msra.mxu0 %v5337
        %5348 = vmatprep.subr.bf16.mxu0 0
        %5349 = vmatpush1.bf16.msra.mxu0 %v5336
        %5350 = vmatprep.subr.bf16.mxu0 0
        %5351 = vmatpush1.bf16.msra.mxu0 %v5335
        %5352 = vmatprep.subr.bf16.mxu0 0
        %5353 = vmatpush1.bf16.msra.mxu0 %v5334
        %5354 = vmatprep.subr.bf16.mxu0 0
        %5355 = vmatpush1.bf16.msra.mxu0 %v5333
        %5356 = vmatprep.subr.bf16.mxu0 0
        %5357 = vmatpush1.bf16.msra.mxu0 %v5332
        %5358 = vmatprep.subr.bf16.mxu0 0
        %5359 = vmatpush1.bf16.msra.mxu0 %v5331
        %5360 = vmatprep.subr.bf16.mxu0 0
        %5361 = vmatpush1.bf16.msra.mxu0 %v5330
        %5362 = vmatprep.subr.bf16.mxu0 0
        %5363 = vmatpush2.bf16.msra.mxu0 0
        %5364 = vmatprep.subr.bf16.mxu0 0
        %5365 = vmatpush2.bf16.msra.mxu0 0
        %5366 = vmatprep.subr.bf16.mxu0 0
        %5367 = vmatpush2.bf16.msra.mxu0 0
        %5368 = vmatprep.subr.bf16.mxu0 0
        %5369 = vmatpush2.bf16.msra.mxu0 0
        %5370 = vmatprep.subr.bf16.mxu0 0
        %5371 = vmatpush2.bf16.msra.mxu0 0
        %5372 = vmatprep.subr.bf16.mxu0 0
        %5373 = vmatpush2.bf16.msra.mxu0 0
        %5374 = vmatprep.subr.bf16.mxu0 0
        %5375 = vmatpush2.bf16.msra.mxu0 0
        %5376 = vmatprep.subr.bf16.mxu0 0
        %5377 = vmatpush2.bf16.msra.mxu0 0
        %5378 = vmatprep.mubr.bf16.mxu0 0
        %5379 = vmatmul.mubr.bf16.gmra.mxu0 %v5290
        %v5380 = vpop.f32.mrf.mxu0
        %v5381 = vadd.f32 0.0, %v5380
        %v5382 = vpop.f32.mrf.mxu0
        %v5383 = vpop.f32.mrf.mxu0
        %v5384 = vadd.f32 0.0, %v5383
        %v5385 = vpop.f32.mrf.mxu0
        %5386 = vmatprep.mubr.bf16.mxu0 0
        %5387 = vmatmul.mubr.bf16.gmra.mxu0 %v5291
        %v5388 = vpop.f32.mrf.mxu0
        %v5389 = vadd.f32 0.0, %v5388
        %v5390 = vpop.f32.mrf.mxu0
        %v5391 = vpop.f32.mrf.mxu0
        %v5392 = vadd.f32 0.0, %v5391
        %v5393 = vpop.f32.mrf.mxu0
        %5394 = vmatprep.mubr.bf16.mxu0 0
        %5395 = vmatmul.mubr.bf16.gmra.mxu0 %v5292
        %v5396 = vpop.f32.mrf.mxu0
        %v5397 = vadd.f32 0.0, %v5396
        %v5398 = vpop.f32.mrf.mxu0
        %v5399 = vpop.f32.mrf.mxu0
        %v5400 = vadd.f32 0.0, %v5399
        %v5401 = vpop.f32.mrf.mxu0
        %5402 = vmatprep.mubr.bf16.mxu0 0
        %5403 = vmatmul.mubr.bf16.gmra.mxu0 %v5293
        %v5404 = vpop.f32.mrf.mxu0
        %v5405 = vadd.f32 0.0, %v5404
        %v5406 = vpop.f32.mrf.mxu0
        %v5407 = vpop.f32.mrf.mxu0
        %v5408 = vadd.f32 0.0, %v5407
        %v5409 = vpop.f32.mrf.mxu0
        %5410 = vdwg.mxu0
        %v5411 = vadd.f32 %v5128, %v5381
        %v5412 = vadd.f32 %v5129, %v5384
        %v5413 = vadd.f32 %v5130, %v5389
        %v5414 = vadd.f32 %v5131, %v5392
        %v5415 = vadd.f32 %v5132, %v5397
        %v5416 = vadd.f32 %v5133, %v5400
        %v5417 = vadd.f32 %v5134, %v5405
        %v5418 = vadd.f32 %v5135, %v5408
        %v5419 = vld [vmem:[%s5136] sm:$0xe]
        %v5420 = vld [vmem:[%s5136 + $0x8] sm:$0xe]
        %v5421 = vld [vmem:[%s5136 + $0x10] sm:$0xe]
        %v5422 = vld [vmem:[%s5136 + $0x18] sm:$0xe]
        %v5423 = vld [vmem:[%s5136 + $0x20] sm:$0xe]
        %v5424 = vld [vmem:[%s5136 + $0x28] sm:$0xe]
        %v5425 = vld [vmem:[%s5136 + $0x30] sm:$0xe]
        %v5426 = vld [vmem:[%s5136 + $0x38] sm:$0xe]
        %v5443 = vrot.slane %v5419, 5
        %v5444 = vrot.slane %v5443, 4
        %v5445 = vrot.slane %v5138, 5
        %v5446 = vsel %vm943, %v5444, %v5445
        %v5447 = vrot.slane %v5420, 5
        %v5448 = vrot.slane %v5447, 4
        %v5449 = vrot.slane %v5140, 5
        %v5450 = vsel %vm943, %v5448, %v5449
        %v5451 = vrot.slane %v5421, 5
        %v5452 = vrot.slane %v5451, 4
        %v5453 = vrot.slane %v5142, 5
        %v5454 = vsel %vm943, %v5452, %v5453
        %v5455 = vrot.slane %v5422, 5
        %v5456 = vrot.slane %v5455, 4
        %v5457 = vrot.slane %v5144, 5
        %v5458 = vsel %vm943, %v5456, %v5457
        %v5459 = vrot.slane %v5423, 5
        %v5460 = vrot.slane %v5459, 4
        %v5461 = vrot.slane %v5146, 5
        %v5462 = vsel %vm943, %v5460, %v5461
        %v5463 = vrot.slane %v5424, 5
        %v5464 = vrot.slane %v5463, 4
        %v5465 = vrot.slane %v5148, 5
        %v5466 = vsel %vm943, %v5464, %v5465
        %v5467 = vrot.slane %v5425, 5
        %v5468 = vrot.slane %v5467, 4
        %v5469 = vrot.slane %v5150, 5
        %v5470 = vsel %vm943, %v5468, %v5469
        %v5471 = vrot.slane %v5426, 5
        %v5472 = vrot.slane %v5471, 4
        %v5473 = vrot.slane %v5152, 5
        %v5474 = vsel %vm943, %v5472, %v5473
        %s5475 = scalar_lea.vmem %s513, 448 [#allocation9]
        %v5476 = vld [vmem:[%s5475] sm:$0xf]
        %v5477 = vld [vmem:[%s5475 + $0x4] sm:$0xf]
        %v5478 = vld [vmem:[%s5475 + $0x8] sm:$0xf]
        %v5479 = vld [vmem:[%s5475 + $0xc] sm:$0xf]
        %v5480 = vld [vmem:[%s5475 + $0x10] sm:$0xf]
        %v5481 = vld [vmem:[%s5475 + $0x14] sm:$0xf]
        %v5482 = vld [vmem:[%s5475 + $0x18] sm:$0xf]
        %v5483 = vld [vmem:[%s5475 + $0x1c] sm:$0xf]
        %v5484 = vld [vmem:[%s5475 + $0x20] sm:$0xf]
        %v5485 = vld [vmem:[%s5475 + $0x24] sm:$0xf]
        %v5486 = vld [vmem:[%s5475 + $0x28] sm:$0xf]
        %v5487 = vld [vmem:[%s5475 + $0x2c] sm:$0xf]
        %v5488 = vld [vmem:[%s5475 + $0x30] sm:$0xf]
        %v5489 = vld [vmem:[%s5475 + $0x34] sm:$0xf]
        %v5490 = vld [vmem:[%s5475 + $0x38] sm:$0xf]
        %v5491 = vld [vmem:[%s5475 + $0x3c] sm:$0xf]
        %v5492 = vunpack.c.l.b16 %v5446
        %v5493 = vunpack.c.l.b16 %v5450
        %v5494 = vunpack.c.l.b16 %v5454
        %v5495 = vunpack.c.l.b16 %v5458
        %v5496 = vunpack.c.l.b16 %v5462
        %v5497 = vunpack.c.l.b16 %v5466
        %v5498 = vunpack.c.l.b16 %v5470
        %v5499 = vunpack.c.l.b16 %v5474
        %v5500 = vpack.c.b16 %v5493, %v5492
        %v5501 = vpack.c.b16 %v5495, %v5494
        %v5502 = vpack.c.b16 %v5497, %v5496
        %v5503 = vpack.c.b16 %v5499, %v5498
        %v5524 = vunpack.c.l.b16 %v5476
        %v5525 = vunpack.c.l.b16 %v5477
        %v5526 = vunpack.c.l.b16 %v5478
        %v5527 = vunpack.c.l.b16 %v5479
        %v5528 = vunpack.c.l.b16 %v5480
        %v5529 = vunpack.c.l.b16 %v5481
        %v5530 = vunpack.c.l.b16 %v5482
        %v5531 = vunpack.c.l.b16 %v5483
        %v5532 = vunpack.c.l.b16 %v5484
        %v5533 = vunpack.c.l.b16 %v5485
        %v5534 = vunpack.c.l.b16 %v5486
        %v5535 = vunpack.c.l.b16 %v5487
        %v5536 = vunpack.c.l.b16 %v5488
        %v5537 = vunpack.c.l.b16 %v5489
        %v5538 = vunpack.c.l.b16 %v5490
        %v5539 = vunpack.c.l.b16 %v5491
        %v5540 = vpack.c.b16 %v5525, %v5524
        %v5541 = vpack.c.b16 %v5527, %v5526
        %v5542 = vpack.c.b16 %v5529, %v5528
        %v5543 = vpack.c.b16 %v5531, %v5530
        %v5544 = vpack.c.b16 %v5533, %v5532
        %v5545 = vpack.c.b16 %v5535, %v5534
        %v5546 = vpack.c.b16 %v5537, %v5536
        %v5547 = vpack.c.b16 %v5539, %v5538
        %5556 = vmatprep.subr.bf16.mxu0 0
        %5557 = vmatpush1.bf16.msra.mxu0 %v5547
        %5558 = vmatprep.subr.bf16.mxu0 0
        %5559 = vmatpush1.bf16.msra.mxu0 %v5546
        %5560 = vmatprep.subr.bf16.mxu0 0
        %5561 = vmatpush1.bf16.msra.mxu0 %v5545
        %5562 = vmatprep.subr.bf16.mxu0 0
        %5563 = vmatpush1.bf16.msra.mxu0 %v5544
        %5564 = vmatprep.subr.bf16.mxu0 0
        %5565 = vmatpush1.bf16.msra.mxu0 %v5543
        %5566 = vmatprep.subr.bf16.mxu0 0
        %5567 = vmatpush1.bf16.msra.mxu0 %v5542
        %5568 = vmatprep.subr.bf16.mxu0 0
        %5569 = vmatpush1.bf16.msra.mxu0 %v5541
        %5570 = vmatprep.subr.bf16.mxu0 0
        %5571 = vmatpush1.bf16.msra.mxu0 %v5540
        %5572 = vmatprep.subr.bf16.mxu0 0
        %5573 = vmatpush2.bf16.msra.mxu0 0
        %5574 = vmatprep.subr.bf16.mxu0 0
        %5575 = vmatpush2.bf16.msra.mxu0 0
        %5576 = vmatprep.subr.bf16.mxu0 0
        %5577 = vmatpush2.bf16.msra.mxu0 0
        %5578 = vmatprep.subr.bf16.mxu0 0
        %5579 = vmatpush2.bf16.msra.mxu0 0
        %5580 = vmatprep.subr.bf16.mxu0 0
        %5581 = vmatpush2.bf16.msra.mxu0 0
        %5582 = vmatprep.subr.bf16.mxu0 0
        %5583 = vmatpush2.bf16.msra.mxu0 0
        %5584 = vmatprep.subr.bf16.mxu0 0
        %5585 = vmatpush2.bf16.msra.mxu0 0
        %5586 = vmatprep.subr.bf16.mxu0 0
        %5587 = vmatpush2.bf16.msra.mxu0 0
        %5588 = vmatprep.mubr.bf16.mxu0 0
        %5589 = vmatmul.mubr.bf16.gmra.mxu0 %v5500
        %v5590 = vpop.f32.mrf.mxu0
        %v5591 = vadd.f32 0.0, %v5590
        %v5592 = vpop.f32.mrf.mxu0
        %v5593 = vpop.f32.mrf.mxu0
        %v5594 = vadd.f32 0.0, %v5593
        %v5595 = vpop.f32.mrf.mxu0
        %5596 = vmatprep.mubr.bf16.mxu0 0
        %5597 = vmatmul.mubr.bf16.gmra.mxu0 %v5501
        %v5598 = vpop.f32.mrf.mxu0
        %v5599 = vadd.f32 0.0, %v5598
        %v5600 = vpop.f32.mrf.mxu0
        %v5601 = vpop.f32.mrf.mxu0
        %v5602 = vadd.f32 0.0, %v5601
        %v5603 = vpop.f32.mrf.mxu0
        %5604 = vmatprep.mubr.bf16.mxu0 0
        %5605 = vmatmul.mubr.bf16.gmra.mxu0 %v5502
        %v5606 = vpop.f32.mrf.mxu0
        %v5607 = vadd.f32 0.0, %v5606
        %v5608 = vpop.f32.mrf.mxu0
        %v5609 = vpop.f32.mrf.mxu0
        %v5610 = vadd.f32 0.0, %v5609
        %v5611 = vpop.f32.mrf.mxu0
        %5612 = vmatprep.mubr.bf16.mxu0 0
        %5613 = vmatmul.mubr.bf16.gmra.mxu0 %v5503
        %v5614 = vpop.f32.mrf.mxu0
        %v5615 = vadd.f32 0.0, %v5614
        %v5616 = vpop.f32.mrf.mxu0
        %v5617 = vpop.f32.mrf.mxu0
        %v5618 = vadd.f32 0.0, %v5617
        %v5619 = vpop.f32.mrf.mxu0
        %5620 = vdwg.mxu0
        %v5621 = vadd.f32 %v5411, %v5591
        %v5622 = vadd.f32 %v5412, %v5594
        %v5623 = vadd.f32 %v5413, %v5599
        %v5624 = vadd.f32 %v5414, %v5602
        %v5625 = vadd.f32 %v5415, %v5607
        %v5626 = vadd.f32 %v5416, %v5610
        %v5627 = vadd.f32 %v5417, %v5615
        %v5628 = vadd.f32 %v5418, %v5618
        %v5629 = vld [vmem:[%s5136 + $0x4] sm:$0x3]
        %v5630 = vld [vmem:[%s5136 + $0xc] sm:$0x3]
        %v5631 = vld [vmem:[%s5136 + $0x14] sm:$0x3]
        %v5632 = vld [vmem:[%s5136 + $0x1c] sm:$0x3]
        %v5633 = vld [vmem:[%s5136 + $0x24] sm:$0x3]
        %v5634 = vld [vmem:[%s5136 + $0x2c] sm:$0x3]
        %v5635 = vld [vmem:[%s5136 + $0x34] sm:$0x3]
        %v5636 = vld [vmem:[%s5136 + $0x3c] sm:$0x3]
        %v5638 = vshrl.u32 %v5419, 16
        %v5640 = vrot.slane %v5638, 5
        %v5641 = vshll.u32 %v5419, 16
        %v5643 = vrot.slane %v5641, 6
        %v5644 = vor.u32 %v5640, %v5643
        %v5645 = vrot.slane %v5644, 4
        %v5647 = vshrl.u32 %v5629, 16
        %v5649 = vrot.slane %v5647, 5
        %v5650 = vshll.u32 %v5629, 16
        %v5652 = vrot.slane %v5650, 6
        %v5653 = vor.u32 %v5649, %v5652
        %v5654 = vsel %vm1261, %v5645, %v5653
        %v5656 = vshrl.u32 %v5420, 16
        %v5658 = vrot.slane %v5656, 5
        %v5659 = vshll.u32 %v5420, 16
        %v5661 = vrot.slane %v5659, 6
        %v5662 = vor.u32 %v5658, %v5661
        %v5663 = vrot.slane %v5662, 4
        %v5665 = vshrl.u32 %v5630, 16
        %v5667 = vrot.slane %v5665, 5
        %v5668 = vshll.u32 %v5630, 16
        %v5670 = vrot.slane %v5668, 6
        %v5671 = vor.u32 %v5667, %v5670
        %v5672 = vsel %vm1261, %v5663, %v5671
        %v5674 = vshrl.u32 %v5421, 16
        %v5676 = vrot.slane %v5674, 5
        %v5677 = vshll.u32 %v5421, 16
        %v5679 = vrot.slane %v5677, 6
        %v5680 = vor.u32 %v5676, %v5679
        %v5681 = vrot.slane %v5680, 4
        %v5683 = vshrl.u32 %v5631, 16
        %v5685 = vrot.slane %v5683, 5
        %v5686 = vshll.u32 %v5631, 16
        %v5688 = vrot.slane %v5686, 6
        %v5689 = vor.u32 %v5685, %v5688
        %v5690 = vsel %vm1261, %v5681, %v5689
        %v5692 = vshrl.u32 %v5422, 16
        %v5694 = vrot.slane %v5692, 5
        %v5695 = vshll.u32 %v5422, 16
        %v5697 = vrot.slane %v5695, 6
        %v5698 = vor.u32 %v5694, %v5697
        %v5699 = vrot.slane %v5698, 4
        %v5701 = vshrl.u32 %v5632, 16
        %v5703 = vrot.slane %v5701, 5
        %v5704 = vshll.u32 %v5632, 16
        %v5706 = vrot.slane %v5704, 6
        %v5707 = vor.u32 %v5703, %v5706
        %v5708 = vsel %vm1261, %v5699, %v5707
        %v5710 = vshrl.u32 %v5423, 16
        %v5712 = vrot.slane %v5710, 5
        %v5713 = vshll.u32 %v5423, 16
        %v5715 = vrot.slane %v5713, 6
        %v5716 = vor.u32 %v5712, %v5715
        %v5717 = vrot.slane %v5716, 4
        %v5719 = vshrl.u32 %v5633, 16
        %v5721 = vrot.slane %v5719, 5
        %v5722 = vshll.u32 %v5633, 16
        %v5724 = vrot.slane %v5722, 6
        %v5725 = vor.u32 %v5721, %v5724
        %v5726 = vsel %vm1261, %v5717, %v5725
        %v5728 = vshrl.u32 %v5424, 16
        %v5730 = vrot.slane %v5728, 5
        %v5731 = vshll.u32 %v5424, 16
        %v5733 = vrot.slane %v5731, 6
        %v5734 = vor.u32 %v5730, %v5733
        %v5735 = vrot.slane %v5734, 4
        %v5737 = vshrl.u32 %v5634, 16
        %v5739 = vrot.slane %v5737, 5
        %v5740 = vshll.u32 %v5634, 16
        %v5742 = vrot.slane %v5740, 6
        %v5743 = vor.u32 %v5739, %v5742
        %v5744 = vsel %vm1261, %v5735, %v5743
        %v5746 = vshrl.u32 %v5425, 16
        %v5748 = vrot.slane %v5746, 5
        %v5749 = vshll.u32 %v5425, 16
        %v5751 = vrot.slane %v5749, 6
        %v5752 = vor.u32 %v5748, %v5751
        %v5753 = vrot.slane %v5752, 4
        %v5755 = vshrl.u32 %v5635, 16
        %v5757 = vrot.slane %v5755, 5
        %v5758 = vshll.u32 %v5635, 16
        %v5760 = vrot.slane %v5758, 6
        %v5761 = vor.u32 %v5757, %v5760
        %v5762 = vsel %vm1261, %v5753, %v5761
        %v5764 = vshrl.u32 %v5426, 16
        %v5766 = vrot.slane %v5764, 5
        %v5767 = vshll.u32 %v5426, 16
        %v5769 = vrot.slane %v5767, 6
        %v5770 = vor.u32 %v5766, %v5769
        %v5771 = vrot.slane %v5770, 4
        %v5773 = vshrl.u32 %v5636, 16
        %v5775 = vrot.slane %v5773, 5
        %v5776 = vshll.u32 %v5636, 16
        %v5778 = vrot.slane %v5776, 6
        %v5779 = vor.u32 %v5775, %v5778
        %v5780 = vsel %vm1261, %v5771, %v5779
        %s5781 = scalar_lea.vmem %s513, 512 [#allocation9]
        %v5782 = vld [vmem:[%s5781] sm:$0xf]
        %v5783 = vld [vmem:[%s5781 + $0x4] sm:$0xf]
        %v5784 = vld [vmem:[%s5781 + $0x8] sm:$0xf]
        %v5785 = vld [vmem:[%s5781 + $0xc] sm:$0xf]
        %v5786 = vld [vmem:[%s5781 + $0x10] sm:$0xf]
        %v5787 = vld [vmem:[%s5781 + $0x14] sm:$0xf]
        %v5788 = vld [vmem:[%s5781 + $0x18] sm:$0xf]
        %v5789 = vld [vmem:[%s5781 + $0x1c] sm:$0xf]
        %v5790 = vld [vmem:[%s5781 + $0x20] sm:$0xf]
        %v5791 = vld [vmem:[%s5781 + $0x24] sm:$0xf]
        %v5792 = vld [vmem:[%s5781 + $0x28] sm:$0xf]
        %v5793 = vld [vmem:[%s5781 + $0x2c] sm:$0xf]
        %v5794 = vld [vmem:[%s5781 + $0x30] sm:$0xf]
        %v5795 = vld [vmem:[%s5781 + $0x34] sm:$0xf]
        %v5796 = vld [vmem:[%s5781 + $0x38] sm:$0xf]
        %v5797 = vld [vmem:[%s5781 + $0x3c] sm:$0xf]
        %v5798 = vunpack.c.l.b16 %v5654
        %v5799 = vunpack.c.l.b16 %v5672
        %v5800 = vunpack.c.l.b16 %v5690
        %v5801 = vunpack.c.l.b16 %v5708
        %v5802 = vunpack.c.l.b16 %v5726
        %v5803 = vunpack.c.l.b16 %v5744
        %v5804 = vunpack.c.l.b16 %v5762
        %v5805 = vunpack.c.l.b16 %v5780
        %v5806 = vpack.c.b16 %v5799, %v5798
        %v5807 = vpack.c.b16 %v5801, %v5800
        %v5808 = vpack.c.b16 %v5803, %v5802
        %v5809 = vpack.c.b16 %v5805, %v5804
        %v5830 = vunpack.c.l.b16 %v5782
        %v5831 = vunpack.c.l.b16 %v5783
        %v5832 = vunpack.c.l.b16 %v5784
        %v5833 = vunpack.c.l.b16 %v5785
        %v5834 = vunpack.c.l.b16 %v5786
        %v5835 = vunpack.c.l.b16 %v5787
        %v5836 = vunpack.c.l.b16 %v5788
        %v5837 = vunpack.c.l.b16 %v5789
        %v5838 = vunpack.c.l.b16 %v5790
        %v5839 = vunpack.c.l.b16 %v5791
        %v5840 = vunpack.c.l.b16 %v5792
        %v5841 = vunpack.c.l.b16 %v5793
        %v5842 = vunpack.c.l.b16 %v5794
        %v5843 = vunpack.c.l.b16 %v5795
        %v5844 = vunpack.c.l.b16 %v5796
        %v5845 = vunpack.c.l.b16 %v5797
        %v5846 = vpack.c.b16 %v5831, %v5830
        %v5847 = vpack.c.b16 %v5833, %v5832
        %v5848 = vpack.c.b16 %v5835, %v5834
        %v5849 = vpack.c.b16 %v5837, %v5836
        %v5850 = vpack.c.b16 %v5839, %v5838
        %v5851 = vpack.c.b16 %v5841, %v5840
        %v5852 = vpack.c.b16 %v5843, %v5842
        %v5853 = vpack.c.b16 %v5845, %v5844
        %5862 = vmatprep.subr.bf16.mxu0 0
        %5863 = vmatpush1.bf16.msra.mxu0 %v5853
        %5864 = vmatprep.subr.bf16.mxu0 0
        %5865 = vmatpush1.bf16.msra.mxu0 %v5852
        %5866 = vmatprep.subr.bf16.mxu0 0
        %5867 = vmatpush1.bf16.msra.mxu0 %v5851
        %5868 = vmatprep.subr.bf16.mxu0 0
        %5869 = vmatpush1.bf16.msra.mxu0 %v5850
        %5870 = vmatprep.subr.bf16.mxu0 0
        %5871 = vmatpush1.bf16.msra.mxu0 %v5849
        %5872 = vmatprep.subr.bf16.mxu0 0
        %5873 = vmatpush1.bf16.msra.mxu0 %v5848
        %5874 = vmatprep.subr.bf16.mxu0 0
        %5875 = vmatpush1.bf16.msra.mxu0 %v5847
        %5876 = vmatprep.subr.bf16.mxu0 0
        %5877 = vmatpush1.bf16.msra.mxu0 %v5846
        %5878 = vmatprep.subr.bf16.mxu0 0
        %5879 = vmatpush2.bf16.msra.mxu0 0
        %5880 = vmatprep.subr.bf16.mxu0 0
        %5881 = vmatpush2.bf16.msra.mxu0 0
        %5882 = vmatprep.subr.bf16.mxu0 0
        %5883 = vmatpush2.bf16.msra.mxu0 0
        %5884 = vmatprep.subr.bf16.mxu0 0
        %5885 = vmatpush2.bf16.msra.mxu0 0
        %5886 = vmatprep.subr.bf16.mxu0 0
        %5887 = vmatpush2.bf16.msra.mxu0 0
        %5888 = vmatprep.subr.bf16.mxu0 0
        %5889 = vmatpush2.bf16.msra.mxu0 0
        %5890 = vmatprep.subr.bf16.mxu0 0
        %5891 = vmatpush2.bf16.msra.mxu0 0
        %5892 = vmatprep.subr.bf16.mxu0 0
        %5893 = vmatpush2.bf16.msra.mxu0 0
        %5894 = vmatprep.mubr.bf16.mxu0 0
        %5895 = vmatmul.mubr.bf16.gmra.mxu0 %v5806
        %v5896 = vpop.f32.mrf.mxu0
        %v5897 = vadd.f32 0.0, %v5896
        %v5898 = vpop.f32.mrf.mxu0
        %v5899 = vpop.f32.mrf.mxu0
        %v5900 = vadd.f32 0.0, %v5899
        %v5901 = vpop.f32.mrf.mxu0
        %5902 = vmatprep.mubr.bf16.mxu0 0
        %5903 = vmatmul.mubr.bf16.gmra.mxu0 %v5807
        %v5904 = vpop.f32.mrf.mxu0
        %v5905 = vadd.f32 0.0, %v5904
        %v5906 = vpop.f32.mrf.mxu0
        %v5907 = vpop.f32.mrf.mxu0
        %v5908 = vadd.f32 0.0, %v5907
        %v5909 = vpop.f32.mrf.mxu0
        %5910 = vmatprep.mubr.bf16.mxu0 0
        %5911 = vmatmul.mubr.bf16.gmra.mxu0 %v5808
        %v5912 = vpop.f32.mrf.mxu0
        %v5913 = vadd.f32 0.0, %v5912
        %v5914 = vpop.f32.mrf.mxu0
        %v5915 = vpop.f32.mrf.mxu0
        %v5916 = vadd.f32 0.0, %v5915
        %v5917 = vpop.f32.mrf.mxu0
        %5918 = vmatprep.mubr.bf16.mxu0 0
        %5919 = vmatmul.mubr.bf16.gmra.mxu0 %v5809
        %v5920 = vpop.f32.mrf.mxu0
        %v5921 = vadd.f32 0.0, %v5920
        %v5922 = vpop.f32.mrf.mxu0
        %v5923 = vpop.f32.mrf.mxu0
        %v5924 = vadd.f32 0.0, %v5923
        %v5925 = vpop.f32.mrf.mxu0
        %5926 = vdwg.mxu0
        %v5927 = vadd.f32 %v5621, %v5897
        %v5928 = vadd.f32 %v5622, %v5900
        %v5929 = vadd.f32 %v5623, %v5905
        %v5930 = vadd.f32 %v5624, %v5908
        %v5931 = vadd.f32 %v5625, %v5913
        %v5932 = vadd.f32 %v5626, %v5916
        %v5933 = vadd.f32 %v5627, %v5921
        %v5934 = vadd.f32 %v5628, %v5924
        %v5935 = vld [vmem:[%s521] sm:$0x1]
        %v5937 = vlaneseq
        %v5938 = vshrl.u32 %v5937, 7
        %v5939 = vsub.s32 0, %v5938
        %v5940 = vrot.slane %v5935, %v5939
        %v5942 = vmul.f32 %v5927, %v5940
        %v5943 = vmul.f32 %v5928, %v5940
        %v5944 = vmul.f32 %v5929, %v5940
        %v5945 = vmul.f32 %v5930, %v5940
        %v5946 = vmul.f32 %v5931, %v5940
        %v5947 = vmul.f32 %v5932, %v5940
        %v5948 = vmul.f32 %v5933, %v5940
        %v5949 = vmul.f32 %v5934, %v5940
        %v5950 = vld [vmem:[%s529] sm:$0x1]
        %v5952 = vlaneseq
        %v5953 = vshrl.u32 %v5952, 7
        %v5954 = vsub.s32 0, %v5953
        %v5955 = vrot.slane %v5950, %v5954
        %v5957 = vadd.f32 %v5942, %v5955
        %v5958 = vadd.f32 %v5943, %v5955
        %v5959 = vadd.f32 %v5944, %v5955
        %v5960 = vadd.f32 %v5945, %v5955
        %v5961 = vadd.f32 %v5946, %v5955
        %v5962 = vadd.f32 %v5947, %v5955
        %v5963 = vadd.f32 %v5948, %v5955
        %v5964 = vadd.f32 %v5949, %v5955
        %v5965 = vadd.f32 %v5957, %v3527
        %v5966 = vadd.f32 %v5958, %v3530
        %v5967 = vadd.f32 %v5959, %v3535
        %v5968 = vadd.f32 %v5960, %v3538
        %v5969 = vadd.f32 %v5961, %v3543
        %v5970 = vadd.f32 %v5962, %v3546
        %v5971 = vadd.f32 %v5963, %v3551
        %v5972 = vadd.f32 %v5964, %v3554
        %v5973 = vmul.f32 %v5965, 0.5
        %v5974 = vmul.f32 %v5966, 0.5
        %v5975 = vmul.f32 %v5967, 0.5
        %v5976 = vmul.f32 %v5968, 0.5
        %v5977 = vmul.f32 %v5969, 0.5
        %v5978 = vmul.f32 %v5970, 0.5
        %v5979 = vmul.f32 %v5971, 0.5
        %v5980 = vmul.f32 %v5972, 0.5
        %v5981 = vmul.f32 %v5965, %v5965
        %v5982 = vmul.f32 %v5966, %v5966
        %v5983 = vmul.f32 %v5967, %v5967
        %v5984 = vmul.f32 %v5968, %v5968
        %v5985 = vmul.f32 %v5969, %v5969
        %v5986 = vmul.f32 %v5970, %v5970
        %v5987 = vmul.f32 %v5971, %v5971
        %v5988 = vmul.f32 %v5972, %v5972
        %v5989 = vmul.f32 %v5981, %v5965
        %v5990 = vmul.f32 %v5982, %v5966
        %v5991 = vmul.f32 %v5983, %v5967
        %v5992 = vmul.f32 %v5984, %v5968
        %v5993 = vmul.f32 %v5985, %v5969
        %v5994 = vmul.f32 %v5986, %v5970
        %v5995 = vmul.f32 %v5987, %v5971
        %v5996 = vmul.f32 %v5988, %v5972
        %v5997 = vmul.f32 %v5989, 0.044715
        %v5998 = vmul.f32 %v5990, 0.044715
        %v5999 = vmul.f32 %v5991, 0.044715
        %v6000 = vmul.f32 %v5992, 0.044715
        %v6001 = vmul.f32 %v5993, 0.044715
        %v6002 = vmul.f32 %v5994, 0.044715
        %v6003 = vmul.f32 %v5995, 0.044715
        %v6004 = vmul.f32 %v5996, 0.044715
        %v6005 = vadd.f32 %v5965, %v5997
        %v6006 = vadd.f32 %v5966, %v5998
        %v6007 = vadd.f32 %v5967, %v5999
        %v6008 = vadd.f32 %v5968, %v6000
        %v6009 = vadd.f32 %v5969, %v6001
        %v6010 = vadd.f32 %v5970, %v6002
        %v6011 = vadd.f32 %v5971, %v6003
        %v6012 = vadd.f32 %v5972, %v6004
        %v6013 = vmul.f32 %v6005, 0.7978846
        %v6014 = vmul.f32 %v6006, 0.7978846
        %v6015 = vmul.f32 %v6007, 0.7978846
        %v6016 = vmul.f32 %v6008, 0.7978846
        %v6017 = vmul.f32 %v6009, 0.7978846
        %v6018 = vmul.f32 %v6010, 0.7978846
        %v6019 = vmul.f32 %v6011, 0.7978846
        %v6020 = vmul.f32 %v6012, 0.7978846
        %v6021 = vtanh.pop %v6013
        %v6022 = vtanh.pop %v6014
        %v6023 = vtanh.pop %v6015
        %v6024 = vtanh.pop %v6016
        %v6025 = vtanh.pop %v6017
        %v6026 = vtanh.pop %v6018
        %v6027 = vtanh.pop %v6019
        %v6028 = vtanh.pop %v6020
        %v6029 = vadd.f32 %v6021, 1.0
        %v6030 = vadd.f32 %v6022, 1.0
        %v6031 = vadd.f32 %v6023, 1.0
        %v6032 = vadd.f32 %v6024, 1.0
        %v6033 = vadd.f32 %v6025, 1.0
        %v6034 = vadd.f32 %v6026, 1.0
        %v6035 = vadd.f32 %v6027, 1.0
        %v6036 = vadd.f32 %v6028, 1.0
        %v6037 = vmul.f32 %v5973, %v6029
        %v6038 = vmul.f32 %v5974, %v6030
        %v6039 = vmul.f32 %v5975, %v6031
        %v6040 = vmul.f32 %v5976, %v6032
        %v6041 = vmul.f32 %v5977, %v6033
        %v6042 = vmul.f32 %v5978, %v6034
        %v6043 = vmul.f32 %v5979, %v6035
        %v6044 = vmul.f32 %v5980, %v6036
        %p6045 = scmp.lt.s32.totalorder %s40, 3
        // Predicated region
        $region93: #{chessnet_forward.2} parent=55 // pred_check
          %p6046 = pneg %p6045
        $region94: #{chessnet_forward.2} parent=55 // pred_check_branch
          %6048 = sbr.rel (%p6046) target = $region96
        $region95: #{chessnet_forward.2} parent=55 // pred_region
          %v6049 = vpack.c.bf16 %v6037, %v6037
          %v6050 = vpack.c.bf16 %v6038, %v6038
          %v6051 = vpack.c.bf16 %v6039, %v6039
          %v6052 = vpack.c.bf16 %v6040, %v6040
          %v6053 = vpack.c.bf16 %v6041, %v6041
          %v6054 = vpack.c.bf16 %v6042, %v6042
          %v6055 = vpack.c.bf16 %v6043, %v6043
          %v6056 = vpack.c.bf16 %v6044, %v6044
          %v6065 = vunpack.c.l.b16 %v6049
          %v6066 = vunpack.c.l.b16 %v6050
          %v6067 = vunpack.c.l.b16 %v6051
          %v6068 = vunpack.c.l.b16 %v6052
          %v6069 = vunpack.c.l.b16 %v6053
          %v6070 = vunpack.c.l.b16 %v6054
          %v6071 = vunpack.c.l.b16 %v6055
          %v6072 = vunpack.c.l.b16 %v6056
          %v6073 = vpack.c.b16 %v6065, %v6065
          %v6074 = vpack.c.b16 %v6066, %v6066
          %v6075 = vpack.c.b16 %v6067, %v6067
          %v6076 = vpack.c.b16 %v6068, %v6068
          %v6077 = vpack.c.b16 %v6069, %v6069
          %v6078 = vpack.c.b16 %v6070, %v6070
          %v6079 = vpack.c.b16 %v6071, %v6071
          %v6080 = vpack.c.b16 %v6072, %v6072
          %v6081 = vrot.slane %v6073, 7
          %v6082 = vrot.slane %v6081, 4
          %v6083 = vrot.slane %v6074, 7
          %v6084 = vrot.slane %v6083, 4
          %v6085 = vrot.slane %v6075, 7
          %v6086 = vrot.slane %v6085, 4
          %v6087 = vrot.slane %v6076, 7
          %v6088 = vrot.slane %v6087, 4
          %v6089 = vrot.slane %v6077, 7
          %v6090 = vrot.slane %v6089, 4
          %v6091 = vrot.slane %v6078, 7
          %v6092 = vrot.slane %v6091, 4
          %v6093 = vrot.slane %v6079, 7
          %v6094 = vrot.slane %v6093, 4
          %v6095 = vrot.slane %v6080, 7
          %v6096 = vrot.slane %v6095, 4
          %6113 = vst [vmem:[%s1560] sm:$0xe] %v6081
          %6114 = vst [vmem:[%s1560 + $0x4] sm:$0x1] %v6082
          %6115 = vst [vmem:[%s1560 + $0x8] sm:$0xe] %v6083
          %6116 = vst [vmem:[%s1560 + $0xc] sm:$0x1] %v6084
          %6117 = vst [vmem:[%s1560 + $0x10] sm:$0xe] %v6085
          %6118 = vst [vmem:[%s1560 + $0x14] sm:$0x1] %v6086
          %6119 = vst [vmem:[%s1560 + $0x18] sm:$0xe] %v6087
          %6120 = vst [vmem:[%s1560 + $0x1c] sm:$0x1] %v6088
          %6121 = vst [vmem:[%s1560 + $0x20] sm:$0xe] %v6089
          %6122 = vst [vmem:[%s1560 + $0x24] sm:$0x1] %v6090
          %6123 = vst [vmem:[%s1560 + $0x28] sm:$0xe] %v6091
          %6124 = vst [vmem:[%s1560 + $0x2c] sm:$0x1] %v6092
          %6125 = vst [vmem:[%s1560 + $0x30] sm:$0xe] %v6093
          %6126 = vst [vmem:[%s1560 + $0x34] sm:$0x1] %v6094
          %6127 = vst [vmem:[%s1560 + $0x38] sm:$0xe] %v6095
          %6128 = vst [vmem:[%s1560 + $0x3c] sm:$0x1] %v6096
        $region96: #{chessnet_forward.2} parent=55 // pred_fallthru
          _
        %p6129 = scmp.eq.s32.totalorder %s40, 3
        // Predicated region
        $region97: #{chessnet_forward.2} parent=55 // pred_check
          %p6130 = pneg %p6129
        $region98: #{chessnet_forward.2} parent=55 // pred_check_branch
          %6132 = sbr.rel (%p6130) target = $region100
        $region99: #{chessnet_forward.2} parent=55 // pred_region
          %v6133 = vpack.c.bf16 %v6037, %v6037
          %v6134 = vpack.c.bf16 %v6038, %v6038
          %v6135 = vpack.c.bf16 %v6039, %v6039
          %v6136 = vpack.c.bf16 %v6040, %v6040
          %v6137 = vpack.c.bf16 %v6041, %v6041
          %v6138 = vpack.c.bf16 %v6042, %v6042
          %v6139 = vpack.c.bf16 %v6043, %v6043
          %v6140 = vpack.c.bf16 %v6044, %v6044
          %6141 = vst [vmem:[%s625] sm:$0xf] %v6133
          %6142 = vst [vmem:[%s625 + $0x4] sm:$0xf] %v6134
          %6143 = vst [vmem:[%s625 + $0x8] sm:$0xf] %v6135
          %6144 = vst [vmem:[%s625 + $0xc] sm:$0xf] %v6136
          %6145 = vst [vmem:[%s625 + $0x10] sm:$0xf] %v6137
          %6146 = vst [vmem:[%s625 + $0x14] sm:$0xf] %v6138
          %6147 = vst [vmem:[%s625 + $0x18] sm:$0xf] %v6139
          %6148 = vst [vmem:[%s625 + $0x1c] sm:$0xf] %v6140
        $region100: #{chessnet_forward.2} parent=55 // pred_fallthru
          _
        %p6149 = scmp.lt.s32.totalorder %s39, 1
        %s6150 = scalar_select %p6149, %s39, 1
        %s6151 = smul.addr %s6150, 8
        %s6152 = smul.addr %s6151, 4
        %s6153 = scalar_lea.vmem %s9, %s6152
        // Predicated region
        $region101: #{chessnet_forward.2} parent=55 // pred_check
          %p6154 = pneg %p299
        $region102: #{chessnet_forward.2} parent=55 // pred_check_branch
          %6156 = sbr.rel (%p6154) target = $region104
        $region103: #{chessnet_forward.2} parent=55 // pred_region
          _
        $region104: #{chessnet_forward.2} parent=55 // pred_fallthru
          _
      $region56: #{chessnet_forward.2} parent=5 // pred_fallthru
        _
      %p6157 = scmp.le.s32.totalorder 2, %s30
      // Predicated region
      $region105: #{chessnet_forward.2} parent=5 // pred_check
        %p6158 = pneg %p6157
      $region106: #{chessnet_forward.2} parent=5 // pred_check_branch
        %6160 = sbr.rel (%p6158) target = $region108
      $region107: #{chessnet_forward.2} parent=5 // pred_region
        %s6161 = ssub.s32 %s30, 2
        // Predicated region
        $region109: #{chessnet_forward.2} parent=107 // pred_check
          %p6162 = pneg %p305
        $region110: #{chessnet_forward.2} parent=107 // pred_check_branch
          %6164 = sbr.rel (%p6162) target = $region112
        $region111: #{chessnet_forward.2} parent=107 // pred_region
          %p6165 = scmp.lt.s32.totalorder %s41, 1
          %s6166 = scalar_select %p6165, %s41, 1
          %s6167 = smul.addr %s6166, 8
          %s6168 = smul.addr %s6167, 4
          %s6169 = scalar_lea.vmem %s9, %s6168
        $region112: #{chessnet_forward.2} parent=107 // pred_fallthru
          _
      $region108: #{chessnet_forward.2} parent=5 // pred_fallthru
        _
    $region6: #{chessnet_forward.2} parent=1 // loop_footer
      %s34 = sadd.s32 1, %s30
    $region7: #{chessnet_forward.2} parent=1 // loop_footer_branch
      %29 = sbr.rel target = $region3
    $region8: #{chessnet_forward.2} parent=1 // loop_exit
      _
    %6170 = vsyncpa [#allocation5], 1
    %s6171 = scalar_lea.sflag [#allocation5], 1
    %6172 = vsyncpa %s6171, 1
    %6173 = vsyncpa [#allocation7], 1
    %s6174 = scalar_lea.sflag [#allocation7], 1
    %6175 = vsyncpa %s6174, 1
    %6176 = vsyncpa [#allocation10], 1
    %s6177 = scalar_lea.sflag [#allocation10], 1
    %6178 = vsyncpa %s6177, 1
    %6179 = vsyncpa [#allocation13], 1
    %s6180 = scalar_lea.sflag [#allocation13], 1
    %6181 = vsyncpa %s6180, 1
    %6182 = vsyncpa [#allocation16], 1
    %s6183 = scalar_lea.sflag [#allocation16], 1
    %6184 = vsyncpa %s6183, 1

// kernel: chessnet_forward.3
$region0: #{chessnet_forward.3}
  #allocation0 [shape = 'u32[]', space=smem, size = 0x4, offset = 0x4, fixed_abs, tag = 'smem constant byte address 0x4 - core index']
  #allocation1 [shape = 'u32[144,128]{1,0:T(1,128)}', space=vmem, size = 0x12000, scoped, tag = 'internal scratch']
  %s0 = inlined_call_operand.vmem [shape: bf16[2,8192], index: 0, kind: input, shape index: {}]
  %s1 = inlined_call_operand.vmem [shape: bf16[8192,128], index: 1, kind: input, shape index: {}]
  %s2 = inlined_call_operand.vmem [shape: f32[1,128], index: 2, kind: input, shape index: {}]
  %s3 = inlined_call_operand.vmem [shape: f32[2,128], index: 3, kind: output, shape index: {}]
  %s4 = sld [smem:[#allocation0]]
  $region22: #{chessnet_forward.3} parent=0
    _
  %s6 = ssub.s32 1, %s4
  %s7 = scalar_select 0, %s6, %s4
  // Predicated region
  $region2: #{chessnet_forward.3} parent=0 // pred_check
    _
  $region3: #{chessnet_forward.3} parent=0 // pred_check_branch
    %9 = sbr.rel (0) target = $region5
  $region4: #{chessnet_forward.3} parent=0 // pred_region
    _
  $region5: #{chessnet_forward.3} parent=0 // pred_fallthru
    _
  // Predicated region
  $region6: #{chessnet_forward.3} parent=0 // pred_check
    _
  $region7: #{chessnet_forward.3} parent=0 // pred_check_branch
    %11 = sbr.rel (0) target = $region9
  $region8: #{chessnet_forward.3} parent=0 // pred_region
    _
  $region9: #{chessnet_forward.3} parent=0 // pred_fallthru
    _
  // Predicated region
  $region10: #{chessnet_forward.3} parent=0 // pred_check
    _
  $region11: #{chessnet_forward.3} parent=0 // pred_check_branch
    %13 = sbr.rel (0) target = $region13
  $region12: #{chessnet_forward.3} parent=0 // pred_region
    _
  $region13: #{chessnet_forward.3} parent=0 // pred_fallthru
    _
  %v15 = vld [vmem:[%s0] sm:$0xff]
  %v16 = vld [vmem:[%s0 + $0x8] sm:$0xff]
  %v17 = vld [vmem:[%s0 + $0x10] sm:$0xff]
  %v18 = vld [vmem:[%s0 + $0x18] sm:$0xff]
  %v19 = vld [vmem:[%s0 + $0x20] sm:$0xff]
  %v20 = vld [vmem:[%s0 + $0x28] sm:$0xff]
  %v21 = vld [vmem:[%s0 + $0x30] sm:$0xff]
  %v22 = vld [vmem:[%s0 + $0x38] sm:$0xff]
  %v23 = vld [vmem:[%s1] sm:$0xf]
  %v24 = vld [vmem:[%s1 + $0x4] sm:$0xf]
  %v25 = vld [vmem:[%s1 + $0x8] sm:$0xf]
  %v26 = vld [vmem:[%s1 + $0xc] sm:$0xf]
  %v27 = vld [vmem:[%s1 + $0x10] sm:$0xf]
  %v28 = vld [vmem:[%s1 + $0x14] sm:$0xf]
  %v29 = vld [vmem:[%s1 + $0x18] sm:$0xf]
  %v30 = vld [vmem:[%s1 + $0x1c] sm:$0xf]
  %v31 = vld [vmem:[%s1 + $0x20] sm:$0xf]
  %v32 = vld [vmem:[%s1 + $0x24] sm:$0xf]
  %v33 = vld [vmem:[%s1 + $0x28] sm:$0xf]
  %v34 = vld [vmem:[%s1 + $0x2c] sm:$0xf]
  %v35 = vld [vmem:[%s1 + $0x30] sm:$0xf]
  %v36 = vld [vmem:[%s1 + $0x34] sm:$0xf]
  %v37 = vld [vmem:[%s1 + $0x38] sm:$0xf]
  %v38 = vld [vmem:[%s1 + $0x3c] sm:$0xf]
  %v39 = vld [vmem:[%s1 + $0x40] sm:$0xf]
  %v40 = vld [vmem:[%s1 + $0x44] sm:$0xf]
  %v41 = vld [vmem:[%s1 + $0x48] sm:$0xf]
  %v42 = vld [vmem:[%s1 + $0x4c] sm:$0xf]
  %v43 = vld [vmem:[%s1 + $0x50] sm:$0xf]
  %v44 = vld [vmem:[%s1 + $0x54] sm:$0xf]
  %v45 = vld [vmem:[%s1 + $0x58] sm:$0xf]
  %v46 = vld [vmem:[%s1 + $0x5c] sm:$0xf]
  %v47 = vld [vmem:[%s1 + $0x60] sm:$0xf]
  %v48 = vld [vmem:[%s1 + $0x64] sm:$0xf]
  %v49 = vld [vmem:[%s1 + $0x68] sm:$0xf]
  %v50 = vld [vmem:[%s1 + $0x6c] sm:$0xf]
  %v51 = vld [vmem:[%s1 + $0x70] sm:$0xf]
  %v52 = vld [vmem:[%s1 + $0x74] sm:$0xf]
  %v53 = vld [vmem:[%s1 + $0x78] sm:$0xf]
  %v54 = vld [vmem:[%s1 + $0x7c] sm:$0xf]
  %v55 = vld [vmem:[%s1 + $0x80] sm:$0xf]
  %v56 = vld [vmem:[%s1 + $0x84] sm:$0xf]
  %v57 = vld [vmem:[%s1 + $0x88] sm:$0xf]
  %v58 = vld [vmem:[%s1 + $0x8c] sm:$0xf]
  %v59 = vld [vmem:[%s1 + $0x90] sm:$0xf]
  %v60 = vld [vmem:[%s1 + $0x94] sm:$0xf]
  %v61 = vld [vmem:[%s1 + $0x98] sm:$0xf]
  %v62 = vld [vmem:[%s1 + $0x9c] sm:$0xf]
  %v63 = vld [vmem:[%s1 + $0xa0] sm:$0xf]
  %v64 = vld [vmem:[%s1 + $0xa4] sm:$0xf]
  %v65 = vld [vmem:[%s1 + $0xa8] sm:$0xf]
  %v66 = vld [vmem:[%s1 + $0xac] sm:$0xf]
  %v67 = vld [vmem:[%s1 + $0xb0] sm:$0xf]
  %v68 = vld [vmem:[%s1 + $0xb4] sm:$0xf]
  %v69 = vld [vmem:[%s1 + $0xb8] sm:$0xf]
  %v70 = vld [vmem:[%s1 + $0xbc] sm:$0xf]
  %v71 = vld [vmem:[%s1 + $0xc0] sm:$0xf]
  %v72 = vld [vmem:[%s1 + $0xc4] sm:$0xf]
  %v73 = vld [vmem:[%s1 + $0xc8] sm:$0xf]
  %v74 = vld [vmem:[%s1 + $0xcc] sm:$0xf]
  %v75 = vld [vmem:[%s1 + $0xd0] sm:$0xf]
  %v76 = vld [vmem:[%s1 + $0xd4] sm:$0xf]
  %v77 = vld [vmem:[%s1 + $0xd8] sm:$0xf]
  %v78 = vld [vmem:[%s1 + $0xdc] sm:$0xf]
  %v79 = vld [vmem:[%s1 + $0xe0] sm:$0xf]
  %v80 = vld [vmem:[%s1 + $0xe4] sm:$0xf]
  %v81 = vld [vmem:[%s1 + $0xe8] sm:$0xf]
  %v82 = vld [vmem:[%s1 + $0xec] sm:$0xf]
  %v83 = vld [vmem:[%s1 + $0xf0] sm:$0xf]
  %v84 = vld [vmem:[%s1 + $0xf4] sm:$0xf]
  %v85 = vld [vmem:[%s1 + $0xf8] sm:$0xf]
  %v86 = vld [vmem:[%s1 + $0xfc] sm:$0xf]
  %v87 = vld [vmem:[%s1 + $0x100] sm:$0xf]
  %v88 = vld [vmem:[%s1 + $0x104] sm:$0xf]
  %v89 = vld [vmem:[%s1 + $0x108] sm:$0xf]
  %v90 = vld [vmem:[%s1 + $0x10c] sm:$0xf]
  %v91 = vld [vmem:[%s1 + $0x110] sm:$0xf]
  %v92 = vld [vmem:[%s1 + $0x114] sm:$0xf]
  %v93 = vld [vmem:[%s1 + $0x118] sm:$0xf]
  %v94 = vld [vmem:[%s1 + $0x11c] sm:$0xf]
  %v95 = vld [vmem:[%s1 + $0x120] sm:$0xf]
  %v96 = vld [vmem:[%s1 + $0x124] sm:$0xf]
  %v97 = vld [vmem:[%s1 + $0x128] sm:$0xf]
  %v98 = vld [vmem:[%s1 + $0x12c] sm:$0xf]
  %v99 = vld [vmem:[%s1 + $0x130] sm:$0xf]
  %v100 = vld [vmem:[%s1 + $0x134] sm:$0xf]
  %v101 = vld [vmem:[%s1 + $0x138] sm:$0xf]
  %v102 = vld [vmem:[%s1 + $0x13c] sm:$0xf]
  %v103 = vld [vmem:[%s1 + $0x140] sm:$0xf]
  %v104 = vld [vmem:[%s1 + $0x144] sm:$0xf]
  %v105 = vld [vmem:[%s1 + $0x148] sm:$0xf]
  %v106 = vld [vmem:[%s1 + $0x14c] sm:$0xf]
  %v107 = vld [vmem:[%s1 + $0x150] sm:$0xf]
  %v108 = vld [vmem:[%s1 + $0x154] sm:$0xf]
  %v109 = vld [vmem:[%s1 + $0x158] sm:$0xf]
  %v110 = vld [vmem:[%s1 + $0x15c] sm:$0xf]
  %v111 = vld [vmem:[%s1 + $0x160] sm:$0xf]
  %v112 = vld [vmem:[%s1 + $0x164] sm:$0xf]
  %v113 = vld [vmem:[%s1 + $0x168] sm:$0xf]
  %v114 = vld [vmem:[%s1 + $0x16c] sm:$0xf]
  %v115 = vld [vmem:[%s1 + $0x170] sm:$0xf]
  %v116 = vld [vmem:[%s1 + $0x174] sm:$0xf]
  %v117 = vld [vmem:[%s1 + $0x178] sm:$0xf]
  %v118 = vld [vmem:[%s1 + $0x17c] sm:$0xf]
  %v119 = vld [vmem:[%s1 + $0x180] sm:$0xf]
  %v120 = vld [vmem:[%s1 + $0x184] sm:$0xf]
  %v121 = vld [vmem:[%s1 + $0x188] sm:$0xf]
  %v122 = vld [vmem:[%s1 + $0x18c] sm:$0xf]
  %v123 = vld [vmem:[%s1 + $0x190] sm:$0xf]
  %v124 = vld [vmem:[%s1 + $0x194] sm:$0xf]
  %v125 = vld [vmem:[%s1 + $0x198] sm:$0xf]
  %v126 = vld [vmem:[%s1 + $0x19c] sm:$0xf]
  %v127 = vld [vmem:[%s1 + $0x1a0] sm:$0xf]
  %v128 = vld [vmem:[%s1 + $0x1a4] sm:$0xf]
  %v129 = vld [vmem:[%s1 + $0x1a8] sm:$0xf]
  %v130 = vld [vmem:[%s1 + $0x1ac] sm:$0xf]
  %v131 = vld [vmem:[%s1 + $0x1b0] sm:$0xf]
  %v132 = vld [vmem:[%s1 + $0x1b4] sm:$0xf]
  %v133 = vld [vmem:[%s1 + $0x1b8] sm:$0xf]
  %v134 = vld [vmem:[%s1 + $0x1bc] sm:$0xf]
  %v135 = vld [vmem:[%s1 + $0x1c0] sm:$0xf]
  %v136 = vld [vmem:[%s1 + $0x1c4] sm:$0xf]
  %v137 = vld [vmem:[%s1 + $0x1c8] sm:$0xf]
  %v138 = vld [vmem:[%s1 + $0x1cc] sm:$0xf]
  %v139 = vld [vmem:[%s1 + $0x1d0] sm:$0xf]
  %v140 = vld [vmem:[%s1 + $0x1d4] sm:$0xf]
  %v141 = vld [vmem:[%s1 + $0x1d8] sm:$0xf]
  %v142 = vld [vmem:[%s1 + $0x1dc] sm:$0xf]
  %v143 = vld [vmem:[%s1 + $0x1e0] sm:$0xf]
  %v144 = vld [vmem:[%s1 + $0x1e4] sm:$0xf]
  %v145 = vld [vmem:[%s1 + $0x1e8] sm:$0xf]
  %v146 = vld [vmem:[%s1 + $0x1ec] sm:$0xf]
  %v147 = vld [vmem:[%s1 + $0x1f0] sm:$0xf]
  %v148 = vld [vmem:[%s1 + $0x1f4] sm:$0xf]
  %v149 = vld [vmem:[%s1 + $0x1f8] sm:$0xf]
  %v150 = vld [vmem:[%s1 + $0x1fc] sm:$0xf]
  %v151 = vld [vmem:[%s1 + $0x200] sm:$0xf]
  %v152 = vld [vmem:[%s1 + $0x204] sm:$0xf]
  %v153 = vld [vmem:[%s1 + $0x208] sm:$0xf]
  %v154 = vld [vmem:[%s1 + $0x20c] sm:$0xf]
  %v155 = vld [vmem:[%s1 + $0x210] sm:$0xf]
  %v156 = vld [vmem:[%s1 + $0x214] sm:$0xf]
  %v157 = vld [vmem:[%s1 + $0x218] sm:$0xf]
  %v158 = vld [vmem:[%s1 + $0x21c] sm:$0xf]
  %v159 = vld [vmem:[%s1 + $0x220] sm:$0xf]
  %v160 = vld [vmem:[%s1 + $0x224] sm:$0xf]
  %v161 = vld [vmem:[%s1 + $0x228] sm:$0xf]
  %v162 = vld [vmem:[%s1 + $0x22c] sm:$0xf]
  %v163 = vld [vmem:[%s1 + $0x230] sm:$0xf]
  %v164 = vld [vmem:[%s1 + $0x234] sm:$0xf]
  %v165 = vld [vmem:[%s1 + $0x238] sm:$0xf]
  %v166 = vld [vmem:[%s1 + $0x23c] sm:$0xf]
  %v167 = vld [vmem:[%s1 + $0x240] sm:$0xf]
  %v168 = vld [vmem:[%s1 + $0x244] sm:$0xf]
  %v169 = vld [vmem:[%s1 + $0x248] sm:$0xf]
  %v170 = vld [vmem:[%s1 + $0x24c] sm:$0xf]
  %v171 = vld [vmem:[%s1 + $0x250] sm:$0xf]
  %v172 = vld [vmem:[%s1 + $0x254] sm:$0xf]
  %v173 = vld [vmem:[%s1 + $0x258] sm:$0xf]
  %v174 = vld [vmem:[%s1 + $0x25c] sm:$0xf]
  %v175 = vld [vmem:[%s1 + $0x260] sm:$0xf]
  %v176 = vld [vmem:[%s1 + $0x264] sm:$0xf]
  %v177 = vld [vmem:[%s1 + $0x268] sm:$0xf]
  %v178 = vld [vmem:[%s1 + $0x26c] sm:$0xf]
  %v179 = vld [vmem:[%s1 + $0x270] sm:$0xf]
  %v180 = vld [vmem:[%s1 + $0x274] sm:$0xf]
  %v181 = vld [vmem:[%s1 + $0x278] sm:$0xf]
  %v182 = vld [vmem:[%s1 + $0x27c] sm:$0xf]
  %v183 = vld [vmem:[%s1 + $0x280] sm:$0xf]
  %v184 = vld [vmem:[%s1 + $0x284] sm:$0xf]
  %v185 = vld [vmem:[%s1 + $0x288] sm:$0xf]
  %v186 = vld [vmem:[%s1 + $0x28c] sm:$0xf]
  %v187 = vld [vmem:[%s1 + $0x290] sm:$0xf]
  %v188 = vld [vmem:[%s1 + $0x294] sm:$0xf]
  %v189 = vld [vmem:[%s1 + $0x298] sm:$0xf]
  %v190 = vld [vmem:[%s1 + $0x29c] sm:$0xf]
  %v191 = vld [vmem:[%s1 + $0x2a0] sm:$0xf]
  %v192 = vld [vmem:[%s1 + $0x2a4] sm:$0xf]
  %v193 = vld [vmem:[%s1 + $0x2a8] sm:$0xf]
  %v194 = vld [vmem:[%s1 + $0x2ac] sm:$0xf]
  %v195 = vld [vmem:[%s1 + $0x2b0] sm:$0xf]
  %v196 = vld [vmem:[%s1 + $0x2b4] sm:$0xf]
  %v197 = vld [vmem:[%s1 + $0x2b8] sm:$0xf]
  %v198 = vld [vmem:[%s1 + $0x2bc] sm:$0xf]
  %v199 = vld [vmem:[%s1 + $0x2c0] sm:$0xf]
  %v200 = vld [vmem:[%s1 + $0x2c4] sm:$0xf]
  %v201 = vld [vmem:[%s1 + $0x2c8] sm:$0xf]
  %v202 = vld [vmem:[%s1 + $0x2cc] sm:$0xf]
  %v203 = vld [vmem:[%s1 + $0x2d0] sm:$0xf]
  %v204 = vld [vmem:[%s1 + $0x2d4] sm:$0xf]
  %v205 = vld [vmem:[%s1 + $0x2d8] sm:$0xf]
  %v206 = vld [vmem:[%s1 + $0x2dc] sm:$0xf]
  %v207 = vld [vmem:[%s1 + $0x2e0] sm:$0xf]
  %v208 = vld [vmem:[%s1 + $0x2e4] sm:$0xf]
  %v209 = vld [vmem:[%s1 + $0x2e8] sm:$0xf]
  %v210 = vld [vmem:[%s1 + $0x2ec] sm:$0xf]
  %v211 = vld [vmem:[%s1 + $0x2f0] sm:$0xf]
  %v212 = vld [vmem:[%s1 + $0x2f4] sm:$0xf]
  %v213 = vld [vmem:[%s1 + $0x2f8] sm:$0xf]
  %v214 = vld [vmem:[%s1 + $0x2fc] sm:$0xf]
  %v215 = vld [vmem:[%s1 + $0x300] sm:$0xf]
  %v216 = vld [vmem:[%s1 + $0x304] sm:$0xf]
  %v217 = vld [vmem:[%s1 + $0x308] sm:$0xf]
  %v218 = vld [vmem:[%s1 + $0x30c] sm:$0xf]
  %v219 = vld [vmem:[%s1 + $0x310] sm:$0xf]
  %v220 = vld [vmem:[%s1 + $0x314] sm:$0xf]
  %v221 = vld [vmem:[%s1 + $0x318] sm:$0xf]
  %v222 = vld [vmem:[%s1 + $0x31c] sm:$0xf]
  %v223 = vld [vmem:[%s1 + $0x320] sm:$0xf]
  %v224 = vld [vmem:[%s1 + $0x324] sm:$0xf]
  %v225 = vld [vmem:[%s1 + $0x328] sm:$0xf]
  %v226 = vld [vmem:[%s1 + $0x32c] sm:$0xf]
  %v227 = vld [vmem:[%s1 + $0x330] sm:$0xf]
  %v228 = vld [vmem:[%s1 + $0x334] sm:$0xf]
  %v229 = vld [vmem:[%s1 + $0x338] sm:$0xf]
  %v230 = vld [vmem:[%s1 + $0x33c] sm:$0xf]
  %v231 = vld [vmem:[%s1 + $0x340] sm:$0xf]
  %v232 = vld [vmem:[%s1 + $0x344] sm:$0xf]
  %v233 = vld [vmem:[%s1 + $0x348] sm:$0xf]
  %v234 = vld [vmem:[%s1 + $0x34c] sm:$0xf]
  %v235 = vld [vmem:[%s1 + $0x350] sm:$0xf]
  %v236 = vld [vmem:[%s1 + $0x354] sm:$0xf]
  %v237 = vld [vmem:[%s1 + $0x358] sm:$0xf]
  %v238 = vld [vmem:[%s1 + $0x35c] sm:$0xf]
  %v239 = vld [vmem:[%s1 + $0x360] sm:$0xf]
  %v240 = vld [vmem:[%s1 + $0x364] sm:$0xf]
  %v241 = vld [vmem:[%s1 + $0x368] sm:$0xf]
  %v242 = vld [vmem:[%s1 + $0x36c] sm:$0xf]
  %v243 = vld [vmem:[%s1 + $0x370] sm:$0xf]
  %v244 = vld [vmem:[%s1 + $0x374] sm:$0xf]
  %v245 = vld [vmem:[%s1 + $0x378] sm:$0xf]
  %v246 = vld [vmem:[%s1 + $0x37c] sm:$0xf]
  %v247 = vld [vmem:[%s1 + $0x380] sm:$0xf]
  %v248 = vld [vmem:[%s1 + $0x384] sm:$0xf]
  %v249 = vld [vmem:[%s1 + $0x388] sm:$0xf]
  %v250 = vld [vmem:[%s1 + $0x38c] sm:$0xf]
  %v251 = vld [vmem:[%s1 + $0x390] sm:$0xf]
  %v252 = vld [vmem:[%s1 + $0x394] sm:$0xf]
  %v253 = vld [vmem:[%s1 + $0x398] sm:$0xf]
  %v254 = vld [vmem:[%s1 + $0x39c] sm:$0xf]
  %v255 = vld [vmem:[%s1 + $0x3a0] sm:$0xf]
  %v256 = vld [vmem:[%s1 + $0x3a4] sm:$0xf]
  %v257 = vld [vmem:[%s1 + $0x3a8] sm:$0xf]
  %v258 = vld [vmem:[%s1 + $0x3ac] sm:$0xf]
  %v259 = vld [vmem:[%s1 + $0x3b0] sm:$0xf]
  %v260 = vld [vmem:[%s1 + $0x3b4] sm:$0xf]
  %v261 = vld [vmem:[%s1 + $0x3b8] sm:$0xf]
  %v262 = vld [vmem:[%s1 + $0x3bc] sm:$0xf]
  %v263 = vld [vmem:[%s1 + $0x3c0] sm:$0xf]
  %v264 = vld [vmem:[%s1 + $0x3c4] sm:$0xf]
  %v265 = vld [vmem:[%s1 + $0x3c8] sm:$0xf]
  %v266 = vld [vmem:[%s1 + $0x3cc] sm:$0xf]
  %v267 = vld [vmem:[%s1 + $0x3d0] sm:$0xf]
  %v268 = vld [vmem:[%s1 + $0x3d4] sm:$0xf]
  %v269 = vld [vmem:[%s1 + $0x3d8] sm:$0xf]
  %v270 = vld [vmem:[%s1 + $0x3dc] sm:$0xf]
  %v271 = vld [vmem:[%s1 + $0x3e0] sm:$0xf]
  %v272 = vld [vmem:[%s1 + $0x3e4] sm:$0xf]
  %v273 = vld [vmem:[%s1 + $0x3e8] sm:$0xf]
  %v274 = vld [vmem:[%s1 + $0x3ec] sm:$0xf]
  %v275 = vld [vmem:[%s1 + $0x3f0] sm:$0xf]
  %v276 = vld [vmem:[%s1 + $0x3f4] sm:$0xf]
  %v277 = vld [vmem:[%s1 + $0x3f8] sm:$0xf]
  %v278 = vld [vmem:[%s1 + $0x3fc] sm:$0xf]
  %v279 = vld [vmem:[%s1 + $0x400] sm:$0xf]
  %v280 = vld [vmem:[%s1 + $0x404] sm:$0xf]
  %v281 = vld [vmem:[%s1 + $0x408] sm:$0xf]
  %v282 = vld [vmem:[%s1 + $0x40c] sm:$0xf]
  %v283 = vld [vmem:[%s1 + $0x410] sm:$0xf]
  %v284 = vld [vmem:[%s1 + $0x414] sm:$0xf]
  %v285 = vld [vmem:[%s1 + $0x418] sm:$0xf]
  %v286 = vld [vmem:[%s1 + $0x41c] sm:$0xf]
  %v287 = vld [vmem:[%s1 + $0x420] sm:$0xf]
  %v288 = vld [vmem:[%s1 + $0x424] sm:$0xf]
  %v289 = vld [vmem:[%s1 + $0x428] sm:$0xf]
  %v290 = vld [vmem:[%s1 + $0x42c] sm:$0xf]
  %v291 = vld [vmem:[%s1 + $0x430] sm:$0xf]
  %v292 = vld [vmem:[%s1 + $0x434] sm:$0xf]
  %v293 = vld [vmem:[%s1 + $0x438] sm:$0xf]
  %v294 = vld [vmem:[%s1 + $0x43c] sm:$0xf]
  %v295 = vld [vmem:[%s1 + $0x440] sm:$0xf]
  %v296 = vld [vmem:[%s1 + $0x444] sm:$0xf]
  %v297 = vld [vmem:[%s1 + $0x448] sm:$0xf]
  %v298 = vld [vmem:[%s1 + $0x44c] sm:$0xf]
  %v299 = vld [vmem:[%s1 + $0x450] sm:$0xf]
  %v300 = vld [vmem:[%s1 + $0x454] sm:$0xf]
  %v301 = vld [vmem:[%s1 + $0x458] sm:$0xf]
  %v302 = vld [vmem:[%s1 + $0x45c] sm:$0xf]
  %v303 = vld [vmem:[%s1 + $0x460] sm:$0xf]
  %v304 = vld [vmem:[%s1 + $0x464] sm:$0xf]
  %v305 = vld [vmem:[%s1 + $0x468] sm:$0xf]
  %v306 = vld [vmem:[%s1 + $0x46c] sm:$0xf]
  %v307 = vld [vmem:[%s1 + $0x470] sm:$0xf]
  %v308 = vld [vmem:[%s1 + $0x474] sm:$0xf]
  %v309 = vld [vmem:[%s1 + $0x478] sm:$0xf]
  %v310 = vld [vmem:[%s1 + $0x47c] sm:$0xf]
  %v311 = vld [vmem:[%s1 + $0x480] sm:$0xf]
  %v312 = vld [vmem:[%s1 + $0x484] sm:$0xf]
  %v313 = vld [vmem:[%s1 + $0x488] sm:$0xf]
  %v314 = vld [vmem:[%s1 + $0x48c] sm:$0xf]
  %v315 = vld [vmem:[%s1 + $0x490] sm:$0xf]
  %v316 = vld [vmem:[%s1 + $0x494] sm:$0xf]
  %v317 = vld [vmem:[%s1 + $0x498] sm:$0xf]
  %v318 = vld [vmem:[%s1 + $0x49c] sm:$0xf]
  %v319 = vld [vmem:[%s1 + $0x4a0] sm:$0xf]
  %v320 = vld [vmem:[%s1 + $0x4a4] sm:$0xf]
  %v321 = vld [vmem:[%s1 + $0x4a8] sm:$0xf]
  %v322 = vld [vmem:[%s1 + $0x4ac] sm:$0xf]
  %v323 = vld [vmem:[%s1 + $0x4b0] sm:$0xf]
  %v324 = vld [vmem:[%s1 + $0x4b4] sm:$0xf]
  %v325 = vld [vmem:[%s1 + $0x4b8] sm:$0xf]
  %v326 = vld [vmem:[%s1 + $0x4bc] sm:$0xf]
  %v327 = vld [vmem:[%s1 + $0x4c0] sm:$0xf]
  %v328 = vld [vmem:[%s1 + $0x4c4] sm:$0xf]
  %v329 = vld [vmem:[%s1 + $0x4c8] sm:$0xf]
  %v330 = vld [vmem:[%s1 + $0x4cc] sm:$0xf]
  %v331 = vld [vmem:[%s1 + $0x4d0] sm:$0xf]
  %v332 = vld [vmem:[%s1 + $0x4d4] sm:$0xf]
  %v333 = vld [vmem:[%s1 + $0x4d8] sm:$0xf]
  %v334 = vld [vmem:[%s1 + $0x4dc] sm:$0xf]
  %v335 = vld [vmem:[%s1 + $0x4e0] sm:$0xf]
  %v336 = vld [vmem:[%s1 + $0x4e4] sm:$0xf]
  %v337 = vld [vmem:[%s1 + $0x4e8] sm:$0xf]
  %v338 = vld [vmem:[%s1 + $0x4ec] sm:$0xf]
  %v339 = vld [vmem:[%s1 + $0x4f0] sm:$0xf]
  %v340 = vld [vmem:[%s1 + $0x4f4] sm:$0xf]
  %v341 = vld [vmem:[%s1 + $0x4f8] sm:$0xf]
  %v342 = vld [vmem:[%s1 + $0x4fc] sm:$0xf]
  %v343 = vld [vmem:[%s1 + $0x500] sm:$0xf]
  %v344 = vld [vmem:[%s1 + $0x504] sm:$0xf]
  %v345 = vld [vmem:[%s1 + $0x508] sm:$0xf]
  %v346 = vld [vmem:[%s1 + $0x50c] sm:$0xf]
  %v347 = vld [vmem:[%s1 + $0x510] sm:$0xf]
  %v348 = vld [vmem:[%s1 + $0x514] sm:$0xf]
  %v349 = vld [vmem:[%s1 + $0x518] sm:$0xf]
  %v350 = vld [vmem:[%s1 + $0x51c] sm:$0xf]
  %v351 = vld [vmem:[%s1 + $0x520] sm:$0xf]
  %v352 = vld [vmem:[%s1 + $0x524] sm:$0xf]
  %v353 = vld [vmem:[%s1 + $0x528] sm:$0xf]
  %v354 = vld [vmem:[%s1 + $0x52c] sm:$0xf]
  %v355 = vld [vmem:[%s1 + $0x530] sm:$0xf]
  %v356 = vld [vmem:[%s1 + $0x534] sm:$0xf]
  %v357 = vld [vmem:[%s1 + $0x538] sm:$0xf]
  %v358 = vld [vmem:[%s1 + $0x53c] sm:$0xf]
  %v359 = vld [vmem:[%s1 + $0x540] sm:$0xf]
  %v360 = vld [vmem:[%s1 + $0x544] sm:$0xf]
  %v361 = vld [vmem:[%s1 + $0x548] sm:$0xf]
  %v362 = vld [vmem:[%s1 + $0x54c] sm:$0xf]
  %v363 = vld [vmem:[%s1 + $0x550] sm:$0xf]
  %v364 = vld [vmem:[%s1 + $0x554] sm:$0xf]
  %v365 = vld [vmem:[%s1 + $0x558] sm:$0xf]
  %v366 = vld [vmem:[%s1 + $0x55c] sm:$0xf]
  %v367 = vld [vmem:[%s1 + $0x560] sm:$0xf]
  %v368 = vld [vmem:[%s1 + $0x564] sm:$0xf]
  %v369 = vld [vmem:[%s1 + $0x568] sm:$0xf]
  %v370 = vld [vmem:[%s1 + $0x56c] sm:$0xf]
  %v371 = vld [vmem:[%s1 + $0x570] sm:$0xf]
  %v372 = vld [vmem:[%s1 + $0x574] sm:$0xf]
  %v373 = vld [vmem:[%s1 + $0x578] sm:$0xf]
  %v374 = vld [vmem:[%s1 + $0x57c] sm:$0xf]
  %v375 = vld [vmem:[%s1 + $0x580] sm:$0xf]
  %v376 = vld [vmem:[%s1 + $0x584] sm:$0xf]
  %v377 = vld [vmem:[%s1 + $0x588] sm:$0xf]
  %v378 = vld [vmem:[%s1 + $0x58c] sm:$0xf]
  %v379 = vld [vmem:[%s1 + $0x590] sm:$0xf]
  %v380 = vld [vmem:[%s1 + $0x594] sm:$0xf]
  %v381 = vld [vmem:[%s1 + $0x598] sm:$0xf]
  %v382 = vld [vmem:[%s1 + $0x59c] sm:$0xf]
  %v383 = vld [vmem:[%s1 + $0x5a0] sm:$0xf]
  %v384 = vld [vmem:[%s1 + $0x5a4] sm:$0xf]
  %v385 = vld [vmem:[%s1 + $0x5a8] sm:$0xf]
  %v386 = vld [vmem:[%s1 + $0x5ac] sm:$0xf]
  %v387 = vld [vmem:[%s1 + $0x5b0] sm:$0xf]
  %v388 = vld [vmem:[%s1 + $0x5b4] sm:$0xf]
  %v389 = vld [vmem:[%s1 + $0x5b8] sm:$0xf]
  %v390 = vld [vmem:[%s1 + $0x5bc] sm:$0xf]
  %v391 = vld [vmem:[%s1 + $0x5c0] sm:$0xf]
  %v392 = vld [vmem:[%s1 + $0x5c4] sm:$0xf]
  %v393 = vld [vmem:[%s1 + $0x5c8] sm:$0xf]
  %v394 = vld [vmem:[%s1 + $0x5cc] sm:$0xf]
  %v395 = vld [vmem:[%s1 + $0x5d0] sm:$0xf]
  %v396 = vld [vmem:[%s1 + $0x5d4] sm:$0xf]
  %v397 = vld [vmem:[%s1 + $0x5d8] sm:$0xf]
  %v398 = vld [vmem:[%s1 + $0x5dc] sm:$0xf]
  %v399 = vld [vmem:[%s1 + $0x5e0] sm:$0xf]
  %v400 = vld [vmem:[%s1 + $0x5e4] sm:$0xf]
  %v401 = vld [vmem:[%s1 + $0x5e8] sm:$0xf]
  %v402 = vld [vmem:[%s1 + $0x5ec] sm:$0xf]
  %v403 = vld [vmem:[%s1 + $0x5f0] sm:$0xf]
  %v404 = vld [vmem:[%s1 + $0x5f4] sm:$0xf]
  %v405 = vld [vmem:[%s1 + $0x5f8] sm:$0xf]
  %v406 = vld [vmem:[%s1 + $0x5fc] sm:$0xf]
  %v407 = vld [vmem:[%s1 + $0x600] sm:$0xf]
  %v408 = vld [vmem:[%s1 + $0x604] sm:$0xf]
  %v409 = vld [vmem:[%s1 + $0x608] sm:$0xf]
  %v410 = vld [vmem:[%s1 + $0x60c] sm:$0xf]
  %v411 = vld [vmem:[%s1 + $0x610] sm:$0xf]
  %v412 = vld [vmem:[%s1 + $0x614] sm:$0xf]
  %v413 = vld [vmem:[%s1 + $0x618] sm:$0xf]
  %v414 = vld [vmem:[%s1 + $0x61c] sm:$0xf]
  %v415 = vld [vmem:[%s1 + $0x620] sm:$0xf]
  %v416 = vld [vmem:[%s1 + $0x624] sm:$0xf]
  %v417 = vld [vmem:[%s1 + $0x628] sm:$0xf]
  %v418 = vld [vmem:[%s1 + $0x62c] sm:$0xf]
  %v419 = vld [vmem:[%s1 + $0x630] sm:$0xf]
  %v420 = vld [vmem:[%s1 + $0x634] sm:$0xf]
  %v421 = vld [vmem:[%s1 + $0x638] sm:$0xf]
  %v422 = vld [vmem:[%s1 + $0x63c] sm:$0xf]
  %v423 = vld [vmem:[%s1 + $0x640] sm:$0xf]
  %v424 = vld [vmem:[%s1 + $0x644] sm:$0xf]
  %v425 = vld [vmem:[%s1 + $0x648] sm:$0xf]
  %v426 = vld [vmem:[%s1 + $0x64c] sm:$0xf]
  %v427 = vld [vmem:[%s1 + $0x650] sm:$0xf]
  %v428 = vld [vmem:[%s1 + $0x654] sm:$0xf]
  %v429 = vld [vmem:[%s1 + $0x658] sm:$0xf]
  %v430 = vld [vmem:[%s1 + $0x65c] sm:$0xf]
  %v431 = vld [vmem:[%s1 + $0x660] sm:$0xf]
  %v432 = vld [vmem:[%s1 + $0x664] sm:$0xf]
  %v433 = vld [vmem:[%s1 + $0x668] sm:$0xf]
  %v434 = vld [vmem:[%s1 + $0x66c] sm:$0xf]
  %v435 = vld [vmem:[%s1 + $0x670] sm:$0xf]
  %v436 = vld [vmem:[%s1 + $0x674] sm:$0xf]
  %v437 = vld [vmem:[%s1 + $0x678] sm:$0xf]
  %v438 = vld [vmem:[%s1 + $0x67c] sm:$0xf]
  %v439 = vld [vmem:[%s1 + $0x680] sm:$0xf]
  %v440 = vld [vmem:[%s1 + $0x684] sm:$0xf]
  %v441 = vld [vmem:[%s1 + $0x688] sm:$0xf]
  %v442 = vld [vmem:[%s1 + $0x68c] sm:$0xf]
  %v443 = vld [vmem:[%s1 + $0x690] sm:$0xf]
  %v444 = vld [vmem:[%s1 + $0x694] sm:$0xf]
  %v445 = vld [vmem:[%s1 + $0x698] sm:$0xf]
  %v446 = vld [vmem:[%s1 + $0x69c] sm:$0xf]
  %v447 = vld [vmem:[%s1 + $0x6a0] sm:$0xf]
  %v448 = vld [vmem:[%s1 + $0x6a4] sm:$0xf]
  %v449 = vld [vmem:[%s1 + $0x6a8] sm:$0xf]
  %v450 = vld [vmem:[%s1 + $0x6ac] sm:$0xf]
  %v451 = vld [vmem:[%s1 + $0x6b0] sm:$0xf]
  %v452 = vld [vmem:[%s1 + $0x6b4] sm:$0xf]
  %v453 = vld [vmem:[%s1 + $0x6b8] sm:$0xf]
  %v454 = vld [vmem:[%s1 + $0x6bc] sm:$0xf]
  %v455 = vld [vmem:[%s1 + $0x6c0] sm:$0xf]
  %v456 = vld [vmem:[%s1 + $0x6c4] sm:$0xf]
  %v457 = vld [vmem:[%s1 + $0x6c8] sm:$0xf]
  %v458 = vld [vmem:[%s1 + $0x6cc] sm:$0xf]
  %v459 = vld [vmem:[%s1 + $0x6d0] sm:$0xf]
  %v460 = vld [vmem:[%s1 + $0x6d4] sm:$0xf]
  %v461 = vld [vmem:[%s1 + $0x6d8] sm:$0xf]
  %v462 = vld [vmem:[%s1 + $0x6dc] sm:$0xf]
  %v463 = vld [vmem:[%s1 + $0x6e0] sm:$0xf]
  %v464 = vld [vmem:[%s1 + $0x6e4] sm:$0xf]
  %v465 = vld [vmem:[%s1 + $0x6e8] sm:$0xf]
  %v466 = vld [vmem:[%s1 + $0x6ec] sm:$0xf]
  %v467 = vld [vmem:[%s1 + $0x6f0] sm:$0xf]
  %v468 = vld [vmem:[%s1 + $0x6f4] sm:$0xf]
  %v469 = vld [vmem:[%s1 + $0x6f8] sm:$0xf]
  %v470 = vld [vmem:[%s1 + $0x6fc] sm:$0xf]
  %v471 = vld [vmem:[%s1 + $0x700] sm:$0xf]
  %v472 = vld [vmem:[%s1 + $0x704] sm:$0xf]
  %v473 = vld [vmem:[%s1 + $0x708] sm:$0xf]
  %v474 = vld [vmem:[%s1 + $0x70c] sm:$0xf]
  %v475 = vld [vmem:[%s1 + $0x710] sm:$0xf]
  %v476 = vld [vmem:[%s1 + $0x714] sm:$0xf]
  %v477 = vld [vmem:[%s1 + $0x718] sm:$0xf]
  %v478 = vld [vmem:[%s1 + $0x71c] sm:$0xf]
  %v479 = vld [vmem:[%s1 + $0x720] sm:$0xf]
  %v480 = vld [vmem:[%s1 + $0x724] sm:$0xf]
  %v481 = vld [vmem:[%s1 + $0x728] sm:$0xf]
  %v482 = vld [vmem:[%s1 + $0x72c] sm:$0xf]
  %v483 = vld [vmem:[%s1 + $0x730] sm:$0xf]
  %v484 = vld [vmem:[%s1 + $0x734] sm:$0xf]
  %v485 = vld [vmem:[%s1 + $0x738] sm:$0xf]
  %v486 = vld [vmem:[%s1 + $0x73c] sm:$0xf]
  %v487 = vld [vmem:[%s1 + $0x740] sm:$0xf]
  %v488 = vld [vmem:[%s1 + $0x744] sm:$0xf]
  %v489 = vld [vmem:[%s1 + $0x748] sm:$0xf]
  %v490 = vld [vmem:[%s1 + $0x74c] sm:$0xf]
  %v491 = vld [vmem:[%s1 + $0x750] sm:$0xf]
  %v492 = vld [vmem:[%s1 + $0x754] sm:$0xf]
  %v493 = vld [vmem:[%s1 + $0x758] sm:$0xf]
  %v494 = vld [vmem:[%s1 + $0x75c] sm:$0xf]
  %v495 = vld [vmem:[%s1 + $0x760] sm:$0xf]
  %v496 = vld [vmem:[%s1 + $0x764] sm:$0xf]
  %v497 = vld [vmem:[%s1 + $0x768] sm:$0xf]
  %v498 = vld [vmem:[%s1 + $0x76c] sm:$0xf]
  %v499 = vld [vmem:[%s1 + $0x770] sm:$0xf]
  %v500 = vld [vmem:[%s1 + $0x774] sm:$0xf]
  %v501 = vld [vmem:[%s1 + $0x778] sm:$0xf]
  %v502 = vld [vmem:[%s1 + $0x77c] sm:$0xf]
  %v503 = vld [vmem:[%s1 + $0x780] sm:$0xf]
  %v504 = vld [vmem:[%s1 + $0x784] sm:$0xf]
  %v505 = vld [vmem:[%s1 + $0x788] sm:$0xf]
  %v506 = vld [vmem:[%s1 + $0x78c] sm:$0xf]
  %v507 = vld [vmem:[%s1 + $0x790] sm:$0xf]
  %v508 = vld [vmem:[%s1 + $0x794] sm:$0xf]
  %v509 = vld [vmem:[%s1 + $0x798] sm:$0xf]
  %v510 = vld [vmem:[%s1 + $0x79c] sm:$0xf]
  %v511 = vld [vmem:[%s1 + $0x7a0] sm:$0xf]
  %v512 = vld [vmem:[%s1 + $0x7a4] sm:$0xf]
  %v513 = vld [vmem:[%s1 + $0x7a8] sm:$0xf]
  %v514 = vld [vmem:[%s1 + $0x7ac] sm:$0xf]
  %v515 = vld [vmem:[%s1 + $0x7b0] sm:$0xf]
  %v516 = vld [vmem:[%s1 + $0x7b4] sm:$0xf]
  %v517 = vld [vmem:[%s1 + $0x7b8] sm:$0xf]
  %v518 = vld [vmem:[%s1 + $0x7bc] sm:$0xf]
  %v519 = vld [vmem:[%s1 + $0x7c0] sm:$0xf]
  %v520 = vld [vmem:[%s1 + $0x7c4] sm:$0xf]
  %v521 = vld [vmem:[%s1 + $0x7c8] sm:$0xf]
  %v522 = vld [vmem:[%s1 + $0x7cc] sm:$0xf]
  %v523 = vld [vmem:[%s1 + $0x7d0] sm:$0xf]
  %v524 = vld [vmem:[%s1 + $0x7d4] sm:$0xf]
  %v525 = vld [vmem:[%s1 + $0x7d8] sm:$0xf]
  %v526 = vld [vmem:[%s1 + $0x7dc] sm:$0xf]
  %v527 = vld [vmem:[%s1 + $0x7e0] sm:$0xf]
  %v528 = vld [vmem:[%s1 + $0x7e4] sm:$0xf]
  %v529 = vld [vmem:[%s1 + $0x7e8] sm:$0xf]
  %v530 = vld [vmem:[%s1 + $0x7ec] sm:$0xf]
  %v531 = vld [vmem:[%s1 + $0x7f0] sm:$0xf]
  %v532 = vld [vmem:[%s1 + $0x7f4] sm:$0xf]
  %v533 = vld [vmem:[%s1 + $0x7f8] sm:$0xf]
  %v534 = vld [vmem:[%s1 + $0x7fc] sm:$0xf]
  %v535 = vld [vmem:[%s1 + $0x800] sm:$0xf]
  %v536 = vld [vmem:[%s1 + $0x804] sm:$0xf]
  %v537 = vld [vmem:[%s1 + $0x808] sm:$0xf]
  %v538 = vld [vmem:[%s1 + $0x80c] sm:$0xf]
  %v539 = vld [vmem:[%s1 + $0x810] sm:$0xf]
  %v540 = vld [vmem:[%s1 + $0x814] sm:$0xf]
  %v541 = vld [vmem:[%s1 + $0x818] sm:$0xf]
  %v542 = vld [vmem:[%s1 + $0x81c] sm:$0xf]
  %v543 = vld [vmem:[%s1 + $0x820] sm:$0xf]
  %v544 = vld [vmem:[%s1 + $0x824] sm:$0xf]
  %v545 = vld [vmem:[%s1 + $0x828] sm:$0xf]
  %v546 = vld [vmem:[%s1 + $0x82c] sm:$0xf]
  %v547 = vld [vmem:[%s1 + $0x830] sm:$0xf]
  %v548 = vld [vmem:[%s1 + $0x834] sm:$0xf]
  %v549 = vld [vmem:[%s1 + $0x838] sm:$0xf]
  %v550 = vld [vmem:[%s1 + $0x83c] sm:$0xf]
  %v551 = vld [vmem:[%s1 + $0x840] sm:$0xf]
  %v552 = vld [vmem:[%s1 + $0x844] sm:$0xf]
  %v553 = vld [vmem:[%s1 + $0x848] sm:$0xf]
  %v554 = vld [vmem:[%s1 + $0x84c] sm:$0xf]
  %v555 = vld [vmem:[%s1 + $0x850] sm:$0xf]
  %v556 = vld [vmem:[%s1 + $0x854] sm:$0xf]
  %v557 = vld [vmem:[%s1 + $0x858] sm:$0xf]
  %v558 = vld [vmem:[%s1 + $0x85c] sm:$0xf]
  %v559 = vld [vmem:[%s1 + $0x860] sm:$0xf]
  %v560 = vld [vmem:[%s1 + $0x864] sm:$0xf]
  %v561 = vld [vmem:[%s1 + $0x868] sm:$0xf]
  %v562 = vld [vmem:[%s1 + $0x86c] sm:$0xf]
  %v563 = vld [vmem:[%s1 + $0x870] sm:$0xf]
  %v564 = vld [vmem:[%s1 + $0x874] sm:$0xf]
  %v565 = vld [vmem:[%s1 + $0x878] sm:$0xf]
  %v566 = vld [vmem:[%s1 + $0x87c] sm:$0xf]
  %v567 = vld [vmem:[%s1 + $0x880] sm:$0xf]
  %v568 = vld [vmem:[%s1 + $0x884] sm:$0xf]
  %v569 = vld [vmem:[%s1 + $0x888] sm:$0xf]
  %v570 = vld [vmem:[%s1 + $0x88c] sm:$0xf]
  %v571 = vld [vmem:[%s1 + $0x890] sm:$0xf]
  %v572 = vld [vmem:[%s1 + $0x894] sm:$0xf]
  %v573 = vld [vmem:[%s1 + $0x898] sm:$0xf]
  %v574 = vld [vmem:[%s1 + $0x89c] sm:$0xf]
  %v575 = vld [vmem:[%s1 + $0x8a0] sm:$0xf]
  %v576 = vld [vmem:[%s1 + $0x8a4] sm:$0xf]
  %v577 = vld [vmem:[%s1 + $0x8a8] sm:$0xf]
  %v578 = vld [vmem:[%s1 + $0x8ac] sm:$0xf]
  %v579 = vld [vmem:[%s1 + $0x8b0] sm:$0xf]
  %v580 = vld [vmem:[%s1 + $0x8b4] sm:$0xf]
  %v581 = vld [vmem:[%s1 + $0x8b8] sm:$0xf]
  %v582 = vld [vmem:[%s1 + $0x8bc] sm:$0xf]
  %v583 = vld [vmem:[%s1 + $0x8c0] sm:$0xf]
  %v584 = vld [vmem:[%s1 + $0x8c4] sm:$0xf]
  %v585 = vld [vmem:[%s1 + $0x8c8] sm:$0xf]
  %v586 = vld [vmem:[%s1 + $0x8cc] sm:$0xf]
  %v587 = vld [vmem:[%s1 + $0x8d0] sm:$0xf]
  %v588 = vld [vmem:[%s1 + $0x8d4] sm:$0xf]
  %v589 = vld [vmem:[%s1 + $0x8d8] sm:$0xf]
  %v590 = vld [vmem:[%s1 + $0x8dc] sm:$0xf]
  %v591 = vld [vmem:[%s1 + $0x8e0] sm:$0xf]
  %v592 = vld [vmem:[%s1 + $0x8e4] sm:$0xf]
  %v593 = vld [vmem:[%s1 + $0x8e8] sm:$0xf]
  %v594 = vld [vmem:[%s1 + $0x8ec] sm:$0xf]
  %v595 = vld [vmem:[%s1 + $0x8f0] sm:$0xf]
  %v596 = vld [vmem:[%s1 + $0x8f4] sm:$0xf]
  %v597 = vld [vmem:[%s1 + $0x8f8] sm:$0xf]
  %v598 = vld [vmem:[%s1 + $0x8fc] sm:$0xf]
  %v599 = vld [vmem:[%s1 + $0x900] sm:$0xf]
  %v600 = vld [vmem:[%s1 + $0x904] sm:$0xf]
  %v601 = vld [vmem:[%s1 + $0x908] sm:$0xf]
  %v602 = vld [vmem:[%s1 + $0x90c] sm:$0xf]
  %v603 = vld [vmem:[%s1 + $0x910] sm:$0xf]
  %v604 = vld [vmem:[%s1 + $0x914] sm:$0xf]
  %v605 = vld [vmem:[%s1 + $0x918] sm:$0xf]
  %v606 = vld [vmem:[%s1 + $0x91c] sm:$0xf]
  %v607 = vld [vmem:[%s1 + $0x920] sm:$0xf]
  %v608 = vld [vmem:[%s1 + $0x924] sm:$0xf]
  %v609 = vld [vmem:[%s1 + $0x928] sm:$0xf]
  %v610 = vld [vmem:[%s1 + $0x92c] sm:$0xf]
  %v611 = vld [vmem:[%s1 + $0x930] sm:$0xf]
  %v612 = vld [vmem:[%s1 + $0x934] sm:$0xf]
  %v613 = vld [vmem:[%s1 + $0x938] sm:$0xf]
  %v614 = vld [vmem:[%s1 + $0x93c] sm:$0xf]
  %v615 = vld [vmem:[%s1 + $0x940] sm:$0xf]
  %v616 = vld [vmem:[%s1 + $0x944] sm:$0xf]
  %v617 = vld [vmem:[%s1 + $0x948] sm:$0xf]
  %v618 = vld [vmem:[%s1 + $0x94c] sm:$0xf]
  %v619 = vld [vmem:[%s1 + $0x950] sm:$0xf]
  %v620 = vld [vmem:[%s1 + $0x954] sm:$0xf]
  %v621 = vld [vmem:[%s1 + $0x958] sm:$0xf]
  %v622 = vld [vmem:[%s1 + $0x95c] sm:$0xf]
  %v623 = vld [vmem:[%s1 + $0x960] sm:$0xf]
  %v624 = vld [vmem:[%s1 + $0x964] sm:$0xf]
  %v625 = vld [vmem:[%s1 + $0x968] sm:$0xf]
  %v626 = vld [vmem:[%s1 + $0x96c] sm:$0xf]
  %v627 = vld [vmem:[%s1 + $0x970] sm:$0xf]
  %v628 = vld [vmem:[%s1 + $0x974] sm:$0xf]
  %v629 = vld [vmem:[%s1 + $0x978] sm:$0xf]
  %v630 = vld [vmem:[%s1 + $0x97c] sm:$0xf]
  %v631 = vld [vmem:[%s1 + $0x980] sm:$0xf]
  %v632 = vld [vmem:[%s1 + $0x984] sm:$0xf]
  %v633 = vld [vmem:[%s1 + $0x988] sm:$0xf]
  %v634 = vld [vmem:[%s1 + $0x98c] sm:$0xf]
  %v635 = vld [vmem:[%s1 + $0x990] sm:$0xf]
  %v636 = vld [vmem:[%s1 + $0x994] sm:$0xf]
  %v637 = vld [vmem:[%s1 + $0x998] sm:$0xf]
  %v638 = vld [vmem:[%s1 + $0x99c] sm:$0xf]
  %v639 = vld [vmem:[%s1 + $0x9a0] sm:$0xf]
  %v640 = vld [vmem:[%s1 + $0x9a4] sm:$0xf]
  %v641 = vld [vmem:[%s1 + $0x9a8] sm:$0xf]
  %v642 = vld [vmem:[%s1 + $0x9ac] sm:$0xf]
  %v643 = vld [vmem:[%s1 + $0x9b0] sm:$0xf]
  %v644 = vld [vmem:[%s1 + $0x9b4] sm:$0xf]
  %v645 = vld [vmem:[%s1 + $0x9b8] sm:$0xf]
  %v646 = vld [vmem:[%s1 + $0x9bc] sm:$0xf]
  %v647 = vld [vmem:[%s1 + $0x9c0] sm:$0xf]
  %v648 = vld [vmem:[%s1 + $0x9c4] sm:$0xf]
  %v649 = vld [vmem:[%s1 + $0x9c8] sm:$0xf]
  %v650 = vld [vmem:[%s1 + $0x9cc] sm:$0xf]
  %v651 = vld [vmem:[%s1 + $0x9d0] sm:$0xf]
  %v652 = vld [vmem:[%s1 + $0x9d4] sm:$0xf]
  %v653 = vld [vmem:[%s1 + $0x9d8] sm:$0xf]
  %v654 = vld [vmem:[%s1 + $0x9dc] sm:$0xf]
  %v655 = vld [vmem:[%s1 + $0x9e0] sm:$0xf]
  %v656 = vld [vmem:[%s1 + $0x9e4] sm:$0xf]
  %v657 = vld [vmem:[%s1 + $0x9e8] sm:$0xf]
  %v658 = vld [vmem:[%s1 + $0x9ec] sm:$0xf]
  %v659 = vld [vmem:[%s1 + $0x9f0] sm:$0xf]
  %v660 = vld [vmem:[%s1 + $0x9f4] sm:$0xf]
  %v661 = vld [vmem:[%s1 + $0x9f8] sm:$0xf]
  %v662 = vld [vmem:[%s1 + $0x9fc] sm:$0xf]
  %v663 = vld [vmem:[%s1 + $0xa00] sm:$0xf]
  %v664 = vld [vmem:[%s1 + $0xa04] sm:$0xf]
  %v665 = vld [vmem:[%s1 + $0xa08] sm:$0xf]
  %v666 = vld [vmem:[%s1 + $0xa0c] sm:$0xf]
  %v667 = vld [vmem:[%s1 + $0xa10] sm:$0xf]
  %v668 = vld [vmem:[%s1 + $0xa14] sm:$0xf]
  %v669 = vld [vmem:[%s1 + $0xa18] sm:$0xf]
  %v670 = vld [vmem:[%s1 + $0xa1c] sm:$0xf]
  %v671 = vld [vmem:[%s1 + $0xa20] sm:$0xf]
  %v672 = vld [vmem:[%s1 + $0xa24] sm:$0xf]
  %v673 = vld [vmem:[%s1 + $0xa28] sm:$0xf]
  %v674 = vld [vmem:[%s1 + $0xa2c] sm:$0xf]
  %v675 = vld [vmem:[%s1 + $0xa30] sm:$0xf]
  %v676 = vld [vmem:[%s1 + $0xa34] sm:$0xf]
  %v677 = vld [vmem:[%s1 + $0xa38] sm:$0xf]
  %v678 = vld [vmem:[%s1 + $0xa3c] sm:$0xf]
  %v679 = vld [vmem:[%s1 + $0xa40] sm:$0xf]
  %v680 = vld [vmem:[%s1 + $0xa44] sm:$0xf]
  %v681 = vld [vmem:[%s1 + $0xa48] sm:$0xf]
  %v682 = vld [vmem:[%s1 + $0xa4c] sm:$0xf]
  %v683 = vld [vmem:[%s1 + $0xa50] sm:$0xf]
  %v684 = vld [vmem:[%s1 + $0xa54] sm:$0xf]
  %v685 = vld [vmem:[%s1 + $0xa58] sm:$0xf]
  %v686 = vld [vmem:[%s1 + $0xa5c] sm:$0xf]
  %v687 = vld [vmem:[%s1 + $0xa60] sm:$0xf]
  %v688 = vld [vmem:[%s1 + $0xa64] sm:$0xf]
  %v689 = vld [vmem:[%s1 + $0xa68] sm:$0xf]
  %v690 = vld [vmem:[%s1 + $0xa6c] sm:$0xf]
  %v691 = vld [vmem:[%s1 + $0xa70] sm:$0xf]
  %v692 = vld [vmem:[%s1 + $0xa74] sm:$0xf]
  %v693 = vld [vmem:[%s1 + $0xa78] sm:$0xf]
  %v694 = vld [vmem:[%s1 + $0xa7c] sm:$0xf]
  %v695 = vld [vmem:[%s1 + $0xa80] sm:$0xf]
  %v696 = vld [vmem:[%s1 + $0xa84] sm:$0xf]
  %v697 = vld [vmem:[%s1 + $0xa88] sm:$0xf]
  %v698 = vld [vmem:[%s1 + $0xa8c] sm:$0xf]
  %v699 = vld [vmem:[%s1 + $0xa90] sm:$0xf]
  %v700 = vld [vmem:[%s1 + $0xa94] sm:$0xf]
  %v701 = vld [vmem:[%s1 + $0xa98] sm:$0xf]
  %v702 = vld [vmem:[%s1 + $0xa9c] sm:$0xf]
  %v703 = vld [vmem:[%s1 + $0xaa0] sm:$0xf]
  %v704 = vld [vmem:[%s1 + $0xaa4] sm:$0xf]
  %v705 = vld [vmem:[%s1 + $0xaa8] sm:$0xf]
  %v706 = vld [vmem:[%s1 + $0xaac] sm:$0xf]
  %v707 = vld [vmem:[%s1 + $0xab0] sm:$0xf]
  %v708 = vld [vmem:[%s1 + $0xab4] sm:$0xf]
  %v709 = vld [vmem:[%s1 + $0xab8] sm:$0xf]
  %v710 = vld [vmem:[%s1 + $0xabc] sm:$0xf]
  %v711 = vld [vmem:[%s1 + $0xac0] sm:$0xf]
  %v712 = vld [vmem:[%s1 + $0xac4] sm:$0xf]
  %v713 = vld [vmem:[%s1 + $0xac8] sm:$0xf]
  %v714 = vld [vmem:[%s1 + $0xacc] sm:$0xf]
  %v715 = vld [vmem:[%s1 + $0xad0] sm:$0xf]
  %v716 = vld [vmem:[%s1 + $0xad4] sm:$0xf]
  %v717 = vld [vmem:[%s1 + $0xad8] sm:$0xf]
  %v718 = vld [vmem:[%s1 + $0xadc] sm:$0xf]
  %v719 = vld [vmem:[%s1 + $0xae0] sm:$0xf]
  %v720 = vld [vmem:[%s1 + $0xae4] sm:$0xf]
  %v721 = vld [vmem:[%s1 + $0xae8] sm:$0xf]
  %v722 = vld [vmem:[%s1 + $0xaec] sm:$0xf]
  %v723 = vld [vmem:[%s1 + $0xaf0] sm:$0xf]
  %v724 = vld [vmem:[%s1 + $0xaf4] sm:$0xf]
  %v725 = vld [vmem:[%s1 + $0xaf8] sm:$0xf]
  %v726 = vld [vmem:[%s1 + $0xafc] sm:$0xf]
  %v727 = vld [vmem:[%s1 + $0xb00] sm:$0xf]
  %v728 = vld [vmem:[%s1 + $0xb04] sm:$0xf]
  %v729 = vld [vmem:[%s1 + $0xb08] sm:$0xf]
  %v730 = vld [vmem:[%s1 + $0xb0c] sm:$0xf]
  %v731 = vld [vmem:[%s1 + $0xb10] sm:$0xf]
  %v732 = vld [vmem:[%s1 + $0xb14] sm:$0xf]
  %v733 = vld [vmem:[%s1 + $0xb18] sm:$0xf]
  %v734 = vld [vmem:[%s1 + $0xb1c] sm:$0xf]
  %v735 = vld [vmem:[%s1 + $0xb20] sm:$0xf]
  %v736 = vld [vmem:[%s1 + $0xb24] sm:$0xf]
  %v737 = vld [vmem:[%s1 + $0xb28] sm:$0xf]
  %v738 = vld [vmem:[%s1 + $0xb2c] sm:$0xf]
  %v739 = vld [vmem:[%s1 + $0xb30] sm:$0xf]
  %v740 = vld [vmem:[%s1 + $0xb34] sm:$0xf]
  %v741 = vld [vmem:[%s1 + $0xb38] sm:$0xf]
  %v742 = vld [vmem:[%s1 + $0xb3c] sm:$0xf]
  %v743 = vld [vmem:[%s1 + $0xb40] sm:$0xf]
  %v744 = vld [vmem:[%s1 + $0xb44] sm:$0xf]
  %v745 = vld [vmem:[%s1 + $0xb48] sm:$0xf]
  %v746 = vld [vmem:[%s1 + $0xb4c] sm:$0xf]
  %v747 = vld [vmem:[%s1 + $0xb50] sm:$0xf]
  %v748 = vld [vmem:[%s1 + $0xb54] sm:$0xf]
  %v749 = vld [vmem:[%s1 + $0xb58] sm:$0xf]
  %v750 = vld [vmem:[%s1 + $0xb5c] sm:$0xf]
  %v751 = vld [vmem:[%s1 + $0xb60] sm:$0xf]
  %v752 = vld [vmem:[%s1 + $0xb64] sm:$0xf]
  %v753 = vld [vmem:[%s1 + $0xb68] sm:$0xf]
  %v754 = vld [vmem:[%s1 + $0xb6c] sm:$0xf]
  %v755 = vld [vmem:[%s1 + $0xb70] sm:$0xf]
  %v756 = vld [vmem:[%s1 + $0xb74] sm:$0xf]
  %v757 = vld [vmem:[%s1 + $0xb78] sm:$0xf]
  %v758 = vld [vmem:[%s1 + $0xb7c] sm:$0xf]
  %v759 = vld [vmem:[%s1 + $0xb80] sm:$0xf]
  %v760 = vld [vmem:[%s1 + $0xb84] sm:$0xf]
  %v761 = vld [vmem:[%s1 + $0xb88] sm:$0xf]
  %v762 = vld [vmem:[%s1 + $0xb8c] sm:$0xf]
  %v763 = vld [vmem:[%s1 + $0xb90] sm:$0xf]
  %v764 = vld [vmem:[%s1 + $0xb94] sm:$0xf]
  %v765 = vld [vmem:[%s1 + $0xb98] sm:$0xf]
  %v766 = vld [vmem:[%s1 + $0xb9c] sm:$0xf]
  %v767 = vld [vmem:[%s1 + $0xba0] sm:$0xf]
  %v768 = vld [vmem:[%s1 + $0xba4] sm:$0xf]
  %v769 = vld [vmem:[%s1 + $0xba8] sm:$0xf]
  %v770 = vld [vmem:[%s1 + $0xbac] sm:$0xf]
  %v771 = vld [vmem:[%s1 + $0xbb0] sm:$0xf]
  %v772 = vld [vmem:[%s1 + $0xbb4] sm:$0xf]
  %v773 = vld [vmem:[%s1 + $0xbb8] sm:$0xf]
  %v774 = vld [vmem:[%s1 + $0xbbc] sm:$0xf]
  %v775 = vld [vmem:[%s1 + $0xbc0] sm:$0xf]
  %v776 = vld [vmem:[%s1 + $0xbc4] sm:$0xf]
  %v777 = vld [vmem:[%s1 + $0xbc8] sm:$0xf]
  %v778 = vld [vmem:[%s1 + $0xbcc] sm:$0xf]
  %v779 = vld [vmem:[%s1 + $0xbd0] sm:$0xf]
  %v780 = vld [vmem:[%s1 + $0xbd4] sm:$0xf]
  %v781 = vld [vmem:[%s1 + $0xbd8] sm:$0xf]
  %v782 = vld [vmem:[%s1 + $0xbdc] sm:$0xf]
  %v783 = vld [vmem:[%s1 + $0xbe0] sm:$0xf]
  %v784 = vld [vmem:[%s1 + $0xbe4] sm:$0xf]
  %v785 = vld [vmem:[%s1 + $0xbe8] sm:$0xf]
  %v786 = vld [vmem:[%s1 + $0xbec] sm:$0xf]
  %v787 = vld [vmem:[%s1 + $0xbf0] sm:$0xf]
  %v788 = vld [vmem:[%s1 + $0xbf4] sm:$0xf]
  %v789 = vld [vmem:[%s1 + $0xbf8] sm:$0xf]
  %v790 = vld [vmem:[%s1 + $0xbfc] sm:$0xf]
  %v791 = vld [vmem:[%s1 + $0xc00] sm:$0xf]
  %v792 = vld [vmem:[%s1 + $0xc04] sm:$0xf]
  %v793 = vld [vmem:[%s1 + $0xc08] sm:$0xf]
  %v794 = vld [vmem:[%s1 + $0xc0c] sm:$0xf]
  %v795 = vld [vmem:[%s1 + $0xc10] sm:$0xf]
  %v796 = vld [vmem:[%s1 + $0xc14] sm:$0xf]
  %v797 = vld [vmem:[%s1 + $0xc18] sm:$0xf]
  %v798 = vld [vmem:[%s1 + $0xc1c] sm:$0xf]
  %v799 = vld [vmem:[%s1 + $0xc20] sm:$0xf]
  %v800 = vld [vmem:[%s1 + $0xc24] sm:$0xf]
  %v801 = vld [vmem:[%s1 + $0xc28] sm:$0xf]
  %v802 = vld [vmem:[%s1 + $0xc2c] sm:$0xf]
  %v803 = vld [vmem:[%s1 + $0xc30] sm:$0xf]
  %v804 = vld [vmem:[%s1 + $0xc34] sm:$0xf]
  %v805 = vld [vmem:[%s1 + $0xc38] sm:$0xf]
  %v806 = vld [vmem:[%s1 + $0xc3c] sm:$0xf]
  %v807 = vld [vmem:[%s1 + $0xc40] sm:$0xf]
  %v808 = vld [vmem:[%s1 + $0xc44] sm:$0xf]
  %v809 = vld [vmem:[%s1 + $0xc48] sm:$0xf]
  %v810 = vld [vmem:[%s1 + $0xc4c] sm:$0xf]
  %v811 = vld [vmem:[%s1 + $0xc50] sm:$0xf]
  %v812 = vld [vmem:[%s1 + $0xc54] sm:$0xf]
  %v813 = vld [vmem:[%s1 + $0xc58] sm:$0xf]
  %v814 = vld [vmem:[%s1 + $0xc5c] sm:$0xf]
  %v815 = vld [vmem:[%s1 + $0xc60] sm:$0xf]
  %v816 = vld [vmem:[%s1 + $0xc64] sm:$0xf]
  %v817 = vld [vmem:[%s1 + $0xc68] sm:$0xf]
  %v818 = vld [vmem:[%s1 + $0xc6c] sm:$0xf]
  %v819 = vld [vmem:[%s1 + $0xc70] sm:$0xf]
  %v820 = vld [vmem:[%s1 + $0xc74] sm:$0xf]
  %v821 = vld [vmem:[%s1 + $0xc78] sm:$0xf]
  %v822 = vld [vmem:[%s1 + $0xc7c] sm:$0xf]
  %v823 = vld [vmem:[%s1 + $0xc80] sm:$0xf]
  %v824 = vld [vmem:[%s1 + $0xc84] sm:$0xf]
  %v825 = vld [vmem:[%s1 + $0xc88] sm:$0xf]
  %v826 = vld [vmem:[%s1 + $0xc8c] sm:$0xf]
  %v827 = vld [vmem:[%s1 + $0xc90] sm:$0xf]
  %v828 = vld [vmem:[%s1 + $0xc94] sm:$0xf]
  %v829 = vld [vmem:[%s1 + $0xc98] sm:$0xf]
  %v830 = vld [vmem:[%s1 + $0xc9c] sm:$0xf]
  %v831 = vld [vmem:[%s1 + $0xca0] sm:$0xf]
  %v832 = vld [vmem:[%s1 + $0xca4] sm:$0xf]
  %v833 = vld [vmem:[%s1 + $0xca8] sm:$0xf]
  %v834 = vld [vmem:[%s1 + $0xcac] sm:$0xf]
  %v835 = vld [vmem:[%s1 + $0xcb0] sm:$0xf]
  %v836 = vld [vmem:[%s1 + $0xcb4] sm:$0xf]
  %v837 = vld [vmem:[%s1 + $0xcb8] sm:$0xf]
  %v838 = vld [vmem:[%s1 + $0xcbc] sm:$0xf]
  %v839 = vld [vmem:[%s1 + $0xcc0] sm:$0xf]
  %v840 = vld [vmem:[%s1 + $0xcc4] sm:$0xf]
  %v841 = vld [vmem:[%s1 + $0xcc8] sm:$0xf]
  %v842 = vld [vmem:[%s1 + $0xccc] sm:$0xf]
  %v843 = vld [vmem:[%s1 + $0xcd0] sm:$0xf]
  %v844 = vld [vmem:[%s1 + $0xcd4] sm:$0xf]
  %v845 = vld [vmem:[%s1 + $0xcd8] sm:$0xf]
  %v846 = vld [vmem:[%s1 + $0xcdc] sm:$0xf]
  %v847 = vld [vmem:[%s1 + $0xce0] sm:$0xf]
  %v848 = vld [vmem:[%s1 + $0xce4] sm:$0xf]
  %v849 = vld [vmem:[%s1 + $0xce8] sm:$0xf]
  %v850 = vld [vmem:[%s1 + $0xcec] sm:$0xf]
  %v851 = vld [vmem:[%s1 + $0xcf0] sm:$0xf]
  %v852 = vld [vmem:[%s1 + $0xcf4] sm:$0xf]
  %v853 = vld [vmem:[%s1 + $0xcf8] sm:$0xf]
  %v854 = vld [vmem:[%s1 + $0xcfc] sm:$0xf]
  %v855 = vld [vmem:[%s1 + $0xd00] sm:$0xf]
  %v856 = vld [vmem:[%s1 + $0xd04] sm:$0xf]
  %v857 = vld [vmem:[%s1 + $0xd08] sm:$0xf]
  %v858 = vld [vmem:[%s1 + $0xd0c] sm:$0xf]
  %v859 = vld [vmem:[%s1 + $0xd10] sm:$0xf]
  %v860 = vld [vmem:[%s1 + $0xd14] sm:$0xf]
  %v861 = vld [vmem:[%s1 + $0xd18] sm:$0xf]
  %v862 = vld [vmem:[%s1 + $0xd1c] sm:$0xf]
  %v863 = vld [vmem:[%s1 + $0xd20] sm:$0xf]
  %v864 = vld [vmem:[%s1 + $0xd24] sm:$0xf]
  %v865 = vld [vmem:[%s1 + $0xd28] sm:$0xf]
  %v866 = vld [vmem:[%s1 + $0xd2c] sm:$0xf]
  %v867 = vld [vmem:[%s1 + $0xd30] sm:$0xf]
  %v868 = vld [vmem:[%s1 + $0xd34] sm:$0xf]
  %v869 = vld [vmem:[%s1 + $0xd38] sm:$0xf]
  %v870 = vld [vmem:[%s1 + $0xd3c] sm:$0xf]
  %v871 = vld [vmem:[%s1 + $0xd40] sm:$0xf]
  %v872 = vld [vmem:[%s1 + $0xd44] sm:$0xf]
  %v873 = vld [vmem:[%s1 + $0xd48] sm:$0xf]
  %v874 = vld [vmem:[%s1 + $0xd4c] sm:$0xf]
  %v875 = vld [vmem:[%s1 + $0xd50] sm:$0xf]
  %v876 = vld [vmem:[%s1 + $0xd54] sm:$0xf]
  %v877 = vld [vmem:[%s1 + $0xd58] sm:$0xf]
  %v878 = vld [vmem:[%s1 + $0xd5c] sm:$0xf]
  %v879 = vld [vmem:[%s1 + $0xd60] sm:$0xf]
  %v880 = vld [vmem:[%s1 + $0xd64] sm:$0xf]
  %v881 = vld [vmem:[%s1 + $0xd68] sm:$0xf]
  %v882 = vld [vmem:[%s1 + $0xd6c] sm:$0xf]
  %v883 = vld [vmem:[%s1 + $0xd70] sm:$0xf]
  %v884 = vld [vmem:[%s1 + $0xd74] sm:$0xf]
  %v885 = vld [vmem:[%s1 + $0xd78] sm:$0xf]
  %v886 = vld [vmem:[%s1 + $0xd7c] sm:$0xf]
  %v887 = vld [vmem:[%s1 + $0xd80] sm:$0xf]
  %v888 = vld [vmem:[%s1 + $0xd84] sm:$0xf]
  %v889 = vld [vmem:[%s1 + $0xd88] sm:$0xf]
  %v890 = vld [vmem:[%s1 + $0xd8c] sm:$0xf]
  %v891 = vld [vmem:[%s1 + $0xd90] sm:$0xf]
  %v892 = vld [vmem:[%s1 + $0xd94] sm:$0xf]
  %v893 = vld [vmem:[%s1 + $0xd98] sm:$0xf]
  %v894 = vld [vmem:[%s1 + $0xd9c] sm:$0xf]
  %v895 = vld [vmem:[%s1 + $0xda0] sm:$0xf]
  %v896 = vld [vmem:[%s1 + $0xda4] sm:$0xf]
  %v897 = vld [vmem:[%s1 + $0xda8] sm:$0xf]
  %v898 = vld [vmem:[%s1 + $0xdac] sm:$0xf]
  %v899 = vld [vmem:[%s1 + $0xdb0] sm:$0xf]
  %v900 = vld [vmem:[%s1 + $0xdb4] sm:$0xf]
  %v901 = vld [vmem:[%s1 + $0xdb8] sm:$0xf]
  %v902 = vld [vmem:[%s1 + $0xdbc] sm:$0xf]
  %v903 = vld [vmem:[%s1 + $0xdc0] sm:$0xf]
  %v904 = vld [vmem:[%s1 + $0xdc4] sm:$0xf]
  %v905 = vld [vmem:[%s1 + $0xdc8] sm:$0xf]
  %v906 = vld [vmem:[%s1 + $0xdcc] sm:$0xf]
  %v907 = vld [vmem:[%s1 + $0xdd0] sm:$0xf]
  %v908 = vld [vmem:[%s1 + $0xdd4] sm:$0xf]
  %v909 = vld [vmem:[%s1 + $0xdd8] sm:$0xf]
  %v910 = vld [vmem:[%s1 + $0xddc] sm:$0xf]
  %v911 = vld [vmem:[%s1 + $0xde0] sm:$0xf]
  %v912 = vld [vmem:[%s1 + $0xde4] sm:$0xf]
  %v913 = vld [vmem:[%s1 + $0xde8] sm:$0xf]
  %v914 = vld [vmem:[%s1 + $0xdec] sm:$0xf]
  %v915 = vld [vmem:[%s1 + $0xdf0] sm:$0xf]
  %v916 = vld [vmem:[%s1 + $0xdf4] sm:$0xf]
  %v917 = vld [vmem:[%s1 + $0xdf8] sm:$0xf]
  %v918 = vld [vmem:[%s1 + $0xdfc] sm:$0xf]
  %v919 = vld [vmem:[%s1 + $0xe00] sm:$0xf]
  %v920 = vld [vmem:[%s1 + $0xe04] sm:$0xf]
  %v921 = vld [vmem:[%s1 + $0xe08] sm:$0xf]
  %v922 = vld [vmem:[%s1 + $0xe0c] sm:$0xf]
  %v923 = vld [vmem:[%s1 + $0xe10] sm:$0xf]
  %v924 = vld [vmem:[%s1 + $0xe14] sm:$0xf]
  %v925 = vld [vmem:[%s1 + $0xe18] sm:$0xf]
  %v926 = vld [vmem:[%s1 + $0xe1c] sm:$0xf]
  %v927 = vld [vmem:[%s1 + $0xe20] sm:$0xf]
  %v928 = vld [vmem:[%s1 + $0xe24] sm:$0xf]
  %v929 = vld [vmem:[%s1 + $0xe28] sm:$0xf]
  %v930 = vld [vmem:[%s1 + $0xe2c] sm:$0xf]
  %v931 = vld [vmem:[%s1 + $0xe30] sm:$0xf]
  %v932 = vld [vmem:[%s1 + $0xe34] sm:$0xf]
  %v933 = vld [vmem:[%s1 + $0xe38] sm:$0xf]
  %v934 = vld [vmem:[%s1 + $0xe3c] sm:$0xf]
  %v935 = vld [vmem:[%s1 + $0xe40] sm:$0xf]
  %v936 = vld [vmem:[%s1 + $0xe44] sm:$0xf]
  %v937 = vld [vmem:[%s1 + $0xe48] sm:$0xf]
  %v938 = vld [vmem:[%s1 + $0xe4c] sm:$0xf]
  %v939 = vld [vmem:[%s1 + $0xe50] sm:$0xf]
  %v940 = vld [vmem:[%s1 + $0xe54] sm:$0xf]
  %v941 = vld [vmem:[%s1 + $0xe58] sm:$0xf]
  %v942 = vld [vmem:[%s1 + $0xe5c] sm:$0xf]
  %v943 = vld [vmem:[%s1 + $0xe60] sm:$0xf]
  %v944 = vld [vmem:[%s1 + $0xe64] sm:$0xf]
  %v945 = vld [vmem:[%s1 + $0xe68] sm:$0xf]
  %v946 = vld [vmem:[%s1 + $0xe6c] sm:$0xf]
  %v947 = vld [vmem:[%s1 + $0xe70] sm:$0xf]
  %v948 = vld [vmem:[%s1 + $0xe74] sm:$0xf]
  %v949 = vld [vmem:[%s1 + $0xe78] sm:$0xf]
  %v950 = vld [vmem:[%s1 + $0xe7c] sm:$0xf]
  %v951 = vld [vmem:[%s1 + $0xe80] sm:$0xf]
  %v952 = vld [vmem:[%s1 + $0xe84] sm:$0xf]
  %v953 = vld [vmem:[%s1 + $0xe88] sm:$0xf]
  %v954 = vld [vmem:[%s1 + $0xe8c] sm:$0xf]
  %v955 = vld [vmem:[%s1 + $0xe90] sm:$0xf]
  %v956 = vld [vmem:[%s1 + $0xe94] sm:$0xf]
  %v957 = vld [vmem:[%s1 + $0xe98] sm:$0xf]
  %v958 = vld [vmem:[%s1 + $0xe9c] sm:$0xf]
  %v959 = vld [vmem:[%s1 + $0xea0] sm:$0xf]
  %v960 = vld [vmem:[%s1 + $0xea4] sm:$0xf]
  %v961 = vld [vmem:[%s1 + $0xea8] sm:$0xf]
  %v962 = vld [vmem:[%s1 + $0xeac] sm:$0xf]
  %v963 = vld [vmem:[%s1 + $0xeb0] sm:$0xf]
  %v964 = vld [vmem:[%s1 + $0xeb4] sm:$0xf]
  %v965 = vld [vmem:[%s1 + $0xeb8] sm:$0xf]
  %v966 = vld [vmem:[%s1 + $0xebc] sm:$0xf]
  %v967 = vld [vmem:[%s1 + $0xec0] sm:$0xf]
  %v968 = vld [vmem:[%s1 + $0xec4] sm:$0xf]
  %v969 = vld [vmem:[%s1 + $0xec8] sm:$0xf]
  %v970 = vld [vmem:[%s1 + $0xecc] sm:$0xf]
  %v971 = vld [vmem:[%s1 + $0xed0] sm:$0xf]
  %v972 = vld [vmem:[%s1 + $0xed4] sm:$0xf]
  %v973 = vld [vmem:[%s1 + $0xed8] sm:$0xf]
  %v974 = vld [vmem:[%s1 + $0xedc] sm:$0xf]
  %v975 = vld [vmem:[%s1 + $0xee0] sm:$0xf]
  %v976 = vld [vmem:[%s1 + $0xee4] sm:$0xf]
  %v977 = vld [vmem:[%s1 + $0xee8] sm:$0xf]
  %v978 = vld [vmem:[%s1 + $0xeec] sm:$0xf]
  %v979 = vld [vmem:[%s1 + $0xef0] sm:$0xf]
  %v980 = vld [vmem:[%s1 + $0xef4] sm:$0xf]
  %v981 = vld [vmem:[%s1 + $0xef8] sm:$0xf]
  %v982 = vld [vmem:[%s1 + $0xefc] sm:$0xf]
  %v983 = vld [vmem:[%s1 + $0xf00] sm:$0xf]
  %v984 = vld [vmem:[%s1 + $0xf04] sm:$0xf]
  %v985 = vld [vmem:[%s1 + $0xf08] sm:$0xf]
  %v986 = vld [vmem:[%s1 + $0xf0c] sm:$0xf]
  %v987 = vld [vmem:[%s1 + $0xf10] sm:$0xf]
  %v988 = vld [vmem:[%s1 + $0xf14] sm:$0xf]
  %v989 = vld [vmem:[%s1 + $0xf18] sm:$0xf]
  %v990 = vld [vmem:[%s1 + $0xf1c] sm:$0xf]
  %v991 = vld [vmem:[%s1 + $0xf20] sm:$0xf]
  %v992 = vld [vmem:[%s1 + $0xf24] sm:$0xf]
  %v993 = vld [vmem:[%s1 + $0xf28] sm:$0xf]
  %v994 = vld [vmem:[%s1 + $0xf2c] sm:$0xf]
  %v995 = vld [vmem:[%s1 + $0xf30] sm:$0xf]
  %v996 = vld [vmem:[%s1 + $0xf34] sm:$0xf]
  %v997 = vld [vmem:[%s1 + $0xf38] sm:$0xf]
  %v998 = vld [vmem:[%s1 + $0xf3c] sm:$0xf]
  %v999 = vld [vmem:[%s1 + $0xf40] sm:$0xf]
  %v1000 = vld [vmem:[%s1 + $0xf44] sm:$0xf]
  %v1001 = vld [vmem:[%s1 + $0xf48] sm:$0xf]
  %v1002 = vld [vmem:[%s1 + $0xf4c] sm:$0xf]
  %v1003 = vld [vmem:[%s1 + $0xf50] sm:$0xf]
  %v1004 = vld [vmem:[%s1 + $0xf54] sm:$0xf]
  %v1005 = vld [vmem:[%s1 + $0xf58] sm:$0xf]
  %v1006 = vld [vmem:[%s1 + $0xf5c] sm:$0xf]
  %v1007 = vld [vmem:[%s1 + $0xf60] sm:$0xf]
  %v1008 = vld [vmem:[%s1 + $0xf64] sm:$0xf]
  %v1009 = vld [vmem:[%s1 + $0xf68] sm:$0xf]
  %v1010 = vld [vmem:[%s1 + $0xf6c] sm:$0xf]
  %v1011 = vld [vmem:[%s1 + $0xf70] sm:$0xf]
  %v1012 = vld [vmem:[%s1 + $0xf74] sm:$0xf]
  %v1013 = vld [vmem:[%s1 + $0xf78] sm:$0xf]
  %v1014 = vld [vmem:[%s1 + $0xf7c] sm:$0xf]
  %v1015 = vld [vmem:[%s1 + $0xf80] sm:$0xf]
  %v1016 = vld [vmem:[%s1 + $0xf84] sm:$0xf]
  %v1017 = vld [vmem:[%s1 + $0xf88] sm:$0xf]
  %v1018 = vld [vmem:[%s1 + $0xf8c] sm:$0xf]
  %v1019 = vld [vmem:[%s1 + $0xf90] sm:$0xf]
  %v1020 = vld [vmem:[%s1 + $0xf94] sm:$0xf]
  %v1021 = vld [vmem:[%s1 + $0xf98] sm:$0xf]
  %v1022 = vld [vmem:[%s1 + $0xf9c] sm:$0xf]
  %v1023 = vld [vmem:[%s1 + $0xfa0] sm:$0xf]
  %v1024 = vld [vmem:[%s1 + $0xfa4] sm:$0xf]
  %v1025 = vld [vmem:[%s1 + $0xfa8] sm:$0xf]
  %v1026 = vld [vmem:[%s1 + $0xfac] sm:$0xf]
  %v1027 = vld [vmem:[%s1 + $0xfb0] sm:$0xf]
  %v1028 = vld [vmem:[%s1 + $0xfb4] sm:$0xf]
  %v1029 = vld [vmem:[%s1 + $0xfb8] sm:$0xf]
  %v1030 = vld [vmem:[%s1 + $0xfbc] sm:$0xf]
  %v1031 = vld [vmem:[%s1 + $0xfc0] sm:$0xf]
  %v1032 = vld [vmem:[%s1 + $0xfc4] sm:$0xf]
  %v1033 = vld [vmem:[%s1 + $0xfc8] sm:$0xf]
  %v1034 = vld [vmem:[%s1 + $0xfcc] sm:$0xf]
  %v1035 = vld [vmem:[%s1 + $0xfd0] sm:$0xf]
  %v1036 = vld [vmem:[%s1 + $0xfd4] sm:$0xf]
  %v1037 = vld [vmem:[%s1 + $0xfd8] sm:$0xf]
  %v1038 = vld [vmem:[%s1 + $0xfdc] sm:$0xf]
  %v1039 = vld [vmem:[%s1 + $0xfe0] sm:$0xf]
  %v1040 = vld [vmem:[%s1 + $0xfe4] sm:$0xf]
  %v1041 = vld [vmem:[%s1 + $0xfe8] sm:$0xf]
  %v1042 = vld [vmem:[%s1 + $0xfec] sm:$0xf]
  %v1043 = vld [vmem:[%s1 + $0xff0] sm:$0xf]
  %v1044 = vld [vmem:[%s1 + $0xff4] sm:$0xf]
  %v1045 = vld [vmem:[%s1 + $0xff8] sm:$0xf]
  %v1046 = vld [vmem:[%s1 + $0xffc] sm:$0xf]
  %v1047 = vld [vmem:[%s2] sm:$0x1]
  %v1049 = vlaneseq
  %v1050 = vshrl.u32 %v1049, 7
  %v1051 = vsub.s32 0, %v1050
  %v1052 = vrot.slane %v1047, %v1051
  %v1062 = vcombine.high %v15, %v15
  %v1064 = vunpack.c.l.s4 1966171168
  %v1065 = vunpack.c.0.s8 %v1064
  %v1066 = vlaneseq
  %v1067 = vshrl.u32 %v1066, 7
  %v1068 = vsub.s32 %v1065, %v1067
  %v1069 = vrot.slane %v15, %v1068
  %v1071 = vunpack.c.l.s4 1966171168
  %v1072 = vunpack.c.0.s8 %v1071
  %v1073 = vlaneseq
  %v1074 = vshrl.u32 %v1073, 7
  %v1075 = vsub.s32 %v1072, %v1074
  %v1076 = vrot.slane %v1062, %v1075
  %v1077 = vcombine.high %v1069, %v1069
  %v1078 = vcombine.high %v1076, %v1076
  %v1080 = vunpack.c.l.s4 1966171168
  %v1081 = vunpack.c.0.s8 %v1080
  %v1082 = vlaneseq
  %v1083 = vshrl.u32 %v1082, 7
  %v1084 = vsub.s32 %v1081, %v1083
  %v1085 = vrot.slane %v1069, %v1084
  %v1087 = vunpack.c.l.s4 1966171168
  %v1088 = vunpack.c.0.s8 %v1087
  %v1089 = vlaneseq
  %v1090 = vshrl.u32 %v1089, 7
  %v1091 = vsub.s32 %v1088, %v1090
  %v1092 = vrot.slane %v1076, %v1091
  %v1094 = vunpack.c.l.s4 1966171168
  %v1095 = vunpack.c.0.s8 %v1094
  %v1096 = vlaneseq
  %v1097 = vshrl.u32 %v1096, 7
  %v1098 = vsub.s32 %v1095, %v1097
  %v1099 = vrot.slane %v1077, %v1098
  %v1101 = vunpack.c.l.s4 1966171168
  %v1102 = vunpack.c.0.s8 %v1101
  %v1103 = vlaneseq
  %v1104 = vshrl.u32 %v1103, 7
  %v1105 = vsub.s32 %v1102, %v1104
  %v1106 = vrot.slane %v1078, %v1105
  %v1107 = vcombine.high %v1085, %v1085
  %v1108 = vcombine.high %v1092, %v1092
  %v1109 = vcombine.high %v1099, %v1099
  %v1110 = vcombine.high %v1106, %v1106
  %v1111 = vcombine.high %v16, %v16
  %v1113 = vunpack.c.l.s4 1966171168
  %v1114 = vunpack.c.0.s8 %v1113
  %v1115 = vlaneseq
  %v1116 = vshrl.u32 %v1115, 7
  %v1117 = vsub.s32 %v1114, %v1116
  %v1118 = vrot.slane %v16, %v1117
  %v1120 = vunpack.c.l.s4 1966171168
  %v1121 = vunpack.c.0.s8 %v1120
  %v1122 = vlaneseq
  %v1123 = vshrl.u32 %v1122, 7
  %v1124 = vsub.s32 %v1121, %v1123
  %v1125 = vrot.slane %v1111, %v1124
  %v1126 = vcombine.high %v1118, %v1118
  %v1127 = vcombine.high %v1125, %v1125
  %v1129 = vunpack.c.l.s4 1966171168
  %v1130 = vunpack.c.0.s8 %v1129
  %v1131 = vlaneseq
  %v1132 = vshrl.u32 %v1131, 7
  %v1133 = vsub.s32 %v1130, %v1132
  %v1134 = vrot.slane %v1118, %v1133
  %v1136 = vunpack.c.l.s4 1966171168
  %v1137 = vunpack.c.0.s8 %v1136
  %v1138 = vlaneseq
  %v1139 = vshrl.u32 %v1138, 7
  %v1140 = vsub.s32 %v1137, %v1139
  %v1141 = vrot.slane %v1125, %v1140
  %v1143 = vunpack.c.l.s4 1966171168
  %v1144 = vunpack.c.0.s8 %v1143
  %v1145 = vlaneseq
  %v1146 = vshrl.u32 %v1145, 7
  %v1147 = vsub.s32 %v1144, %v1146
  %v1148 = vrot.slane %v1126, %v1147
  %v1150 = vunpack.c.l.s4 1966171168
  %v1151 = vunpack.c.0.s8 %v1150
  %v1152 = vlaneseq
  %v1153 = vshrl.u32 %v1152, 7
  %v1154 = vsub.s32 %v1151, %v1153
  %v1155 = vrot.slane %v1127, %v1154
  %v1156 = vcombine.high %v1134, %v1134
  %v1157 = vcombine.high %v1141, %v1141
  %v1158 = vcombine.high %v1148, %v1148
  %v1159 = vcombine.high %v1155, %v1155
  %v1160 = vcombine.high %v17, %v17
  %v1162 = vunpack.c.l.s4 1966171168
  %v1163 = vunpack.c.0.s8 %v1162
  %v1164 = vlaneseq
  %v1165 = vshrl.u32 %v1164, 7
  %v1166 = vsub.s32 %v1163, %v1165
  %v1167 = vrot.slane %v17, %v1166
  %v1169 = vunpack.c.l.s4 1966171168
  %v1170 = vunpack.c.0.s8 %v1169
  %v1171 = vlaneseq
  %v1172 = vshrl.u32 %v1171, 7
  %v1173 = vsub.s32 %v1170, %v1172
  %v1174 = vrot.slane %v1160, %v1173
  %v1175 = vcombine.high %v1167, %v1167
  %v1176 = vcombine.high %v1174, %v1174
  %v1178 = vunpack.c.l.s4 1966171168
  %v1179 = vunpack.c.0.s8 %v1178
  %v1180 = vlaneseq
  %v1181 = vshrl.u32 %v1180, 7
  %v1182 = vsub.s32 %v1179, %v1181
  %v1183 = vrot.slane %v1167, %v1182
  %v1185 = vunpack.c.l.s4 1966171168
  %v1186 = vunpack.c.0.s8 %v1185
  %v1187 = vlaneseq
  %v1188 = vshrl.u32 %v1187, 7
  %v1189 = vsub.s32 %v1186, %v1188
  %v1190 = vrot.slane %v1174, %v1189
  %v1192 = vunpack.c.l.s4 1966171168
  %v1193 = vunpack.c.0.s8 %v1192
  %v1194 = vlaneseq
  %v1195 = vshrl.u32 %v1194, 7
  %v1196 = vsub.s32 %v1193, %v1195
  %v1197 = vrot.slane %v1175, %v1196
  %v1199 = vunpack.c.l.s4 1966171168
  %v1200 = vunpack.c.0.s8 %v1199
  %v1201 = vlaneseq
  %v1202 = vshrl.u32 %v1201, 7
  %v1203 = vsub.s32 %v1200, %v1202
  %v1204 = vrot.slane %v1176, %v1203
  %v1205 = vcombine.high %v1183, %v1183
  %v1206 = vcombine.high %v1190, %v1190
  %v1207 = vcombine.high %v1197, %v1197
  %v1208 = vcombine.high %v1204, %v1204
  %v1209 = vcombine.high %v18, %v18
  %v1211 = vunpack.c.l.s4 1966171168
  %v1212 = vunpack.c.0.s8 %v1211
  %v1213 = vlaneseq
  %v1214 = vshrl.u32 %v1213, 7
  %v1215 = vsub.s32 %v1212, %v1214
  %v1216 = vrot.slane %v18, %v1215
  %v1218 = vunpack.c.l.s4 1966171168
  %v1219 = vunpack.c.0.s8 %v1218
  %v1220 = vlaneseq
  %v1221 = vshrl.u32 %v1220, 7
  %v1222 = vsub.s32 %v1219, %v1221
  %v1223 = vrot.slane %v1209, %v1222
  %v1224 = vcombine.high %v1216, %v1216
  %v1225 = vcombine.high %v1223, %v1223
  %v1227 = vunpack.c.l.s4 1966171168
  %v1228 = vunpack.c.0.s8 %v1227
  %v1229 = vlaneseq
  %v1230 = vshrl.u32 %v1229, 7
  %v1231 = vsub.s32 %v1228, %v1230
  %v1232 = vrot.slane %v1216, %v1231
  %v1234 = vunpack.c.l.s4 1966171168
  %v1235 = vunpack.c.0.s8 %v1234
  %v1236 = vlaneseq
  %v1237 = vshrl.u32 %v1236, 7
  %v1238 = vsub.s32 %v1235, %v1237
  %v1239 = vrot.slane %v1223, %v1238
  %v1241 = vunpack.c.l.s4 1966171168
  %v1242 = vunpack.c.0.s8 %v1241
  %v1243 = vlaneseq
  %v1244 = vshrl.u32 %v1243, 7
  %v1245 = vsub.s32 %v1242, %v1244
  %v1246 = vrot.slane %v1224, %v1245
  %v1248 = vunpack.c.l.s4 1966171168
  %v1249 = vunpack.c.0.s8 %v1248
  %v1250 = vlaneseq
  %v1251 = vshrl.u32 %v1250, 7
  %v1252 = vsub.s32 %v1249, %v1251
  %v1253 = vrot.slane %v1225, %v1252
  %v1254 = vcombine.high %v1232, %v1232
  %v1255 = vcombine.high %v1239, %v1239
  %v1256 = vcombine.high %v1246, %v1246
  %v1257 = vcombine.high %v1253, %v1253
  %v1258 = vcombine.high %v19, %v19
  %v1260 = vunpack.c.l.s4 1966171168
  %v1261 = vunpack.c.0.s8 %v1260
  %v1262 = vlaneseq
  %v1263 = vshrl.u32 %v1262, 7
  %v1264 = vsub.s32 %v1261, %v1263
  %v1265 = vrot.slane %v19, %v1264
  %v1267 = vunpack.c.l.s4 1966171168
  %v1268 = vunpack.c.0.s8 %v1267
  %v1269 = vlaneseq
  %v1270 = vshrl.u32 %v1269, 7
  %v1271 = vsub.s32 %v1268, %v1270
  %v1272 = vrot.slane %v1258, %v1271
  %v1273 = vcombine.high %v1265, %v1265
  %v1274 = vcombine.high %v1272, %v1272
  %v1276 = vunpack.c.l.s4 1966171168
  %v1277 = vunpack.c.0.s8 %v1276
  %v1278 = vlaneseq
  %v1279 = vshrl.u32 %v1278, 7
  %v1280 = vsub.s32 %v1277, %v1279
  %v1281 = vrot.slane %v1265, %v1280
  %v1283 = vunpack.c.l.s4 1966171168
  %v1284 = vunpack.c.0.s8 %v1283
  %v1285 = vlaneseq
  %v1286 = vshrl.u32 %v1285, 7
  %v1287 = vsub.s32 %v1284, %v1286
  %v1288 = vrot.slane %v1272, %v1287
  %v1290 = vunpack.c.l.s4 1966171168
  %v1291 = vunpack.c.0.s8 %v1290
  %v1292 = vlaneseq
  %v1293 = vshrl.u32 %v1292, 7
  %v1294 = vsub.s32 %v1291, %v1293
  %v1295 = vrot.slane %v1273, %v1294
  %v1297 = vunpack.c.l.s4 1966171168
  %v1298 = vunpack.c.0.s8 %v1297
  %v1299 = vlaneseq
  %v1300 = vshrl.u32 %v1299, 7
  %v1301 = vsub.s32 %v1298, %v1300
  %v1302 = vrot.slane %v1274, %v1301
  %v1303 = vcombine.high %v1281, %v1281
  %v1304 = vcombine.high %v1288, %v1288
  %v1305 = vcombine.high %v1295, %v1295
  %v1306 = vcombine.high %v1302, %v1302
  %v1307 = vcombine.high %v20, %v20
  %v1309 = vunpack.c.l.s4 1966171168
  %v1310 = vunpack.c.0.s8 %v1309
  %v1311 = vlaneseq
  %v1312 = vshrl.u32 %v1311, 7
  %v1313 = vsub.s32 %v1310, %v1312
  %v1314 = vrot.slane %v20, %v1313
  %v1316 = vunpack.c.l.s4 1966171168
  %v1317 = vunpack.c.0.s8 %v1316
  %v1318 = vlaneseq
  %v1319 = vshrl.u32 %v1318, 7
  %v1320 = vsub.s32 %v1317, %v1319
  %v1321 = vrot.slane %v1307, %v1320
  %v1322 = vcombine.high %v1314, %v1314
  %v1323 = vcombine.high %v1321, %v1321
  %v1325 = vunpack.c.l.s4 1966171168
  %v1326 = vunpack.c.0.s8 %v1325
  %v1327 = vlaneseq
  %v1328 = vshrl.u32 %v1327, 7
  %v1329 = vsub.s32 %v1326, %v1328
  %v1330 = vrot.slane %v1314, %v1329
  %v1332 = vunpack.c.l.s4 1966171168
  %v1333 = vunpack.c.0.s8 %v1332
  %v1334 = vlaneseq
  %v1335 = vshrl.u32 %v1334, 7
  %v1336 = vsub.s32 %v1333, %v1335
  %v1337 = vrot.slane %v1321, %v1336
  %v1339 = vunpack.c.l.s4 1966171168
  %v1340 = vunpack.c.0.s8 %v1339
  %v1341 = vlaneseq
  %v1342 = vshrl.u32 %v1341, 7
  %v1343 = vsub.s32 %v1340, %v1342
  %v1344 = vrot.slane %v1322, %v1343
  %v1346 = vunpack.c.l.s4 1966171168
  %v1347 = vunpack.c.0.s8 %v1346
  %v1348 = vlaneseq
  %v1349 = vshrl.u32 %v1348, 7
  %v1350 = vsub.s32 %v1347, %v1349
  %v1351 = vrot.slane %v1323, %v1350
  %v1352 = vcombine.high %v1330, %v1330
  %v1353 = vcombine.high %v1337, %v1337
  %v1354 = vcombine.high %v1344, %v1344
  %v1355 = vcombine.high %v1351, %v1351
  %v1356 = vcombine.high %v21, %v21
  %v1358 = vunpack.c.l.s4 1966171168
  %v1359 = vunpack.c.0.s8 %v1358
  %v1360 = vlaneseq
  %v1361 = vshrl.u32 %v1360, 7
  %v1362 = vsub.s32 %v1359, %v1361
  %v1363 = vrot.slane %v21, %v1362
  %v1365 = vunpack.c.l.s4 1966171168
  %v1366 = vunpack.c.0.s8 %v1365
  %v1367 = vlaneseq
  %v1368 = vshrl.u32 %v1367, 7
  %v1369 = vsub.s32 %v1366, %v1368
  %v1370 = vrot.slane %v1356, %v1369
  %v1371 = vcombine.high %v1363, %v1363
  %v1372 = vcombine.high %v1370, %v1370
  %v1374 = vunpack.c.l.s4 1966171168
  %v1375 = vunpack.c.0.s8 %v1374
  %v1376 = vlaneseq
  %v1377 = vshrl.u32 %v1376, 7
  %v1378 = vsub.s32 %v1375, %v1377
  %v1379 = vrot.slane %v1363, %v1378
  %v1381 = vunpack.c.l.s4 1966171168
  %v1382 = vunpack.c.0.s8 %v1381
  %v1383 = vlaneseq
  %v1384 = vshrl.u32 %v1383, 7
  %v1385 = vsub.s32 %v1382, %v1384
  %v1386 = vrot.slane %v1370, %v1385
  %v1388 = vunpack.c.l.s4 1966171168
  %v1389 = vunpack.c.0.s8 %v1388
  %v1390 = vlaneseq
  %v1391 = vshrl.u32 %v1390, 7
  %v1392 = vsub.s32 %v1389, %v1391
  %v1393 = vrot.slane %v1371, %v1392
  %v1395 = vunpack.c.l.s4 1966171168
  %v1396 = vunpack.c.0.s8 %v1395
  %v1397 = vlaneseq
  %v1398 = vshrl.u32 %v1397, 7
  %v1399 = vsub.s32 %v1396, %v1398
  %v1400 = vrot.slane %v1372, %v1399
  %v1401 = vcombine.high %v1379, %v1379
  %v1402 = vcombine.high %v1386, %v1386
  %v1403 = vcombine.high %v1393, %v1393
  %v1404 = vcombine.high %v1400, %v1400
  %v1405 = vcombine.high %v22, %v22
  %v1407 = vunpack.c.l.s4 1966171168
  %v1408 = vunpack.c.0.s8 %v1407
  %v1409 = vlaneseq
  %v1410 = vshrl.u32 %v1409, 7
  %v1411 = vsub.s32 %v1408, %v1410
  %v1412 = vrot.slane %v22, %v1411
  %v1414 = vunpack.c.l.s4 1966171168
  %v1415 = vunpack.c.0.s8 %v1414
  %v1416 = vlaneseq
  %v1417 = vshrl.u32 %v1416, 7
  %v1418 = vsub.s32 %v1415, %v1417
  %v1419 = vrot.slane %v1405, %v1418
  %v1420 = vcombine.high %v1412, %v1412
  %v1421 = vcombine.high %v1419, %v1419
  %v1423 = vunpack.c.l.s4 1966171168
  %v1424 = vunpack.c.0.s8 %v1423
  %v1425 = vlaneseq
  %v1426 = vshrl.u32 %v1425, 7
  %v1427 = vsub.s32 %v1424, %v1426
  %v1428 = vrot.slane %v1412, %v1427
  %v1430 = vunpack.c.l.s4 1966171168
  %v1431 = vunpack.c.0.s8 %v1430
  %v1432 = vlaneseq
  %v1433 = vshrl.u32 %v1432, 7
  %v1434 = vsub.s32 %v1431, %v1433
  %v1435 = vrot.slane %v1419, %v1434
  %v1437 = vunpack.c.l.s4 1966171168
  %v1438 = vunpack.c.0.s8 %v1437
  %v1439 = vlaneseq
  %v1440 = vshrl.u32 %v1439, 7
  %v1441 = vsub.s32 %v1438, %v1440
  %v1442 = vrot.slane %v1420, %v1441
  %v1444 = vunpack.c.l.s4 1966171168
  %v1445 = vunpack.c.0.s8 %v1444
  %v1446 = vlaneseq
  %v1447 = vshrl.u32 %v1446, 7
  %v1448 = vsub.s32 %v1445, %v1447
  %v1449 = vrot.slane %v1421, %v1448
  %v1450 = vcombine.high %v1428, %v1428
  %v1451 = vcombine.high %v1435, %v1435
  %v1452 = vcombine.high %v1442, %v1442
  %v1453 = vcombine.high %v1449, %v1449
  %v2542 = vunpack.c.l.b16 %v23
  %v2543 = vunpack.c.l.b16 %v24
  %v2544 = vunpack.c.l.b16 %v25
  %v2545 = vunpack.c.l.b16 %v26
  %v2546 = vunpack.c.l.b16 %v27
  %v2547 = vunpack.c.l.b16 %v28
  %v2548 = vunpack.c.l.b16 %v29
  %v2549 = vunpack.c.l.b16 %v30
  %v2550 = vunpack.c.l.b16 %v31
  %v2551 = vunpack.c.l.b16 %v32
  %v2552 = vunpack.c.l.b16 %v33
  %v2553 = vunpack.c.l.b16 %v34
  %v2554 = vunpack.c.l.b16 %v35
  %v2555 = vunpack.c.l.b16 %v36
  %v2556 = vunpack.c.l.b16 %v37
  %v2557 = vunpack.c.l.b16 %v38
  %v2558 = vunpack.c.l.b16 %v39
  %v2559 = vunpack.c.l.b16 %v40
  %v2560 = vunpack.c.l.b16 %v41
  %v2561 = vunpack.c.l.b16 %v42
  %v2562 = vunpack.c.l.b16 %v43
  %v2563 = vunpack.c.l.b16 %v44
  %v2564 = vunpack.c.l.b16 %v45
  %v2565 = vunpack.c.l.b16 %v46
  %v2566 = vunpack.c.l.b16 %v47
  %v2567 = vunpack.c.l.b16 %v48
  %v2568 = vunpack.c.l.b16 %v49
  %v2569 = vunpack.c.l.b16 %v50
  %v2570 = vunpack.c.l.b16 %v51
  %v2571 = vunpack.c.l.b16 %v52
  %v2572 = vunpack.c.l.b16 %v53
  %v2573 = vunpack.c.l.b16 %v54
  %v2574 = vunpack.c.l.b16 %v55
  %v2575 = vunpack.c.l.b16 %v56
  %v2576 = vunpack.c.l.b16 %v57
  %v2577 = vunpack.c.l.b16 %v58
  %v2578 = vunpack.c.l.b16 %v59
  %v2579 = vunpack.c.l.b16 %v60
  %v2580 = vunpack.c.l.b16 %v61
  %v2581 = vunpack.c.l.b16 %v62
  %v2582 = vunpack.c.l.b16 %v63
  %v2583 = vunpack.c.l.b16 %v64
  %v2584 = vunpack.c.l.b16 %v65
  %v2585 = vunpack.c.l.b16 %v66
  %v2586 = vunpack.c.l.b16 %v67
  %v2587 = vunpack.c.l.b16 %v68
  %v2588 = vunpack.c.l.b16 %v69
  %v2589 = vunpack.c.l.b16 %v70
  %v2590 = vunpack.c.l.b16 %v71
  %v2591 = vunpack.c.l.b16 %v72
  %v2592 = vunpack.c.l.b16 %v73
  %v2593 = vunpack.c.l.b16 %v74
  %v2594 = vunpack.c.l.b16 %v75
  %v2595 = vunpack.c.l.b16 %v76
  %v2596 = vunpack.c.l.b16 %v77
  %v2597 = vunpack.c.l.b16 %v78
  %v2598 = vunpack.c.l.b16 %v79
  %v2599 = vunpack.c.l.b16 %v80
  %v2600 = vunpack.c.l.b16 %v81
  %v2601 = vunpack.c.l.b16 %v82
  %v2602 = vunpack.c.l.b16 %v83
  %v2603 = vunpack.c.l.b16 %v84
  %v2604 = vunpack.c.l.b16 %v85
  %v2605 = vunpack.c.l.b16 %v86
  %v2606 = vunpack.c.l.b16 %v87
  %v2607 = vunpack.c.l.b16 %v88
  %v2608 = vunpack.c.l.b16 %v89
  %v2609 = vunpack.c.l.b16 %v90
  %v2610 = vunpack.c.l.b16 %v91
  %v2611 = vunpack.c.l.b16 %v92
  %v2612 = vunpack.c.l.b16 %v93
  %v2613 = vunpack.c.l.b16 %v94
  %v2614 = vunpack.c.l.b16 %v95
  %v2615 = vunpack.c.l.b16 %v96
  %v2616 = vunpack.c.l.b16 %v97
  %v2617 = vunpack.c.l.b16 %v98
  %v2618 = vunpack.c.l.b16 %v99
  %v2619 = vunpack.c.l.b16 %v100
  %v2620 = vunpack.c.l.b16 %v101
  %v2621 = vunpack.c.l.b16 %v102
  %v2622 = vunpack.c.l.b16 %v103
  %v2623 = vunpack.c.l.b16 %v104
  %v2624 = vunpack.c.l.b16 %v105
  %v2625 = vunpack.c.l.b16 %v106
  %v2626 = vunpack.c.l.b16 %v107
  %v2627 = vunpack.c.l.b16 %v108
  %v2628 = vunpack.c.l.b16 %v109
  %v2629 = vunpack.c.l.b16 %v110
  %v2630 = vunpack.c.l.b16 %v111
  %v2631 = vunpack.c.l.b16 %v112
  %v2632 = vunpack.c.l.b16 %v113
  %v2633 = vunpack.c.l.b16 %v114
  %v2634 = vunpack.c.l.b16 %v115
  %v2635 = vunpack.c.l.b16 %v116
  %v2636 = vunpack.c.l.b16 %v117
  %v2637 = vunpack.c.l.b16 %v118
  %v2638 = vunpack.c.l.b16 %v119
  %v2639 = vunpack.c.l.b16 %v120
  %v2640 = vunpack.c.l.b16 %v121
  %v2641 = vunpack.c.l.b16 %v122
  %v2642 = vunpack.c.l.b16 %v123
  %v2643 = vunpack.c.l.b16 %v124
  %v2644 = vunpack.c.l.b16 %v125
  %v2645 = vunpack.c.l.b16 %v126
  %v2646 = vunpack.c.l.b16 %v127
  %v2647 = vunpack.c.l.b16 %v128
  %v2648 = vunpack.c.l.b16 %v129
  %v2649 = vunpack.c.l.b16 %v130
  %v2650 = vunpack.c.l.b16 %v131
  %v2651 = vunpack.c.l.b16 %v132
  %v2652 = vunpack.c.l.b16 %v133
  %v2653 = vunpack.c.l.b16 %v134
  %v2654 = vunpack.c.l.b16 %v135
  %v2655 = vunpack.c.l.b16 %v136
  %v2656 = vunpack.c.l.b16 %v137
  %v2657 = vunpack.c.l.b16 %v138
  %v2658 = vunpack.c.l.b16 %v139
  %v2659 = vunpack.c.l.b16 %v140
  %v2660 = vunpack.c.l.b16 %v141
  %v2661 = vunpack.c.l.b16 %v142
  %v2662 = vunpack.c.l.b16 %v143
  %v2663 = vunpack.c.l.b16 %v144
  %v2664 = vunpack.c.l.b16 %v145
  %v2665 = vunpack.c.l.b16 %v146
  %v2666 = vunpack.c.l.b16 %v147
  %v2667 = vunpack.c.l.b16 %v148
  %v2668 = vunpack.c.l.b16 %v149
  %v2669 = vunpack.c.l.b16 %v150
  %v2670 = vunpack.c.l.b16 %v151
  %v2671 = vunpack.c.l.b16 %v152
  %v2672 = vunpack.c.l.b16 %v153
  %v2673 = vunpack.c.l.b16 %v154
  %v2674 = vunpack.c.l.b16 %v155
  %v2675 = vunpack.c.l.b16 %v156
  %v2676 = vunpack.c.l.b16 %v157
  %v2677 = vunpack.c.l.b16 %v158
  %v2678 = vunpack.c.l.b16 %v159
  %v2679 = vunpack.c.l.b16 %v160
  %v2680 = vunpack.c.l.b16 %v161
  %v2681 = vunpack.c.l.b16 %v162
  %v2682 = vunpack.c.l.b16 %v163
  %v2683 = vunpack.c.l.b16 %v164
  %v2684 = vunpack.c.l.b16 %v165
  %v2685 = vunpack.c.l.b16 %v166
  %v2686 = vunpack.c.l.b16 %v167
  %v2687 = vunpack.c.l.b16 %v168
  %v2688 = vunpack.c.l.b16 %v169
  %v2689 = vunpack.c.l.b16 %v170
  %v2690 = vunpack.c.l.b16 %v171
  %v2691 = vunpack.c.l.b16 %v172
  %v2692 = vunpack.c.l.b16 %v173
  %v2693 = vunpack.c.l.b16 %v174
  %v2694 = vunpack.c.l.b16 %v175
  %v2695 = vunpack.c.l.b16 %v176
  %v2696 = vunpack.c.l.b16 %v177
  %v2697 = vunpack.c.l.b16 %v178
  %v2698 = vunpack.c.l.b16 %v179
  %v2699 = vunpack.c.l.b16 %v180
  %v2700 = vunpack.c.l.b16 %v181
  %v2701 = vunpack.c.l.b16 %v182
  %v2702 = vunpack.c.l.b16 %v183
  %v2703 = vunpack.c.l.b16 %v184
  %v2704 = vunpack.c.l.b16 %v185
  %v2705 = vunpack.c.l.b16 %v186
  %v2706 = vunpack.c.l.b16 %v187
  %v2707 = vunpack.c.l.b16 %v188
  %v2708 = vunpack.c.l.b16 %v189
  %v2709 = vunpack.c.l.b16 %v190
  %v2710 = vunpack.c.l.b16 %v191
  %v2711 = vunpack.c.l.b16 %v192
  %v2712 = vunpack.c.l.b16 %v193
  %v2713 = vunpack.c.l.b16 %v194
  %v2714 = vunpack.c.l.b16 %v195
  %v2715 = vunpack.c.l.b16 %v196
  %v2716 = vunpack.c.l.b16 %v197
  %v2717 = vunpack.c.l.b16 %v198
  %v2718 = vunpack.c.l.b16 %v199
  %v2719 = vunpack.c.l.b16 %v200
  %v2720 = vunpack.c.l.b16 %v201
  %v2721 = vunpack.c.l.b16 %v202
  %v2722 = vunpack.c.l.b16 %v203
  %v2723 = vunpack.c.l.b16 %v204
  %v2724 = vunpack.c.l.b16 %v205
  %v2725 = vunpack.c.l.b16 %v206
  %v2726 = vunpack.c.l.b16 %v207
  %v2727 = vunpack.c.l.b16 %v208
  %v2728 = vunpack.c.l.b16 %v209
  %v2729 = vunpack.c.l.b16 %v210
  %v2730 = vunpack.c.l.b16 %v211
  %v2731 = vunpack.c.l.b16 %v212
  %v2732 = vunpack.c.l.b16 %v213
  %v2733 = vunpack.c.l.b16 %v214
  %v2734 = vunpack.c.l.b16 %v215
  %v2735 = vunpack.c.l.b16 %v216
  %v2736 = vunpack.c.l.b16 %v217
  %v2737 = vunpack.c.l.b16 %v218
  %v2738 = vunpack.c.l.b16 %v219
  %v2739 = vunpack.c.l.b16 %v220
  %v2740 = vunpack.c.l.b16 %v221
  %v2741 = vunpack.c.l.b16 %v222
  %v2742 = vunpack.c.l.b16 %v223
  %v2743 = vunpack.c.l.b16 %v224
  %v2744 = vunpack.c.l.b16 %v225
  %v2745 = vunpack.c.l.b16 %v226
  %v2746 = vunpack.c.l.b16 %v227
  %v2747 = vunpack.c.l.b16 %v228
  %v2748 = vunpack.c.l.b16 %v229
  %v2749 = vunpack.c.l.b16 %v230
  %v2750 = vunpack.c.l.b16 %v231
  %v2751 = vunpack.c.l.b16 %v232
  %v2752 = vunpack.c.l.b16 %v233
  %v2753 = vunpack.c.l.b16 %v234
  %v2754 = vunpack.c.l.b16 %v235
  %v2755 = vunpack.c.l.b16 %v236
  %v2756 = vunpack.c.l.b16 %v237
  %v2757 = vunpack.c.l.b16 %v238
  %v2758 = vunpack.c.l.b16 %v239
  %v2759 = vunpack.c.l.b16 %v240
  %v2760 = vunpack.c.l.b16 %v241
  %v2761 = vunpack.c.l.b16 %v242
  %v2762 = vunpack.c.l.b16 %v243
  %v2763 = vunpack.c.l.b16 %v244
  %v2764 = vunpack.c.l.b16 %v245
  %v2765 = vunpack.c.l.b16 %v246
  %v2766 = vunpack.c.l.b16 %v247
  %v2767 = vunpack.c.l.b16 %v248
  %v2768 = vunpack.c.l.b16 %v249
  %v2769 = vunpack.c.l.b16 %v250
  %v2770 = vunpack.c.l.b16 %v251
  %v2771 = vunpack.c.l.b16 %v252
  %v2772 = vunpack.c.l.b16 %v253
  %v2773 = vunpack.c.l.b16 %v254
  %v2774 = vunpack.c.l.b16 %v255
  %v2775 = vunpack.c.l.b16 %v256
  %v2776 = vunpack.c.l.b16 %v257
  %v2777 = vunpack.c.l.b16 %v258
  %v2778 = vunpack.c.l.b16 %v259
  %v2779 = vunpack.c.l.b16 %v260
  %v2780 = vunpack.c.l.b16 %v261
  %v2781 = vunpack.c.l.b16 %v262
  %v2782 = vunpack.c.l.b16 %v263
  %v2783 = vunpack.c.l.b16 %v264
  %v2784 = vunpack.c.l.b16 %v265
  %v2785 = vunpack.c.l.b16 %v266
  %v2786 = vunpack.c.l.b16 %v267
  %v2787 = vunpack.c.l.b16 %v268
  %v2788 = vunpack.c.l.b16 %v269
  %v2789 = vunpack.c.l.b16 %v270
  %v2790 = vunpack.c.l.b16 %v271
  %v2791 = vunpack.c.l.b16 %v272
  %v2792 = vunpack.c.l.b16 %v273
  %v2793 = vunpack.c.l.b16 %v274
  %v2794 = vunpack.c.l.b16 %v275
  %v2795 = vunpack.c.l.b16 %v276
  %v2796 = vunpack.c.l.b16 %v277
  %v2797 = vunpack.c.l.b16 %v278
  %v2798 = vunpack.c.l.b16 %v279
  %v2799 = vunpack.c.l.b16 %v280
  %v2800 = vunpack.c.l.b16 %v281
  %v2801 = vunpack.c.l.b16 %v282
  %v2802 = vunpack.c.l.b16 %v283
  %v2803 = vunpack.c.l.b16 %v284
  %v2804 = vunpack.c.l.b16 %v285
  %v2805 = vunpack.c.l.b16 %v286
  %v2806 = vunpack.c.l.b16 %v287
  %v2807 = vunpack.c.l.b16 %v288
  %v2808 = vunpack.c.l.b16 %v289
  %v2809 = vunpack.c.l.b16 %v290
  %v2810 = vunpack.c.l.b16 %v291
  %v2811 = vunpack.c.l.b16 %v292
  %v2812 = vunpack.c.l.b16 %v293
  %v2813 = vunpack.c.l.b16 %v294
  %v2814 = vunpack.c.l.b16 %v295
  %v2815 = vunpack.c.l.b16 %v296
  %v2816 = vunpack.c.l.b16 %v297
  %v2817 = vunpack.c.l.b16 %v298
  %v2818 = vunpack.c.l.b16 %v299
  %v2819 = vunpack.c.l.b16 %v300
  %v2820 = vunpack.c.l.b16 %v301
  %v2821 = vunpack.c.l.b16 %v302
  %v2822 = vunpack.c.l.b16 %v303
  %v2823 = vunpack.c.l.b16 %v304
  %v2824 = vunpack.c.l.b16 %v305
  %v2825 = vunpack.c.l.b16 %v306
  %v2826 = vunpack.c.l.b16 %v307
  %v2827 = vunpack.c.l.b16 %v308
  %v2828 = vunpack.c.l.b16 %v309
  %v2829 = vunpack.c.l.b16 %v310
  %v2830 = vunpack.c.l.b16 %v311
  %v2831 = vunpack.c.l.b16 %v312
  %v2832 = vunpack.c.l.b16 %v313
  %v2833 = vunpack.c.l.b16 %v314
  %v2834 = vunpack.c.l.b16 %v315
  %v2835 = vunpack.c.l.b16 %v316
  %v2836 = vunpack.c.l.b16 %v317
  %v2837 = vunpack.c.l.b16 %v318
  %v2838 = vunpack.c.l.b16 %v319
  %v2839 = vunpack.c.l.b16 %v320
  %v2840 = vunpack.c.l.b16 %v321
  %v2841 = vunpack.c.l.b16 %v322
  %v2842 = vunpack.c.l.b16 %v323
  %v2843 = vunpack.c.l.b16 %v324
  %v2844 = vunpack.c.l.b16 %v325
  %v2845 = vunpack.c.l.b16 %v326
  %v2846 = vunpack.c.l.b16 %v327
  %v2847 = vunpack.c.l.b16 %v328
  %v2848 = vunpack.c.l.b16 %v329
  %v2849 = vunpack.c.l.b16 %v330
  %v2850 = vunpack.c.l.b16 %v331
  %v2851 = vunpack.c.l.b16 %v332
  %v2852 = vunpack.c.l.b16 %v333
  %v2853 = vunpack.c.l.b16 %v334
  %v2854 = vunpack.c.l.b16 %v335
  %v2855 = vunpack.c.l.b16 %v336
  %v2856 = vunpack.c.l.b16 %v337
  %v2857 = vunpack.c.l.b16 %v338
  %v2858 = vunpack.c.l.b16 %v339
  %v2859 = vunpack.c.l.b16 %v340
  %v2860 = vunpack.c.l.b16 %v341
  %v2861 = vunpack.c.l.b16 %v342
  %v2862 = vunpack.c.l.b16 %v343
  %v2863 = vunpack.c.l.b16 %v344
  %v2864 = vunpack.c.l.b16 %v345
  %v2865 = vunpack.c.l.b16 %v346
  %v2866 = vunpack.c.l.b16 %v347
  %v2867 = vunpack.c.l.b16 %v348
  %v2868 = vunpack.c.l.b16 %v349
  %v2869 = vunpack.c.l.b16 %v350
  %v2870 = vunpack.c.l.b16 %v351
  %v2871 = vunpack.c.l.b16 %v352
  %v2872 = vunpack.c.l.b16 %v353
  %v2873 = vunpack.c.l.b16 %v354
  %v2874 = vunpack.c.l.b16 %v355
  %v2875 = vunpack.c.l.b16 %v356
  %v2876 = vunpack.c.l.b16 %v357
  %v2877 = vunpack.c.l.b16 %v358
  %v2878 = vunpack.c.l.b16 %v359
  %v2879 = vunpack.c.l.b16 %v360
  %v2880 = vunpack.c.l.b16 %v361
  %v2881 = vunpack.c.l.b16 %v362
  %v2882 = vunpack.c.l.b16 %v363
  %v2883 = vunpack.c.l.b16 %v364
  %v2884 = vunpack.c.l.b16 %v365
  %v2885 = vunpack.c.l.b16 %v366
  %v2886 = vunpack.c.l.b16 %v367
  %v2887 = vunpack.c.l.b16 %v368
  %v2888 = vunpack.c.l.b16 %v369
  %v2889 = vunpack.c.l.b16 %v370
  %v2890 = vunpack.c.l.b16 %v371
  %v2891 = vunpack.c.l.b16 %v372
  %v2892 = vunpack.c.l.b16 %v373
  %v2893 = vunpack.c.l.b16 %v374
  %v2894 = vunpack.c.l.b16 %v375
  %v2895 = vunpack.c.l.b16 %v376
  %v2896 = vunpack.c.l.b16 %v377
  %v2897 = vunpack.c.l.b16 %v378
  %v2898 = vunpack.c.l.b16 %v379
  %v2899 = vunpack.c.l.b16 %v380
  %v2900 = vunpack.c.l.b16 %v381
  %v2901 = vunpack.c.l.b16 %v382
  %v2902 = vunpack.c.l.b16 %v383
  %v2903 = vunpack.c.l.b16 %v384
  %v2904 = vunpack.c.l.b16 %v385
  %v2905 = vunpack.c.l.b16 %v386
  %v2906 = vunpack.c.l.b16 %v387
  %v2907 = vunpack.c.l.b16 %v388
  %v2908 = vunpack.c.l.b16 %v389
  %v2909 = vunpack.c.l.b16 %v390
  %v2910 = vunpack.c.l.b16 %v391
  %v2911 = vunpack.c.l.b16 %v392
  %v2912 = vunpack.c.l.b16 %v393
  %v2913 = vunpack.c.l.b16 %v394
  %v2914 = vunpack.c.l.b16 %v395
  %v2915 = vunpack.c.l.b16 %v396
  %v2916 = vunpack.c.l.b16 %v397
  %v2917 = vunpack.c.l.b16 %v398
  %v2918 = vunpack.c.l.b16 %v399
  %v2919 = vunpack.c.l.b16 %v400
  %v2920 = vunpack.c.l.b16 %v401
  %v2921 = vunpack.c.l.b16 %v402
  %v2922 = vunpack.c.l.b16 %v403
  %v2923 = vunpack.c.l.b16 %v404
  %v2924 = vunpack.c.l.b16 %v405
  %v2925 = vunpack.c.l.b16 %v406
  %v2926 = vunpack.c.l.b16 %v407
  %v2927 = vunpack.c.l.b16 %v408
  %v2928 = vunpack.c.l.b16 %v409
  %v2929 = vunpack.c.l.b16 %v410
  %v2930 = vunpack.c.l.b16 %v411
  %v2931 = vunpack.c.l.b16 %v412
  %v2932 = vunpack.c.l.b16 %v413
  %v2933 = vunpack.c.l.b16 %v414
  %v2934 = vunpack.c.l.b16 %v415
  %v2935 = vunpack.c.l.b16 %v416
  %v2936 = vunpack.c.l.b16 %v417
  %v2937 = vunpack.c.l.b16 %v418
  %v2938 = vunpack.c.l.b16 %v419
  %v2939 = vunpack.c.l.b16 %v420
  %v2940 = vunpack.c.l.b16 %v421
  %v2941 = vunpack.c.l.b16 %v422
  %v2942 = vunpack.c.l.b16 %v423
  %v2943 = vunpack.c.l.b16 %v424
  %v2944 = vunpack.c.l.b16 %v425
  %v2945 = vunpack.c.l.b16 %v426
  %v2946 = vunpack.c.l.b16 %v427
  %v2947 = vunpack.c.l.b16 %v428
  %v2948 = vunpack.c.l.b16 %v429
  %v2949 = vunpack.c.l.b16 %v430
  %v2950 = vunpack.c.l.b16 %v431
  %v2951 = vunpack.c.l.b16 %v432
  %v2952 = vunpack.c.l.b16 %v433
  %v2953 = vunpack.c.l.b16 %v434
  %v2954 = vunpack.c.l.b16 %v435
  %v2955 = vunpack.c.l.b16 %v436
  %v2956 = vunpack.c.l.b16 %v437
  %v2957 = vunpack.c.l.b16 %v438
  %v2958 = vunpack.c.l.b16 %v439
  %v2959 = vunpack.c.l.b16 %v440
  %v2960 = vunpack.c.l.b16 %v441
  %v2961 = vunpack.c.l.b16 %v442
  %v2962 = vunpack.c.l.b16 %v443
  %v2963 = vunpack.c.l.b16 %v444
  %v2964 = vunpack.c.l.b16 %v445
  %v2965 = vunpack.c.l.b16 %v446
  %v2966 = vunpack.c.l.b16 %v447
  %v2967 = vunpack.c.l.b16 %v448
  %v2968 = vunpack.c.l.b16 %v449
  %v2969 = vunpack.c.l.b16 %v450
  %v2970 = vunpack.c.l.b16 %v451
  %v2971 = vunpack.c.l.b16 %v452
  %v2972 = vunpack.c.l.b16 %v453
  %v2973 = vunpack.c.l.b16 %v454
  %v2974 = vunpack.c.l.b16 %v455
  %v2975 = vunpack.c.l.b16 %v456
  %v2976 = vunpack.c.l.b16 %v457
  %v2977 = vunpack.c.l.b16 %v458
  %v2978 = vunpack.c.l.b16 %v459
  %v2979 = vunpack.c.l.b16 %v460
  %v2980 = vunpack.c.l.b16 %v461
  %v2981 = vunpack.c.l.b16 %v462
  %v2982 = vunpack.c.l.b16 %v463
  %v2983 = vunpack.c.l.b16 %v464
  %v2984 = vunpack.c.l.b16 %v465
  %v2985 = vunpack.c.l.b16 %v466
  %v2986 = vunpack.c.l.b16 %v467
  %v2987 = vunpack.c.l.b16 %v468
  %v2988 = vunpack.c.l.b16 %v469
  %v2989 = vunpack.c.l.b16 %v470
  %v2990 = vunpack.c.l.b16 %v471
  %v2991 = vunpack.c.l.b16 %v472
  %v2992 = vunpack.c.l.b16 %v473
  %v2993 = vunpack.c.l.b16 %v474
  %v2994 = vunpack.c.l.b16 %v475
  %v2995 = vunpack.c.l.b16 %v476
  %v2996 = vunpack.c.l.b16 %v477
  %v2997 = vunpack.c.l.b16 %v478
  %v2998 = vunpack.c.l.b16 %v479
  %v2999 = vunpack.c.l.b16 %v480
  %v3000 = vunpack.c.l.b16 %v481
  %v3001 = vunpack.c.l.b16 %v482
  %v3002 = vunpack.c.l.b16 %v483
  %v3003 = vunpack.c.l.b16 %v484
  %v3004 = vunpack.c.l.b16 %v485
  %v3005 = vunpack.c.l.b16 %v486
  %v3006 = vunpack.c.l.b16 %v487
  %v3007 = vunpack.c.l.b16 %v488
  %v3008 = vunpack.c.l.b16 %v489
  %v3009 = vunpack.c.l.b16 %v490
  %v3010 = vunpack.c.l.b16 %v491
  %v3011 = vunpack.c.l.b16 %v492
  %v3012 = vunpack.c.l.b16 %v493
  %v3013 = vunpack.c.l.b16 %v494
  %v3014 = vunpack.c.l.b16 %v495
  %v3015 = vunpack.c.l.b16 %v496
  %v3016 = vunpack.c.l.b16 %v497
  %v3017 = vunpack.c.l.b16 %v498
  %v3018 = vunpack.c.l.b16 %v499
  %v3019 = vunpack.c.l.b16 %v500
  %v3020 = vunpack.c.l.b16 %v501
  %v3021 = vunpack.c.l.b16 %v502
  %v3022 = vunpack.c.l.b16 %v503
  %v3023 = vunpack.c.l.b16 %v504
  %v3024 = vunpack.c.l.b16 %v505
  %v3025 = vunpack.c.l.b16 %v506
  %v3026 = vunpack.c.l.b16 %v507
  %v3027 = vunpack.c.l.b16 %v508
  %v3028 = vunpack.c.l.b16 %v509
  %v3029 = vunpack.c.l.b16 %v510
  %v3030 = vunpack.c.l.b16 %v511
  %v3031 = vunpack.c.l.b16 %v512
  %v3032 = vunpack.c.l.b16 %v513
  %v3033 = vunpack.c.l.b16 %v514
  %v3034 = vunpack.c.l.b16 %v515
  %v3035 = vunpack.c.l.b16 %v516
  %v3036 = vunpack.c.l.b16 %v517
  %v3037 = vunpack.c.l.b16 %v518
  %v3038 = vunpack.c.l.b16 %v519
  %v3039 = vunpack.c.l.b16 %v520
  %v3040 = vunpack.c.l.b16 %v521
  %v3041 = vunpack.c.l.b16 %v522
  %v3042 = vunpack.c.l.b16 %v523
  %v3043 = vunpack.c.l.b16 %v524
  %v3044 = vunpack.c.l.b16 %v525
  %v3045 = vunpack.c.l.b16 %v526
  %v3046 = vunpack.c.l.b16 %v527
  %v3047 = vunpack.c.l.b16 %v528
  %v3048 = vunpack.c.l.b16 %v529
  %v3049 = vunpack.c.l.b16 %v530
  %v3050 = vunpack.c.l.b16 %v531
  %v3051 = vunpack.c.l.b16 %v532
  %v3052 = vunpack.c.l.b16 %v533
  %v3053 = vunpack.c.l.b16 %v534
  %v3054 = vunpack.c.l.b16 %v535
  %v3055 = vunpack.c.l.b16 %v536
  %v3056 = vunpack.c.l.b16 %v537
  %v3057 = vunpack.c.l.b16 %v538
  %v3058 = vunpack.c.l.b16 %v539
  %v3059 = vunpack.c.l.b16 %v540
  %v3060 = vunpack.c.l.b16 %v541
  %v3061 = vunpack.c.l.b16 %v542
  %v3062 = vunpack.c.l.b16 %v543
  %v3063 = vunpack.c.l.b16 %v544
  %v3064 = vunpack.c.l.b16 %v545
  %v3065 = vunpack.c.l.b16 %v546
  %v3066 = vunpack.c.l.b16 %v547
  %v3067 = vunpack.c.l.b16 %v548
  %v3068 = vunpack.c.l.b16 %v549
  %v3069 = vunpack.c.l.b16 %v550
  %v3070 = vunpack.c.l.b16 %v551
  %v3071 = vunpack.c.l.b16 %v552
  %v3072 = vunpack.c.l.b16 %v553
  %v3073 = vunpack.c.l.b16 %v554
  %v3074 = vunpack.c.l.b16 %v555
  %v3075 = vunpack.c.l.b16 %v556
  %v3076 = vunpack.c.l.b16 %v557
  %v3077 = vunpack.c.l.b16 %v558
  %v3078 = vunpack.c.l.b16 %v559
  %v3079 = vunpack.c.l.b16 %v560
  %v3080 = vunpack.c.l.b16 %v561
  %v3081 = vunpack.c.l.b16 %v562
  %v3082 = vunpack.c.l.b16 %v563
  %v3083 = vunpack.c.l.b16 %v564
  %v3084 = vunpack.c.l.b16 %v565
  %v3085 = vunpack.c.l.b16 %v566
  %v3086 = vunpack.c.l.b16 %v567
  %v3087 = vunpack.c.l.b16 %v568
  %v3088 = vunpack.c.l.b16 %v569
  %v3089 = vunpack.c.l.b16 %v570
  %v3090 = vunpack.c.l.b16 %v571
  %v3091 = vunpack.c.l.b16 %v572
  %v3092 = vunpack.c.l.b16 %v573
  %v3093 = vunpack.c.l.b16 %v574
  %v3094 = vunpack.c.l.b16 %v575
  %v3095 = vunpack.c.l.b16 %v576
  %v3096 = vunpack.c.l.b16 %v577
  %v3097 = vunpack.c.l.b16 %v578
  %v3098 = vunpack.c.l.b16 %v579
  %v3099 = vunpack.c.l.b16 %v580
  %v3100 = vunpack.c.l.b16 %v581
  %v3101 = vunpack.c.l.b16 %v582
  %v3102 = vunpack.c.l.b16 %v583
  %v3103 = vunpack.c.l.b16 %v584
  %v3104 = vunpack.c.l.b16 %v585
  %v3105 = vunpack.c.l.b16 %v586
  %v3106 = vunpack.c.l.b16 %v587
  %v3107 = vunpack.c.l.b16 %v588
  %v3108 = vunpack.c.l.b16 %v589
  %v3109 = vunpack.c.l.b16 %v590
  %v3110 = vunpack.c.l.b16 %v591
  %v3111 = vunpack.c.l.b16 %v592
  %v3112 = vunpack.c.l.b16 %v593
  %v3113 = vunpack.c.l.b16 %v594
  %v3114 = vunpack.c.l.b16 %v595
  %v3115 = vunpack.c.l.b16 %v596
  %v3116 = vunpack.c.l.b16 %v597
  %v3117 = vunpack.c.l.b16 %v598
  %v3118 = vunpack.c.l.b16 %v599
  %v3119 = vunpack.c.l.b16 %v600
  %v3120 = vunpack.c.l.b16 %v601
  %v3121 = vunpack.c.l.b16 %v602
  %v3122 = vunpack.c.l.b16 %v603
  %v3123 = vunpack.c.l.b16 %v604
  %v3124 = vunpack.c.l.b16 %v605
  %v3125 = vunpack.c.l.b16 %v606
  %v3126 = vunpack.c.l.b16 %v607
  %v3127 = vunpack.c.l.b16 %v608
  %v3128 = vunpack.c.l.b16 %v609
  %v3129 = vunpack.c.l.b16 %v610
  %v3130 = vunpack.c.l.b16 %v611
  %v3131 = vunpack.c.l.b16 %v612
  %v3132 = vunpack.c.l.b16 %v613
  %v3133 = vunpack.c.l.b16 %v614
  %v3134 = vunpack.c.l.b16 %v615
  %v3135 = vunpack.c.l.b16 %v616
  %v3136 = vunpack.c.l.b16 %v617
  %v3137 = vunpack.c.l.b16 %v618
  %v3138 = vunpack.c.l.b16 %v619
  %v3139 = vunpack.c.l.b16 %v620
  %v3140 = vunpack.c.l.b16 %v621
  %v3141 = vunpack.c.l.b16 %v622
  %v3142 = vunpack.c.l.b16 %v623
  %v3143 = vunpack.c.l.b16 %v624
  %v3144 = vunpack.c.l.b16 %v625
  %v3145 = vunpack.c.l.b16 %v626
  %v3146 = vunpack.c.l.b16 %v627
  %v3147 = vunpack.c.l.b16 %v628
  %v3148 = vunpack.c.l.b16 %v629
  %v3149 = vunpack.c.l.b16 %v630
  %v3150 = vunpack.c.l.b16 %v631
  %v3151 = vunpack.c.l.b16 %v632
  %v3152 = vunpack.c.l.b16 %v633
  %v3153 = vunpack.c.l.b16 %v634
  %v3154 = vunpack.c.l.b16 %v635
  %v3155 = vunpack.c.l.b16 %v636
  %v3156 = vunpack.c.l.b16 %v637
  %v3157 = vunpack.c.l.b16 %v638
  %v3158 = vunpack.c.l.b16 %v639
  %v3159 = vunpack.c.l.b16 %v640
  %v3160 = vunpack.c.l.b16 %v641
  %v3161 = vunpack.c.l.b16 %v642
  %v3162 = vunpack.c.l.b16 %v643
  %v3163 = vunpack.c.l.b16 %v644
  %v3164 = vunpack.c.l.b16 %v645
  %v3165 = vunpack.c.l.b16 %v646
  %v3166 = vunpack.c.l.b16 %v647
  %v3167 = vunpack.c.l.b16 %v648
  %v3168 = vunpack.c.l.b16 %v649
  %v3169 = vunpack.c.l.b16 %v650
  %v3170 = vunpack.c.l.b16 %v651
  %v3171 = vunpack.c.l.b16 %v652
  %v3172 = vunpack.c.l.b16 %v653
  %v3173 = vunpack.c.l.b16 %v654
  %v3174 = vunpack.c.l.b16 %v655
  %v3175 = vunpack.c.l.b16 %v656
  %v3176 = vunpack.c.l.b16 %v657
  %v3177 = vunpack.c.l.b16 %v658
  %v3178 = vunpack.c.l.b16 %v659
  %v3179 = vunpack.c.l.b16 %v660
  %v3180 = vunpack.c.l.b16 %v661
  %v3181 = vunpack.c.l.b16 %v662
  %v3182 = vunpack.c.l.b16 %v663
  %v3183 = vunpack.c.l.b16 %v664
  %v3184 = vunpack.c.l.b16 %v665
  %v3185 = vunpack.c.l.b16 %v666
  %v3186 = vunpack.c.l.b16 %v667
  %v3187 = vunpack.c.l.b16 %v668
  %v3188 = vunpack.c.l.b16 %v669
  %v3189 = vunpack.c.l.b16 %v670
  %v3190 = vunpack.c.l.b16 %v671
  %v3191 = vunpack.c.l.b16 %v672
  %v3192 = vunpack.c.l.b16 %v673
  %v3193 = vunpack.c.l.b16 %v674
  %v3194 = vunpack.c.l.b16 %v675
  %v3195 = vunpack.c.l.b16 %v676
  %v3196 = vunpack.c.l.b16 %v677
  %v3197 = vunpack.c.l.b16 %v678
  %v3198 = vunpack.c.l.b16 %v679
  %v3199 = vunpack.c.l.b16 %v680
  %v3200 = vunpack.c.l.b16 %v681
  %v3201 = vunpack.c.l.b16 %v682
  %v3202 = vunpack.c.l.b16 %v683
  %v3203 = vunpack.c.l.b16 %v684
  %v3204 = vunpack.c.l.b16 %v685
  %v3205 = vunpack.c.l.b16 %v686
  %v3206 = vunpack.c.l.b16 %v687
  %v3207 = vunpack.c.l.b16 %v688
  %v3208 = vunpack.c.l.b16 %v689
  %v3209 = vunpack.c.l.b16 %v690
  %v3210 = vunpack.c.l.b16 %v691
  %v3211 = vunpack.c.l.b16 %v692
  %v3212 = vunpack.c.l.b16 %v693
  %v3213 = vunpack.c.l.b16 %v694
  %v3214 = vunpack.c.l.b16 %v695
  %v3215 = vunpack.c.l.b16 %v696
  %v3216 = vunpack.c.l.b16 %v697
  %v3217 = vunpack.c.l.b16 %v698
  %v3218 = vunpack.c.l.b16 %v699
  %v3219 = vunpack.c.l.b16 %v700
  %v3220 = vunpack.c.l.b16 %v701
  %v3221 = vunpack.c.l.b16 %v702
  %v3222 = vunpack.c.l.b16 %v703
  %v3223 = vunpack.c.l.b16 %v704
  %v3224 = vunpack.c.l.b16 %v705
  %v3225 = vunpack.c.l.b16 %v706
  %v3226 = vunpack.c.l.b16 %v707
  %v3227 = vunpack.c.l.b16 %v708
  %v3228 = vunpack.c.l.b16 %v709
  %v3229 = vunpack.c.l.b16 %v710
  %v3230 = vunpack.c.l.b16 %v711
  %v3231 = vunpack.c.l.b16 %v712
  %v3232 = vunpack.c.l.b16 %v713
  %v3233 = vunpack.c.l.b16 %v714
  %v3234 = vunpack.c.l.b16 %v715
  %v3235 = vunpack.c.l.b16 %v716
  %v3236 = vunpack.c.l.b16 %v717
  %v3237 = vunpack.c.l.b16 %v718
  %v3238 = vunpack.c.l.b16 %v719
  %v3239 = vunpack.c.l.b16 %v720
  %v3240 = vunpack.c.l.b16 %v721
  %v3241 = vunpack.c.l.b16 %v722
  %v3242 = vunpack.c.l.b16 %v723
  %v3243 = vunpack.c.l.b16 %v724
  %v3244 = vunpack.c.l.b16 %v725
  %v3245 = vunpack.c.l.b16 %v726
  %v3246 = vunpack.c.l.b16 %v727
  %v3247 = vunpack.c.l.b16 %v728
  %v3248 = vunpack.c.l.b16 %v729
  %v3249 = vunpack.c.l.b16 %v730
  %v3250 = vunpack.c.l.b16 %v731
  %v3251 = vunpack.c.l.b16 %v732
  %v3252 = vunpack.c.l.b16 %v733
  %v3253 = vunpack.c.l.b16 %v734
  %v3254 = vunpack.c.l.b16 %v735
  %v3255 = vunpack.c.l.b16 %v736
  %v3256 = vunpack.c.l.b16 %v737
  %v3257 = vunpack.c.l.b16 %v738
  %v3258 = vunpack.c.l.b16 %v739
  %v3259 = vunpack.c.l.b16 %v740
  %v3260 = vunpack.c.l.b16 %v741
  %v3261 = vunpack.c.l.b16 %v742
  %v3262 = vunpack.c.l.b16 %v743
  %v3263 = vunpack.c.l.b16 %v744
  %v3264 = vunpack.c.l.b16 %v745
  %v3265 = vunpack.c.l.b16 %v746
  %v3266 = vunpack.c.l.b16 %v747
  %v3267 = vunpack.c.l.b16 %v748
  %v3268 = vunpack.c.l.b16 %v749
  %v3269 = vunpack.c.l.b16 %v750
  %v3270 = vunpack.c.l.b16 %v751
  %v3271 = vunpack.c.l.b16 %v752
  %v3272 = vunpack.c.l.b16 %v753
  %v3273 = vunpack.c.l.b16 %v754
  %v3274 = vunpack.c.l.b16 %v755
  %v3275 = vunpack.c.l.b16 %v756
  %v3276 = vunpack.c.l.b16 %v757
  %v3277 = vunpack.c.l.b16 %v758
  %v3278 = vunpack.c.l.b16 %v759
  %v3279 = vunpack.c.l.b16 %v760
  %v3280 = vunpack.c.l.b16 %v761
  %v3281 = vunpack.c.l.b16 %v762
  %v3282 = vunpack.c.l.b16 %v763
  %v3283 = vunpack.c.l.b16 %v764
  %v3284 = vunpack.c.l.b16 %v765
  %v3285 = vunpack.c.l.b16 %v766
  %v3286 = vunpack.c.l.b16 %v767
  %v3287 = vunpack.c.l.b16 %v768
  %v3288 = vunpack.c.l.b16 %v769
  %v3289 = vunpack.c.l.b16 %v770
  %v3290 = vunpack.c.l.b16 %v771
  %v3291 = vunpack.c.l.b16 %v772
  %v3292 = vunpack.c.l.b16 %v773
  %v3293 = vunpack.c.l.b16 %v774
  %v3294 = vunpack.c.l.b16 %v775
  %v3295 = vunpack.c.l.b16 %v776
  %v3296 = vunpack.c.l.b16 %v777
  %v3297 = vunpack.c.l.b16 %v778
  %v3298 = vunpack.c.l.b16 %v779
  %v3299 = vunpack.c.l.b16 %v780
  %v3300 = vunpack.c.l.b16 %v781
  %v3301 = vunpack.c.l.b16 %v782
  %v3302 = vunpack.c.l.b16 %v783
  %v3303 = vunpack.c.l.b16 %v784
  %v3304 = vunpack.c.l.b16 %v785
  %v3305 = vunpack.c.l.b16 %v786
  %v3306 = vunpack.c.l.b16 %v787
  %v3307 = vunpack.c.l.b16 %v788
  %v3308 = vunpack.c.l.b16 %v789
  %v3309 = vunpack.c.l.b16 %v790
  %v3310 = vunpack.c.l.b16 %v791
  %v3311 = vunpack.c.l.b16 %v792
  %v3312 = vunpack.c.l.b16 %v793
  %v3313 = vunpack.c.l.b16 %v794
  %v3314 = vunpack.c.l.b16 %v795
  %v3315 = vunpack.c.l.b16 %v796
  %v3316 = vunpack.c.l.b16 %v797
  %v3317 = vunpack.c.l.b16 %v798
  %v3318 = vunpack.c.l.b16 %v799
  %v3319 = vunpack.c.l.b16 %v800
  %v3320 = vunpack.c.l.b16 %v801
  %v3321 = vunpack.c.l.b16 %v802
  %v3322 = vunpack.c.l.b16 %v803
  %v3323 = vunpack.c.l.b16 %v804
  %v3324 = vunpack.c.l.b16 %v805
  %v3325 = vunpack.c.l.b16 %v806
  %v3326 = vunpack.c.l.b16 %v807
  %v3327 = vunpack.c.l.b16 %v808
  %v3328 = vunpack.c.l.b16 %v809
  %v3329 = vunpack.c.l.b16 %v810
  %v3330 = vunpack.c.l.b16 %v811
  %v3331 = vunpack.c.l.b16 %v812
  %v3332 = vunpack.c.l.b16 %v813
  %v3333 = vunpack.c.l.b16 %v814
  %v3334 = vunpack.c.l.b16 %v815
  %v3335 = vunpack.c.l.b16 %v816
  %v3336 = vunpack.c.l.b16 %v817
  %v3337 = vunpack.c.l.b16 %v818
  %v3338 = vunpack.c.l.b16 %v819
  %v3339 = vunpack.c.l.b16 %v820
  %v3340 = vunpack.c.l.b16 %v821
  %v3341 = vunpack.c.l.b16 %v822
  %v3342 = vunpack.c.l.b16 %v823
  %v3343 = vunpack.c.l.b16 %v824
  %v3344 = vunpack.c.l.b16 %v825
  %v3345 = vunpack.c.l.b16 %v826
  %v3346 = vunpack.c.l.b16 %v827
  %v3347 = vunpack.c.l.b16 %v828
  %v3348 = vunpack.c.l.b16 %v829
  %v3349 = vunpack.c.l.b16 %v830
  %v3350 = vunpack.c.l.b16 %v831
  %v3351 = vunpack.c.l.b16 %v832
  %v3352 = vunpack.c.l.b16 %v833
  %v3353 = vunpack.c.l.b16 %v834
  %v3354 = vunpack.c.l.b16 %v835
  %v3355 = vunpack.c.l.b16 %v836
  %v3356 = vunpack.c.l.b16 %v837
  %v3357 = vunpack.c.l.b16 %v838
  %v3358 = vunpack.c.l.b16 %v839
  %v3359 = vunpack.c.l.b16 %v840
  %v3360 = vunpack.c.l.b16 %v841
  %v3361 = vunpack.c.l.b16 %v842
  %v3362 = vunpack.c.l.b16 %v843
  %v3363 = vunpack.c.l.b16 %v844
  %v3364 = vunpack.c.l.b16 %v845
  %v3365 = vunpack.c.l.b16 %v846
  %v3366 = vunpack.c.l.b16 %v847
  %v3367 = vunpack.c.l.b16 %v848
  %v3368 = vunpack.c.l.b16 %v849
  %v3369 = vunpack.c.l.b16 %v850
  %v3370 = vunpack.c.l.b16 %v851
  %v3371 = vunpack.c.l.b16 %v852
  %v3372 = vunpack.c.l.b16 %v853
  %v3373 = vunpack.c.l.b16 %v854
  %v3374 = vunpack.c.l.b16 %v855
  %v3375 = vunpack.c.l.b16 %v856
  %v3376 = vunpack.c.l.b16 %v857
  %v3377 = vunpack.c.l.b16 %v858
  %v3378 = vunpack.c.l.b16 %v859
  %v3379 = vunpack.c.l.b16 %v860
  %v3380 = vunpack.c.l.b16 %v861
  %v3381 = vunpack.c.l.b16 %v862
  %v3382 = vunpack.c.l.b16 %v863
  %v3383 = vunpack.c.l.b16 %v864
  %v3384 = vunpack.c.l.b16 %v865
  %v3385 = vunpack.c.l.b16 %v866
  %v3386 = vunpack.c.l.b16 %v867
  %v3387 = vunpack.c.l.b16 %v868
  %v3388 = vunpack.c.l.b16 %v869
  %v3389 = vunpack.c.l.b16 %v870
  %v3390 = vunpack.c.l.b16 %v871
  %v3391 = vunpack.c.l.b16 %v872
  %v3392 = vunpack.c.l.b16 %v873
  %v3393 = vunpack.c.l.b16 %v874
  %v3394 = vunpack.c.l.b16 %v875
  %v3395 = vunpack.c.l.b16 %v876
  %v3396 = vunpack.c.l.b16 %v877
  %v3397 = vunpack.c.l.b16 %v878
  %v3398 = vunpack.c.l.b16 %v879
  %v3399 = vunpack.c.l.b16 %v880
  %v3400 = vunpack.c.l.b16 %v881
  %v3401 = vunpack.c.l.b16 %v882
  %v3402 = vunpack.c.l.b16 %v883
  %v3403 = vunpack.c.l.b16 %v884
  %v3404 = vunpack.c.l.b16 %v885
  %v3405 = vunpack.c.l.b16 %v886
  %v3406 = vunpack.c.l.b16 %v887
  %v3407 = vunpack.c.l.b16 %v888
  %v3408 = vunpack.c.l.b16 %v889
  %v3409 = vunpack.c.l.b16 %v890
  %v3410 = vunpack.c.l.b16 %v891
  %v3411 = vunpack.c.l.b16 %v892
  %v3412 = vunpack.c.l.b16 %v893
  %v3413 = vunpack.c.l.b16 %v894
  %v3414 = vunpack.c.l.b16 %v895
  %v3415 = vunpack.c.l.b16 %v896
  %v3416 = vunpack.c.l.b16 %v897
  %v3417 = vunpack.c.l.b16 %v898
  %v3418 = vunpack.c.l.b16 %v899
  %v3419 = vunpack.c.l.b16 %v900
  %v3420 = vunpack.c.l.b16 %v901
  %v3421 = vunpack.c.l.b16 %v902
  %v3422 = vunpack.c.l.b16 %v903
  %v3423 = vunpack.c.l.b16 %v904
  %v3424 = vunpack.c.l.b16 %v905
  %v3425 = vunpack.c.l.b16 %v906
  %v3426 = vunpack.c.l.b16 %v907
  %v3427 = vunpack.c.l.b16 %v908
  %v3428 = vunpack.c.l.b16 %v909
  %v3429 = vunpack.c.l.b16 %v910
  %v3430 = vunpack.c.l.b16 %v911
  %v3431 = vunpack.c.l.b16 %v912
  %v3432 = vunpack.c.l.b16 %v913
  %v3433 = vunpack.c.l.b16 %v914
  %v3434 = vunpack.c.l.b16 %v915
  %v3435 = vunpack.c.l.b16 %v916
  %v3436 = vunpack.c.l.b16 %v917
  %v3437 = vunpack.c.l.b16 %v918
  %v3438 = vunpack.c.l.b16 %v919
  %v3439 = vunpack.c.l.b16 %v920
  %v3440 = vunpack.c.l.b16 %v921
  %v3441 = vunpack.c.l.b16 %v922
  %v3442 = vunpack.c.l.b16 %v923
  %v3443 = vunpack.c.l.b16 %v924
  %v3444 = vunpack.c.l.b16 %v925
  %v3445 = vunpack.c.l.b16 %v926
  %v3446 = vunpack.c.l.b16 %v927
  %v3447 = vunpack.c.l.b16 %v928
  %v3448 = vunpack.c.l.b16 %v929
  %v3449 = vunpack.c.l.b16 %v930
  %v3450 = vunpack.c.l.b16 %v931
  %v3451 = vunpack.c.l.b16 %v932
  %v3452 = vunpack.c.l.b16 %v933
  %v3453 = vunpack.c.l.b16 %v934
  %v3454 = vunpack.c.l.b16 %v935
  %v3455 = vunpack.c.l.b16 %v936
  %v3456 = vunpack.c.l.b16 %v937
  %v3457 = vunpack.c.l.b16 %v938
  %v3458 = vunpack.c.l.b16 %v939
  %v3459 = vunpack.c.l.b16 %v940
  %v3460 = vunpack.c.l.b16 %v941
  %v3461 = vunpack.c.l.b16 %v942
  %v3462 = vunpack.c.l.b16 %v943
  %v3463 = vunpack.c.l.b16 %v944
  %v3464 = vunpack.c.l.b16 %v945
  %v3465 = vunpack.c.l.b16 %v946
  %v3466 = vunpack.c.l.b16 %v947
  %v3467 = vunpack.c.l.b16 %v948
  %v3468 = vunpack.c.l.b16 %v949
  %v3469 = vunpack.c.l.b16 %v950
  %v3470 = vunpack.c.l.b16 %v951
  %v3471 = vunpack.c.l.b16 %v952
  %v3472 = vunpack.c.l.b16 %v953
  %v3473 = vunpack.c.l.b16 %v954
  %v3474 = vunpack.c.l.b16 %v955
  %v3475 = vunpack.c.l.b16 %v956
  %v3476 = vunpack.c.l.b16 %v957
  %v3477 = vunpack.c.l.b16 %v958
  %v3478 = vunpack.c.l.b16 %v959
  %v3479 = vunpack.c.l.b16 %v960
  %v3480 = vunpack.c.l.b16 %v961
  %v3481 = vunpack.c.l.b16 %v962
  %v3482 = vunpack.c.l.b16 %v963
  %v3483 = vunpack.c.l.b16 %v964
  %v3484 = vunpack.c.l.b16 %v965
  %v3485 = vunpack.c.l.b16 %v966
  %v3486 = vunpack.c.l.b16 %v967
  %v3487 = vunpack.c.l.b16 %v968
  %v3488 = vunpack.c.l.b16 %v969
  %v3489 = vunpack.c.l.b16 %v970
  %v3490 = vunpack.c.l.b16 %v971
  %v3491 = vunpack.c.l.b16 %v972
  %v3492 = vunpack.c.l.b16 %v973
  %v3493 = vunpack.c.l.b16 %v974
  %v3494 = vunpack.c.l.b16 %v975
  %v3495 = vunpack.c.l.b16 %v976
  %v3496 = vunpack.c.l.b16 %v977
  %v3497 = vunpack.c.l.b16 %v978
  %v3498 = vunpack.c.l.b16 %v979
  %v3499 = vunpack.c.l.b16 %v980
  %v3500 = vunpack.c.l.b16 %v981
  %v3501 = vunpack.c.l.b16 %v982
  %v3502 = vunpack.c.l.b16 %v983
  %v3503 = vunpack.c.l.b16 %v984
  %v3504 = vunpack.c.l.b16 %v985
  %v3505 = vunpack.c.l.b16 %v986
  %v3506 = vunpack.c.l.b16 %v987
  %v3507 = vunpack.c.l.b16 %v988
  %v3508 = vunpack.c.l.b16 %v989
  %v3509 = vunpack.c.l.b16 %v990
  %v3510 = vunpack.c.l.b16 %v991
  %v3511 = vunpack.c.l.b16 %v992
  %v3512 = vunpack.c.l.b16 %v993
  %v3513 = vunpack.c.l.b16 %v994
  %v3514 = vunpack.c.l.b16 %v995
  %v3515 = vunpack.c.l.b16 %v996
  %v3516 = vunpack.c.l.b16 %v997
  %v3517 = vunpack.c.l.b16 %v998
  %v3518 = vunpack.c.l.b16 %v999
  %v3519 = vunpack.c.l.b16 %v1000
  %v3520 = vunpack.c.l.b16 %v1001
  %v3521 = vunpack.c.l.b16 %v1002
  %v3522 = vunpack.c.l.b16 %v1003
  %v3523 = vunpack.c.l.b16 %v1004
  %v3524 = vunpack.c.l.b16 %v1005
  %v3525 = vunpack.c.l.b16 %v1006
  %v3526 = vunpack.c.l.b16 %v1007
  %v3527 = vunpack.c.l.b16 %v1008
  %v3528 = vunpack.c.l.b16 %v1009
  %v3529 = vunpack.c.l.b16 %v1010
  %v3530 = vunpack.c.l.b16 %v1011
  %v3531 = vunpack.c.l.b16 %v1012
  %v3532 = vunpack.c.l.b16 %v1013
  %v3533 = vunpack.c.l.b16 %v1014
  %v3534 = vunpack.c.l.b16 %v1015
  %v3535 = vunpack.c.l.b16 %v1016
  %v3536 = vunpack.c.l.b16 %v1017
  %v3537 = vunpack.c.l.b16 %v1018
  %v3538 = vunpack.c.l.b16 %v1019
  %v3539 = vunpack.c.l.b16 %v1020
  %v3540 = vunpack.c.l.b16 %v1021
  %v3541 = vunpack.c.l.b16 %v1022
  %v3542 = vunpack.c.l.b16 %v1023
  %v3543 = vunpack.c.l.b16 %v1024
  %v3544 = vunpack.c.l.b16 %v1025
  %v3545 = vunpack.c.l.b16 %v1026
  %v3546 = vunpack.c.l.b16 %v1027
  %v3547 = vunpack.c.l.b16 %v1028
  %v3548 = vunpack.c.l.b16 %v1029
  %v3549 = vunpack.c.l.b16 %v1030
  %v3550 = vunpack.c.l.b16 %v1031
  %v3551 = vunpack.c.l.b16 %v1032
  %v3552 = vunpack.c.l.b16 %v1033
  %v3553 = vunpack.c.l.b16 %v1034
  %v3554 = vunpack.c.l.b16 %v1035
  %v3555 = vunpack.c.l.b16 %v1036
  %v3556 = vunpack.c.l.b16 %v1037
  %v3557 = vunpack.c.l.b16 %v1038
  %v3558 = vunpack.c.l.b16 %v1039
  %v3559 = vunpack.c.l.b16 %v1040
  %v3560 = vunpack.c.l.b16 %v1041
  %v3561 = vunpack.c.l.b16 %v1042
  %v3562 = vunpack.c.l.b16 %v1043
  %v3563 = vunpack.c.l.b16 %v1044
  %v3564 = vunpack.c.l.b16 %v1045
  %v3565 = vunpack.c.l.b16 %v1046
  %v3566 = vpack.c.b16 %v2543, %v2542
  %v3567 = vpack.c.b16 %v2545, %v2544
  %v3568 = vpack.c.b16 %v2547, %v2546
  %v3569 = vpack.c.b16 %v2549, %v2548
  %v3570 = vpack.c.b16 %v2551, %v2550
  %v3571 = vpack.c.b16 %v2553, %v2552
  %v3572 = vpack.c.b16 %v2555, %v2554
  %v3573 = vpack.c.b16 %v2557, %v2556
  %v3574 = vpack.c.b16 %v2559, %v2558
  %v3575 = vpack.c.b16 %v2561, %v2560
  %v3576 = vpack.c.b16 %v2563, %v2562
  %v3577 = vpack.c.b16 %v2565, %v2564
  %v3578 = vpack.c.b16 %v2567, %v2566
  %v3579 = vpack.c.b16 %v2569, %v2568
  %v3580 = vpack.c.b16 %v2571, %v2570
  %v3581 = vpack.c.b16 %v2573, %v2572
  %v3582 = vpack.c.b16 %v2575, %v2574
  %v3583 = vpack.c.b16 %v2577, %v2576
  %v3584 = vpack.c.b16 %v2579, %v2578
  %v3585 = vpack.c.b16 %v2581, %v2580
  %v3586 = vpack.c.b16 %v2583, %v2582
  %v3587 = vpack.c.b16 %v2585, %v2584
  %v3588 = vpack.c.b16 %v2587, %v2586
  %v3589 = vpack.c.b16 %v2589, %v2588
  %v3590 = vpack.c.b16 %v2591, %v2590
  %v3591 = vpack.c.b16 %v2593, %v2592
  %v3592 = vpack.c.b16 %v2595, %v2594
  %v3593 = vpack.c.b16 %v2597, %v2596
  %v3594 = vpack.c.b16 %v2599, %v2598
  %v3595 = vpack.c.b16 %v2601, %v2600
  %v3596 = vpack.c.b16 %v2603, %v2602
  %v3597 = vpack.c.b16 %v2605, %v2604
  %v3598 = vpack.c.b16 %v2607, %v2606
  %v3599 = vpack.c.b16 %v2609, %v2608
  %v3600 = vpack.c.b16 %v2611, %v2610
  %v3601 = vpack.c.b16 %v2613, %v2612
  %v3602 = vpack.c.b16 %v2615, %v2614
  %v3603 = vpack.c.b16 %v2617, %v2616
  %v3604 = vpack.c.b16 %v2619, %v2618
  %v3605 = vpack.c.b16 %v2621, %v2620
  %v3606 = vpack.c.b16 %v2623, %v2622
  %v3607 = vpack.c.b16 %v2625, %v2624
  %v3608 = vpack.c.b16 %v2627, %v2626
  %v3609 = vpack.c.b16 %v2629, %v2628
  %v3610 = vpack.c.b16 %v2631, %v2630
  %v3611 = vpack.c.b16 %v2633, %v2632
  %v3612 = vpack.c.b16 %v2635, %v2634
  %v3613 = vpack.c.b16 %v2637, %v2636
  %v3614 = vpack.c.b16 %v2639, %v2638
  %v3615 = vpack.c.b16 %v2641, %v2640
  %v3616 = vpack.c.b16 %v2643, %v2642
  %v3617 = vpack.c.b16 %v2645, %v2644
  %v3618 = vpack.c.b16 %v2647, %v2646
  %v3619 = vpack.c.b16 %v2649, %v2648
  %v3620 = vpack.c.b16 %v2651, %v2650
  %v3621 = vpack.c.b16 %v2653, %v2652
  %v3622 = vpack.c.b16 %v2655, %v2654
  %v3623 = vpack.c.b16 %v2657, %v2656
  %v3624 = vpack.c.b16 %v2659, %v2658
  %v3625 = vpack.c.b16 %v2661, %v2660
  %v3626 = vpack.c.b16 %v2663, %v2662
  %v3627 = vpack.c.b16 %v2665, %v2664
  %v3628 = vpack.c.b16 %v2667, %v2666
  %v3629 = vpack.c.b16 %v2669, %v2668
  %v3630 = vpack.c.b16 %v2671, %v2670
  %v3631 = vpack.c.b16 %v2673, %v2672
  %v3632 = vpack.c.b16 %v2675, %v2674
  %v3633 = vpack.c.b16 %v2677, %v2676
  %v3634 = vpack.c.b16 %v2679, %v2678
  %v3635 = vpack.c.b16 %v2681, %v2680
  %v3636 = vpack.c.b16 %v2683, %v2682
  %v3637 = vpack.c.b16 %v2685, %v2684
  %v3638 = vpack.c.b16 %v2687, %v2686
  %v3639 = vpack.c.b16 %v2689, %v2688
  %v3640 = vpack.c.b16 %v2691, %v2690
  %v3641 = vpack.c.b16 %v2693, %v2692
  %v3642 = vpack.c.b16 %v2695, %v2694
  %v3643 = vpack.c.b16 %v2697, %v2696
  %v3644 = vpack.c.b16 %v2699, %v2698
  %v3645 = vpack.c.b16 %v2701, %v2700
  %v3646 = vpack.c.b16 %v2703, %v2702
  %v3647 = vpack.c.b16 %v2705, %v2704
  %v3648 = vpack.c.b16 %v2707, %v2706
  %v3649 = vpack.c.b16 %v2709, %v2708
  %v3650 = vpack.c.b16 %v2711, %v2710
  %v3651 = vpack.c.b16 %v2713, %v2712
  %v3652 = vpack.c.b16 %v2715, %v2714
  %v3653 = vpack.c.b16 %v2717, %v2716
  %v3654 = vpack.c.b16 %v2719, %v2718
  %v3655 = vpack.c.b16 %v2721, %v2720
  %v3656 = vpack.c.b16 %v2723, %v2722
  %v3657 = vpack.c.b16 %v2725, %v2724
  %v3658 = vpack.c.b16 %v2727, %v2726
  %v3659 = vpack.c.b16 %v2729, %v2728
  %v3660 = vpack.c.b16 %v2731, %v2730
  %v3661 = vpack.c.b16 %v2733, %v2732
  %v3662 = vpack.c.b16 %v2735, %v2734
  %v3663 = vpack.c.b16 %v2737, %v2736
  %v3664 = vpack.c.b16 %v2739, %v2738
  %v3665 = vpack.c.b16 %v2741, %v2740
  %v3666 = vpack.c.b16 %v2743, %v2742
  %v3667 = vpack.c.b16 %v2745, %v2744
  %v3668 = vpack.c.b16 %v2747, %v2746
  %v3669 = vpack.c.b16 %v2749, %v2748
  %v3670 = vpack.c.b16 %v2751, %v2750
  %v3671 = vpack.c.b16 %v2753, %v2752
  %v3672 = vpack.c.b16 %v2755, %v2754
  %v3673 = vpack.c.b16 %v2757, %v2756
  %v3674 = vpack.c.b16 %v2759, %v2758
  %v3675 = vpack.c.b16 %v2761, %v2760
  %v3676 = vpack.c.b16 %v2763, %v2762
  %v3677 = vpack.c.b16 %v2765, %v2764
  %v3678 = vpack.c.b16 %v2767, %v2766
  %v3679 = vpack.c.b16 %v2769, %v2768
  %v3680 = vpack.c.b16 %v2771, %v2770
  %v3681 = vpack.c.b16 %v2773, %v2772
  %v3682 = vpack.c.b16 %v2775, %v2774
  %v3683 = vpack.c.b16 %v2777, %v2776
  %v3684 = vpack.c.b16 %v2779, %v2778
  %v3685 = vpack.c.b16 %v2781, %v2780
  %v3686 = vpack.c.b16 %v2783, %v2782
  %v3687 = vpack.c.b16 %v2785, %v2784
  %v3688 = vpack.c.b16 %v2787, %v2786
  %v3689 = vpack.c.b16 %v2789, %v2788
  %v3690 = vpack.c.b16 %v2791, %v2790
  %v3691 = vpack.c.b16 %v2793, %v2792
  %v3692 = vpack.c.b16 %v2795, %v2794
  %v3693 = vpack.c.b16 %v2797, %v2796
  %v3694 = vpack.c.b16 %v2799, %v2798
  %v3695 = vpack.c.b16 %v2801, %v2800
  %v3696 = vpack.c.b16 %v2803, %v2802
  %v3697 = vpack.c.b16 %v2805, %v2804
  %v3698 = vpack.c.b16 %v2807, %v2806
  %v3699 = vpack.c.b16 %v2809, %v2808
  %v3700 = vpack.c.b16 %v2811, %v2810
  %v3701 = vpack.c.b16 %v2813, %v2812
  %v3702 = vpack.c.b16 %v2815, %v2814
  %v3703 = vpack.c.b16 %v2817, %v2816
  %v3704 = vpack.c.b16 %v2819, %v2818
  %v3705 = vpack.c.b16 %v2821, %v2820
  %v3706 = vpack.c.b16 %v2823, %v2822
  %v3707 = vpack.c.b16 %v2825, %v2824
  %v3708 = vpack.c.b16 %v2827, %v2826
  %v3709 = vpack.c.b16 %v2829, %v2828
  %v3710 = vpack.c.b16 %v2831, %v2830
  %v3711 = vpack.c.b16 %v2833, %v2832
  %v3712 = vpack.c.b16 %v2835, %v2834
  %v3713 = vpack.c.b16 %v2837, %v2836
  %v3714 = vpack.c.b16 %v2839, %v2838
  %v3715 = vpack.c.b16 %v2841, %v2840
  %v3716 = vpack.c.b16 %v2843, %v2842
  %v3717 = vpack.c.b16 %v2845, %v2844
  %v3718 = vpack.c.b16 %v2847, %v2846
  %v3719 = vpack.c.b16 %v2849, %v2848
  %v3720 = vpack.c.b16 %v2851, %v2850
  %v3721 = vpack.c.b16 %v2853, %v2852
  %v3722 = vpack.c.b16 %v2855, %v2854
  %v3723 = vpack.c.b16 %v2857, %v2856
  %v3724 = vpack.c.b16 %v2859, %v2858
  %v3725 = vpack.c.b16 %v2861, %v2860
  %v3726 = vpack.c.b16 %v2863, %v2862
  %v3727 = vpack.c.b16 %v2865, %v2864
  %v3728 = vpack.c.b16 %v2867, %v2866
  %v3729 = vpack.c.b16 %v2869, %v2868
  %v3730 = vpack.c.b16 %v2871, %v2870
  %v3731 = vpack.c.b16 %v2873, %v2872
  %v3732 = vpack.c.b16 %v2875, %v2874
  %v3733 = vpack.c.b16 %v2877, %v2876
  %v3734 = vpack.c.b16 %v2879, %v2878
  %v3735 = vpack.c.b16 %v2881, %v2880
  %v3736 = vpack.c.b16 %v2883, %v2882
  %v3737 = vpack.c.b16 %v2885, %v2884
  %v3738 = vpack.c.b16 %v2887, %v2886
  %v3739 = vpack.c.b16 %v2889, %v2888
  %v3740 = vpack.c.b16 %v2891, %v2890
  %v3741 = vpack.c.b16 %v2893, %v2892
  %v3742 = vpack.c.b16 %v2895, %v2894
  %v3743 = vpack.c.b16 %v2897, %v2896
  %v3744 = vpack.c.b16 %v2899, %v2898
  %v3745 = vpack.c.b16 %v2901, %v2900
  %v3746 = vpack.c.b16 %v2903, %v2902
  %v3747 = vpack.c.b16 %v2905, %v2904
  %v3748 = vpack.c.b16 %v2907, %v2906
  %v3749 = vpack.c.b16 %v2909, %v2908
  %v3750 = vpack.c.b16 %v2911, %v2910
  %v3751 = vpack.c.b16 %v2913, %v2912
  %v3752 = vpack.c.b16 %v2915, %v2914
  %v3753 = vpack.c.b16 %v2917, %v2916
  %v3754 = vpack.c.b16 %v2919, %v2918
  %v3755 = vpack.c.b16 %v2921, %v2920
  %v3756 = vpack.c.b16 %v2923, %v2922
  %v3757 = vpack.c.b16 %v2925, %v2924
  %v3758 = vpack.c.b16 %v2927, %v2926
  %v3759 = vpack.c.b16 %v2929, %v2928
  %v3760 = vpack.c.b16 %v2931, %v2930
  %v3761 = vpack.c.b16 %v2933, %v2932
  %v3762 = vpack.c.b16 %v2935, %v2934
  %v3763 = vpack.c.b16 %v2937, %v2936
  %v3764 = vpack.c.b16 %v2939, %v2938
  %v3765 = vpack.c.b16 %v2941, %v2940
  %v3766 = vpack.c.b16 %v2943, %v2942
  %v3767 = vpack.c.b16 %v2945, %v2944
  %v3768 = vpack.c.b16 %v2947, %v2946
  %v3769 = vpack.c.b16 %v2949, %v2948
  %v3770 = vpack.c.b16 %v2951, %v2950
  %v3771 = vpack.c.b16 %v2953, %v2952
  %v3772 = vpack.c.b16 %v2955, %v2954
  %v3773 = vpack.c.b16 %v2957, %v2956
  %v3774 = vpack.c.b16 %v2959, %v2958
  %v3775 = vpack.c.b16 %v2961, %v2960
  %v3776 = vpack.c.b16 %v2963, %v2962
  %v3777 = vpack.c.b16 %v2965, %v2964
  %v3778 = vpack.c.b16 %v2967, %v2966
  %v3779 = vpack.c.b16 %v2969, %v2968
  %v3780 = vpack.c.b16 %v2971, %v2970
  %v3781 = vpack.c.b16 %v2973, %v2972
  %v3782 = vpack.c.b16 %v2975, %v2974
  %v3783 = vpack.c.b16 %v2977, %v2976
  %v3784 = vpack.c.b16 %v2979, %v2978
  %v3785 = vpack.c.b16 %v2981, %v2980
  %v3786 = vpack.c.b16 %v2983, %v2982
  %v3787 = vpack.c.b16 %v2985, %v2984
  %v3788 = vpack.c.b16 %v2987, %v2986
  %v3789 = vpack.c.b16 %v2989, %v2988
  %v3790 = vpack.c.b16 %v2991, %v2990
  %v3791 = vpack.c.b16 %v2993, %v2992
  %v3792 = vpack.c.b16 %v2995, %v2994
  %v3793 = vpack.c.b16 %v2997, %v2996
  %v3794 = vpack.c.b16 %v2999, %v2998
  %v3795 = vpack.c.b16 %v3001, %v3000
  %v3796 = vpack.c.b16 %v3003, %v3002
  %v3797 = vpack.c.b16 %v3005, %v3004
  %v3798 = vpack.c.b16 %v3007, %v3006
  %v3799 = vpack.c.b16 %v3009, %v3008
  %v3800 = vpack.c.b16 %v3011, %v3010
  %v3801 = vpack.c.b16 %v3013, %v3012
  %v3802 = vpack.c.b16 %v3015, %v3014
  %v3803 = vpack.c.b16 %v3017, %v3016
  %v3804 = vpack.c.b16 %v3019, %v3018
  %v3805 = vpack.c.b16 %v3021, %v3020
  %v3806 = vpack.c.b16 %v3023, %v3022
  %v3807 = vpack.c.b16 %v3025, %v3024
  %v3808 = vpack.c.b16 %v3027, %v3026
  %v3809 = vpack.c.b16 %v3029, %v3028
  %v3810 = vpack.c.b16 %v3031, %v3030
  %v3811 = vpack.c.b16 %v3033, %v3032
  %v3812 = vpack.c.b16 %v3035, %v3034
  %v3813 = vpack.c.b16 %v3037, %v3036
  %v3814 = vpack.c.b16 %v3039, %v3038
  %v3815 = vpack.c.b16 %v3041, %v3040
  %v3816 = vpack.c.b16 %v3043, %v3042
  %v3817 = vpack.c.b16 %v3045, %v3044
  %v3818 = vpack.c.b16 %v3047, %v3046
  %v3819 = vpack.c.b16 %v3049, %v3048
  %v3820 = vpack.c.b16 %v3051, %v3050
  %v3821 = vpack.c.b16 %v3053, %v3052
  %v3822 = vpack.c.b16 %v3055, %v3054
  %v3823 = vpack.c.b16 %v3057, %v3056
  %v3824 = vpack.c.b16 %v3059, %v3058
  %v3825 = vpack.c.b16 %v3061, %v3060
  %v3826 = vpack.c.b16 %v3063, %v3062
  %v3827 = vpack.c.b16 %v3065, %v3064
  %v3828 = vpack.c.b16 %v3067, %v3066
  %v3829 = vpack.c.b16 %v3069, %v3068
  %v3830 = vpack.c.b16 %v3071, %v3070
  %v3831 = vpack.c.b16 %v3073, %v3072
  %v3832 = vpack.c.b16 %v3075, %v3074
  %v3833 = vpack.c.b16 %v3077, %v3076
  %v3834 = vpack.c.b16 %v3079, %v3078
  %v3835 = vpack.c.b16 %v3081, %v3080
  %v3836 = vpack.c.b16 %v3083, %v3082
  %v3837 = vpack.c.b16 %v3085, %v3084
  %v3838 = vpack.c.b16 %v3087, %v3086
  %v3839 = vpack.c.b16 %v3089, %v3088
  %v3840 = vpack.c.b16 %v3091, %v3090
  %v3841 = vpack.c.b16 %v3093, %v3092
  %v3842 = vpack.c.b16 %v3095, %v3094
  %v3843 = vpack.c.b16 %v3097, %v3096
  %v3844 = vpack.c.b16 %v3099, %v3098
  %v3845 = vpack.c.b16 %v3101, %v3100
  %v3846 = vpack.c.b16 %v3103, %v3102
  %v3847 = vpack.c.b16 %v3105, %v3104
  %v3848 = vpack.c.b16 %v3107, %v3106
  %v3849 = vpack.c.b16 %v3109, %v3108
  %v3850 = vpack.c.b16 %v3111, %v3110
  %v3851 = vpack.c.b16 %v3113, %v3112
  %v3852 = vpack.c.b16 %v3115, %v3114
  %v3853 = vpack.c.b16 %v3117, %v3116
  %v3854 = vpack.c.b16 %v3119, %v3118
  %v3855 = vpack.c.b16 %v3121, %v3120
  %v3856 = vpack.c.b16 %v3123, %v3122
  %v3857 = vpack.c.b16 %v3125, %v3124
  %v3858 = vpack.c.b16 %v3127, %v3126
  %v3859 = vpack.c.b16 %v3129, %v3128
  %v3860 = vpack.c.b16 %v3131, %v3130
  %v3861 = vpack.c.b16 %v3133, %v3132
  %v3862 = vpack.c.b16 %v3135, %v3134
  %v3863 = vpack.c.b16 %v3137, %v3136
  %v3864 = vpack.c.b16 %v3139, %v3138
  %v3865 = vpack.c.b16 %v3141, %v3140
  %v3866 = vpack.c.b16 %v3143, %v3142
  %v3867 = vpack.c.b16 %v3145, %v3144
  %v3868 = vpack.c.b16 %v3147, %v3146
  %v3869 = vpack.c.b16 %v3149, %v3148
  %v3870 = vpack.c.b16 %v3151, %v3150
  %v3871 = vpack.c.b16 %v3153, %v3152
  %v3872 = vpack.c.b16 %v3155, %v3154
  %v3873 = vpack.c.b16 %v3157, %v3156
  %v3874 = vpack.c.b16 %v3159, %v3158
  %v3875 = vpack.c.b16 %v3161, %v3160
  %v3876 = vpack.c.b16 %v3163, %v3162
  %v3877 = vpack.c.b16 %v3165, %v3164
  %v3878 = vpack.c.b16 %v3167, %v3166
  %v3879 = vpack.c.b16 %v3169, %v3168
  %v3880 = vpack.c.b16 %v3171, %v3170
  %v3881 = vpack.c.b16 %v3173, %v3172
  %v3882 = vpack.c.b16 %v3175, %v3174
  %v3883 = vpack.c.b16 %v3177, %v3176
  %v3884 = vpack.c.b16 %v3179, %v3178
  %v3885 = vpack.c.b16 %v3181, %v3180
  %v3886 = vpack.c.b16 %v3183, %v3182
  %v3887 = vpack.c.b16 %v3185, %v3184
  %v3888 = vpack.c.b16 %v3187, %v3186
  %v3889 = vpack.c.b16 %v3189, %v3188
  %v3890 = vpack.c.b16 %v3191, %v3190
  %v3891 = vpack.c.b16 %v3193, %v3192
  %v3892 = vpack.c.b16 %v3195, %v3194
  %v3893 = vpack.c.b16 %v3197, %v3196
  %v3894 = vpack.c.b16 %v3199, %v3198
  %v3895 = vpack.c.b16 %v3201, %v3200
  %v3896 = vpack.c.b16 %v3203, %v3202
  %v3897 = vpack.c.b16 %v3205, %v3204
  %v3898 = vpack.c.b16 %v3207, %v3206
  %v3899 = vpack.c.b16 %v3209, %v3208
  %v3900 = vpack.c.b16 %v3211, %v3210
  %v3901 = vpack.c.b16 %v3213, %v3212
  %v3902 = vpack.c.b16 %v3215, %v3214
  %v3903 = vpack.c.b16 %v3217, %v3216
  %v3904 = vpack.c.b16 %v3219, %v3218
  %v3905 = vpack.c.b16 %v3221, %v3220
  %v3906 = vpack.c.b16 %v3223, %v3222
  %v3907 = vpack.c.b16 %v3225, %v3224
  %v3908 = vpack.c.b16 %v3227, %v3226
  %v3909 = vpack.c.b16 %v3229, %v3228
  %v3910 = vpack.c.b16 %v3231, %v3230
  %v3911 = vpack.c.b16 %v3233, %v3232
  %v3912 = vpack.c.b16 %v3235, %v3234
  %v3913 = vpack.c.b16 %v3237, %v3236
  %v3914 = vpack.c.b16 %v3239, %v3238
  %v3915 = vpack.c.b16 %v3241, %v3240
  %v3916 = vpack.c.b16 %v3243, %v3242
  %v3917 = vpack.c.b16 %v3245, %v3244
  %v3918 = vpack.c.b16 %v3247, %v3246
  %v3919 = vpack.c.b16 %v3249, %v3248
  %v3920 = vpack.c.b16 %v3251, %v3250
  %v3921 = vpack.c.b16 %v3253, %v3252
  %v3922 = vpack.c.b16 %v3255, %v3254
  %v3923 = vpack.c.b16 %v3257, %v3256
  %v3924 = vpack.c.b16 %v3259, %v3258
  %v3925 = vpack.c.b16 %v3261, %v3260
  %v3926 = vpack.c.b16 %v3263, %v3262
  %v3927 = vpack.c.b16 %v3265, %v3264
  %v3928 = vpack.c.b16 %v3267, %v3266
  %v3929 = vpack.c.b16 %v3269, %v3268
  %v3930 = vpack.c.b16 %v3271, %v3270
  %v3931 = vpack.c.b16 %v3273, %v3272
  %v3932 = vpack.c.b16 %v3275, %v3274
  %v3933 = vpack.c.b16 %v3277, %v3276
  %v3934 = vpack.c.b16 %v3279, %v3278
  %v3935 = vpack.c.b16 %v3281, %v3280
  %v3936 = vpack.c.b16 %v3283, %v3282
  %v3937 = vpack.c.b16 %v3285, %v3284
  %v3938 = vpack.c.b16 %v3287, %v3286
  %v3939 = vpack.c.b16 %v3289, %v3288
  %v3940 = vpack.c.b16 %v3291, %v3290
  %v3941 = vpack.c.b16 %v3293, %v3292
  %v3942 = vpack.c.b16 %v3295, %v3294
  %v3943 = vpack.c.b16 %v3297, %v3296
  %v3944 = vpack.c.b16 %v3299, %v3298
  %v3945 = vpack.c.b16 %v3301, %v3300
  %v3946 = vpack.c.b16 %v3303, %v3302
  %v3947 = vpack.c.b16 %v3305, %v3304
  %v3948 = vpack.c.b16 %v3307, %v3306
  %v3949 = vpack.c.b16 %v3309, %v3308
  %v3950 = vpack.c.b16 %v3311, %v3310
  %v3951 = vpack.c.b16 %v3313, %v3312
  %v3952 = vpack.c.b16 %v3315, %v3314
  %v3953 = vpack.c.b16 %v3317, %v3316
  %v3954 = vpack.c.b16 %v3319, %v3318
  %v3955 = vpack.c.b16 %v3321, %v3320
  %v3956 = vpack.c.b16 %v3323, %v3322
  %v3957 = vpack.c.b16 %v3325, %v3324
  %v3958 = vpack.c.b16 %v3327, %v3326
  %v3959 = vpack.c.b16 %v3329, %v3328
  %v3960 = vpack.c.b16 %v3331, %v3330
  %v3961 = vpack.c.b16 %v3333, %v3332
  %v3962 = vpack.c.b16 %v3335, %v3334
  %v3963 = vpack.c.b16 %v3337, %v3336
  %v3964 = vpack.c.b16 %v3339, %v3338
  %v3965 = vpack.c.b16 %v3341, %v3340
  %v3966 = vpack.c.b16 %v3343, %v3342
  %v3967 = vpack.c.b16 %v3345, %v3344
  %v3968 = vpack.c.b16 %v3347, %v3346
  %v3969 = vpack.c.b16 %v3349, %v3348
  %v3970 = vpack.c.b16 %v3351, %v3350
  %v3971 = vpack.c.b16 %v3353, %v3352
  %v3972 = vpack.c.b16 %v3355, %v3354
  %v3973 = vpack.c.b16 %v3357, %v3356
  %v3974 = vpack.c.b16 %v3359, %v3358
  %v3975 = vpack.c.b16 %v3361, %v3360
  %v3976 = vpack.c.b16 %v3363, %v3362
  %v3977 = vpack.c.b16 %v3365, %v3364
  %v3978 = vpack.c.b16 %v3367, %v3366
  %v3979 = vpack.c.b16 %v3369, %v3368
  %v3980 = vpack.c.b16 %v3371, %v3370
  %v3981 = vpack.c.b16 %v3373, %v3372
  %v3982 = vpack.c.b16 %v3375, %v3374
  %v3983 = vpack.c.b16 %v3377, %v3376
  %v3984 = vpack.c.b16 %v3379, %v3378
  %v3985 = vpack.c.b16 %v3381, %v3380
  %v3986 = vpack.c.b16 %v3383, %v3382
  %v3987 = vpack.c.b16 %v3385, %v3384
  %v3988 = vpack.c.b16 %v3387, %v3386
  %v3989 = vpack.c.b16 %v3389, %v3388
  %v3990 = vpack.c.b16 %v3391, %v3390
  %v3991 = vpack.c.b16 %v3393, %v3392
  %v3992 = vpack.c.b16 %v3395, %v3394
  %v3993 = vpack.c.b16 %v3397, %v3396
  %v3994 = vpack.c.b16 %v3399, %v3398
  %v3995 = vpack.c.b16 %v3401, %v3400
  %v3996 = vpack.c.b16 %v3403, %v3402
  %v3997 = vpack.c.b16 %v3405, %v3404
  %v3998 = vpack.c.b16 %v3407, %v3406
  %v3999 = vpack.c.b16 %v3409, %v3408
  %v4000 = vpack.c.b16 %v3411, %v3410
  %v4001 = vpack.c.b16 %v3413, %v3412
  %v4002 = vpack.c.b16 %v3415, %v3414
  %v4003 = vpack.c.b16 %v3417, %v3416
  %v4004 = vpack.c.b16 %v3419, %v3418
  %v4005 = vpack.c.b16 %v3421, %v3420
  %v4006 = vpack.c.b16 %v3423, %v3422
  %v4007 = vpack.c.b16 %v3425, %v3424
  %v4008 = vpack.c.b16 %v3427, %v3426
  %v4009 = vpack.c.b16 %v3429, %v3428
  %v4010 = vpack.c.b16 %v3431, %v3430
  %v4011 = vpack.c.b16 %v3433, %v3432
  %v4012 = vpack.c.b16 %v3435, %v3434
  %v4013 = vpack.c.b16 %v3437, %v3436
  %v4014 = vpack.c.b16 %v3439, %v3438
  %v4015 = vpack.c.b16 %v3441, %v3440
  %v4016 = vpack.c.b16 %v3443, %v3442
  %v4017 = vpack.c.b16 %v3445, %v3444
  %v4018 = vpack.c.b16 %v3447, %v3446
  %v4019 = vpack.c.b16 %v3449, %v3448
  %v4020 = vpack.c.b16 %v3451, %v3450
  %v4021 = vpack.c.b16 %v3453, %v3452
  %v4022 = vpack.c.b16 %v3455, %v3454
  %v4023 = vpack.c.b16 %v3457, %v3456
  %v4024 = vpack.c.b16 %v3459, %v3458
  %v4025 = vpack.c.b16 %v3461, %v3460
  %v4026 = vpack.c.b16 %v3463, %v3462
  %v4027 = vpack.c.b16 %v3465, %v3464
  %v4028 = vpack.c.b16 %v3467, %v3466
  %v4029 = vpack.c.b16 %v3469, %v3468
  %v4030 = vpack.c.b16 %v3471, %v3470
  %v4031 = vpack.c.b16 %v3473, %v3472
  %v4032 = vpack.c.b16 %v3475, %v3474
  %v4033 = vpack.c.b16 %v3477, %v3476
  %v4034 = vpack.c.b16 %v3479, %v3478
  %v4035 = vpack.c.b16 %v3481, %v3480
  %v4036 = vpack.c.b16 %v3483, %v3482
  %v4037 = vpack.c.b16 %v3485, %v3484
  %v4038 = vpack.c.b16 %v3487, %v3486
  %v4039 = vpack.c.b16 %v3489, %v3488
  %v4040 = vpack.c.b16 %v3491, %v3490
  %v4041 = vpack.c.b16 %v3493, %v3492
  %v4042 = vpack.c.b16 %v3495, %v3494
  %v4043 = vpack.c.b16 %v3497, %v3496
  %v4044 = vpack.c.b16 %v3499, %v3498
  %v4045 = vpack.c.b16 %v3501, %v3500
  %v4046 = vpack.c.b16 %v3503, %v3502
  %v4047 = vpack.c.b16 %v3505, %v3504
  %v4048 = vpack.c.b16 %v3507, %v3506
  %v4049 = vpack.c.b16 %v3509, %v3508
  %v4050 = vpack.c.b16 %v3511, %v3510
  %v4051 = vpack.c.b16 %v3513, %v3512
  %v4052 = vpack.c.b16 %v3515, %v3514
  %v4053 = vpack.c.b16 %v3517, %v3516
  %v4054 = vpack.c.b16 %v3519, %v3518
  %v4055 = vpack.c.b16 %v3521, %v3520
  %v4056 = vpack.c.b16 %v3523, %v3522
  %v4057 = vpack.c.b16 %v3525, %v3524
  %v4058 = vpack.c.b16 %v3527, %v3526
  %v4059 = vpack.c.b16 %v3529, %v3528
  %v4060 = vpack.c.b16 %v3531, %v3530
  %v4061 = vpack.c.b16 %v3533, %v3532
  %v4062 = vpack.c.b16 %v3535, %v3534
  %v4063 = vpack.c.b16 %v3537, %v3536
  %v4064 = vpack.c.b16 %v3539, %v3538
  %v4065 = vpack.c.b16 %v3541, %v3540
  %v4066 = vpack.c.b16 %v3543, %v3542
  %v4067 = vpack.c.b16 %v3545, %v3544
  %v4068 = vpack.c.b16 %v3547, %v3546
  %v4069 = vpack.c.b16 %v3549, %v3548
  %v4070 = vpack.c.b16 %v3551, %v3550
  %v4071 = vpack.c.b16 %v3553, %v3552
  %v4072 = vpack.c.b16 %v3555, %v3554
  %v4073 = vpack.c.b16 %v3557, %v3556
  %v4074 = vpack.c.b16 %v3559, %v3558
  %v4075 = vpack.c.b16 %v3561, %v3560
  %v4076 = vpack.c.b16 %v3563, %v3562
  %v4077 = vpack.c.b16 %v3565, %v3564
  %4590 = vmatprep.subr.bf16.mxu0 0
  %4591 = vmatpush1.bf16.msra.mxu0 %v3573
  %4592 = vmatprep.subr.bf16.mxu0 0
  %4593 = vmatpush1.bf16.msra.mxu0 %v3572
  %4594 = vmatprep.subr.bf16.mxu0 0
  %4595 = vmatpush1.bf16.msra.mxu0 %v3571
  %4596 = vmatprep.subr.bf16.mxu0 0
  %4597 = vmatpush1.bf16.msra.mxu0 %v3570
  %4598 = vmatprep.subr.bf16.mxu0 0
  %4599 = vmatpush1.bf16.msra.mxu0 %v3569
  %4600 = vmatprep.subr.bf16.mxu0 0
  %4601 = vmatpush1.bf16.msra.mxu0 %v3568
  %4602 = vmatprep.subr.bf16.mxu0 0
  %4603 = vmatpush1.bf16.msra.mxu0 %v3567
  %4604 = vmatprep.subr.bf16.mxu0 0
  %4605 = vmatpush1.bf16.msra.mxu0 %v3566
  %4606 = vmatprep.subr.bf16.mxu0 0
  %4607 = vmatpush2.bf16.msra.mxu0 %v3581
  %4608 = vmatprep.subr.bf16.mxu0 0
  %4609 = vmatpush2.bf16.msra.mxu0 %v3580
  %4610 = vmatprep.subr.bf16.mxu0 0
  %4611 = vmatpush2.bf16.msra.mxu0 %v3579
  %4612 = vmatprep.subr.bf16.mxu0 0
  %4613 = vmatpush2.bf16.msra.mxu0 %v3578
  %4614 = vmatprep.subr.bf16.mxu0 0
  %4615 = vmatpush2.bf16.msra.mxu0 %v3577
  %4616 = vmatprep.subr.bf16.mxu0 0
  %4617 = vmatpush2.bf16.msra.mxu0 %v3576
  %4618 = vmatprep.subr.bf16.mxu0 0
  %4619 = vmatpush2.bf16.msra.mxu0 %v3575
  %4620 = vmatprep.subr.bf16.mxu0 0
  %4621 = vmatpush2.bf16.msra.mxu0 %v3574
  %4622 = vmatprep.mubr.bf16.mxu0 %v1099
  %4623 = vmatmul.mubr.bf16.gmra.mxu0 %v1085
  %v4624 = vpop.f32.mrf.mxu0
  %v4625 = vadd.f32 %v1052, %v4624
  %v4626 = vpop.f32.mrf.mxu0
  %v4627 = vpop.f32.mrf.mxu0
  %v4628 = vpop.f32.mrf.mxu0
  %4629 = vdwg.mxu0
  %4630 = vmatprep.subr.bf16.mxu0 0
  %4631 = vmatpush1.bf16.msra.mxu0 %v3589
  %4632 = vmatprep.subr.bf16.mxu0 0
  %4633 = vmatpush1.bf16.msra.mxu0 %v3588
  %4634 = vmatprep.subr.bf16.mxu0 0
  %4635 = vmatpush1.bf16.msra.mxu0 %v3587
  %4636 = vmatprep.subr.bf16.mxu0 0
  %4637 = vmatpush1.bf16.msra.mxu0 %v3586
  %4638 = vmatprep.subr.bf16.mxu0 0
  %4639 = vmatpush1.bf16.msra.mxu0 %v3585
  %4640 = vmatprep.subr.bf16.mxu0 0
  %4641 = vmatpush1.bf16.msra.mxu0 %v3584
  %4642 = vmatprep.subr.bf16.mxu0 0
  %4643 = vmatpush1.bf16.msra.mxu0 %v3583
  %4644 = vmatprep.subr.bf16.mxu0 0
  %4645 = vmatpush1.bf16.msra.mxu0 %v3582
  %4646 = vmatprep.subr.bf16.mxu0 0
  %4647 = vmatpush2.bf16.msra.mxu0 %v3597
  %4648 = vmatprep.subr.bf16.mxu0 0
  %4649 = vmatpush2.bf16.msra.mxu0 %v3596
  %4650 = vmatprep.subr.bf16.mxu0 0
  %4651 = vmatpush2.bf16.msra.mxu0 %v3595
  %4652 = vmatprep.subr.bf16.mxu0 0
  %4653 = vmatpush2.bf16.msra.mxu0 %v3594
  %4654 = vmatprep.subr.bf16.mxu0 0
  %4655 = vmatpush2.bf16.msra.mxu0 %v3593
  %4656 = vmatprep.subr.bf16.mxu0 0
  %4657 = vmatpush2.bf16.msra.mxu0 %v3592
  %4658 = vmatprep.subr.bf16.mxu0 0
  %4659 = vmatpush2.bf16.msra.mxu0 %v3591
  %4660 = vmatprep.subr.bf16.mxu0 0
  %4661 = vmatpush2.bf16.msra.mxu0 %v3590
  %4662 = vmatprep.mubr.bf16.mxu0 %v1109
  %4663 = vmatmul.mubr.bf16.gmra.mxu0 %v1107
  %v4664 = vpop.f32.mrf.mxu0
  %v4665 = vadd.f32 %v4625, %v4664
  %v4666 = vpop.f32.mrf.mxu0
  %v4667 = vpop.f32.mrf.mxu0
  %v4668 = vpop.f32.mrf.mxu0
  %4669 = vdwg.mxu0
  %4670 = vmatprep.subr.bf16.mxu0 0
  %4671 = vmatpush1.bf16.msra.mxu0 %v3605
  %4672 = vmatprep.subr.bf16.mxu0 0
  %4673 = vmatpush1.bf16.msra.mxu0 %v3604
  %4674 = vmatprep.subr.bf16.mxu0 0
  %4675 = vmatpush1.bf16.msra.mxu0 %v3603
  %4676 = vmatprep.subr.bf16.mxu0 0
  %4677 = vmatpush1.bf16.msra.mxu0 %v3602
  %4678 = vmatprep.subr.bf16.mxu0 0
  %4679 = vmatpush1.bf16.msra.mxu0 %v3601
  %4680 = vmatprep.subr.bf16.mxu0 0
  %4681 = vmatpush1.bf16.msra.mxu0 %v3600
  %4682 = vmatprep.subr.bf16.mxu0 0
  %4683 = vmatpush1.bf16.msra.mxu0 %v3599
  %4684 = vmatprep.subr.bf16.mxu0 0
  %4685 = vmatpush1.bf16.msra.mxu0 %v3598
  %4686 = vmatprep.subr.bf16.mxu0 0
  %4687 = vmatpush2.bf16.msra.mxu0 %v3613
  %4688 = vmatprep.subr.bf16.mxu0 0
  %4689 = vmatpush2.bf16.msra.mxu0 %v3612
  %4690 = vmatprep.subr.bf16.mxu0 0
  %4691 = vmatpush2.bf16.msra.mxu0 %v3611
  %4692 = vmatprep.subr.bf16.mxu0 0
  %4693 = vmatpush2.bf16.msra.mxu0 %v3610
  %4694 = vmatprep.subr.bf16.mxu0 0
  %4695 = vmatpush2.bf16.msra.mxu0 %v3609
  %4696 = vmatprep.subr.bf16.mxu0 0
  %4697 = vmatpush2.bf16.msra.mxu0 %v3608
  %4698 = vmatprep.subr.bf16.mxu0 0
  %4699 = vmatpush2.bf16.msra.mxu0 %v3607
  %4700 = vmatprep.subr.bf16.mxu0 0
  %4701 = vmatpush2.bf16.msra.mxu0 %v3606
  %4702 = vmatprep.mubr.bf16.mxu0 %v1106
  %4703 = vmatmul.mubr.bf16.gmra.mxu0 %v1092
  %v4704 = vpop.f32.mrf.mxu0
  %v4705 = vadd.f32 %v4665, %v4704
  %v4706 = vpop.f32.mrf.mxu0
  %v4707 = vpop.f32.mrf.mxu0
  %v4708 = vpop.f32.mrf.mxu0
  %4709 = vdwg.mxu0
  %4710 = vmatprep.subr.bf16.mxu0 0
  %4711 = vmatpush1.bf16.msra.mxu0 %v3621
  %4712 = vmatprep.subr.bf16.mxu0 0
  %4713 = vmatpush1.bf16.msra.mxu0 %v3620
  %4714 = vmatprep.subr.bf16.mxu0 0
  %4715 = vmatpush1.bf16.msra.mxu0 %v3619
  %4716 = vmatprep.subr.bf16.mxu0 0
  %4717 = vmatpush1.bf16.msra.mxu0 %v3618
  %4718 = vmatprep.subr.bf16.mxu0 0
  %4719 = vmatpush1.bf16.msra.mxu0 %v3617
  %4720 = vmatprep.subr.bf16.mxu0 0
  %4721 = vmatpush1.bf16.msra.mxu0 %v3616
  %4722 = vmatprep.subr.bf16.mxu0 0
  %4723 = vmatpush1.bf16.msra.mxu0 %v3615
  %4724 = vmatprep.subr.bf16.mxu0 0
  %4725 = vmatpush1.bf16.msra.mxu0 %v3614
  %4726 = vmatprep.subr.bf16.mxu0 0
  %4727 = vmatpush2.bf16.msra.mxu0 %v3629
  %4728 = vmatprep.subr.bf16.mxu0 0
  %4729 = vmatpush2.bf16.msra.mxu0 %v3628
  %4730 = vmatprep.subr.bf16.mxu0 0
  %4731 = vmatpush2.bf16.msra.mxu0 %v3627
  %4732 = vmatprep.subr.bf16.mxu0 0
  %4733 = vmatpush2.bf16.msra.mxu0 %v3626
  %4734 = vmatprep.subr.bf16.mxu0 0
  %4735 = vmatpush2.bf16.msra.mxu0 %v3625
  %4736 = vmatprep.subr.bf16.mxu0 0
  %4737 = vmatpush2.bf16.msra.mxu0 %v3624
  %4738 = vmatprep.subr.bf16.mxu0 0
  %4739 = vmatpush2.bf16.msra.mxu0 %v3623
  %4740 = vmatprep.subr.bf16.mxu0 0
  %4741 = vmatpush2.bf16.msra.mxu0 %v3622
  %4742 = vmatprep.mubr.bf16.mxu0 %v1110
  %4743 = vmatmul.mubr.bf16.gmra.mxu0 %v1108
  %v4744 = vpop.f32.mrf.mxu0
  %v4745 = vadd.f32 %v4705, %v4744
  %v4746 = vpop.f32.mrf.mxu0
  %v4747 = vpop.f32.mrf.mxu0
  %v4748 = vpop.f32.mrf.mxu0
  %4749 = vdwg.mxu0
  %4750 = vmatprep.subr.bf16.mxu0 0
  %4751 = vmatpush1.bf16.msra.mxu0 %v3637
  %4752 = vmatprep.subr.bf16.mxu0 0
  %4753 = vmatpush1.bf16.msra.mxu0 %v3636
  %4754 = vmatprep.subr.bf16.mxu0 0
  %4755 = vmatpush1.bf16.msra.mxu0 %v3635
  %4756 = vmatprep.subr.bf16.mxu0 0
  %4757 = vmatpush1.bf16.msra.mxu0 %v3634
  %4758 = vmatprep.subr.bf16.mxu0 0
  %4759 = vmatpush1.bf16.msra.mxu0 %v3633
  %4760 = vmatprep.subr.bf16.mxu0 0
  %4761 = vmatpush1.bf16.msra.mxu0 %v3632
  %4762 = vmatprep.subr.bf16.mxu0 0
  %4763 = vmatpush1.bf16.msra.mxu0 %v3631
  %4764 = vmatprep.subr.bf16.mxu0 0
  %4765 = vmatpush1.bf16.msra.mxu0 %v3630
  %4766 = vmatprep.subr.bf16.mxu0 0
  %4767 = vmatpush2.bf16.msra.mxu0 %v3645
  %4768 = vmatprep.subr.bf16.mxu0 0
  %4769 = vmatpush2.bf16.msra.mxu0 %v3644
  %4770 = vmatprep.subr.bf16.mxu0 0
  %4771 = vmatpush2.bf16.msra.mxu0 %v3643
  %4772 = vmatprep.subr.bf16.mxu0 0
  %4773 = vmatpush2.bf16.msra.mxu0 %v3642
  %4774 = vmatprep.subr.bf16.mxu0 0
  %4775 = vmatpush2.bf16.msra.mxu0 %v3641
  %4776 = vmatprep.subr.bf16.mxu0 0
  %4777 = vmatpush2.bf16.msra.mxu0 %v3640
  %4778 = vmatprep.subr.bf16.mxu0 0
  %4779 = vmatpush2.bf16.msra.mxu0 %v3639
  %4780 = vmatprep.subr.bf16.mxu0 0
  %4781 = vmatpush2.bf16.msra.mxu0 %v3638
  %4782 = vmatprep.mubr.bf16.mxu0 %v1148
  %4783 = vmatmul.mubr.bf16.gmra.mxu0 %v1134
  %v4784 = vpop.f32.mrf.mxu0
  %v4785 = vadd.f32 %v4745, %v4784
  %v4786 = vpop.f32.mrf.mxu0
  %v4787 = vpop.f32.mrf.mxu0
  %v4788 = vpop.f32.mrf.mxu0
  %4789 = vdwg.mxu0
  %4790 = vmatprep.subr.bf16.mxu0 0
  %4791 = vmatpush1.bf16.msra.mxu0 %v3653
  %4792 = vmatprep.subr.bf16.mxu0 0
  %4793 = vmatpush1.bf16.msra.mxu0 %v3652
  %4794 = vmatprep.subr.bf16.mxu0 0
  %4795 = vmatpush1.bf16.msra.mxu0 %v3651
  %4796 = vmatprep.subr.bf16.mxu0 0
  %4797 = vmatpush1.bf16.msra.mxu0 %v3650
  %4798 = vmatprep.subr.bf16.mxu0 0
  %4799 = vmatpush1.bf16.msra.mxu0 %v3649
  %4800 = vmatprep.subr.bf16.mxu0 0
  %4801 = vmatpush1.bf16.msra.mxu0 %v3648
  %4802 = vmatprep.subr.bf16.mxu0 0
  %4803 = vmatpush1.bf16.msra.mxu0 %v3647
  %4804 = vmatprep.subr.bf16.mxu0 0
  %4805 = vmatpush1.bf16.msra.mxu0 %v3646
  %4806 = vmatprep.subr.bf16.mxu0 0
  %4807 = vmatpush2.bf16.msra.mxu0 %v3661
  %4808 = vmatprep.subr.bf16.mxu0 0
  %4809 = vmatpush2.bf16.msra.mxu0 %v3660
  %4810 = vmatprep.subr.bf16.mxu0 0
  %4811 = vmatpush2.bf16.msra.mxu0 %v3659
  %4812 = vmatprep.subr.bf16.mxu0 0
  %4813 = vmatpush2.bf16.msra.mxu0 %v3658
  %4814 = vmatprep.subr.bf16.mxu0 0
  %4815 = vmatpush2.bf16.msra.mxu0 %v3657
  %4816 = vmatprep.subr.bf16.mxu0 0
  %4817 = vmatpush2.bf16.msra.mxu0 %v3656
  %4818 = vmatprep.subr.bf16.mxu0 0
  %4819 = vmatpush2.bf16.msra.mxu0 %v3655
  %4820 = vmatprep.subr.bf16.mxu0 0
  %4821 = vmatpush2.bf16.msra.mxu0 %v3654
  %4822 = vmatprep.mubr.bf16.mxu0 %v1158
  %4823 = vmatmul.mubr.bf16.gmra.mxu0 %v1156
  %v4824 = vpop.f32.mrf.mxu0
  %v4825 = vadd.f32 %v4785, %v4824
  %v4826 = vpop.f32.mrf.mxu0
  %v4827 = vpop.f32.mrf.mxu0
  %v4828 = vpop.f32.mrf.mxu0
  %4829 = vdwg.mxu0
  %4830 = vmatprep.subr.bf16.mxu0 0
  %4831 = vmatpush1.bf16.msra.mxu0 %v3669
  %4832 = vmatprep.subr.bf16.mxu0 0
  %4833 = vmatpush1.bf16.msra.mxu0 %v3668
  %4834 = vmatprep.subr.bf16.mxu0 0
  %4835 = vmatpush1.bf16.msra.mxu0 %v3667
  %4836 = vmatprep.subr.bf16.mxu0 0
  %4837 = vmatpush1.bf16.msra.mxu0 %v3666
  %4838 = vmatprep.subr.bf16.mxu0 0
  %4839 = vmatpush1.bf16.msra.mxu0 %v3665
  %4840 = vmatprep.subr.bf16.mxu0 0
  %4841 = vmatpush1.bf16.msra.mxu0 %v3664
  %4842 = vmatprep.subr.bf16.mxu0 0
  %4843 = vmatpush1.bf16.msra.mxu0 %v3663
  %4844 = vmatprep.subr.bf16.mxu0 0
  %4845 = vmatpush1.bf16.msra.mxu0 %v3662
  %4846 = vmatprep.subr.bf16.mxu0 0
  %4847 = vmatpush2.bf16.msra.mxu0 %v3677
  %4848 = vmatprep.subr.bf16.mxu0 0
  %4849 = vmatpush2.bf16.msra.mxu0 %v3676
  %4850 = vmatprep.subr.bf16.mxu0 0
  %4851 = vmatpush2.bf16.msra.mxu0 %v3675
  %4852 = vmatprep.subr.bf16.mxu0 0
  %4853 = vmatpush2.bf16.msra.mxu0 %v3674
  %4854 = vmatprep.subr.bf16.mxu0 0
  %4855 = vmatpush2.bf16.msra.mxu0 %v3673
  %4856 = vmatprep.subr.bf16.mxu0 0
  %4857 = vmatpush2.bf16.msra.mxu0 %v3672
  %4858 = vmatprep.subr.bf16.mxu0 0
  %4859 = vmatpush2.bf16.msra.mxu0 %v3671
  %4860 = vmatprep.subr.bf16.mxu0 0
  %4861 = vmatpush2.bf16.msra.mxu0 %v3670
  %4862 = vmatprep.mubr.bf16.mxu0 %v1155
  %4863 = vmatmul.mubr.bf16.gmra.mxu0 %v1141
  %v4864 = vpop.f32.mrf.mxu0
  %v4865 = vadd.f32 %v4825, %v4864
  %v4866 = vpop.f32.mrf.mxu0
  %v4867 = vpop.f32.mrf.mxu0
  %v4868 = vpop.f32.mrf.mxu0
  %4869 = vdwg.mxu0
  %4870 = vmatprep.subr.bf16.mxu0 0
  %4871 = vmatpush1.bf16.msra.mxu0 %v3685
  %4872 = vmatprep.subr.bf16.mxu0 0
  %4873 = vmatpush1.bf16.msra.mxu0 %v3684
  %4874 = vmatprep.subr.bf16.mxu0 0
  %4875 = vmatpush1.bf16.msra.mxu0 %v3683
  %4876 = vmatprep.subr.bf16.mxu0 0
  %4877 = vmatpush1.bf16.msra.mxu0 %v3682
  %4878 = vmatprep.subr.bf16.mxu0 0
  %4879 = vmatpush1.bf16.msra.mxu0 %v3681
  %4880 = vmatprep.subr.bf16.mxu0 0
  %4881 = vmatpush1.bf16.msra.mxu0 %v3680
  %4882 = vmatprep.subr.bf16.mxu0 0
  %4883 = vmatpush1.bf16.msra.mxu0 %v3679
  %4884 = vmatprep.subr.bf16.mxu0 0
  %4885 = vmatpush1.bf16.msra.mxu0 %v3678
  %4886 = vmatprep.subr.bf16.mxu0 0
  %4887 = vmatpush2.bf16.msra.mxu0 %v3693
  %4888 = vmatprep.subr.bf16.mxu0 0
  %4889 = vmatpush2.bf16.msra.mxu0 %v3692
  %4890 = vmatprep.subr.bf16.mxu0 0
  %4891 = vmatpush2.bf16.msra.mxu0 %v3691
  %4892 = vmatprep.subr.bf16.mxu0 0
  %4893 = vmatpush2.bf16.msra.mxu0 %v3690
  %4894 = vmatprep.subr.bf16.mxu0 0
  %4895 = vmatpush2.bf16.msra.mxu0 %v3689
  %4896 = vmatprep.subr.bf16.mxu0 0
  %4897 = vmatpush2.bf16.msra.mxu0 %v3688
  %4898 = vmatprep.subr.bf16.mxu0 0
  %4899 = vmatpush2.bf16.msra.mxu0 %v3687
  %4900 = vmatprep.subr.bf16.mxu0 0
  %4901 = vmatpush2.bf16.msra.mxu0 %v3686
  %4902 = vmatprep.mubr.bf16.mxu0 %v1159
  %4903 = vmatmul.mubr.bf16.gmra.mxu0 %v1157
  %v4904 = vpop.f32.mrf.mxu0
  %v4905 = vadd.f32 %v4865, %v4904
  %v4906 = vpop.f32.mrf.mxu0
  %v4907 = vpop.f32.mrf.mxu0
  %v4908 = vpop.f32.mrf.mxu0
  %4909 = vdwg.mxu0
  %4910 = vmatprep.subr.bf16.mxu0 0
  %4911 = vmatpush1.bf16.msra.mxu0 %v3701
  %4912 = vmatprep.subr.bf16.mxu0 0
  %4913 = vmatpush1.bf16.msra.mxu0 %v3700
  %4914 = vmatprep.subr.bf16.mxu0 0
  %4915 = vmatpush1.bf16.msra.mxu0 %v3699
  %4916 = vmatprep.subr.bf16.mxu0 0
  %4917 = vmatpush1.bf16.msra.mxu0 %v3698
  %4918 = vmatprep.subr.bf16.mxu0 0
  %4919 = vmatpush1.bf16.msra.mxu0 %v3697
  %4920 = vmatprep.subr.bf16.mxu0 0
  %4921 = vmatpush1.bf16.msra.mxu0 %v3696
  %4922 = vmatprep.subr.bf16.mxu0 0
  %4923 = vmatpush1.bf16.msra.mxu0 %v3695
  %4924 = vmatprep.subr.bf16.mxu0 0
  %4925 = vmatpush1.bf16.msra.mxu0 %v3694
  %4926 = vmatprep.subr.bf16.mxu0 0
  %4927 = vmatpush2.bf16.msra.mxu0 %v3709
  %4928 = vmatprep.subr.bf16.mxu0 0
  %4929 = vmatpush2.bf16.msra.mxu0 %v3708
  %4930 = vmatprep.subr.bf16.mxu0 0
  %4931 = vmatpush2.bf16.msra.mxu0 %v3707
  %4932 = vmatprep.subr.bf16.mxu0 0
  %4933 = vmatpush2.bf16.msra.mxu0 %v3706
  %4934 = vmatprep.subr.bf16.mxu0 0
  %4935 = vmatpush2.bf16.msra.mxu0 %v3705
  %4936 = vmatprep.subr.bf16.mxu0 0
  %4937 = vmatpush2.bf16.msra.mxu0 %v3704
  %4938 = vmatprep.subr.bf16.mxu0 0
  %4939 = vmatpush2.bf16.msra.mxu0 %v3703
  %4940 = vmatprep.subr.bf16.mxu0 0
  %4941 = vmatpush2.bf16.msra.mxu0 %v3702
  %4942 = vmatprep.mubr.bf16.mxu0 %v1197
  %4943 = vmatmul.mubr.bf16.gmra.mxu0 %v1183
  %v4944 = vpop.f32.mrf.mxu0
  %v4945 = vadd.f32 %v4905, %v4944
  %v4946 = vpop.f32.mrf.mxu0
  %v4947 = vpop.f32.mrf.mxu0
  %v4948 = vpop.f32.mrf.mxu0
  %4949 = vdwg.mxu0
  %4950 = vmatprep.subr.bf16.mxu0 0
  %4951 = vmatpush1.bf16.msra.mxu0 %v3717
  %4952 = vmatprep.subr.bf16.mxu0 0
  %4953 = vmatpush1.bf16.msra.mxu0 %v3716
  %4954 = vmatprep.subr.bf16.mxu0 0
  %4955 = vmatpush1.bf16.msra.mxu0 %v3715
  %4956 = vmatprep.subr.bf16.mxu0 0
  %4957 = vmatpush1.bf16.msra.mxu0 %v3714
  %4958 = vmatprep.subr.bf16.mxu0 0
  %4959 = vmatpush1.bf16.msra.mxu0 %v3713
  %4960 = vmatprep.subr.bf16.mxu0 0
  %4961 = vmatpush1.bf16.msra.mxu0 %v3712
  %4962 = vmatprep.subr.bf16.mxu0 0
  %4963 = vmatpush1.bf16.msra.mxu0 %v3711
  %4964 = vmatprep.subr.bf16.mxu0 0
  %4965 = vmatpush1.bf16.msra.mxu0 %v3710
  %4966 = vmatprep.subr.bf16.mxu0 0
  %4967 = vmatpush2.bf16.msra.mxu0 %v3725
  %4968 = vmatprep.subr.bf16.mxu0 0
  %4969 = vmatpush2.bf16.msra.mxu0 %v3724
  %4970 = vmatprep.subr.bf16.mxu0 0
  %4971 = vmatpush2.bf16.msra.mxu0 %v3723
  %4972 = vmatprep.subr.bf16.mxu0 0
  %4973 = vmatpush2.bf16.msra.mxu0 %v3722
  %4974 = vmatprep.subr.bf16.mxu0 0
  %4975 = vmatpush2.bf16.msra.mxu0 %v3721
  %4976 = vmatprep.subr.bf16.mxu0 0
  %4977 = vmatpush2.bf16.msra.mxu0 %v3720
  %4978 = vmatprep.subr.bf16.mxu0 0
  %4979 = vmatpush2.bf16.msra.mxu0 %v3719
  %4980 = vmatprep.subr.bf16.mxu0 0
  %4981 = vmatpush2.bf16.msra.mxu0 %v3718
  %4982 = vmatprep.mubr.bf16.mxu0 %v1207
  %4983 = vmatmul.mubr.bf16.gmra.mxu0 %v1205
  %v4984 = vpop.f32.mrf.mxu0
  %v4985 = vadd.f32 %v4945, %v4984
  %v4986 = vpop.f32.mrf.mxu0
  %v4987 = vpop.f32.mrf.mxu0
  %v4988 = vpop.f32.mrf.mxu0
  %4989 = vdwg.mxu0
  %4990 = vmatprep.subr.bf16.mxu0 0
  %4991 = vmatpush1.bf16.msra.mxu0 %v3733
  %4992 = vmatprep.subr.bf16.mxu0 0
  %4993 = vmatpush1.bf16.msra.mxu0 %v3732
  %4994 = vmatprep.subr.bf16.mxu0 0
  %4995 = vmatpush1.bf16.msra.mxu0 %v3731
  %4996 = vmatprep.subr.bf16.mxu0 0
  %4997 = vmatpush1.bf16.msra.mxu0 %v3730
  %4998 = vmatprep.subr.bf16.mxu0 0
  %4999 = vmatpush1.bf16.msra.mxu0 %v3729
  %5000 = vmatprep.subr.bf16.mxu0 0
  %5001 = vmatpush1.bf16.msra.mxu0 %v3728
  %5002 = vmatprep.subr.bf16.mxu0 0
  %5003 = vmatpush1.bf16.msra.mxu0 %v3727
  %5004 = vmatprep.subr.bf16.mxu0 0
  %5005 = vmatpush1.bf16.msra.mxu0 %v3726
  %5006 = vmatprep.subr.bf16.mxu0 0
  %5007 = vmatpush2.bf16.msra.mxu0 %v3741
  %5008 = vmatprep.subr.bf16.mxu0 0
  %5009 = vmatpush2.bf16.msra.mxu0 %v3740
  %5010 = vmatprep.subr.bf16.mxu0 0
  %5011 = vmatpush2.bf16.msra.mxu0 %v3739
  %5012 = vmatprep.subr.bf16.mxu0 0
  %5013 = vmatpush2.bf16.msra.mxu0 %v3738
  %5014 = vmatprep.subr.bf16.mxu0 0
  %5015 = vmatpush2.bf16.msra.mxu0 %v3737
  %5016 = vmatprep.subr.bf16.mxu0 0
  %5017 = vmatpush2.bf16.msra.mxu0 %v3736
  %5018 = vmatprep.subr.bf16.mxu0 0
  %5019 = vmatpush2.bf16.msra.mxu0 %v3735
  %5020 = vmatprep.subr.bf16.mxu0 0
  %5021 = vmatpush2.bf16.msra.mxu0 %v3734
  %5022 = vmatprep.mubr.bf16.mxu0 %v1204
  %5023 = vmatmul.mubr.bf16.gmra.mxu0 %v1190
  %v5024 = vpop.f32.mrf.mxu0
  %v5025 = vadd.f32 %v4985, %v5024
  %v5026 = vpop.f32.mrf.mxu0
  %v5027 = vpop.f32.mrf.mxu0
  %v5028 = vpop.f32.mrf.mxu0
  %5029 = vdwg.mxu0
  %5030 = vmatprep.subr.bf16.mxu0 0
  %5031 = vmatpush1.bf16.msra.mxu0 %v3749
  %5032 = vmatprep.subr.bf16.mxu0 0
  %5033 = vmatpush1.bf16.msra.mxu0 %v3748
  %5034 = vmatprep.subr.bf16.mxu0 0
  %5035 = vmatpush1.bf16.msra.mxu0 %v3747
  %5036 = vmatprep.subr.bf16.mxu0 0
  %5037 = vmatpush1.bf16.msra.mxu0 %v3746
  %5038 = vmatprep.subr.bf16.mxu0 0
  %5039 = vmatpush1.bf16.msra.mxu0 %v3745
  %5040 = vmatprep.subr.bf16.mxu0 0
  %5041 = vmatpush1.bf16.msra.mxu0 %v3744
  %5042 = vmatprep.subr.bf16.mxu0 0
  %5043 = vmatpush1.bf16.msra.mxu0 %v3743
  %5044 = vmatprep.subr.bf16.mxu0 0
  %5045 = vmatpush1.bf16.msra.mxu0 %v3742
  %5046 = vmatprep.subr.bf16.mxu0 0
  %5047 = vmatpush2.bf16.msra.mxu0 %v3757
  %5048 = vmatprep.subr.bf16.mxu0 0
  %5049 = vmatpush2.bf16.msra.mxu0 %v3756
  %5050 = vmatprep.subr.bf16.mxu0 0
  %5051 = vmatpush2.bf16.msra.mxu0 %v3755
  %5052 = vmatprep.subr.bf16.mxu0 0
  %5053 = vmatpush2.bf16.msra.mxu0 %v3754
  %5054 = vmatprep.subr.bf16.mxu0 0
  %5055 = vmatpush2.bf16.msra.mxu0 %v3753
  %5056 = vmatprep.subr.bf16.mxu0 0
  %5057 = vmatpush2.bf16.msra.mxu0 %v3752
  %5058 = vmatprep.subr.bf16.mxu0 0
  %5059 = vmatpush2.bf16.msra.mxu0 %v3751
  %5060 = vmatprep.subr.bf16.mxu0 0
  %5061 = vmatpush2.bf16.msra.mxu0 %v3750
  %5062 = vmatprep.mubr.bf16.mxu0 %v1208
  %5063 = vmatmul.mubr.bf16.gmra.mxu0 %v1206
  %v5064 = vpop.f32.mrf.mxu0
  %v5065 = vadd.f32 %v5025, %v5064
  %v5066 = vpop.f32.mrf.mxu0
  %v5067 = vpop.f32.mrf.mxu0
  %v5068 = vpop.f32.mrf.mxu0
  %5069 = vdwg.mxu0
  %5070 = vmatprep.subr.bf16.mxu0 0
  %5071 = vmatpush1.bf16.msra.mxu0 %v3765
  %5072 = vmatprep.subr.bf16.mxu0 0
  %5073 = vmatpush1.bf16.msra.mxu0 %v3764
  %5074 = vmatprep.subr.bf16.mxu0 0
  %5075 = vmatpush1.bf16.msra.mxu0 %v3763
  %5076 = vmatprep.subr.bf16.mxu0 0
  %5077 = vmatpush1.bf16.msra.mxu0 %v3762
  %5078 = vmatprep.subr.bf16.mxu0 0
  %5079 = vmatpush1.bf16.msra.mxu0 %v3761
  %5080 = vmatprep.subr.bf16.mxu0 0
  %5081 = vmatpush1.bf16.msra.mxu0 %v3760
  %5082 = vmatprep.subr.bf16.mxu0 0
  %5083 = vmatpush1.bf16.msra.mxu0 %v3759
  %5084 = vmatprep.subr.bf16.mxu0 0
  %5085 = vmatpush1.bf16.msra.mxu0 %v3758
  %5086 = vmatprep.subr.bf16.mxu0 0
  %5087 = vmatpush2.bf16.msra.mxu0 %v3773
  %5088 = vmatprep.subr.bf16.mxu0 0
  %5089 = vmatpush2.bf16.msra.mxu0 %v3772
  %5090 = vmatprep.subr.bf16.mxu0 0
  %5091 = vmatpush2.bf16.msra.mxu0 %v3771
  %5092 = vmatprep.subr.bf16.mxu0 0
  %5093 = vmatpush2.bf16.msra.mxu0 %v3770
  %5094 = vmatprep.subr.bf16.mxu0 0
  %5095 = vmatpush2.bf16.msra.mxu0 %v3769
  %5096 = vmatprep.subr.bf16.mxu0 0
  %5097 = vmatpush2.bf16.msra.mxu0 %v3768
  %5098 = vmatprep.subr.bf16.mxu0 0
  %5099 = vmatpush2.bf16.msra.mxu0 %v3767
  %5100 = vmatprep.subr.bf16.mxu0 0
  %5101 = vmatpush2.bf16.msra.mxu0 %v3766
  %5102 = vmatprep.mubr.bf16.mxu0 %v1246
  %5103 = vmatmul.mubr.bf16.gmra.mxu0 %v1232
  %v5104 = vpop.f32.mrf.mxu0
  %v5105 = vadd.f32 %v5065, %v5104
  %v5106 = vpop.f32.mrf.mxu0
  %v5107 = vpop.f32.mrf.mxu0
  %v5108 = vpop.f32.mrf.mxu0
  %5109 = vdwg.mxu0
  %5110 = vmatprep.subr.bf16.mxu0 0
  %5111 = vmatpush1.bf16.msra.mxu0 %v3781
  %5112 = vmatprep.subr.bf16.mxu0 0
  %5113 = vmatpush1.bf16.msra.mxu0 %v3780
  %5114 = vmatprep.subr.bf16.mxu0 0
  %5115 = vmatpush1.bf16.msra.mxu0 %v3779
  %5116 = vmatprep.subr.bf16.mxu0 0
  %5117 = vmatpush1.bf16.msra.mxu0 %v3778
  %5118 = vmatprep.subr.bf16.mxu0 0
  %5119 = vmatpush1.bf16.msra.mxu0 %v3777
  %5120 = vmatprep.subr.bf16.mxu0 0
  %5121 = vmatpush1.bf16.msra.mxu0 %v3776
  %5122 = vmatprep.subr.bf16.mxu0 0
  %5123 = vmatpush1.bf16.msra.mxu0 %v3775
  %5124 = vmatprep.subr.bf16.mxu0 0
  %5125 = vmatpush1.bf16.msra.mxu0 %v3774
  %5126 = vmatprep.subr.bf16.mxu0 0
  %5127 = vmatpush2.bf16.msra.mxu0 %v3789
  %5128 = vmatprep.subr.bf16.mxu0 0
  %5129 = vmatpush2.bf16.msra.mxu0 %v3788
  %5130 = vmatprep.subr.bf16.mxu0 0
  %5131 = vmatpush2.bf16.msra.mxu0 %v3787
  %5132 = vmatprep.subr.bf16.mxu0 0
  %5133 = vmatpush2.bf16.msra.mxu0 %v3786
  %5134 = vmatprep.subr.bf16.mxu0 0
  %5135 = vmatpush2.bf16.msra.mxu0 %v3785
  %5136 = vmatprep.subr.bf16.mxu0 0
  %5137 = vmatpush2.bf16.msra.mxu0 %v3784
  %5138 = vmatprep.subr.bf16.mxu0 0
  %5139 = vmatpush2.bf16.msra.mxu0 %v3783
  %5140 = vmatprep.subr.bf16.mxu0 0
  %5141 = vmatpush2.bf16.msra.mxu0 %v3782
  %5142 = vmatprep.mubr.bf16.mxu0 %v1256
  %5143 = vmatmul.mubr.bf16.gmra.mxu0 %v1254
  %v5144 = vpop.f32.mrf.mxu0
  %v5145 = vadd.f32 %v5105, %v5144
  %v5146 = vpop.f32.mrf.mxu0
  %v5147 = vpop.f32.mrf.mxu0
  %v5148 = vpop.f32.mrf.mxu0
  %5149 = vdwg.mxu0
  %5150 = vmatprep.subr.bf16.mxu0 0
  %5151 = vmatpush1.bf16.msra.mxu0 %v3797
  %5152 = vmatprep.subr.bf16.mxu0 0
  %5153 = vmatpush1.bf16.msra.mxu0 %v3796
  %5154 = vmatprep.subr.bf16.mxu0 0
  %5155 = vmatpush1.bf16.msra.mxu0 %v3795
  %5156 = vmatprep.subr.bf16.mxu0 0
  %5157 = vmatpush1.bf16.msra.mxu0 %v3794
  %5158 = vmatprep.subr.bf16.mxu0 0
  %5159 = vmatpush1.bf16.msra.mxu0 %v3793
  %5160 = vmatprep.subr.bf16.mxu0 0
  %5161 = vmatpush1.bf16.msra.mxu0 %v3792
  %5162 = vmatprep.subr.bf16.mxu0 0
  %5163 = vmatpush1.bf16.msra.mxu0 %v3791
  %5164 = vmatprep.subr.bf16.mxu0 0
  %5165 = vmatpush1.bf16.msra.mxu0 %v3790
  %5166 = vmatprep.subr.bf16.mxu0 0
  %5167 = vmatpush2.bf16.msra.mxu0 %v3805
  %5168 = vmatprep.subr.bf16.mxu0 0
  %5169 = vmatpush2.bf16.msra.mxu0 %v3804
  %5170 = vmatprep.subr.bf16.mxu0 0
  %5171 = vmatpush2.bf16.msra.mxu0 %v3803
  %5172 = vmatprep.subr.bf16.mxu0 0
  %5173 = vmatpush2.bf16.msra.mxu0 %v3802
  %5174 = vmatprep.subr.bf16.mxu0 0
  %5175 = vmatpush2.bf16.msra.mxu0 %v3801
  %5176 = vmatprep.subr.bf16.mxu0 0
  %5177 = vmatpush2.bf16.msra.mxu0 %v3800
  %5178 = vmatprep.subr.bf16.mxu0 0
  %5179 = vmatpush2.bf16.msra.mxu0 %v3799
  %5180 = vmatprep.subr.bf16.mxu0 0
  %5181 = vmatpush2.bf16.msra.mxu0 %v3798
  %5182 = vmatprep.mubr.bf16.mxu0 %v1253
  %5183 = vmatmul.mubr.bf16.gmra.mxu0 %v1239
  %v5184 = vpop.f32.mrf.mxu0
  %v5185 = vadd.f32 %v5145, %v5184
  %v5186 = vpop.f32.mrf.mxu0
  %v5187 = vpop.f32.mrf.mxu0
  %v5188 = vpop.f32.mrf.mxu0
  %5189 = vdwg.mxu0
  %5190 = vmatprep.subr.bf16.mxu0 0
  %5191 = vmatpush1.bf16.msra.mxu0 %v3813
  %5192 = vmatprep.subr.bf16.mxu0 0
  %5193 = vmatpush1.bf16.msra.mxu0 %v3812
  %5194 = vmatprep.subr.bf16.mxu0 0
  %5195 = vmatpush1.bf16.msra.mxu0 %v3811
  %5196 = vmatprep.subr.bf16.mxu0 0
  %5197 = vmatpush1.bf16.msra.mxu0 %v3810
  %5198 = vmatprep.subr.bf16.mxu0 0
  %5199 = vmatpush1.bf16.msra.mxu0 %v3809
  %5200 = vmatprep.subr.bf16.mxu0 0
  %5201 = vmatpush1.bf16.msra.mxu0 %v3808
  %5202 = vmatprep.subr.bf16.mxu0 0
  %5203 = vmatpush1.bf16.msra.mxu0 %v3807
  %5204 = vmatprep.subr.bf16.mxu0 0
  %5205 = vmatpush1.bf16.msra.mxu0 %v3806
  %5206 = vmatprep.subr.bf16.mxu0 0
  %5207 = vmatpush2.bf16.msra.mxu0 %v3821
  %5208 = vmatprep.subr.bf16.mxu0 0
  %5209 = vmatpush2.bf16.msra.mxu0 %v3820
  %5210 = vmatprep.subr.bf16.mxu0 0
  %5211 = vmatpush2.bf16.msra.mxu0 %v3819
  %5212 = vmatprep.subr.bf16.mxu0 0
  %5213 = vmatpush2.bf16.msra.mxu0 %v3818
  %5214 = vmatprep.subr.bf16.mxu0 0
  %5215 = vmatpush2.bf16.msra.mxu0 %v3817
  %5216 = vmatprep.subr.bf16.mxu0 0
  %5217 = vmatpush2.bf16.msra.mxu0 %v3816
  %5218 = vmatprep.subr.bf16.mxu0 0
  %5219 = vmatpush2.bf16.msra.mxu0 %v3815
  %5220 = vmatprep.subr.bf16.mxu0 0
  %5221 = vmatpush2.bf16.msra.mxu0 %v3814
  %5222 = vmatprep.mubr.bf16.mxu0 %v1257
  %5223 = vmatmul.mubr.bf16.gmra.mxu0 %v1255
  %v5224 = vpop.f32.mrf.mxu0
  %v5225 = vadd.f32 %v5185, %v5224
  %v5226 = vpop.f32.mrf.mxu0
  %v5227 = vpop.f32.mrf.mxu0
  %v5228 = vpop.f32.mrf.mxu0
  %5229 = vdwg.mxu0
  %5230 = vmatprep.subr.bf16.mxu0 0
  %5231 = vmatpush1.bf16.msra.mxu0 %v3829
  %5232 = vmatprep.subr.bf16.mxu0 0
  %5233 = vmatpush1.bf16.msra.mxu0 %v3828
  %5234 = vmatprep.subr.bf16.mxu0 0
  %5235 = vmatpush1.bf16.msra.mxu0 %v3827
  %5236 = vmatprep.subr.bf16.mxu0 0
  %5237 = vmatpush1.bf16.msra.mxu0 %v3826
  %5238 = vmatprep.subr.bf16.mxu0 0
  %5239 = vmatpush1.bf16.msra.mxu0 %v3825
  %5240 = vmatprep.subr.bf16.mxu0 0
  %5241 = vmatpush1.bf16.msra.mxu0 %v3824
  %5242 = vmatprep.subr.bf16.mxu0 0
  %5243 = vmatpush1.bf16.msra.mxu0 %v3823
  %5244 = vmatprep.subr.bf16.mxu0 0
  %5245 = vmatpush1.bf16.msra.mxu0 %v3822
  %5246 = vmatprep.subr.bf16.mxu0 0
  %5247 = vmatpush2.bf16.msra.mxu0 %v3837
  %5248 = vmatprep.subr.bf16.mxu0 0
  %5249 = vmatpush2.bf16.msra.mxu0 %v3836
  %5250 = vmatprep.subr.bf16.mxu0 0
  %5251 = vmatpush2.bf16.msra.mxu0 %v3835
  %5252 = vmatprep.subr.bf16.mxu0 0
  %5253 = vmatpush2.bf16.msra.mxu0 %v3834
  %5254 = vmatprep.subr.bf16.mxu0 0
  %5255 = vmatpush2.bf16.msra.mxu0 %v3833
  %5256 = vmatprep.subr.bf16.mxu0 0
  %5257 = vmatpush2.bf16.msra.mxu0 %v3832
  %5258 = vmatprep.subr.bf16.mxu0 0
  %5259 = vmatpush2.bf16.msra.mxu0 %v3831
  %5260 = vmatprep.subr.bf16.mxu0 0
  %5261 = vmatpush2.bf16.msra.mxu0 %v3830
  %5262 = vmatprep.mubr.bf16.mxu0 %v1295
  %5263 = vmatmul.mubr.bf16.gmra.mxu0 %v1281
  %v5264 = vpop.f32.mrf.mxu0
  %v5265 = vadd.f32 %v5225, %v5264
  %v5266 = vpop.f32.mrf.mxu0
  %v5267 = vpop.f32.mrf.mxu0
  %v5268 = vpop.f32.mrf.mxu0
  %5269 = vdwg.mxu0
  %5270 = vmatprep.subr.bf16.mxu0 0
  %5271 = vmatpush1.bf16.msra.mxu0 %v3845
  %5272 = vmatprep.subr.bf16.mxu0 0
  %5273 = vmatpush1.bf16.msra.mxu0 %v3844
  %5274 = vmatprep.subr.bf16.mxu0 0
  %5275 = vmatpush1.bf16.msra.mxu0 %v3843
  %5276 = vmatprep.subr.bf16.mxu0 0
  %5277 = vmatpush1.bf16.msra.mxu0 %v3842
  %5278 = vmatprep.subr.bf16.mxu0 0
  %5279 = vmatpush1.bf16.msra.mxu0 %v3841
  %5280 = vmatprep.subr.bf16.mxu0 0
  %5281 = vmatpush1.bf16.msra.mxu0 %v3840
  %5282 = vmatprep.subr.bf16.mxu0 0
  %5283 = vmatpush1.bf16.msra.mxu0 %v3839
  %5284 = vmatprep.subr.bf16.mxu0 0
  %5285 = vmatpush1.bf16.msra.mxu0 %v3838
  %5286 = vmatprep.subr.bf16.mxu0 0
  %5287 = vmatpush2.bf16.msra.mxu0 %v3853
  %5288 = vmatprep.subr.bf16.mxu0 0
  %5289 = vmatpush2.bf16.msra.mxu0 %v3852
  %5290 = vmatprep.subr.bf16.mxu0 0
  %5291 = vmatpush2.bf16.msra.mxu0 %v3851
  %5292 = vmatprep.subr.bf16.mxu0 0
  %5293 = vmatpush2.bf16.msra.mxu0 %v3850
  %5294 = vmatprep.subr.bf16.mxu0 0
  %5295 = vmatpush2.bf16.msra.mxu0 %v3849
  %5296 = vmatprep.subr.bf16.mxu0 0
  %5297 = vmatpush2.bf16.msra.mxu0 %v3848
  %5298 = vmatprep.subr.bf16.mxu0 0
  %5299 = vmatpush2.bf16.msra.mxu0 %v3847
  %5300 = vmatprep.subr.bf16.mxu0 0
  %5301 = vmatpush2.bf16.msra.mxu0 %v3846
  %5302 = vmatprep.mubr.bf16.mxu0 %v1305
  %5303 = vmatmul.mubr.bf16.gmra.mxu0 %v1303
  %v5304 = vpop.f32.mrf.mxu0
  %v5305 = vadd.f32 %v5265, %v5304
  %v5306 = vpop.f32.mrf.mxu0
  %v5307 = vpop.f32.mrf.mxu0
  %v5308 = vpop.f32.mrf.mxu0
  %5309 = vdwg.mxu0
  %5310 = vmatprep.subr.bf16.mxu0 0
  %5311 = vmatpush1.bf16.msra.mxu0 %v3861
  %5312 = vmatprep.subr.bf16.mxu0 0
  %5313 = vmatpush1.bf16.msra.mxu0 %v3860
  %5314 = vmatprep.subr.bf16.mxu0 0
  %5315 = vmatpush1.bf16.msra.mxu0 %v3859
  %5316 = vmatprep.subr.bf16.mxu0 0
  %5317 = vmatpush1.bf16.msra.mxu0 %v3858
  %5318 = vmatprep.subr.bf16.mxu0 0
  %5319 = vmatpush1.bf16.msra.mxu0 %v3857
  %5320 = vmatprep.subr.bf16.mxu0 0
  %5321 = vmatpush1.bf16.msra.mxu0 %v3856
  %5322 = vmatprep.subr.bf16.mxu0 0
  %5323 = vmatpush1.bf16.msra.mxu0 %v3855
  %5324 = vmatprep.subr.bf16.mxu0 0
  %5325 = vmatpush1.bf16.msra.mxu0 %v3854
  %5326 = vmatprep.subr.bf16.mxu0 0
  %5327 = vmatpush2.bf16.msra.mxu0 %v3869
  %5328 = vmatprep.subr.bf16.mxu0 0
  %5329 = vmatpush2.bf16.msra.mxu0 %v3868
  %5330 = vmatprep.subr.bf16.mxu0 0
  %5331 = vmatpush2.bf16.msra.mxu0 %v3867
  %5332 = vmatprep.subr.bf16.mxu0 0
  %5333 = vmatpush2.bf16.msra.mxu0 %v3866
  %5334 = vmatprep.subr.bf16.mxu0 0
  %5335 = vmatpush2.bf16.msra.mxu0 %v3865
  %5336 = vmatprep.subr.bf16.mxu0 0
  %5337 = vmatpush2.bf16.msra.mxu0 %v3864
  %5338 = vmatprep.subr.bf16.mxu0 0
  %5339 = vmatpush2.bf16.msra.mxu0 %v3863
  %5340 = vmatprep.subr.bf16.mxu0 0
  %5341 = vmatpush2.bf16.msra.mxu0 %v3862
  %5342 = vmatprep.mubr.bf16.mxu0 %v1302
  %5343 = vmatmul.mubr.bf16.gmra.mxu0 %v1288
  %v5344 = vpop.f32.mrf.mxu0
  %v5345 = vadd.f32 %v5305, %v5344
  %v5346 = vpop.f32.mrf.mxu0
  %v5347 = vpop.f32.mrf.mxu0
  %v5348 = vpop.f32.mrf.mxu0
  %5349 = vdwg.mxu0
  %5350 = vmatprep.subr.bf16.mxu0 0
  %5351 = vmatpush1.bf16.msra.mxu0 %v3877
  %5352 = vmatprep.subr.bf16.mxu0 0
  %5353 = vmatpush1.bf16.msra.mxu0 %v3876
  %5354 = vmatprep.subr.bf16.mxu0 0
  %5355 = vmatpush1.bf16.msra.mxu0 %v3875
  %5356 = vmatprep.subr.bf16.mxu0 0
  %5357 = vmatpush1.bf16.msra.mxu0 %v3874
  %5358 = vmatprep.subr.bf16.mxu0 0
  %5359 = vmatpush1.bf16.msra.mxu0 %v3873
  %5360 = vmatprep.subr.bf16.mxu0 0
  %5361 = vmatpush1.bf16.msra.mxu0 %v3872
  %5362 = vmatprep.subr.bf16.mxu0 0
  %5363 = vmatpush1.bf16.msra.mxu0 %v3871
  %5364 = vmatprep.subr.bf16.mxu0 0
  %5365 = vmatpush1.bf16.msra.mxu0 %v3870
  %5366 = vmatprep.subr.bf16.mxu0 0
  %5367 = vmatpush2.bf16.msra.mxu0 %v3885
  %5368 = vmatprep.subr.bf16.mxu0 0
  %5369 = vmatpush2.bf16.msra.mxu0 %v3884
  %5370 = vmatprep.subr.bf16.mxu0 0
  %5371 = vmatpush2.bf16.msra.mxu0 %v3883
  %5372 = vmatprep.subr.bf16.mxu0 0
  %5373 = vmatpush2.bf16.msra.mxu0 %v3882
  %5374 = vmatprep.subr.bf16.mxu0 0
  %5375 = vmatpush2.bf16.msra.mxu0 %v3881
  %5376 = vmatprep.subr.bf16.mxu0 0
  %5377 = vmatpush2.bf16.msra.mxu0 %v3880
  %5378 = vmatprep.subr.bf16.mxu0 0
  %5379 = vmatpush2.bf16.msra.mxu0 %v3879
  %5380 = vmatprep.subr.bf16.mxu0 0
  %5381 = vmatpush2.bf16.msra.mxu0 %v3878
  %5382 = vmatprep.mubr.bf16.mxu0 %v1306
  %5383 = vmatmul.mubr.bf16.gmra.mxu0 %v1304
  %v5384 = vpop.f32.mrf.mxu0
  %v5385 = vadd.f32 %v5345, %v5384
  %v5386 = vpop.f32.mrf.mxu0
  %v5387 = vpop.f32.mrf.mxu0
  %v5388 = vpop.f32.mrf.mxu0
  %5389 = vdwg.mxu0
  %5390 = vmatprep.subr.bf16.mxu0 0
  %5391 = vmatpush1.bf16.msra.mxu0 %v3893
  %5392 = vmatprep.subr.bf16.mxu0 0
  %5393 = vmatpush1.bf16.msra.mxu0 %v3892
  %5394 = vmatprep.subr.bf16.mxu0 0
  %5395 = vmatpush1.bf16.msra.mxu0 %v3891
  %5396 = vmatprep.subr.bf16.mxu0 0
  %5397 = vmatpush1.bf16.msra.mxu0 %v3890
  %5398 = vmatprep.subr.bf16.mxu0 0
  %5399 = vmatpush1.bf16.msra.mxu0 %v3889
  %5400 = vmatprep.subr.bf16.mxu0 0
  %5401 = vmatpush1.bf16.msra.mxu0 %v3888
  %5402 = vmatprep.subr.bf16.mxu0 0
  %5403 = vmatpush1.bf16.msra.mxu0 %v3887
  %5404 = vmatprep.subr.bf16.mxu0 0
  %5405 = vmatpush1.bf16.msra.mxu0 %v3886
  %5406 = vmatprep.subr.bf16.mxu0 0
  %5407 = vmatpush2.bf16.msra.mxu0 %v3901
  %5408 = vmatprep.subr.bf16.mxu0 0
  %5409 = vmatpush2.bf16.msra.mxu0 %v3900
  %5410 = vmatprep.subr.bf16.mxu0 0
  %5411 = vmatpush2.bf16.msra.mxu0 %v3899
  %5412 = vmatprep.subr.bf16.mxu0 0
  %5413 = vmatpush2.bf16.msra.mxu0 %v3898
  %5414 = vmatprep.subr.bf16.mxu0 0
  %5415 = vmatpush2.bf16.msra.mxu0 %v3897
  %5416 = vmatprep.subr.bf16.mxu0 0
  %5417 = vmatpush2.bf16.msra.mxu0 %v3896
  %5418 = vmatprep.subr.bf16.mxu0 0
  %5419 = vmatpush2.bf16.msra.mxu0 %v3895
  %5420 = vmatprep.subr.bf16.mxu0 0
  %5421 = vmatpush2.bf16.msra.mxu0 %v3894
  %5422 = vmatprep.mubr.bf16.mxu0 %v1344
  %5423 = vmatmul.mubr.bf16.gmra.mxu0 %v1330
  %v5424 = vpop.f32.mrf.mxu0
  %v5425 = vadd.f32 %v5385, %v5424
  %v5426 = vpop.f32.mrf.mxu0
  %v5427 = vpop.f32.mrf.mxu0
  %v5428 = vpop.f32.mrf.mxu0
  %5429 = vdwg.mxu0
  %5430 = vmatprep.subr.bf16.mxu0 0
  %5431 = vmatpush1.bf16.msra.mxu0 %v3909
  %5432 = vmatprep.subr.bf16.mxu0 0
  %5433 = vmatpush1.bf16.msra.mxu0 %v3908
  %5434 = vmatprep.subr.bf16.mxu0 0
  %5435 = vmatpush1.bf16.msra.mxu0 %v3907
  %5436 = vmatprep.subr.bf16.mxu0 0
  %5437 = vmatpush1.bf16.msra.mxu0 %v3906
  %5438 = vmatprep.subr.bf16.mxu0 0
  %5439 = vmatpush1.bf16.msra.mxu0 %v3905
  %5440 = vmatprep.subr.bf16.mxu0 0
  %5441 = vmatpush1.bf16.msra.mxu0 %v3904
  %5442 = vmatprep.subr.bf16.mxu0 0
  %5443 = vmatpush1.bf16.msra.mxu0 %v3903
  %5444 = vmatprep.subr.bf16.mxu0 0
  %5445 = vmatpush1.bf16.msra.mxu0 %v3902
  %5446 = vmatprep.subr.bf16.mxu0 0
  %5447 = vmatpush2.bf16.msra.mxu0 %v3917
  %5448 = vmatprep.subr.bf16.mxu0 0
  %5449 = vmatpush2.bf16.msra.mxu0 %v3916
  %5450 = vmatprep.subr.bf16.mxu0 0
  %5451 = vmatpush2.bf16.msra.mxu0 %v3915
  %5452 = vmatprep.subr.bf16.mxu0 0
  %5453 = vmatpush2.bf16.msra.mxu0 %v3914
  %5454 = vmatprep.subr.bf16.mxu0 0
  %5455 = vmatpush2.bf16.msra.mxu0 %v3913
  %5456 = vmatprep.subr.bf16.mxu0 0
  %5457 = vmatpush2.bf16.msra.mxu0 %v3912
  %5458 = vmatprep.subr.bf16.mxu0 0
  %5459 = vmatpush2.bf16.msra.mxu0 %v3911
  %5460 = vmatprep.subr.bf16.mxu0 0
  %5461 = vmatpush2.bf16.msra.mxu0 %v3910
  %5462 = vmatprep.mubr.bf16.mxu0 %v1354
  %5463 = vmatmul.mubr.bf16.gmra.mxu0 %v1352
  %v5464 = vpop.f32.mrf.mxu0
  %v5465 = vadd.f32 %v5425, %v5464
  %v5466 = vpop.f32.mrf.mxu0
  %v5467 = vpop.f32.mrf.mxu0
  %v5468 = vpop.f32.mrf.mxu0
  %5469 = vdwg.mxu0
  %5470 = vmatprep.subr.bf16.mxu0 0
  %5471 = vmatpush1.bf16.msra.mxu0 %v3925
  %5472 = vmatprep.subr.bf16.mxu0 0
  %5473 = vmatpush1.bf16.msra.mxu0 %v3924
  %5474 = vmatprep.subr.bf16.mxu0 0
  %5475 = vmatpush1.bf16.msra.mxu0 %v3923
  %5476 = vmatprep.subr.bf16.mxu0 0
  %5477 = vmatpush1.bf16.msra.mxu0 %v3922
  %5478 = vmatprep.subr.bf16.mxu0 0
  %5479 = vmatpush1.bf16.msra.mxu0 %v3921
  %5480 = vmatprep.subr.bf16.mxu0 0
  %5481 = vmatpush1.bf16.msra.mxu0 %v3920
  %5482 = vmatprep.subr.bf16.mxu0 0
  %5483 = vmatpush1.bf16.msra.mxu0 %v3919
  %5484 = vmatprep.subr.bf16.mxu0 0
  %5485 = vmatpush1.bf16.msra.mxu0 %v3918
  %5486 = vmatprep.subr.bf16.mxu0 0
  %5487 = vmatpush2.bf16.msra.mxu0 %v3933
  %5488 = vmatprep.subr.bf16.mxu0 0
  %5489 = vmatpush2.bf16.msra.mxu0 %v3932
  %5490 = vmatprep.subr.bf16.mxu0 0
  %5491 = vmatpush2.bf16.msra.mxu0 %v3931
  %5492 = vmatprep.subr.bf16.mxu0 0
  %5493 = vmatpush2.bf16.msra.mxu0 %v3930
  %5494 = vmatprep.subr.bf16.mxu0 0
  %5495 = vmatpush2.bf16.msra.mxu0 %v3929
  %5496 = vmatprep.subr.bf16.mxu0 0
  %5497 = vmatpush2.bf16.msra.mxu0 %v3928
  %5498 = vmatprep.subr.bf16.mxu0 0
  %5499 = vmatpush2.bf16.msra.mxu0 %v3927
  %5500 = vmatprep.subr.bf16.mxu0 0
  %5501 = vmatpush2.bf16.msra.mxu0 %v3926
  %5502 = vmatprep.mubr.bf16.mxu0 %v1351
  %5503 = vmatmul.mubr.bf16.gmra.mxu0 %v1337
  %v5504 = vpop.f32.mrf.mxu0
  %v5505 = vadd.f32 %v5465, %v5504
  %v5506 = vpop.f32.mrf.mxu0
  %v5507 = vpop.f32.mrf.mxu0
  %v5508 = vpop.f32.mrf.mxu0
  %5509 = vdwg.mxu0
  %5510 = vmatprep.subr.bf16.mxu0 0
  %5511 = vmatpush1.bf16.msra.mxu0 %v3941
  %5512 = vmatprep.subr.bf16.mxu0 0
  %5513 = vmatpush1.bf16.msra.mxu0 %v3940
  %5514 = vmatprep.subr.bf16.mxu0 0
  %5515 = vmatpush1.bf16.msra.mxu0 %v3939
  %5516 = vmatprep.subr.bf16.mxu0 0
  %5517 = vmatpush1.bf16.msra.mxu0 %v3938
  %5518 = vmatprep.subr.bf16.mxu0 0
  %5519 = vmatpush1.bf16.msra.mxu0 %v3937
  %5520 = vmatprep.subr.bf16.mxu0 0
  %5521 = vmatpush1.bf16.msra.mxu0 %v3936
  %5522 = vmatprep.subr.bf16.mxu0 0
  %5523 = vmatpush1.bf16.msra.mxu0 %v3935
  %5524 = vmatprep.subr.bf16.mxu0 0
  %5525 = vmatpush1.bf16.msra.mxu0 %v3934
  %5526 = vmatprep.subr.bf16.mxu0 0
  %5527 = vmatpush2.bf16.msra.mxu0 %v3949
  %5528 = vmatprep.subr.bf16.mxu0 0
  %5529 = vmatpush2.bf16.msra.mxu0 %v3948
  %5530 = vmatprep.subr.bf16.mxu0 0
  %5531 = vmatpush2.bf16.msra.mxu0 %v3947
  %5532 = vmatprep.subr.bf16.mxu0 0
  %5533 = vmatpush2.bf16.msra.mxu0 %v3946
  %5534 = vmatprep.subr.bf16.mxu0 0
  %5535 = vmatpush2.bf16.msra.mxu0 %v3945
  %5536 = vmatprep.subr.bf16.mxu0 0
  %5537 = vmatpush2.bf16.msra.mxu0 %v3944
  %5538 = vmatprep.subr.bf16.mxu0 0
  %5539 = vmatpush2.bf16.msra.mxu0 %v3943
  %5540 = vmatprep.subr.bf16.mxu0 0
  %5541 = vmatpush2.bf16.msra.mxu0 %v3942
  %5542 = vmatprep.mubr.bf16.mxu0 %v1355
  %5543 = vmatmul.mubr.bf16.gmra.mxu0 %v1353
  %v5544 = vpop.f32.mrf.mxu0
  %v5545 = vadd.f32 %v5505, %v5544
  %v5546 = vpop.f32.mrf.mxu0
  %v5547 = vpop.f32.mrf.mxu0
  %v5548 = vpop.f32.mrf.mxu0
  %5549 = vdwg.mxu0
  %5550 = vmatprep.subr.bf16.mxu0 0
  %5551 = vmatpush1.bf16.msra.mxu0 %v3957
  %5552 = vmatprep.subr.bf16.mxu0 0
  %5553 = vmatpush1.bf16.msra.mxu0 %v3956
  %5554 = vmatprep.subr.bf16.mxu0 0
  %5555 = vmatpush1.bf16.msra.mxu0 %v3955
  %5556 = vmatprep.subr.bf16.mxu0 0
  %5557 = vmatpush1.bf16.msra.mxu0 %v3954
  %5558 = vmatprep.subr.bf16.mxu0 0
  %5559 = vmatpush1.bf16.msra.mxu0 %v3953
  %5560 = vmatprep.subr.bf16.mxu0 0
  %5561 = vmatpush1.bf16.msra.mxu0 %v3952
  %5562 = vmatprep.subr.bf16.mxu0 0
  %5563 = vmatpush1.bf16.msra.mxu0 %v3951
  %5564 = vmatprep.subr.bf16.mxu0 0
  %5565 = vmatpush1.bf16.msra.mxu0 %v3950
  %5566 = vmatprep.subr.bf16.mxu0 0
  %5567 = vmatpush2.bf16.msra.mxu0 %v3965
  %5568 = vmatprep.subr.bf16.mxu0 0
  %5569 = vmatpush2.bf16.msra.mxu0 %v3964
  %5570 = vmatprep.subr.bf16.mxu0 0
  %5571 = vmatpush2.bf16.msra.mxu0 %v3963
  %5572 = vmatprep.subr.bf16.mxu0 0
  %5573 = vmatpush2.bf16.msra.mxu0 %v3962
  %5574 = vmatprep.subr.bf16.mxu0 0
  %5575 = vmatpush2.bf16.msra.mxu0 %v3961
  %5576 = vmatprep.subr.bf16.mxu0 0
  %5577 = vmatpush2.bf16.msra.mxu0 %v3960
  %5578 = vmatprep.subr.bf16.mxu0 0
  %5579 = vmatpush2.bf16.msra.mxu0 %v3959
  %5580 = vmatprep.subr.bf16.mxu0 0
  %5581 = vmatpush2.bf16.msra.mxu0 %v3958
  %5582 = vmatprep.mubr.bf16.mxu0 %v1393
  %5583 = vmatmul.mubr.bf16.gmra.mxu0 %v1379
  %v5584 = vpop.f32.mrf.mxu0
  %v5585 = vadd.f32 %v5545, %v5584
  %v5586 = vpop.f32.mrf.mxu0
  %v5587 = vpop.f32.mrf.mxu0
  %v5588 = vpop.f32.mrf.mxu0
  %5589 = vdwg.mxu0
  %5590 = vmatprep.subr.bf16.mxu0 0
  %5591 = vmatpush1.bf16.msra.mxu0 %v3973
  %5592 = vmatprep.subr.bf16.mxu0 0
  %5593 = vmatpush1.bf16.msra.mxu0 %v3972
  %5594 = vmatprep.subr.bf16.mxu0 0
  %5595 = vmatpush1.bf16.msra.mxu0 %v3971
  %5596 = vmatprep.subr.bf16.mxu0 0
  %5597 = vmatpush1.bf16.msra.mxu0 %v3970
  %5598 = vmatprep.subr.bf16.mxu0 0
  %5599 = vmatpush1.bf16.msra.mxu0 %v3969
  %5600 = vmatprep.subr.bf16.mxu0 0
  %5601 = vmatpush1.bf16.msra.mxu0 %v3968
  %5602 = vmatprep.subr.bf16.mxu0 0
  %5603 = vmatpush1.bf16.msra.mxu0 %v3967
  %5604 = vmatprep.subr.bf16.mxu0 0
  %5605 = vmatpush1.bf16.msra.mxu0 %v3966
  %5606 = vmatprep.subr.bf16.mxu0 0
  %5607 = vmatpush2.bf16.msra.mxu0 %v3981
  %5608 = vmatprep.subr.bf16.mxu0 0
  %5609 = vmatpush2.bf16.msra.mxu0 %v3980
  %5610 = vmatprep.subr.bf16.mxu0 0
  %5611 = vmatpush2.bf16.msra.mxu0 %v3979
  %5612 = vmatprep.subr.bf16.mxu0 0
  %5613 = vmatpush2.bf16.msra.mxu0 %v3978
  %5614 = vmatprep.subr.bf16.mxu0 0
  %5615 = vmatpush2.bf16.msra.mxu0 %v3977
  %5616 = vmatprep.subr.bf16.mxu0 0
  %5617 = vmatpush2.bf16.msra.mxu0 %v3976
  %5618 = vmatprep.subr.bf16.mxu0 0
  %5619 = vmatpush2.bf16.msra.mxu0 %v3975
  %5620 = vmatprep.subr.bf16.mxu0 0
  %5621 = vmatpush2.bf16.msra.mxu0 %v3974
  %5622 = vmatprep.mubr.bf16.mxu0 %v1403
  %5623 = vmatmul.mubr.bf16.gmra.mxu0 %v1401
  %v5624 = vpop.f32.mrf.mxu0
  %v5625 = vadd.f32 %v5585, %v5624
  %v5626 = vpop.f32.mrf.mxu0
  %v5627 = vpop.f32.mrf.mxu0
  %v5628 = vpop.f32.mrf.mxu0
  %5629 = vdwg.mxu0
  %5630 = vmatprep.subr.bf16.mxu0 0
  %5631 = vmatpush1.bf16.msra.mxu0 %v3989
  %5632 = vmatprep.subr.bf16.mxu0 0
  %5633 = vmatpush1.bf16.msra.mxu0 %v3988
  %5634 = vmatprep.subr.bf16.mxu0 0
  %5635 = vmatpush1.bf16.msra.mxu0 %v3987
  %5636 = vmatprep.subr.bf16.mxu0 0
  %5637 = vmatpush1.bf16.msra.mxu0 %v3986
  %5638 = vmatprep.subr.bf16.mxu0 0
  %5639 = vmatpush1.bf16.msra.mxu0 %v3985
  %5640 = vmatprep.subr.bf16.mxu0 0
  %5641 = vmatpush1.bf16.msra.mxu0 %v3984
  %5642 = vmatprep.subr.bf16.mxu0 0
  %5643 = vmatpush1.bf16.msra.mxu0 %v3983
  %5644 = vmatprep.subr.bf16.mxu0 0
  %5645 = vmatpush1.bf16.msra.mxu0 %v3982
  %5646 = vmatprep.subr.bf16.mxu0 0
  %5647 = vmatpush2.bf16.msra.mxu0 %v3997
  %5648 = vmatprep.subr.bf16.mxu0 0
  %5649 = vmatpush2.bf16.msra.mxu0 %v3996
  %5650 = vmatprep.subr.bf16.mxu0 0
  %5651 = vmatpush2.bf16.msra.mxu0 %v3995
  %5652 = vmatprep.subr.bf16.mxu0 0
  %5653 = vmatpush2.bf16.msra.mxu0 %v3994
  %5654 = vmatprep.subr.bf16.mxu0 0
  %5655 = vmatpush2.bf16.msra.mxu0 %v3993
  %5656 = vmatprep.subr.bf16.mxu0 0
  %5657 = vmatpush2.bf16.msra.mxu0 %v3992
  %5658 = vmatprep.subr.bf16.mxu0 0
  %5659 = vmatpush2.bf16.msra.mxu0 %v3991
  %5660 = vmatprep.subr.bf16.mxu0 0
  %5661 = vmatpush2.bf16.msra.mxu0 %v3990
  %5662 = vmatprep.mubr.bf16.mxu0 %v1400
  %5663 = vmatmul.mubr.bf16.gmra.mxu0 %v1386
  %v5664 = vpop.f32.mrf.mxu0
  %v5665 = vadd.f32 %v5625, %v5664
  %v5666 = vpop.f32.mrf.mxu0
  %v5667 = vpop.f32.mrf.mxu0
  %v5668 = vpop.f32.mrf.mxu0
  %5669 = vdwg.mxu0
  %5670 = vmatprep.subr.bf16.mxu0 0
  %5671 = vmatpush1.bf16.msra.mxu0 %v4005
  %5672 = vmatprep.subr.bf16.mxu0 0
  %5673 = vmatpush1.bf16.msra.mxu0 %v4004
  %5674 = vmatprep.subr.bf16.mxu0 0
  %5675 = vmatpush1.bf16.msra.mxu0 %v4003
  %5676 = vmatprep.subr.bf16.mxu0 0
  %5677 = vmatpush1.bf16.msra.mxu0 %v4002
  %5678 = vmatprep.subr.bf16.mxu0 0
  %5679 = vmatpush1.bf16.msra.mxu0 %v4001
  %5680 = vmatprep.subr.bf16.mxu0 0
  %5681 = vmatpush1.bf16.msra.mxu0 %v4000
  %5682 = vmatprep.subr.bf16.mxu0 0
  %5683 = vmatpush1.bf16.msra.mxu0 %v3999
  %5684 = vmatprep.subr.bf16.mxu0 0
  %5685 = vmatpush1.bf16.msra.mxu0 %v3998
  %5686 = vmatprep.subr.bf16.mxu0 0
  %5687 = vmatpush2.bf16.msra.mxu0 %v4013
  %5688 = vmatprep.subr.bf16.mxu0 0
  %5689 = vmatpush2.bf16.msra.mxu0 %v4012
  %5690 = vmatprep.subr.bf16.mxu0 0
  %5691 = vmatpush2.bf16.msra.mxu0 %v4011
  %5692 = vmatprep.subr.bf16.mxu0 0
  %5693 = vmatpush2.bf16.msra.mxu0 %v4010
  %5694 = vmatprep.subr.bf16.mxu0 0
  %5695 = vmatpush2.bf16.msra.mxu0 %v4009
  %5696 = vmatprep.subr.bf16.mxu0 0
  %5697 = vmatpush2.bf16.msra.mxu0 %v4008
  %5698 = vmatprep.subr.bf16.mxu0 0
  %5699 = vmatpush2.bf16.msra.mxu0 %v4007
  %5700 = vmatprep.subr.bf16.mxu0 0
  %5701 = vmatpush2.bf16.msra.mxu0 %v4006
  %5702 = vmatprep.mubr.bf16.mxu0 %v1404
  %5703 = vmatmul.mubr.bf16.gmra.mxu0 %v1402
  %v5704 = vpop.f32.mrf.mxu0
  %v5705 = vadd.f32 %v5665, %v5704
  %v5706 = vpop.f32.mrf.mxu0
  %v5707 = vpop.f32.mrf.mxu0
  %v5708 = vpop.f32.mrf.mxu0
  %5709 = vdwg.mxu0
  %5710 = vmatprep.subr.bf16.mxu0 0
  %5711 = vmatpush1.bf16.msra.mxu0 %v4021
  %5712 = vmatprep.subr.bf16.mxu0 0
  %5713 = vmatpush1.bf16.msra.mxu0 %v4020
  %5714 = vmatprep.subr.bf16.mxu0 0
  %5715 = vmatpush1.bf16.msra.mxu0 %v4019
  %5716 = vmatprep.subr.bf16.mxu0 0
  %5717 = vmatpush1.bf16.msra.mxu0 %v4018
  %5718 = vmatprep.subr.bf16.mxu0 0
  %5719 = vmatpush1.bf16.msra.mxu0 %v4017
  %5720 = vmatprep.subr.bf16.mxu0 0
  %5721 = vmatpush1.bf16.msra.mxu0 %v4016
  %5722 = vmatprep.subr.bf16.mxu0 0
  %5723 = vmatpush1.bf16.msra.mxu0 %v4015
  %5724 = vmatprep.subr.bf16.mxu0 0
  %5725 = vmatpush1.bf16.msra.mxu0 %v4014
  %5726 = vmatprep.subr.bf16.mxu0 0
  %5727 = vmatpush2.bf16.msra.mxu0 %v4029
  %5728 = vmatprep.subr.bf16.mxu0 0
  %5729 = vmatpush2.bf16.msra.mxu0 %v4028
  %5730 = vmatprep.subr.bf16.mxu0 0
  %5731 = vmatpush2.bf16.msra.mxu0 %v4027
  %5732 = vmatprep.subr.bf16.mxu0 0
  %5733 = vmatpush2.bf16.msra.mxu0 %v4026
  %5734 = vmatprep.subr.bf16.mxu0 0
  %5735 = vmatpush2.bf16.msra.mxu0 %v4025
  %5736 = vmatprep.subr.bf16.mxu0 0
  %5737 = vmatpush2.bf16.msra.mxu0 %v4024
  %5738 = vmatprep.subr.bf16.mxu0 0
  %5739 = vmatpush2.bf16.msra.mxu0 %v4023
  %5740 = vmatprep.subr.bf16.mxu0 0
  %5741 = vmatpush2.bf16.msra.mxu0 %v4022
  %5742 = vmatprep.mubr.bf16.mxu0 %v1442
  %5743 = vmatmul.mubr.bf16.gmra.mxu0 %v1428
  %v5744 = vpop.f32.mrf.mxu0
  %v5745 = vadd.f32 %v5705, %v5744
  %v5746 = vpop.f32.mrf.mxu0
  %v5747 = vpop.f32.mrf.mxu0
  %v5748 = vpop.f32.mrf.mxu0
  %5749 = vdwg.mxu0
  %5750 = vmatprep.subr.bf16.mxu0 0
  %5751 = vmatpush1.bf16.msra.mxu0 %v4037
  %5752 = vmatprep.subr.bf16.mxu0 0
  %5753 = vmatpush1.bf16.msra.mxu0 %v4036
  %5754 = vmatprep.subr.bf16.mxu0 0
  %5755 = vmatpush1.bf16.msra.mxu0 %v4035
  %5756 = vmatprep.subr.bf16.mxu0 0
  %5757 = vmatpush1.bf16.msra.mxu0 %v4034
  %5758 = vmatprep.subr.bf16.mxu0 0
  %5759 = vmatpush1.bf16.msra.mxu0 %v4033
  %5760 = vmatprep.subr.bf16.mxu0 0
  %5761 = vmatpush1.bf16.msra.mxu0 %v4032
  %5762 = vmatprep.subr.bf16.mxu0 0
  %5763 = vmatpush1.bf16.msra.mxu0 %v4031
  %5764 = vmatprep.subr.bf16.mxu0 0
  %5765 = vmatpush1.bf16.msra.mxu0 %v4030
  %5766 = vmatprep.subr.bf16.mxu0 0
  %5767 = vmatpush2.bf16.msra.mxu0 %v4045
  %5768 = vmatprep.subr.bf16.mxu0 0
  %5769 = vmatpush2.bf16.msra.mxu0 %v4044
  %5770 = vmatprep.subr.bf16.mxu0 0
  %5771 = vmatpush2.bf16.msra.mxu0 %v4043
  %5772 = vmatprep.subr.bf16.mxu0 0
  %5773 = vmatpush2.bf16.msra.mxu0 %v4042
  %5774 = vmatprep.subr.bf16.mxu0 0
  %5775 = vmatpush2.bf16.msra.mxu0 %v4041
  %5776 = vmatprep.subr.bf16.mxu0 0
  %5777 = vmatpush2.bf16.msra.mxu0 %v4040
  %5778 = vmatprep.subr.bf16.mxu0 0
  %5779 = vmatpush2.bf16.msra.mxu0 %v4039
  %5780 = vmatprep.subr.bf16.mxu0 0
  %5781 = vmatpush2.bf16.msra.mxu0 %v4038
  %5782 = vmatprep.mubr.bf16.mxu0 %v1452
  %5783 = vmatmul.mubr.bf16.gmra.mxu0 %v1450
  %v5784 = vpop.f32.mrf.mxu0
  %v5785 = vadd.f32 %v5745, %v5784
  %v5786 = vpop.f32.mrf.mxu0
  %v5787 = vpop.f32.mrf.mxu0
  %v5788 = vpop.f32.mrf.mxu0
  %5789 = vdwg.mxu0
  %5790 = vmatprep.subr.bf16.mxu0 0
  %5791 = vmatpush1.bf16.msra.mxu0 %v4053
  %5792 = vmatprep.subr.bf16.mxu0 0
  %5793 = vmatpush1.bf16.msra.mxu0 %v4052
  %5794 = vmatprep.subr.bf16.mxu0 0
  %5795 = vmatpush1.bf16.msra.mxu0 %v4051
  %5796 = vmatprep.subr.bf16.mxu0 0
  %5797 = vmatpush1.bf16.msra.mxu0 %v4050
  %5798 = vmatprep.subr.bf16.mxu0 0
  %5799 = vmatpush1.bf16.msra.mxu0 %v4049
  %5800 = vmatprep.subr.bf16.mxu0 0
  %5801 = vmatpush1.bf16.msra.mxu0 %v4048
  %5802 = vmatprep.subr.bf16.mxu0 0
  %5803 = vmatpush1.bf16.msra.mxu0 %v4047
  %5804 = vmatprep.subr.bf16.mxu0 0
  %5805 = vmatpush1.bf16.msra.mxu0 %v4046
  %5806 = vmatprep.subr.bf16.mxu0 0
  %5807 = vmatpush2.bf16.msra.mxu0 %v4061
  %5808 = vmatprep.subr.bf16.mxu0 0
  %5809 = vmatpush2.bf16.msra.mxu0 %v4060
  %5810 = vmatprep.subr.bf16.mxu0 0
  %5811 = vmatpush2.bf16.msra.mxu0 %v4059
  %5812 = vmatprep.subr.bf16.mxu0 0
  %5813 = vmatpush2.bf16.msra.mxu0 %v4058
  %5814 = vmatprep.subr.bf16.mxu0 0
  %5815 = vmatpush2.bf16.msra.mxu0 %v4057
  %5816 = vmatprep.subr.bf16.mxu0 0
  %5817 = vmatpush2.bf16.msra.mxu0 %v4056
  %5818 = vmatprep.subr.bf16.mxu0 0
  %5819 = vmatpush2.bf16.msra.mxu0 %v4055
  %5820 = vmatprep.subr.bf16.mxu0 0
  %5821 = vmatpush2.bf16.msra.mxu0 %v4054
  %5822 = vmatprep.mubr.bf16.mxu0 %v1449
  %5823 = vmatmul.mubr.bf16.gmra.mxu0 %v1435
  %v5824 = vpop.f32.mrf.mxu0
  %v5825 = vadd.f32 %v5785, %v5824
  %v5826 = vpop.f32.mrf.mxu0
  %v5827 = vpop.f32.mrf.mxu0
  %v5828 = vpop.f32.mrf.mxu0
  %5829 = vdwg.mxu0
  %5830 = vmatprep.subr.bf16.mxu0 0
  %5831 = vmatpush1.bf16.msra.mxu0 %v4069
  %5832 = vmatprep.subr.bf16.mxu0 0
  %5833 = vmatpush1.bf16.msra.mxu0 %v4068
  %5834 = vmatprep.subr.bf16.mxu0 0
  %5835 = vmatpush1.bf16.msra.mxu0 %v4067
  %5836 = vmatprep.subr.bf16.mxu0 0
  %5837 = vmatpush1.bf16.msra.mxu0 %v4066
  %5838 = vmatprep.subr.bf16.mxu0 0
  %5839 = vmatpush1.bf16.msra.mxu0 %v4065
  %5840 = vmatprep.subr.bf16.mxu0 0
  %5841 = vmatpush1.bf16.msra.mxu0 %v4064
  %5842 = vmatprep.subr.bf16.mxu0 0
  %5843 = vmatpush1.bf16.msra.mxu0 %v4063
  %5844 = vmatprep.subr.bf16.mxu0 0
  %5845 = vmatpush1.bf16.msra.mxu0 %v4062
  %5846 = vmatprep.subr.bf16.mxu0 0
  %5847 = vmatpush2.bf16.msra.mxu0 %v4077
  %5848 = vmatprep.subr.bf16.mxu0 0
  %5849 = vmatpush2.bf16.msra.mxu0 %v4076
  %5850 = vmatprep.subr.bf16.mxu0 0
  %5851 = vmatpush2.bf16.msra.mxu0 %v4075
  %5852 = vmatprep.subr.bf16.mxu0 0
  %5853 = vmatpush2.bf16.msra.mxu0 %v4074
  %5854 = vmatprep.subr.bf16.mxu0 0
  %5855 = vmatpush2.bf16.msra.mxu0 %v4073
  %5856 = vmatprep.subr.bf16.mxu0 0
  %5857 = vmatpush2.bf16.msra.mxu0 %v4072
  %5858 = vmatprep.subr.bf16.mxu0 0
  %5859 = vmatpush2.bf16.msra.mxu0 %v4071
  %5860 = vmatprep.subr.bf16.mxu0 0
  %5861 = vmatpush2.bf16.msra.mxu0 %v4070
  %5862 = vmatprep.mubr.bf16.mxu0 %v1453
  %5863 = vmatmul.mubr.bf16.gmra.mxu0 %v1451
  %v5864 = vpop.f32.mrf.mxu0
  %v5865 = vadd.f32 %v5825, %v5864
  %v5866 = vpop.f32.mrf.mxu0
  %v5867 = vpop.f32.mrf.mxu0
  %v5868 = vpop.f32.mrf.mxu0
  %5869 = vdwg.mxu0
  %5870 = vst [vmem:[%s3] sm:$0x3] %v5865
  // Predicated region
  $region14: #{chessnet_forward.3} parent=0 // pred_check
    _
  $region15: #{chessnet_forward.3} parent=0 // pred_check_branch
    %5872 = sbr.rel (0) target = $region17
  $region16: #{chessnet_forward.3} parent=0 // pred_region
    _
  $region17: #{chessnet_forward.3} parent=0 // pred_fallthru
    _
  // Predicated region
  $region18: #{chessnet_forward.3} parent=0 // pred_check
    _
  $region19: #{chessnet_forward.3} parent=0 // pred_check_branch
    %5874 = sbr.rel (0) target = $region21
  $region20: #{chessnet_forward.3} parent=0 // pred_region
    _
  $region21: #{chessnet_forward.3} parent=0 // pred_fallthru
    _

</llo_original>
